<compile_context>
chip_gen: v7x
topology: tpu7x:2x2x1
jax: 0.10.0
libtpu: 0.0.40
codegen_flags: <defaults>
</compile_context>

<pallas_src>
import math

import jax
import jax.numpy as jnp
from jax.experimental import pallas as pl
from jax.experimental.pallas import tpu as pltpu

# ----------------------------- config (small) -------------------------------
N_EMBED = 32
NUM_HEADS = 4
H_SIZE = N_EMBED // NUM_HEADS
NUM_LAYER = 2
VOCAB_SIZE = 64
VOCAB_PAD = 128            # lane-dense logits store; sliced back outside
MAX_SEQ_LEN = 16
LN_EPS = 1e-5


# --------------------------- in-kernel helpers -------------------------------
def _layernorm(x, g, b):
    mean = jnp.mean(x, axis=-1, keepdims=True)
    cen = x - mean
    var = jnp.mean(cen * cen, axis=-1, keepdims=True)
    return cen * jax.lax.rsqrt(var + LN_EPS) * g + b


def _mh_attention(q, k, v, causal):
    """q: (Tq, C), k/v: (Tk, C) -> (Tq, C).  Static per-head unroll."""
    Tq, Tk = q.shape[0], k.shape[0]
    scale = float(H_SIZE) ** (-0.5)
    if causal:
        row = jax.lax.broadcasted_iota(jnp.int32, (Tq, Tk), 0)
        col = jax.lax.broadcasted_iota(jnp.int32, (Tq, Tk), 1)
        keep = col <= row
    outs = []
    for h in range(NUM_HEADS):
        lo, hi = h * H_SIZE, (h + 1) * H_SIZE
        qh, kh, vh = q[:, lo:hi], k[:, lo:hi], v[:, lo:hi]
        s = jax.lax.dot_general(
            qh, kh, (((1,), (1,)), ((), ())),
            preferred_element_type=jnp.float32) * scale
        if causal:
            s = jnp.where(keep, s, -jnp.inf)
        s = s - jnp.max(s, axis=-1, keepdims=True)
        p = jnp.exp(s)
        p = p * pl.reciprocal(jnp.sum(p, axis=-1, keepdims=True), approx=True)
        outs.append(jnp.dot(p, vh, preferred_element_type=jnp.float32))
    return jnp.concatenate(outs, axis=-1)


# ------------------------------ fused kernel ---------------------------------
def _transformer_kernel(
    x_enc_ref, x_dec_ref,
    enc_wqkv, enc_bqkv, enc_wo, enc_bo,
    enc_w1, enc_b1, enc_w2, enc_b2,
    enc_ln1g, enc_ln1b, enc_ln2g, enc_ln2b,
    enc_lnfg, enc_lnfb,
    dec_m_wqkv, dec_m_wo, dec_m_bo,
    dec_c_wq, dec_c_bq, dec_c_wkv, dec_c_bkv, dec_c_wo, dec_c_bo,
    dec_w1, dec_b1, dec_w2, dec_b2,
    dec_ln1g, dec_ln1b, dec_ln2g, dec_ln2b, dec_ln3g, dec_ln3b,
    dec_lnfg, dec_lnfb,
    lm_w, lm_b,
    out_ref,
):
    C = N_EMBED
    f32 = jnp.float32

    # --------------------------- encoder -------------------------------------
    x = x_enc_ref[0]                                        # (Ts, C)
    for l in range(NUM_LAYER):
        qkv = jnp.dot(x, enc_wqkv[l], preferred_element_type=f32) + enc_bqkv[l]
        o = _mh_attention(qkv[:, :C], qkv[:, C:2 * C], qkv[:, 2 * C:],
                          causal=False)
        o = jnp.dot(o, enc_wo[l], preferred_element_type=f32) + enc_bo[l]
        x = _layernorm(x + o, enc_ln1g[l], enc_ln1b[l])
        hdn = jnp.maximum(
            jnp.dot(x, enc_w1[l], preferred_element_type=f32) + enc_b1[l], 0.0)
        ff = jnp.dot(hdn, enc_w2[l], preferred_element_type=f32) + enc_b2[l]
        x = _layernorm(x + ff, enc_ln2g[l], enc_ln2b[l])
    enc = _layernorm(x, enc_lnfg[...], enc_lnfb[...])        # (Ts, C)

    # --------------------------- decoder -------------------------------------
    y = x_dec_ref[0]                                        # (Tt, C)
    for l in range(NUM_LAYER):
        # masked self-attention (bias-free per-head q/k/v, biased out-proj)
        qkv = jnp.dot(y, dec_m_wqkv[l], preferred_element_type=f32)
        o = _mh_attention(qkv[:, :C], qkv[:, C:2 * C], qkv[:, 2 * C:],
                          causal=True)
        o = jnp.dot(o, dec_m_wo[l], preferred_element_type=f32) + dec_m_bo[l]
        y = _layernorm(y + o, dec_ln1g[l], dec_ln1b[l])

        # cross-attention against the resident encoder output
        q = jnp.dot(y, dec_c_wq[l], preferred_element_type=f32) + dec_c_bq[l]
        kv = jnp.dot(enc, dec_c_wkv[l], preferred_element_type=f32) + dec_c_bkv[l]
        o = _mh_attention(q, kv[:, :C], kv[:, C:], causal=False)
        o = jnp.dot(o, dec_c_wo[l], preferred_element_type=f32) + dec_c_bo[l]
        y = _layernorm(y + o, dec_ln2g[l], dec_ln2b[l])

        # feed-forward
        hdn = jnp.maximum(
            jnp.dot(y, dec_w1[l], preferred_element_type=f32) + dec_b1[l], 0.0)
        ff = jnp.dot(hdn, dec_w2[l], preferred_element_type=f32) + dec_b2[l]
        y = _layernorm(y + ff, dec_ln3g[l], dec_ln3b[l])
    y = _layernorm(y, dec_lnfg[...], dec_lnfb[...])

    # lm head (lane-padded to 128 for an unmasked store)
    logits = jnp.dot(y, lm_w[...], preferred_element_type=f32) + lm_b[...]
    out_ref[0] = logits.astype(out_ref.dtype)


# ------------------------------- wrapper --------------------------------------
_WEIGHT_ORDER = (
    "enc_wqkv", "enc_bqkv", "enc_wo", "enc_bo",
    "enc_w1", "enc_b1", "enc_w2", "enc_b2",
    "enc_ln1g", "enc_ln1b", "enc_ln2g", "enc_ln2b",
    "enc_lnfg", "enc_lnfb",
    "dec_m_wqkv", "dec_m_wo", "dec_m_bo",
    "dec_c_wq", "dec_c_bq", "dec_c_wkv", "dec_c_bkv", "dec_c_wo", "dec_c_bo",
    "dec_w1", "dec_b1", "dec_w2", "dec_b2",
    "dec_ln1g", "dec_ln1b", "dec_ln2g", "dec_ln2b", "dec_ln3g", "dec_ln3b",
    "dec_lnfg", "dec_lnfb",
    "lm_w", "lm_b",
)


@jax.jit
def transformer_forward(params, src_idx, tgt_idx):
    B, Ts = src_idx.shape
    _, Tt = tgt_idx.shape
    # Embedding gathers (+ identity dropout) stay in XLA; everything else is
    # one fused pallas_call.
    x_enc = params["enc_tok_emb"][src_idx] + params["enc_pos_emb"][:Ts][None, :, :]
    x_dec = params["dec_tok_emb"][tgt_idx] + params["dec_pos_emb"][:Tt][None, :, :]

    weights = [params[name] for name in _WEIGHT_ORDER]

    def _whole(a):
        # full-array block, same block for every grid step -> stays resident
        return pl.BlockSpec(a.shape, lambda b, _nd=a.ndim: (0,) * _nd)

    in_specs = [
        pl.BlockSpec((1, Ts, N_EMBED), lambda b: (b, 0, 0)),
        pl.BlockSpec((1, Tt, N_EMBED), lambda b: (b, 0, 0)),
    ] + [_whole(w) for w in weights]

    out = pl.pallas_call(
        _transformer_kernel,
        out_shape=jax.ShapeDtypeStruct((B, Tt, VOCAB_PAD), jnp.float32),
        grid=(B,),
        in_specs=in_specs,
        out_specs=pl.BlockSpec((1, Tt, VOCAB_PAD), lambda b: (b, 0, 0)),
        compiler_params=pltpu.CompilerParams(
            dimension_semantics=("parallel",)),
    )(x_enc, x_dec, *weights)
    return out[:, :, :VOCAB_SIZE]


# --------------------------- parameter construction ---------------------------
def init_params(key):
    keys = jax.random.split(key, 64)
    kit = iter(keys)

    def nxt():
        return next(kit)

    def u(shape, fan_in):
        bound = 1.0 / math.sqrt(fan_in)
        return jax.random.uniform(nxt(), shape, jnp.float32, -bound, bound)

    C, L, V = N_EMBED, NUM_LAYER, VOCAB_SIZE
    p = {}
    p["enc_tok_emb"] = 0.02 * jax.random.normal(nxt(), (V, C), jnp.float32)
    p["enc_pos_emb"] = 0.02 * jax.random.normal(nxt(), (MAX_SEQ_LEN, C), jnp.float32)
    p["dec_tok_emb"] = 0.02 * jax.random.normal(nxt(), (V, C), jnp.float32)
    p["dec_pos_emb"] = 0.02 * jax.random.normal(nxt(), (MAX_SEQ_LEN, C), jnp.float32)

    # encoder blocks (weights stacked over layers)
    p["enc_wqkv"] = u((L, C, 3 * C), C)
    p["enc_bqkv"] = u((L, 1, 3 * C), C)
    p["enc_wo"] = u((L, C, C), C)
    p["enc_bo"] = u((L, 1, C), C)
    p["enc_w1"] = u((L, C, 4 * C), C)
    p["enc_b1"] = u((L, 1, 4 * C), C)
    p["enc_w2"] = u((L, 4 * C, C), 4 * C)
    p["enc_b2"] = u((L, 1, C), 4 * C)
    p["enc_ln1g"] = jnp.ones((L, 1, C), jnp.float32)
    p["enc_ln1b"] = jnp.zeros((L, 1, C), jnp.float32)
    p["enc_ln2g"] = jnp.ones((L, 1, C), jnp.float32)
    p["enc_ln2b"] = jnp.zeros((L, 1, C), jnp.float32)
    p["enc_lnfg"] = jnp.ones((1, C), jnp.float32)
    p["enc_lnfb"] = jnp.zeros((1, C), jnp.float32)

    # decoder blocks
    p["dec_m_wqkv"] = u((L, C, 3 * C), C)     # bias-free per-head q/k/v
    p["dec_m_wo"] = u((L, C, C), C)
    p["dec_m_bo"] = u((L, 1, C), C)
    p["dec_c_wq"] = u((L, C, C), C)
    p["dec_c_bq"] = u((L, 1, C), C)
    p["dec_c_wkv"] = u((L, C, 2 * C), C)
    p["dec_c_bkv"] = u((L, 1, 2 * C), C)
    p["dec_c_wo"] = u((L, C, C), C)
    p["dec_c_bo"] = u((L, 1, C), C)
    p["dec_w1"] = u((L, C, 4 * C), C)
    p["dec_b1"] = u((L, 1, 4 * C), C)
    p["dec_w2"] = u((L, 4 * C, C), 4 * C)
    p["dec_b2"] = u((L, 1, C), 4 * C)
    p["dec_ln1g"] = jnp.ones((L, 1, C), jnp.float32)
    p["dec_ln1b"] = jnp.zeros((L, 1, C), jnp.float32)
    p["dec_ln2g"] = jnp.ones((L, 1, C), jnp.float32)
    p["dec_ln2b"] = jnp.zeros((L, 1, C), jnp.float32)
    p["dec_ln3g"] = jnp.ones((L, 1, C), jnp.float32)
    p["dec_ln3b"] = jnp.zeros((L, 1, C), jnp.float32)
    p["dec_lnfg"] = jnp.ones((1, C), jnp.float32)
    p["dec_lnfb"] = jnp.zeros((1, C), jnp.float32)

    # lm head, padded to a lane-dense 128 columns (extra lanes are zero)
    w = u((C, V), C)
    b = u((1, V), C)
    p["lm_w"] = jnp.zeros((C, VOCAB_PAD), jnp.float32).at[:, :V].set(w)
    p["lm_b"] = jnp.zeros((1, VOCAB_PAD), jnp.float32).at[:, :V].set(b)
    return p


# ----------------------------------- main -------------------------------------
if __name__ == "__main__":
    key = jax.random.PRNGKey(0)
    kp, ks, kt = jax.random.split(key, 3)
    params = init_params(kp)

    B, T_src, T_tgt = 2, 8, 8
    src_idx = jax.random.randint(ks, (B, T_src), 0, VOCAB_SIZE, dtype=jnp.int32)
    tgt_idx = jax.random.randint(kt, (B, T_tgt), 0, VOCAB_SIZE, dtype=jnp.int32)

    logits = transformer_forward(params, src_idx, tgt_idx)
    jax.block_until_ready(logits)
    assert logits.shape == (B, T_tgt, VOCAB_SIZE), logits.shape
    assert bool(jnp.all(jnp.isfinite(logits)))
    print("KERNEL_OK")
</pallas_src>

<mosaic_0001>
module attributes {stable_mosaic.version = 11 : i64} {
  func.func @_transformer_kernel(%arg0: i32, %arg1: memref<1x8x32xf32, #tpu.memory_space<vmem>>, %arg2: memref<1x8x32xf32, #tpu.memory_space<vmem>>, %arg3: memref<2x32x96xf32, #tpu.memory_space<vmem>>, %arg4: memref<2x1x96xf32, #tpu.memory_space<vmem>>, %arg5: memref<2x32x32xf32, #tpu.memory_space<vmem>>, %arg6: memref<2x1x32xf32, #tpu.memory_space<vmem>>, %arg7: memref<2x32x128xf32, #tpu.memory_space<vmem>>, %arg8: memref<2x1x128xf32, #tpu.memory_space<vmem>>, %arg9: memref<2x128x32xf32, #tpu.memory_space<vmem>>, %arg10: memref<2x1x32xf32, #tpu.memory_space<vmem>>, %arg11: memref<2x1x32xf32, #tpu.memory_space<vmem>>, %arg12: memref<2x1x32xf32, #tpu.memory_space<vmem>>, %arg13: memref<2x1x32xf32, #tpu.memory_space<vmem>>, %arg14: memref<2x1x32xf32, #tpu.memory_space<vmem>>, %arg15: memref<1x32xf32, #tpu.memory_space<vmem>>, %arg16: memref<1x32xf32, #tpu.memory_space<vmem>>, %arg17: memref<2x32x96xf32, #tpu.memory_space<vmem>>, %arg18: memref<2x32x32xf32, #tpu.memory_space<vmem>>, %arg19: memref<2x1x32xf32, #tpu.memory_space<vmem>>, %arg20: memref<2x32x32xf32, #tpu.memory_space<vmem>>, %arg21: memref<2x1x32xf32, #tpu.memory_space<vmem>>, %arg22: memref<2x32x64xf32, #tpu.memory_space<vmem>>, %arg23: memref<2x1x64xf32, #tpu.memory_space<vmem>>, %arg24: memref<2x32x32xf32, #tpu.memory_space<vmem>>, %arg25: memref<2x1x32xf32, #tpu.memory_space<vmem>>, %arg26: memref<2x32x128xf32, #tpu.memory_space<vmem>>, %arg27: memref<2x1x128xf32, #tpu.memory_space<vmem>>, %arg28: memref<2x128x32xf32, #tpu.memory_space<vmem>>, %arg29: memref<2x1x32xf32, #tpu.memory_space<vmem>>, %arg30: memref<2x1x32xf32, #tpu.memory_space<vmem>>, %arg31: memref<2x1x32xf32, #tpu.memory_space<vmem>>, %arg32: memref<2x1x32xf32, #tpu.memory_space<vmem>>, %arg33: memref<2x1x32xf32, #tpu.memory_space<vmem>>, %arg34: memref<2x1x32xf32, #tpu.memory_space<vmem>>, %arg35: memref<2x1x32xf32, #tpu.memory_space<vmem>>, %arg36: memref<1x32xf32, #tpu.memory_space<vmem>>, %arg37: memref<1x32xf32, #tpu.memory_space<vmem>>, %arg38: memref<32x128xf32, #tpu.memory_space<vmem>>, %arg39: memref<1x128xf32, #tpu.memory_space<vmem>>, %arg40: memref<1x8x128xf32, #tpu.memory_space<vmem>>) attributes {dimension_semantics = [#tpu.dimension_semantics<parallel>], iteration_bounds = array<i64: 2>, scalar_prefetch = 0 : i64, scratch_operands = 0 : i64, tpu.core_type = #tpu.core_type<tc>, window_params = [{transform_indices = @transform_0, window_bounds = array<i64: 1, 8, 32>}, {transform_indices = @transform_1, window_bounds = array<i64: 1, 8, 32>}, {pipeline_mode = #tpu.pipeline_mode<synchronous>, transform_indices = @transform_2, window_bounds = array<i64: 2, 32, 96>}, {pipeline_mode = #tpu.pipeline_mode<synchronous>, transform_indices = @transform_3, window_bounds = array<i64: 2, 1, 96>}, {pipeline_mode = #tpu.pipeline_mode<synchronous>, transform_indices = @transform_4, window_bounds = array<i64: 2, 32, 32>}, {pipeline_mode = #tpu.pipeline_mode<synchronous>, transform_indices = @transform_5, window_bounds = array<i64: 2, 1, 32>}, {pipeline_mode = #tpu.pipeline_mode<synchronous>, transform_indices = @transform_6, window_bounds = array<i64: 2, 32, 128>}, {pipeline_mode = #tpu.pipeline_mode<synchronous>, transform_indices = @transform_7, window_bounds = array<i64: 2, 1, 128>}, {pipeline_mode = #tpu.pipeline_mode<synchronous>, transform_indices = @transform_8, window_bounds = array<i64: 2, 128, 32>}, {pipeline_mode = #tpu.pipeline_mode<synchronous>, transform_indices = @transform_9, window_bounds = array<i64: 2, 1, 32>}, {pipeline_mode = #tpu.pipeline_mode<synchronous>, transform_indices = @transform_10, window_bounds = array<i64: 2, 1, 32>}, {pipeline_mode = #tpu.pipeline_mode<synchronous>, transform_indices = @transform_11, window_bounds = array<i64: 2, 1, 32>}, {pipeline_mode = #tpu.pipeline_mode<synchronous>, transform_indices = @transform_12, window_bounds = array<i64: 2, 1, 32>}, {pipeline_mode = #tpu.pipeline_mode<synchronous>, transform_indices = @transform_13, window_bounds = array<i64: 2, 1, 32>}, {pipeline_mode = #tpu.pipeline_mode<synchronous>, transform_indices = @transform_14, window_bounds = array<i64: 1, 32>}, {pipeline_mode = #tpu.pipeline_mode<synchronous>, transform_indices = @transform_15, window_bounds = array<i64: 1, 32>}, {pipeline_mode = #tpu.pipeline_mode<synchronous>, transform_indices = @transform_16, window_bounds = array<i64: 2, 32, 96>}, {pipeline_mode = #tpu.pipeline_mode<synchronous>, transform_indices = @transform_17, window_bounds = array<i64: 2, 32, 32>}, {pipeline_mode = #tpu.pipeline_mode<synchronous>, transform_indices = @transform_18, window_bounds = array<i64: 2, 1, 32>}, {pipeline_mode = #tpu.pipeline_mode<synchronous>, transform_indices = @transform_19, window_bounds = array<i64: 2, 32, 32>}, {pipeline_mode = #tpu.pipeline_mode<synchronous>, transform_indices = @transform_20, window_bounds = array<i64: 2, 1, 32>}, {pipeline_mode = #tpu.pipeline_mode<synchronous>, transform_indices = @transform_21, window_bounds = array<i64: 2, 32, 64>}, {pipeline_mode = #tpu.pipeline_mode<synchronous>, transform_indices = @transform_22, window_bounds = array<i64: 2, 1, 64>}, {pipeline_mode = #tpu.pipeline_mode<synchronous>, transform_indices = @transform_23, window_bounds = array<i64: 2, 32, 32>}, {pipeline_mode = #tpu.pipeline_mode<synchronous>, transform_indices = @transform_24, window_bounds = array<i64: 2, 1, 32>}, {pipeline_mode = #tpu.pipeline_mode<synchronous>, transform_indices = @transform_25, window_bounds = array<i64: 2, 32, 128>}, {pipeline_mode = #tpu.pipeline_mode<synchronous>, transform_indices = @transform_26, window_bounds = array<i64: 2, 1, 128>}, {pipeline_mode = #tpu.pipeline_mode<synchronous>, transform_indices = @transform_27, window_bounds = array<i64: 2, 128, 32>}, {pipeline_mode = #tpu.pipeline_mode<synchronous>, transform_indices = @transform_28, window_bounds = array<i64: 2, 1, 32>}, {pipeline_mode = #tpu.pipeline_mode<synchronous>, transform_indices = @transform_29, window_bounds = array<i64: 2, 1, 32>}, {pipeline_mode = #tpu.pipeline_mode<synchronous>, transform_indices = @transform_30, window_bounds = array<i64: 2, 1, 32>}, {pipeline_mode = #tpu.pipeline_mode<synchronous>, transform_indices = @transform_31, window_bounds = array<i64: 2, 1, 32>}, {pipeline_mode = #tpu.pipeline_mode<synchronous>, transform_indices = @transform_32, window_bounds = array<i64: 2, 1, 32>}, {pipeline_mode = #tpu.pipeline_mode<synchronous>, transform_indices = @transform_33, window_bounds = array<i64: 2, 1, 32>}, {pipeline_mode = #tpu.pipeline_mode<synchronous>, transform_indices = @transform_34, window_bounds = array<i64: 2, 1, 32>}, {pipeline_mode = #tpu.pipeline_mode<synchronous>, transform_indices = @transform_35, window_bounds = array<i64: 1, 32>}, {pipeline_mode = #tpu.pipeline_mode<synchronous>, transform_indices = @transform_36, window_bounds = array<i64: 1, 32>}, {pipeline_mode = #tpu.pipeline_mode<synchronous>, transform_indices = @transform_37, window_bounds = array<i64: 32, 128>}, {pipeline_mode = #tpu.pipeline_mode<synchronous>, transform_indices = @transform_38, window_bounds = array<i64: 1, 128>}, {transform_indices = @transform_39, window_bounds = array<i64: 1, 8, 128>}]} {
    %c0 = arith.constant 0 : index
    %c0_0 = arith.constant 0 : index
    %c0_1 = arith.constant 0 : index
    %0 = vector.load %arg1[%c0, %c0_0, %c0_1] : memref<1x8x32xf32, #tpu.memory_space<vmem>>, vector<1x8x32xf32>
    %1 = vector.shape_cast %0 : vector<1x8x32xf32> to vector<8x32xf32>
    %c0_2 = arith.constant 0 : index
    %c0_3 = arith.constant 0 : index
    %c0_4 = arith.constant 0 : index
    %2 = vector.load %arg3[%c0_2, %c0_3, %c0_4] : memref<2x32x96xf32, #tpu.memory_space<vmem>>, vector<1x32x96xf32>
    %3 = vector.shape_cast %2 : vector<1x32x96xf32> to vector<32x96xf32>
    %cst = arith.constant dense<0.000000e+00> : vector<8x96xf32>
    %4 = tpu.matmul %1, %3, %cst {dimension_numbers = #tpu.dot_dimension_numbers<[1], [0], [0], [1], [0, 0, 1, 1], [], []>} : vector<8x32xf32>, vector<32x96xf32>, vector<8x96xf32> -> vector<8x96xf32>
    %c0_5 = arith.constant 0 : index
    %c0_6 = arith.constant 0 : index
    %c0_7 = arith.constant 0 : index
    %5 = vector.load %arg4[%c0_5, %c0_6, %c0_7] : memref<2x1x96xf32, #tpu.memory_space<vmem>>, vector<1x1x96xf32>
    %6 = vector.shape_cast %5 : vector<1x1x96xf32> to vector<1x96xf32>
    %7 = vector.broadcast %6 : vector<1x96xf32> to vector<8x96xf32>
    %8 = arith.addf %4, %7 : vector<8x96xf32>
    %9 = vector.extract_strided_slice %8 {offsets = [0, 0], sizes = [8, 32], strides = [1, 1]} : vector<8x96xf32> to vector<8x32xf32>
    %10 = vector.extract_strided_slice %8 {offsets = [0, 32], sizes = [8, 32], strides = [1, 1]} : vector<8x96xf32> to vector<8x32xf32>
    %11 = vector.extract_strided_slice %8 {offsets = [0, 64], sizes = [8, 32], strides = [1, 1]} : vector<8x96xf32> to vector<8x32xf32>
    %12 = vector.extract_strided_slice %9 {offsets = [0, 0], sizes = [8, 8], strides = [1, 1]} : vector<8x32xf32> to vector<8x8xf32>
    %13 = vector.extract_strided_slice %10 {offsets = [0, 0], sizes = [8, 8], strides = [1, 1]} : vector<8x32xf32> to vector<8x8xf32>
    %14 = vector.extract_strided_slice %11 {offsets = [0, 0], sizes = [8, 8], strides = [1, 1]} : vector<8x32xf32> to vector<8x8xf32>
    %cst_8 = arith.constant dense<0.000000e+00> : vector<8x8xf32>
    %15 = tpu.matmul %12, %13, %cst_8 {dimension_numbers = #tpu.dot_dimension_numbers<[1], [1], [0], [0], [0, 0, 1, 0], [], []>} : vector<8x8xf32>, vector<8x8xf32>, vector<8x8xf32> -> vector<8x8xf32>
    %cst_9 = arith.constant 0.353553385 : f32
    %16 = vector.broadcast %cst_9 : f32 to vector<8x8xf32>
    %17 = arith.mulf %15, %16 : vector<8x8xf32>
    %cst_10 = arith.constant dense<0xFF800000> : vector<8xf32>
    %18 = vector.multi_reduction <maximumf>, %17, %cst_10 [1] : vector<8x8xf32> to vector<8xf32>
    %19 = vector.shape_cast %18 : vector<8xf32> to vector<8x1xf32>
    %20 = vector.broadcast %19 : vector<8x1xf32> to vector<8x8xf32>
    %21 = arith.subf %17, %20 : vector<8x8xf32>
    %22 = math.exp %21 : vector<8x8xf32>
    %cst_11 = arith.constant dense<0.000000e+00> : vector<8xf32>
    %23 = vector.multi_reduction <add>, %22, %cst_11 [1] : vector<8x8xf32> to vector<8xf32>
    %24 = vector.shape_cast %23 : vector<8xf32> to vector<8x1xf32>
    %25 = tpu.reciprocal %24 {approx = true} : vector<8x1xf32> -> vector<8x1xf32>
    %26 = vector.broadcast %25 : vector<8x1xf32> to vector<8x8xf32>
    %27 = arith.mulf %22, %26 : vector<8x8xf32>
    %cst_12 = arith.constant dense<0.000000e+00> : vector<8x8xf32>
    %28 = tpu.matmul %27, %14, %cst_12 {dimension_numbers = #tpu.dot_dimension_numbers<[1], [0], [0], [1], [0, 0, 1, 1], [], []>} : vector<8x8xf32>, vector<8x8xf32>, vector<8x8xf32> -> vector<8x8xf32>
    %29 = vector.extract_strided_slice %9 {offsets = [0, 8], sizes = [8, 8], strides = [1, 1]} : vector<8x32xf32> to vector<8x8xf32>
    %30 = vector.extract_strided_slice %10 {offsets = [0, 8], sizes = [8, 8], strides = [1, 1]} : vector<8x32xf32> to vector<8x8xf32>
    %31 = vector.extract_strided_slice %11 {offsets = [0, 8], sizes = [8, 8], strides = [1, 1]} : vector<8x32xf32> to vector<8x8xf32>
    %cst_13 = arith.constant dense<0.000000e+00> : vector<8x8xf32>
    %32 = tpu.matmul %29, %30, %cst_13 {dimension_numbers = #tpu.dot_dimension_numbers<[1], [1], [0], [0], [0, 0, 1, 0], [], []>} : vector<8x8xf32>, vector<8x8xf32>, vector<8x8xf32> -> vector<8x8xf32>
    %cst_14 = arith.constant 0.353553385 : f32
    %33 = vector.broadcast %cst_14 : f32 to vector<8x8xf32>
    %34 = arith.mulf %32, %33 : vector<8x8xf32>
    %cst_15 = arith.constant dense<0xFF800000> : vector<8xf32>
    %35 = vector.multi_reduction <maximumf>, %34, %cst_15 [1] : vector<8x8xf32> to vector<8xf32>
    %36 = vector.shape_cast %35 : vector<8xf32> to vector<8x1xf32>
    %37 = vector.broadcast %36 : vector<8x1xf32> to vector<8x8xf32>
    %38 = arith.subf %34, %37 : vector<8x8xf32>
    %39 = math.exp %38 : vector<8x8xf32>
    %cst_16 = arith.constant dense<0.000000e+00> : vector<8xf32>
    %40 = vector.multi_reduction <add>, %39, %cst_16 [1] : vector<8x8xf32> to vector<8xf32>
    %41 = vector.shape_cast %40 : vector<8xf32> to vector<8x1xf32>
    %42 = tpu.reciprocal %41 {approx = true} : vector<8x1xf32> -> vector<8x1xf32>
    %43 = vector.broadcast %42 : vector<8x1xf32> to vector<8x8xf32>
    %44 = arith.mulf %39, %43 : vector<8x8xf32>
    %cst_17 = arith.constant dense<0.000000e+00> : vector<8x8xf32>
    %45 = tpu.matmul %44, %31, %cst_17 {dimension_numbers = #tpu.dot_dimension_numbers<[1], [0], [0], [1], [0, 0, 1, 1], [], []>} : vector<8x8xf32>, vector<8x8xf32>, vector<8x8xf32> -> vector<8x8xf32>
    %46 = vector.extract_strided_slice %9 {offsets = [0, 16], sizes = [8, 8], strides = [1, 1]} : vector<8x32xf32> to vector<8x8xf32>
    %47 = vector.extract_strided_slice %10 {offsets = [0, 16], sizes = [8, 8], strides = [1, 1]} : vector<8x32xf32> to vector<8x8xf32>
    %48 = vector.extract_strided_slice %11 {offsets = [0, 16], sizes = [8, 8], strides = [1, 1]} : vector<8x32xf32> to vector<8x8xf32>
    %cst_18 = arith.constant dense<0.000000e+00> : vector<8x8xf32>
    %49 = tpu.matmul %46, %47, %cst_18 {dimension_numbers = #tpu.dot_dimension_numbers<[1], [1], [0], [0], [0, 0, 1, 0], [], []>} : vector<8x8xf32>, vector<8x8xf32>, vector<8x8xf32> -> vector<8x8xf32>
    %cst_19 = arith.constant 0.353553385 : f32
    %50 = vector.broadcast %cst_19 : f32 to vector<8x8xf32>
    %51 = arith.mulf %49, %50 : vector<8x8xf32>
    %cst_20 = arith.constant dense<0xFF800000> : vector<8xf32>
    %52 = vector.multi_reduction <maximumf>, %51, %cst_20 [1] : vector<8x8xf32> to vector<8xf32>
    %53 = vector.shape_cast %52 : vector<8xf32> to vector<8x1xf32>
    %54 = vector.broadcast %53 : vector<8x1xf32> to vector<8x8xf32>
    %55 = arith.subf %51, %54 : vector<8x8xf32>
    %56 = math.exp %55 : vector<8x8xf32>
    %cst_21 = arith.constant dense<0.000000e+00> : vector<8xf32>
    %57 = vector.multi_reduction <add>, %56, %cst_21 [1] : vector<8x8xf32> to vector<8xf32>
    %58 = vector.shape_cast %57 : vector<8xf32> to vector<8x1xf32>
    %59 = tpu.reciprocal %58 {approx = true} : vector<8x1xf32> -> vector<8x1xf32>
    %60 = vector.broadcast %59 : vector<8x1xf32> to vector<8x8xf32>
    %61 = arith.mulf %56, %60 : vector<8x8xf32>
    %cst_22 = arith.constant dense<0.000000e+00> : vector<8x8xf32>
    %62 = tpu.matmul %61, %48, %cst_22 {dimension_numbers = #tpu.dot_dimension_numbers<[1], [0], [0], [1], [0, 0, 1, 1], [], []>} : vector<8x8xf32>, vector<8x8xf32>, vector<8x8xf32> -> vector<8x8xf32>
    %63 = vector.extract_strided_slice %9 {offsets = [0, 24], sizes = [8, 8], strides = [1, 1]} : vector<8x32xf32> to vector<8x8xf32>
    %64 = vector.extract_strided_slice %10 {offsets = [0, 24], sizes = [8, 8], strides = [1, 1]} : vector<8x32xf32> to vector<8x8xf32>
    %65 = vector.extract_strided_slice %11 {offsets = [0, 24], sizes = [8, 8], strides = [1, 1]} : vector<8x32xf32> to vector<8x8xf32>
    %cst_23 = arith.constant dense<0.000000e+00> : vector<8x8xf32>
    %66 = tpu.matmul %63, %64, %cst_23 {dimension_numbers = #tpu.dot_dimension_numbers<[1], [1], [0], [0], [0, 0, 1, 0], [], []>} : vector<8x8xf32>, vector<8x8xf32>, vector<8x8xf32> -> vector<8x8xf32>
    %cst_24 = arith.constant 0.353553385 : f32
    %67 = vector.broadcast %cst_24 : f32 to vector<8x8xf32>
    %68 = arith.mulf %66, %67 : vector<8x8xf32>
    %cst_25 = arith.constant dense<0xFF800000> : vector<8xf32>
    %69 = vector.multi_reduction <maximumf>, %68, %cst_25 [1] : vector<8x8xf32> to vector<8xf32>
    %70 = vector.shape_cast %69 : vector<8xf32> to vector<8x1xf32>
    %71 = vector.broadcast %70 : vector<8x1xf32> to vector<8x8xf32>
    %72 = arith.subf %68, %71 : vector<8x8xf32>
    %73 = math.exp %72 : vector<8x8xf32>
    %cst_26 = arith.constant dense<0.000000e+00> : vector<8xf32>
    %74 = vector.multi_reduction <add>, %73, %cst_26 [1] : vector<8x8xf32> to vector<8xf32>
    %75 = vector.shape_cast %74 : vector<8xf32> to vector<8x1xf32>
    %76 = tpu.reciprocal %75 {approx = true} : vector<8x1xf32> -> vector<8x1xf32>
    %77 = vector.broadcast %76 : vector<8x1xf32> to vector<8x8xf32>
    %78 = arith.mulf %73, %77 : vector<8x8xf32>
    %cst_27 = arith.constant dense<0.000000e+00> : vector<8x8xf32>
    %79 = tpu.matmul %78, %65, %cst_27 {dimension_numbers = #tpu.dot_dimension_numbers<[1], [0], [0], [1], [0, 0, 1, 1], [], []>} : vector<8x8xf32>, vector<8x8xf32>, vector<8x8xf32> -> vector<8x8xf32>
    %80 = tpu.concatenate %28, %45, %62, %79 in 1 : vector<8x8xf32>, vector<8x8xf32>, vector<8x8xf32>, vector<8x8xf32> -> vector<8x32xf32>
    %c0_28 = arith.constant 0 : index
    %c0_29 = arith.constant 0 : index
    %c0_30 = arith.constant 0 : index
    %81 = vector.load %arg5[%c0_28, %c0_29, %c0_30] : memref<2x32x32xf32, #tpu.memory_space<vmem>>, vector<1x32x32xf32>
    %82 = vector.shape_cast %81 : vector<1x32x32xf32> to vector<32x32xf32>
    %cst_31 = arith.constant dense<0.000000e+00> : vector<8x32xf32>
    %83 = tpu.matmul %80, %82, %cst_31 {dimension_numbers = #tpu.dot_dimension_numbers<[1], [0], [0], [1], [0, 0, 1, 1], [], []>} : vector<8x32xf32>, vector<32x32xf32>, vector<8x32xf32> -> vector<8x32xf32>
    %c0_32 = arith.constant 0 : index
    %c0_33 = arith.constant 0 : index
    %c0_34 = arith.constant 0 : index
    %84 = vector.load %arg6[%c0_32, %c0_33, %c0_34] : memref<2x1x32xf32, #tpu.memory_space<vmem>>, vector<1x1x32xf32>
    %85 = vector.shape_cast %84 : vector<1x1x32xf32> to vector<1x32xf32>
    %86 = vector.broadcast %85 : vector<1x32xf32> to vector<8x32xf32>
    %87 = arith.addf %83, %86 : vector<8x32xf32>
    %88 = arith.addf %1, %87 : vector<8x32xf32>
    %c0_35 = arith.constant 0 : index
    %c0_36 = arith.constant 0 : index
    %c0_37 = arith.constant 0 : index
    %89 = vector.load %arg11[%c0_35, %c0_36, %c0_37] : memref<2x1x32xf32, #tpu.memory_space<vmem>>, vector<1x1x32xf32>
    %90 = vector.shape_cast %89 : vector<1x1x32xf32> to vector<1x32xf32>
    %c0_38 = arith.constant 0 : index
    %c0_39 = arith.constant 0 : index
    %c0_40 = arith.constant 0 : index
    %91 = vector.load %arg12[%c0_38, %c0_39, %c0_40] : memref<2x1x32xf32, #tpu.memory_space<vmem>>, vector<1x1x32xf32>
    %92 = vector.shape_cast %91 : vector<1x1x32xf32> to vector<1x32xf32>
    %cst_41 = arith.constant dense<0.000000e+00> : vector<8xf32>
    %93 = vector.multi_reduction <add>, %88, %cst_41 [1] : vector<8x32xf32> to vector<8xf32>
    %94 = vector.shape_cast %93 : vector<8xf32> to vector<8x1xf32>
    %cst_42 = arith.constant 3.200000e+01 : f32
    %95 = vector.broadcast %cst_42 : f32 to vector<8x1xf32>
    %96 = arith.divf %94, %95 : vector<8x1xf32>
    %97 = vector.broadcast %96 : vector<8x1xf32> to vector<8x32xf32>
    %98 = arith.subf %88, %97 : vector<8x32xf32>
    %99 = arith.mulf %98, %98 : vector<8x32xf32>
    %cst_43 = arith.constant dense<0.000000e+00> : vector<8xf32>
    %100 = vector.multi_reduction <add>, %99, %cst_43 [1] : vector<8x32xf32> to vector<8xf32>
    %101 = vector.shape_cast %100 : vector<8xf32> to vector<8x1xf32>
    %cst_44 = arith.constant 3.200000e+01 : f32
    %102 = vector.broadcast %cst_44 : f32 to vector<8x1xf32>
    %103 = arith.divf %101, %102 : vector<8x1xf32>
    %cst_45 = arith.constant 9.99999974E-6 : f32
    %104 = vector.broadcast %cst_45 : f32 to vector<8x1xf32>
    %105 = arith.addf %103, %104 : vector<8x1xf32>
    %106 = math.rsqrt %105 : vector<8x1xf32>
    %107 = vector.broadcast %106 : vector<8x1xf32> to vector<8x32xf32>
    %108 = arith.mulf %98, %107 : vector<8x32xf32>
    %109 = vector.broadcast %90 : vector<1x32xf32> to vector<8x32xf32>
    %110 = arith.mulf %108, %109 : vector<8x32xf32>
    %111 = vector.broadcast %92 : vector<1x32xf32> to vector<8x32xf32>
    %112 = arith.addf %110, %111 : vector<8x32xf32>
    %c0_46 = arith.constant 0 : index
    %c0_47 = arith.constant 0 : index
    %c0_48 = arith.constant 0 : index
    %113 = vector.load %arg7[%c0_46, %c0_47, %c0_48] : memref<2x32x128xf32, #tpu.memory_space<vmem>>, vector<1x32x128xf32>
    %114 = vector.shape_cast %113 : vector<1x32x128xf32> to vector<32x128xf32>
    %cst_49 = arith.constant dense<0.000000e+00> : vector<8x128xf32>
    %115 = tpu.matmul %112, %114, %cst_49 {dimension_numbers = #tpu.dot_dimension_numbers<[1], [0], [0], [1], [0, 0, 1, 1], [], []>} : vector<8x32xf32>, vector<32x128xf32>, vector<8x128xf32> -> vector<8x128xf32>
    %c0_50 = arith.constant 0 : index
    %c0_51 = arith.constant 0 : index
    %c0_52 = arith.constant 0 : index
    %116 = vector.load %arg8[%c0_50, %c0_51, %c0_52] : memref<2x1x128xf32, #tpu.memory_space<vmem>>, vector<1x1x128xf32>
    %117 = vector.shape_cast %116 : vector<1x1x128xf32> to vector<1x128xf32>
    %118 = vector.broadcast %117 : vector<1x128xf32> to vector<8x128xf32>
    %119 = arith.addf %115, %118 : vector<8x128xf32>
    %cst_53 = arith.constant 0.000000e+00 : f32
    %120 = vector.broadcast %cst_53 : f32 to vector<8x128xf32>
    %121 = arith.maximumf %119, %120 : vector<8x128xf32>
    %c0_54 = arith.constant 0 : index
    %c0_55 = arith.constant 0 : index
    %c0_56 = arith.constant 0 : index
    %122 = vector.load %arg9[%c0_54, %c0_55, %c0_56] : memref<2x128x32xf32, #tpu.memory_space<vmem>>, vector<1x128x32xf32>
    %123 = vector.shape_cast %122 : vector<1x128x32xf32> to vector<128x32xf32>
    %cst_57 = arith.constant dense<0.000000e+00> : vector<8x32xf32>
    %124 = tpu.matmul %121, %123, %cst_57 {dimension_numbers = #tpu.dot_dimension_numbers<[1], [0], [0], [1], [0, 0, 1, 1], [], []>} : vector<8x128xf32>, vector<128x32xf32>, vector<8x32xf32> -> vector<8x32xf32>
    %c0_58 = arith.constant 0 : index
    %c0_59 = arith.constant 0 : index
    %c0_60 = arith.constant 0 : index
    %125 = vector.load %arg10[%c0_58, %c0_59, %c0_60] : memref<2x1x32xf32, #tpu.memory_space<vmem>>, vector<1x1x32xf32>
    %126 = vector.shape_cast %125 : vector<1x1x32xf32> to vector<1x32xf32>
    %127 = vector.broadcast %126 : vector<1x32xf32> to vector<8x32xf32>
    %128 = arith.addf %124, %127 : vector<8x32xf32>
    %129 = arith.addf %112, %128 : vector<8x32xf32>
    %c0_61 = arith.constant 0 : index
    %c0_62 = arith.constant 0 : index
    %c0_63 = arith.constant 0 : index
    %130 = vector.load %arg13[%c0_61, %c0_62, %c0_63] : memref<2x1x32xf32, #tpu.memory_space<vmem>>, vector<1x1x32xf32>
    %131 = vector.shape_cast %130 : vector<1x1x32xf32> to vector<1x32xf32>
    %c0_64 = arith.constant 0 : index
    %c0_65 = arith.constant 0 : index
    %c0_66 = arith.constant 0 : index
    %132 = vector.load %arg14[%c0_64, %c0_65, %c0_66] : memref<2x1x32xf32, #tpu.memory_space<vmem>>, vector<1x1x32xf32>
    %133 = vector.shape_cast %132 : vector<1x1x32xf32> to vector<1x32xf32>
    %cst_67 = arith.constant dense<0.000000e+00> : vector<8xf32>
    %134 = vector.multi_reduction <add>, %129, %cst_67 [1] : vector<8x32xf32> to vector<8xf32>
    %135 = vector.shape_cast %134 : vector<8xf32> to vector<8x1xf32>
    %cst_68 = arith.constant 3.200000e+01 : f32
    %136 = vector.broadcast %cst_68 : f32 to vector<8x1xf32>
    %137 = arith.divf %135, %136 : vector<8x1xf32>
    %138 = vector.broadcast %137 : vector<8x1xf32> to vector<8x32xf32>
    %139 = arith.subf %129, %138 : vector<8x32xf32>
    %140 = arith.mulf %139, %139 : vector<8x32xf32>
    %cst_69 = arith.constant dense<0.000000e+00> : vector<8xf32>
    %141 = vector.multi_reduction <add>, %140, %cst_69 [1] : vector<8x32xf32> to vector<8xf32>
    %142 = vector.shape_cast %141 : vector<8xf32> to vector<8x1xf32>
    %cst_70 = arith.constant 3.200000e+01 : f32
    %143 = vector.broadcast %cst_70 : f32 to vector<8x1xf32>
    %144 = arith.divf %142, %143 : vector<8x1xf32>
    %cst_71 = arith.constant 9.99999974E-6 : f32
    %145 = vector.broadcast %cst_71 : f32 to vector<8x1xf32>
    %146 = arith.addf %144, %145 : vector<8x1xf32>
    %147 = math.rsqrt %146 : vector<8x1xf32>
    %148 = vector.broadcast %147 : vector<8x1xf32> to vector<8x32xf32>
    %149 = arith.mulf %139, %148 : vector<8x32xf32>
    %150 = vector.broadcast %131 : vector<1x32xf32> to vector<8x32xf32>
    %151 = arith.mulf %149, %150 : vector<8x32xf32>
    %152 = vector.broadcast %133 : vector<1x32xf32> to vector<8x32xf32>
    %153 = arith.addf %151, %152 : vector<8x32xf32>
    %c1 = arith.constant 1 : index
    %c0_72 = arith.constant 0 : index
    %c0_73 = arith.constant 0 : index
    %154 = vector.load %arg3[%c1, %c0_72, %c0_73] : memref<2x32x96xf32, #tpu.memory_space<vmem>>, vector<1x32x96xf32>
    %155 = vector.shape_cast %154 : vector<1x32x96xf32> to vector<32x96xf32>
    %cst_74 = arith.constant dense<0.000000e+00> : vector<8x96xf32>
    %156 = tpu.matmul %153, %155, %cst_74 {dimension_numbers = #tpu.dot_dimension_numbers<[1], [0], [0], [1], [0, 0, 1, 1], [], []>} : vector<8x32xf32>, vector<32x96xf32>, vector<8x96xf32> -> vector<8x96xf32>
    %c1_75 = arith.constant 1 : index
    %c0_76 = arith.constant 0 : index
    %c0_77 = arith.constant 0 : index
    %157 = vector.load %arg4[%c1_75, %c0_76, %c0_77] : memref<2x1x96xf32, #tpu.memory_space<vmem>>, vector<1x1x96xf32>
    %158 = vector.shape_cast %157 : vector<1x1x96xf32> to vector<1x96xf32>
    %159 = vector.broadcast %158 : vector<1x96xf32> to vector<8x96xf32>
    %160 = arith.addf %156, %159 : vector<8x96xf32>
    %161 = vector.extract_strided_slice %160 {offsets = [0, 0], sizes = [8, 32], strides = [1, 1]} : vector<8x96xf32> to vector<8x32xf32>
    %162 = vector.extract_strided_slice %160 {offsets = [0, 32], sizes = [8, 32], strides = [1, 1]} : vector<8x96xf32> to vector<8x32xf32>
    %163 = vector.extract_strided_slice %160 {offsets = [0, 64], sizes = [8, 32], strides = [1, 1]} : vector<8x96xf32> to vector<8x32xf32>
    %164 = vector.extract_strided_slice %161 {offsets = [0, 0], sizes = [8, 8], strides = [1, 1]} : vector<8x32xf32> to vector<8x8xf32>
    %165 = vector.extract_strided_slice %162 {offsets = [0, 0], sizes = [8, 8], strides = [1, 1]} : vector<8x32xf32> to vector<8x8xf32>
    %166 = vector.extract_strided_slice %163 {offsets = [0, 0], sizes = [8, 8], strides = [1, 1]} : vector<8x32xf32> to vector<8x8xf32>
    %cst_78 = arith.constant dense<0.000000e+00> : vector<8x8xf32>
    %167 = tpu.matmul %164, %165, %cst_78 {dimension_numbers = #tpu.dot_dimension_numbers<[1], [1], [0], [0], [0, 0, 1, 0], [], []>} : vector<8x8xf32>, vector<8x8xf32>, vector<8x8xf32> -> vector<8x8xf32>
    %cst_79 = arith.constant 0.353553385 : f32
    %168 = vector.broadcast %cst_79 : f32 to vector<8x8xf32>
    %169 = arith.mulf %167, %168 : vector<8x8xf32>
    %cst_80 = arith.constant dense<0xFF800000> : vector<8xf32>
    %170 = vector.multi_reduction <maximumf>, %169, %cst_80 [1] : vector<8x8xf32> to vector<8xf32>
    %171 = vector.shape_cast %170 : vector<8xf32> to vector<8x1xf32>
    %172 = vector.broadcast %171 : vector<8x1xf32> to vector<8x8xf32>
    %173 = arith.subf %169, %172 : vector<8x8xf32>
    %174 = math.exp %173 : vector<8x8xf32>
    %cst_81 = arith.constant dense<0.000000e+00> : vector<8xf32>
    %175 = vector.multi_reduction <add>, %174, %cst_81 [1] : vector<8x8xf32> to vector<8xf32>
    %176 = vector.shape_cast %175 : vector<8xf32> to vector<8x1xf32>
    %177 = tpu.reciprocal %176 {approx = true} : vector<8x1xf32> -> vector<8x1xf32>
    %178 = vector.broadcast %177 : vector<8x1xf32> to vector<8x8xf32>
    %179 = arith.mulf %174, %178 : vector<8x8xf32>
    %cst_82 = arith.constant dense<0.000000e+00> : vector<8x8xf32>
    %180 = tpu.matmul %179, %166, %cst_82 {dimension_numbers = #tpu.dot_dimension_numbers<[1], [0], [0], [1], [0, 0, 1, 1], [], []>} : vector<8x8xf32>, vector<8x8xf32>, vector<8x8xf32> -> vector<8x8xf32>
    %181 = vector.extract_strided_slice %161 {offsets = [0, 8], sizes = [8, 8], strides = [1, 1]} : vector<8x32xf32> to vector<8x8xf32>
    %182 = vector.extract_strided_slice %162 {offsets = [0, 8], sizes = [8, 8], strides = [1, 1]} : vector<8x32xf32> to vector<8x8xf32>
    %183 = vector.extract_strided_slice %163 {offsets = [0, 8], sizes = [8, 8], strides = [1, 1]} : vector<8x32xf32> to vector<8x8xf32>
    %cst_83 = arith.constant dense<0.000000e+00> : vector<8x8xf32>
    %184 = tpu.matmul %181, %182, %cst_83 {dimension_numbers = #tpu.dot_dimension_numbers<[1], [1], [0], [0], [0, 0, 1, 0], [], []>} : vector<8x8xf32>, vector<8x8xf32>, vector<8x8xf32> -> vector<8x8xf32>
    %cst_84 = arith.constant 0.353553385 : f32
    %185 = vector.broadcast %cst_84 : f32 to vector<8x8xf32>
    %186 = arith.mulf %184, %185 : vector<8x8xf32>
    %cst_85 = arith.constant dense<0xFF800000> : vector<8xf32>
    %187 = vector.multi_reduction <maximumf>, %186, %cst_85 [1] : vector<8x8xf32> to vector<8xf32>
    %188 = vector.shape_cast %187 : vector<8xf32> to vector<8x1xf32>
    %189 = vector.broadcast %188 : vector<8x1xf32> to vector<8x8xf32>
    %190 = arith.subf %186, %189 : vector<8x8xf32>
    %191 = math.exp %190 : vector<8x8xf32>
    %cst_86 = arith.constant dense<0.000000e+00> : vector<8xf32>
    %192 = vector.multi_reduction <add>, %191, %cst_86 [1] : vector<8x8xf32> to vector<8xf32>
    %193 = vector.shape_cast %192 : vector<8xf32> to vector<8x1xf32>
    %194 = tpu.reciprocal %193 {approx = true} : vector<8x1xf32> -> vector<8x1xf32>
    %195 = vector.broadcast %194 : vector<8x1xf32> to vector<8x8xf32>
    %196 = arith.mulf %191, %195 : vector<8x8xf32>
    %cst_87 = arith.constant dense<0.000000e+00> : vector<8x8xf32>
    %197 = tpu.matmul %196, %183, %cst_87 {dimension_numbers = #tpu.dot_dimension_numbers<[1], [0], [0], [1], [0, 0, 1, 1], [], []>} : vector<8x8xf32>, vector<8x8xf32>, vector<8x8xf32> -> vector<8x8xf32>
    %198 = vector.extract_strided_slice %161 {offsets = [0, 16], sizes = [8, 8], strides = [1, 1]} : vector<8x32xf32> to vector<8x8xf32>
    %199 = vector.extract_strided_slice %162 {offsets = [0, 16], sizes = [8, 8], strides = [1, 1]} : vector<8x32xf32> to vector<8x8xf32>
    %200 = vector.extract_strided_slice %163 {offsets = [0, 16], sizes = [8, 8], strides = [1, 1]} : vector<8x32xf32> to vector<8x8xf32>
    %cst_88 = arith.constant dense<0.000000e+00> : vector<8x8xf32>
    %201 = tpu.matmul %198, %199, %cst_88 {dimension_numbers = #tpu.dot_dimension_numbers<[1], [1], [0], [0], [0, 0, 1, 0], [], []>} : vector<8x8xf32>, vector<8x8xf32>, vector<8x8xf32> -> vector<8x8xf32>
    %cst_89 = arith.constant 0.353553385 : f32
    %202 = vector.broadcast %cst_89 : f32 to vector<8x8xf32>
    %203 = arith.mulf %201, %202 : vector<8x8xf32>
    %cst_90 = arith.constant dense<0xFF800000> : vector<8xf32>
    %204 = vector.multi_reduction <maximumf>, %203, %cst_90 [1] : vector<8x8xf32> to vector<8xf32>
    %205 = vector.shape_cast %204 : vector<8xf32> to vector<8x1xf32>
    %206 = vector.broadcast %205 : vector<8x1xf32> to vector<8x8xf32>
    %207 = arith.subf %203, %206 : vector<8x8xf32>
    %208 = math.exp %207 : vector<8x8xf32>
    %cst_91 = arith.constant dense<0.000000e+00> : vector<8xf32>
    %209 = vector.multi_reduction <add>, %208, %cst_91 [1] : vector<8x8xf32> to vector<8xf32>
    %210 = vector.shape_cast %209 : vector<8xf32> to vector<8x1xf32>
    %211 = tpu.reciprocal %210 {approx = true} : vector<8x1xf32> -> vector<8x1xf32>
    %212 = vector.broadcast %211 : vector<8x1xf32> to vector<8x8xf32>
    %213 = arith.mulf %208, %212 : vector<8x8xf32>
    %cst_92 = arith.constant dense<0.000000e+00> : vector<8x8xf32>
    %214 = tpu.matmul %213, %200, %cst_92 {dimension_numbers = #tpu.dot_dimension_numbers<[1], [0], [0], [1], [0, 0, 1, 1], [], []>} : vector<8x8xf32>, vector<8x8xf32>, vector<8x8xf32> -> vector<8x8xf32>
    %215 = vector.extract_strided_slice %161 {offsets = [0, 24], sizes = [8, 8], strides = [1, 1]} : vector<8x32xf32> to vector<8x8xf32>
    %216 = vector.extract_strided_slice %162 {offsets = [0, 24], sizes = [8, 8], strides = [1, 1]} : vector<8x32xf32> to vector<8x8xf32>
    %217 = vector.extract_strided_slice %163 {offsets = [0, 24], sizes = [8, 8], strides = [1, 1]} : vector<8x32xf32> to vector<8x8xf32>
    %cst_93 = arith.constant dense<0.000000e+00> : vector<8x8xf32>
    %218 = tpu.matmul %215, %216, %cst_93 {dimension_numbers = #tpu.dot_dimension_numbers<[1], [1], [0], [0], [0, 0, 1, 0], [], []>} : vector<8x8xf32>, vector<8x8xf32>, vector<8x8xf32> -> vector<8x8xf32>
    %cst_94 = arith.constant 0.353553385 : f32
    %219 = vector.broadcast %cst_94 : f32 to vector<8x8xf32>
    %220 = arith.mulf %218, %219 : vector<8x8xf32>
    %cst_95 = arith.constant dense<0xFF800000> : vector<8xf32>
    %221 = vector.multi_reduction <maximumf>, %220, %cst_95 [1] : vector<8x8xf32> to vector<8xf32>
    %222 = vector.shape_cast %221 : vector<8xf32> to vector<8x1xf32>
    %223 = vector.broadcast %222 : vector<8x1xf32> to vector<8x8xf32>
    %224 = arith.subf %220, %223 : vector<8x8xf32>
    %225 = math.exp %224 : vector<8x8xf32>
    %cst_96 = arith.constant dense<0.000000e+00> : vector<8xf32>
    %226 = vector.multi_reduction <add>, %225, %cst_96 [1] : vector<8x8xf32> to vector<8xf32>
    %227 = vector.shape_cast %226 : vector<8xf32> to vector<8x1xf32>
    %228 = tpu.reciprocal %227 {approx = true} : vector<8x1xf32> -> vector<8x1xf32>
    %229 = vector.broadcast %228 : vector<8x1xf32> to vector<8x8xf32>
    %230 = arith.mulf %225, %229 : vector<8x8xf32>
    %cst_97 = arith.constant dense<0.000000e+00> : vector<8x8xf32>
    %231 = tpu.matmul %230, %217, %cst_97 {dimension_numbers = #tpu.dot_dimension_numbers<[1], [0], [0], [1], [0, 0, 1, 1], [], []>} : vector<8x8xf32>, vector<8x8xf32>, vector<8x8xf32> -> vector<8x8xf32>
    %232 = tpu.concatenate %180, %197, %214, %231 in 1 : vector<8x8xf32>, vector<8x8xf32>, vector<8x8xf32>, vector<8x8xf32> -> vector<8x32xf32>
    %c1_98 = arith.constant 1 : index
    %c0_99 = arith.constant 0 : index
    %c0_100 = arith.constant 0 : index
    %233 = vector.load %arg5[%c1_98, %c0_99, %c0_100] : memref<2x32x32xf32, #tpu.memory_space<vmem>>, vector<1x32x32xf32>
    %234 = vector.shape_cast %233 : vector<1x32x32xf32> to vector<32x32xf32>
    %cst_101 = arith.constant dense<0.000000e+00> : vector<8x32xf32>
    %235 = tpu.matmul %232, %234, %cst_101 {dimension_numbers = #tpu.dot_dimension_numbers<[1], [0], [0], [1], [0, 0, 1, 1], [], []>} : vector<8x32xf32>, vector<32x32xf32>, vector<8x32xf32> -> vector<8x32xf32>
    %c1_102 = arith.constant 1 : index
    %c0_103 = arith.constant 0 : index
    %c0_104 = arith.constant 0 : index
    %236 = vector.load %arg6[%c1_102, %c0_103, %c0_104] : memref<2x1x32xf32, #tpu.memory_space<vmem>>, vector<1x1x32xf32>
    %237 = vector.shape_cast %236 : vector<1x1x32xf32> to vector<1x32xf32>
    %238 = vector.broadcast %237 : vector<1x32xf32> to vector<8x32xf32>
    %239 = arith.addf %235, %238 : vector<8x32xf32>
    %240 = arith.addf %153, %239 : vector<8x32xf32>
    %c1_105 = arith.constant 1 : index
    %c0_106 = arith.constant 0 : index
    %c0_107 = arith.constant 0 : index
    %241 = vector.load %arg11[%c1_105, %c0_106, %c0_107] : memref<2x1x32xf32, #tpu.memory_space<vmem>>, vector<1x1x32xf32>
    %242 = vector.shape_cast %241 : vector<1x1x32xf32> to vector<1x32xf32>
    %c1_108 = arith.constant 1 : index
    %c0_109 = arith.constant 0 : index
    %c0_110 = arith.constant 0 : index
    %243 = vector.load %arg12[%c1_108, %c0_109, %c0_110] : memref<2x1x32xf32, #tpu.memory_space<vmem>>, vector<1x1x32xf32>
    %244 = vector.shape_cast %243 : vector<1x1x32xf32> to vector<1x32xf32>
    %cst_111 = arith.constant dense<0.000000e+00> : vector<8xf32>
    %245 = vector.multi_reduction <add>, %240, %cst_111 [1] : vector<8x32xf32> to vector<8xf32>
    %246 = vector.shape_cast %245 : vector<8xf32> to vector<8x1xf32>
    %cst_112 = arith.constant 3.200000e+01 : f32
    %247 = vector.broadcast %cst_112 : f32 to vector<8x1xf32>
    %248 = arith.divf %246, %247 : vector<8x1xf32>
    %249 = vector.broadcast %248 : vector<8x1xf32> to vector<8x32xf32>
    %250 = arith.subf %240, %249 : vector<8x32xf32>
    %251 = arith.mulf %250, %250 : vector<8x32xf32>
    %cst_113 = arith.constant dense<0.000000e+00> : vector<8xf32>
    %252 = vector.multi_reduction <add>, %251, %cst_113 [1] : vector<8x32xf32> to vector<8xf32>
    %253 = vector.shape_cast %252 : vector<8xf32> to vector<8x1xf32>
    %cst_114 = arith.constant 3.200000e+01 : f32
    %254 = vector.broadcast %cst_114 : f32 to vector<8x1xf32>
    %255 = arith.divf %253, %254 : vector<8x1xf32>
    %cst_115 = arith.constant 9.99999974E-6 : f32
    %256 = vector.broadcast %cst_115 : f32 to vector<8x1xf32>
    %257 = arith.addf %255, %256 : vector<8x1xf32>
    %258 = math.rsqrt %257 : vector<8x1xf32>
    %259 = vector.broadcast %258 : vector<8x1xf32> to vector<8x32xf32>
    %260 = arith.mulf %250, %259 : vector<8x32xf32>
    %261 = vector.broadcast %242 : vector<1x32xf32> to vector<8x32xf32>
    %262 = arith.mulf %260, %261 : vector<8x32xf32>
    %263 = vector.broadcast %244 : vector<1x32xf32> to vector<8x32xf32>
    %264 = arith.addf %262, %263 : vector<8x32xf32>
    %c1_116 = arith.constant 1 : index
    %c0_117 = arith.constant 0 : index
    %c0_118 = arith.constant 0 : index
    %265 = vector.load %arg7[%c1_116, %c0_117, %c0_118] : memref<2x32x128xf32, #tpu.memory_space<vmem>>, vector<1x32x128xf32>
    %266 = vector.shape_cast %265 : vector<1x32x128xf32> to vector<32x128xf32>
    %cst_119 = arith.constant dense<0.000000e+00> : vector<8x128xf32>
    %267 = tpu.matmul %264, %266, %cst_119 {dimension_numbers = #tpu.dot_dimension_numbers<[1], [0], [0], [1], [0, 0, 1, 1], [], []>} : vector<8x32xf32>, vector<32x128xf32>, vector<8x128xf32> -> vector<8x128xf32>
    %c1_120 = arith.constant 1 : index
    %c0_121 = arith.constant 0 : index
    %c0_122 = arith.constant 0 : index
    %268 = vector.load %arg8[%c1_120, %c0_121, %c0_122] : memref<2x1x128xf32, #tpu.memory_space<vmem>>, vector<1x1x128xf32>
    %269 = vector.shape_cast %268 : vector<1x1x128xf32> to vector<1x128xf32>
    %270 = vector.broadcast %269 : vector<1x128xf32> to vector<8x128xf32>
    %271 = arith.addf %267, %270 : vector<8x128xf32>
    %cst_123 = arith.constant 0.000000e+00 : f32
    %272 = vector.broadcast %cst_123 : f32 to vector<8x128xf32>
    %273 = arith.maximumf %271, %272 : vector<8x128xf32>
    %c1_124 = arith.constant 1 : index
    %c0_125 = arith.constant 0 : index
    %c0_126 = arith.constant 0 : index
    %274 = vector.load %arg9[%c1_124, %c0_125, %c0_126] : memref<2x128x32xf32, #tpu.memory_space<vmem>>, vector<1x128x32xf32>
    %275 = vector.shape_cast %274 : vector<1x128x32xf32> to vector<128x32xf32>
    %cst_127 = arith.constant dense<0.000000e+00> : vector<8x32xf32>
    %276 = tpu.matmul %273, %275, %cst_127 {dimension_numbers = #tpu.dot_dimension_numbers<[1], [0], [0], [1], [0, 0, 1, 1], [], []>} : vector<8x128xf32>, vector<128x32xf32>, vector<8x32xf32> -> vector<8x32xf32>
    %c1_128 = arith.constant 1 : index
    %c0_129 = arith.constant 0 : index
    %c0_130 = arith.constant 0 : index
    %277 = vector.load %arg10[%c1_128, %c0_129, %c0_130] : memref<2x1x32xf32, #tpu.memory_space<vmem>>, vector<1x1x32xf32>
    %278 = vector.shape_cast %277 : vector<1x1x32xf32> to vector<1x32xf32>
    %279 = vector.broadcast %278 : vector<1x32xf32> to vector<8x32xf32>
    %280 = arith.addf %276, %279 : vector<8x32xf32>
    %281 = arith.addf %264, %280 : vector<8x32xf32>
    %c1_131 = arith.constant 1 : index
    %c0_132 = arith.constant 0 : index
    %c0_133 = arith.constant 0 : index
    %282 = vector.load %arg13[%c1_131, %c0_132, %c0_133] : memref<2x1x32xf32, #tpu.memory_space<vmem>>, vector<1x1x32xf32>
    %283 = vector.shape_cast %282 : vector<1x1x32xf32> to vector<1x32xf32>
    %c1_134 = arith.constant 1 : index
    %c0_135 = arith.constant 0 : index
    %c0_136 = arith.constant 0 : index
    %284 = vector.load %arg14[%c1_134, %c0_135, %c0_136] : memref<2x1x32xf32, #tpu.memory_space<vmem>>, vector<1x1x32xf32>
    %285 = vector.shape_cast %284 : vector<1x1x32xf32> to vector<1x32xf32>
    %cst_137 = arith.constant dense<0.000000e+00> : vector<8xf32>
    %286 = vector.multi_reduction <add>, %281, %cst_137 [1] : vector<8x32xf32> to vector<8xf32>
    %287 = vector.shape_cast %286 : vector<8xf32> to vector<8x1xf32>
    %cst_138 = arith.constant 3.200000e+01 : f32
    %288 = vector.broadcast %cst_138 : f32 to vector<8x1xf32>
    %289 = arith.divf %287, %288 : vector<8x1xf32>
    %290 = vector.broadcast %289 : vector<8x1xf32> to vector<8x32xf32>
    %291 = arith.subf %281, %290 : vector<8x32xf32>
    %292 = arith.mulf %291, %291 : vector<8x32xf32>
    %cst_139 = arith.constant dense<0.000000e+00> : vector<8xf32>
    %293 = vector.multi_reduction <add>, %292, %cst_139 [1] : vector<8x32xf32> to vector<8xf32>
    %294 = vector.shape_cast %293 : vector<8xf32> to vector<8x1xf32>
    %cst_140 = arith.constant 3.200000e+01 : f32
    %295 = vector.broadcast %cst_140 : f32 to vector<8x1xf32>
    %296 = arith.divf %294, %295 : vector<8x1xf32>
    %cst_141 = arith.constant 9.99999974E-6 : f32
    %297 = vector.broadcast %cst_141 : f32 to vector<8x1xf32>
    %298 = arith.addf %296, %297 : vector<8x1xf32>
    %299 = math.rsqrt %298 : vector<8x1xf32>
    %300 = vector.broadcast %299 : vector<8x1xf32> to vector<8x32xf32>
    %301 = arith.mulf %291, %300 : vector<8x32xf32>
    %302 = vector.broadcast %283 : vector<1x32xf32> to vector<8x32xf32>
    %303 = arith.mulf %301, %302 : vector<8x32xf32>
    %304 = vector.broadcast %285 : vector<1x32xf32> to vector<8x32xf32>
    %305 = arith.addf %303, %304 : vector<8x32xf32>
    %c0_142 = arith.constant 0 : index
    %c0_143 = arith.constant 0 : index
    %306 = vector.load %arg15[%c0_142, %c0_143] : memref<1x32xf32, #tpu.memory_space<vmem>>, vector<1x32xf32>
    %c0_144 = arith.constant 0 : index
    %c0_145 = arith.constant 0 : index
    %307 = vector.load %arg16[%c0_144, %c0_145] : memref<1x32xf32, #tpu.memory_space<vmem>>, vector<1x32xf32>
    %cst_146 = arith.constant dense<0.000000e+00> : vector<8xf32>
    %308 = vector.multi_reduction <add>, %305, %cst_146 [1] : vector<8x32xf32> to vector<8xf32>
    %309 = vector.shape_cast %308 : vector<8xf32> to vector<8x1xf32>
    %cst_147 = arith.constant 3.200000e+01 : f32
    %310 = vector.broadcast %cst_147 : f32 to vector<8x1xf32>
    %311 = arith.divf %309, %310 : vector<8x1xf32>
    %312 = vector.broadcast %311 : vector<8x1xf32> to vector<8x32xf32>
    %313 = arith.subf %305, %312 : vector<8x32xf32>
    %314 = arith.mulf %313, %313 : vector<8x32xf32>
    %cst_148 = arith.constant dense<0.000000e+00> : vector<8xf32>
    %315 = vector.multi_reduction <add>, %314, %cst_148 [1] : vector<8x32xf32> to vector<8xf32>
    %316 = vector.shape_cast %315 : vector<8xf32> to vector<8x1xf32>
    %cst_149 = arith.constant 3.200000e+01 : f32
    %317 = vector.broadcast %cst_149 : f32 to vector<8x1xf32>
    %318 = arith.divf %316, %317 : vector<8x1xf32>
    %cst_150 = arith.constant 9.99999974E-6 : f32
    %319 = vector.broadcast %cst_150 : f32 to vector<8x1xf32>
    %320 = arith.addf %318, %319 : vector<8x1xf32>
    %321 = math.rsqrt %320 : vector<8x1xf32>
    %322 = vector.broadcast %321 : vector<8x1xf32> to vector<8x32xf32>
    %323 = arith.mulf %313, %322 : vector<8x32xf32>
    %324 = vector.broadcast %306 : vector<1x32xf32> to vector<8x32xf32>
    %325 = arith.mulf %323, %324 : vector<8x32xf32>
    %326 = vector.broadcast %307 : vector<1x32xf32> to vector<8x32xf32>
    %327 = arith.addf %325, %326 : vector<8x32xf32>
    %c0_151 = arith.constant 0 : index
    %c0_152 = arith.constant 0 : index
    %c0_153 = arith.constant 0 : index
    %328 = vector.load %arg2[%c0_151, %c0_152, %c0_153] : memref<1x8x32xf32, #tpu.memory_space<vmem>>, vector<1x8x32xf32>
    %329 = vector.shape_cast %328 : vector<1x8x32xf32> to vector<8x32xf32>
    %c0_154 = arith.constant 0 : index
    %c0_155 = arith.constant 0 : index
    %c0_156 = arith.constant 0 : index
    %330 = vector.load %arg17[%c0_154, %c0_155, %c0_156] : memref<2x32x96xf32, #tpu.memory_space<vmem>>, vector<1x32x96xf32>
    %331 = vector.shape_cast %330 : vector<1x32x96xf32> to vector<32x96xf32>
    %cst_157 = arith.constant dense<0.000000e+00> : vector<8x96xf32>
    %332 = tpu.matmul %329, %331, %cst_157 {dimension_numbers = #tpu.dot_dimension_numbers<[1], [0], [0], [1], [0, 0, 1, 1], [], []>} : vector<8x32xf32>, vector<32x96xf32>, vector<8x96xf32> -> vector<8x96xf32>
    %333 = vector.extract_strided_slice %332 {offsets = [0, 0], sizes = [8, 32], strides = [1, 1]} : vector<8x96xf32> to vector<8x32xf32>
    %334 = vector.extract_strided_slice %332 {offsets = [0, 32], sizes = [8, 32], strides = [1, 1]} : vector<8x96xf32> to vector<8x32xf32>
    %335 = vector.extract_strided_slice %332 {offsets = [0, 64], sizes = [8, 32], strides = [1, 1]} : vector<8x96xf32> to vector<8x32xf32>
    %336 = tpu.iota {dimensions = array<i32: 0>} : vector<8x8xi32>
    %337 = tpu.iota {dimensions = array<i32: 1>} : vector<8x8xi32>
    %338 = arith.cmpi sle, %337, %336 : vector<8x8xi32>
    %339 = vector.extract_strided_slice %333 {offsets = [0, 0], sizes = [8, 8], strides = [1, 1]} : vector<8x32xf32> to vector<8x8xf32>
    %340 = vector.extract_strided_slice %334 {offsets = [0, 0], sizes = [8, 8], strides = [1, 1]} : vector<8x32xf32> to vector<8x8xf32>
    %341 = vector.extract_strided_slice %335 {offsets = [0, 0], sizes = [8, 8], strides = [1, 1]} : vector<8x32xf32> to vector<8x8xf32>
    %cst_158 = arith.constant dense<0.000000e+00> : vector<8x8xf32>
    %342 = tpu.matmul %339, %340, %cst_158 {dimension_numbers = #tpu.dot_dimension_numbers<[1], [1], [0], [0], [0, 0, 1, 0], [], []>} : vector<8x8xf32>, vector<8x8xf32>, vector<8x8xf32> -> vector<8x8xf32>
    %cst_159 = arith.constant 0.353553385 : f32
    %343 = vector.broadcast %cst_159 : f32 to vector<8x8xf32>
    %344 = arith.mulf %342, %343 : vector<8x8xf32>
    %cst_160 = arith.constant 0xFF800000 : f32
    %345 = vector.broadcast %cst_160 : f32 to vector<8x8xf32>
    %346 = arith.select %338, %344, %345 : vector<8x8xi1>, vector<8x8xf32>
    %cst_161 = arith.constant dense<0xFF800000> : vector<8xf32>
    %347 = vector.multi_reduction <maximumf>, %346, %cst_161 [1] : vector<8x8xf32> to vector<8xf32>
    %348 = vector.shape_cast %347 : vector<8xf32> to vector<8x1xf32>
    %349 = vector.broadcast %348 : vector<8x1xf32> to vector<8x8xf32>
    %350 = arith.subf %346, %349 : vector<8x8xf32>
    %351 = math.exp %350 : vector<8x8xf32>
    %cst_162 = arith.constant dense<0.000000e+00> : vector<8xf32>
    %352 = vector.multi_reduction <add>, %351, %cst_162 [1] : vector<8x8xf32> to vector<8xf32>
    %353 = vector.shape_cast %352 : vector<8xf32> to vector<8x1xf32>
    %354 = tpu.reciprocal %353 {approx = true} : vector<8x1xf32> -> vector<8x1xf32>
    %355 = vector.broadcast %354 : vector<8x1xf32> to vector<8x8xf32>
    %356 = arith.mulf %351, %355 : vector<8x8xf32>
    %cst_163 = arith.constant dense<0.000000e+00> : vector<8x8xf32>
    %357 = tpu.matmul %356, %341, %cst_163 {dimension_numbers = #tpu.dot_dimension_numbers<[1], [0], [0], [1], [0, 0, 1, 1], [], []>} : vector<8x8xf32>, vector<8x8xf32>, vector<8x8xf32> -> vector<8x8xf32>
    %358 = vector.extract_strided_slice %333 {offsets = [0, 8], sizes = [8, 8], strides = [1, 1]} : vector<8x32xf32> to vector<8x8xf32>
    %359 = vector.extract_strided_slice %334 {offsets = [0, 8], sizes = [8, 8], strides = [1, 1]} : vector<8x32xf32> to vector<8x8xf32>
    %360 = vector.extract_strided_slice %335 {offsets = [0, 8], sizes = [8, 8], strides = [1, 1]} : vector<8x32xf32> to vector<8x8xf32>
    %cst_164 = arith.constant dense<0.000000e+00> : vector<8x8xf32>
    %361 = tpu.matmul %358, %359, %cst_164 {dimension_numbers = #tpu.dot_dimension_numbers<[1], [1], [0], [0], [0, 0, 1, 0], [], []>} : vector<8x8xf32>, vector<8x8xf32>, vector<8x8xf32> -> vector<8x8xf32>
    %cst_165 = arith.constant 0.353553385 : f32
    %362 = vector.broadcast %cst_165 : f32 to vector<8x8xf32>
    %363 = arith.mulf %361, %362 : vector<8x8xf32>
    %cst_166 = arith.constant 0xFF800000 : f32
    %364 = vector.broadcast %cst_166 : f32 to vector<8x8xf32>
    %365 = arith.select %338, %363, %364 : vector<8x8xi1>, vector<8x8xf32>
    %cst_167 = arith.constant dense<0xFF800000> : vector<8xf32>
    %366 = vector.multi_reduction <maximumf>, %365, %cst_167 [1] : vector<8x8xf32> to vector<8xf32>
    %367 = vector.shape_cast %366 : vector<8xf32> to vector<8x1xf32>
    %368 = vector.broadcast %367 : vector<8x1xf32> to vector<8x8xf32>
    %369 = arith.subf %365, %368 : vector<8x8xf32>
    %370 = math.exp %369 : vector<8x8xf32>
    %cst_168 = arith.constant dense<0.000000e+00> : vector<8xf32>
    %371 = vector.multi_reduction <add>, %370, %cst_168 [1] : vector<8x8xf32> to vector<8xf32>
    %372 = vector.shape_cast %371 : vector<8xf32> to vector<8x1xf32>
    %373 = tpu.reciprocal %372 {approx = true} : vector<8x1xf32> -> vector<8x1xf32>
    %374 = vector.broadcast %373 : vector<8x1xf32> to vector<8x8xf32>
    %375 = arith.mulf %370, %374 : vector<8x8xf32>
    %cst_169 = arith.constant dense<0.000000e+00> : vector<8x8xf32>
    %376 = tpu.matmul %375, %360, %cst_169 {dimension_numbers = #tpu.dot_dimension_numbers<[1], [0], [0], [1], [0, 0, 1, 1], [], []>} : vector<8x8xf32>, vector<8x8xf32>, vector<8x8xf32> -> vector<8x8xf32>
    %377 = vector.extract_strided_slice %333 {offsets = [0, 16], sizes = [8, 8], strides = [1, 1]} : vector<8x32xf32> to vector<8x8xf32>
    %378 = vector.extract_strided_slice %334 {offsets = [0, 16], sizes = [8, 8], strides = [1, 1]} : vector<8x32xf32> to vector<8x8xf32>
    %379 = vector.extract_strided_slice %335 {offsets = [0, 16], sizes = [8, 8], strides = [1, 1]} : vector<8x32xf32> to vector<8x8xf32>
    %cst_170 = arith.constant dense<0.000000e+00> : vector<8x8xf32>
    %380 = tpu.matmul %377, %378, %cst_170 {dimension_numbers = #tpu.dot_dimension_numbers<[1], [1], [0], [0], [0, 0, 1, 0], [], []>} : vector<8x8xf32>, vector<8x8xf32>, vector<8x8xf32> -> vector<8x8xf32>
    %cst_171 = arith.constant 0.353553385 : f32
    %381 = vector.broadcast %cst_171 : f32 to vector<8x8xf32>
    %382 = arith.mulf %380, %381 : vector<8x8xf32>
    %cst_172 = arith.constant 0xFF800000 : f32
    %383 = vector.broadcast %cst_172 : f32 to vector<8x8xf32>
    %384 = arith.select %338, %382, %383 : vector<8x8xi1>, vector<8x8xf32>
    %cst_173 = arith.constant dense<0xFF800000> : vector<8xf32>
    %385 = vector.multi_reduction <maximumf>, %384, %cst_173 [1] : vector<8x8xf32> to vector<8xf32>
    %386 = vector.shape_cast %385 : vector<8xf32> to vector<8x1xf32>
    %387 = vector.broadcast %386 : vector<8x1xf32> to vector<8x8xf32>
    %388 = arith.subf %384, %387 : vector<8x8xf32>
    %389 = math.exp %388 : vector<8x8xf32>
    %cst_174 = arith.constant dense<0.000000e+00> : vector<8xf32>
    %390 = vector.multi_reduction <add>, %389, %cst_174 [1] : vector<8x8xf32> to vector<8xf32>
    %391 = vector.shape_cast %390 : vector<8xf32> to vector<8x1xf32>
    %392 = tpu.reciprocal %391 {approx = true} : vector<8x1xf32> -> vector<8x1xf32>
    %393 = vector.broadcast %392 : vector<8x1xf32> to vector<8x8xf32>
    %394 = arith.mulf %389, %393 : vector<8x8xf32>
    %cst_175 = arith.constant dense<0.000000e+00> : vector<8x8xf32>
    %395 = tpu.matmul %394, %379, %cst_175 {dimension_numbers = #tpu.dot_dimension_numbers<[1], [0], [0], [1], [0, 0, 1, 1], [], []>} : vector<8x8xf32>, vector<8x8xf32>, vector<8x8xf32> -> vector<8x8xf32>
    %396 = vector.extract_strided_slice %333 {offsets = [0, 24], sizes = [8, 8], strides = [1, 1]} : vector<8x32xf32> to vector<8x8xf32>
    %397 = vector.extract_strided_slice %334 {offsets = [0, 24], sizes = [8, 8], strides = [1, 1]} : vector<8x32xf32> to vector<8x8xf32>
    %398 = vector.extract_strided_slice %335 {offsets = [0, 24], sizes = [8, 8], strides = [1, 1]} : vector<8x32xf32> to vector<8x8xf32>
    %cst_176 = arith.constant dense<0.000000e+00> : vector<8x8xf32>
    %399 = tpu.matmul %396, %397, %cst_176 {dimension_numbers = #tpu.dot_dimension_numbers<[1], [1], [0], [0], [0, 0, 1, 0], [], []>} : vector<8x8xf32>, vector<8x8xf32>, vector<8x8xf32> -> vector<8x8xf32>
    %cst_177 = arith.constant 0.353553385 : f32
    %400 = vector.broadcast %cst_177 : f32 to vector<8x8xf32>
    %401 = arith.mulf %399, %400 : vector<8x8xf32>
    %cst_178 = arith.constant 0xFF800000 : f32
    %402 = vector.broadcast %cst_178 : f32 to vector<8x8xf32>
    %403 = arith.select %338, %401, %402 : vector<8x8xi1>, vector<8x8xf32>
    %cst_179 = arith.constant dense<0xFF800000> : vector<8xf32>
    %404 = vector.multi_reduction <maximumf>, %403, %cst_179 [1] : vector<8x8xf32> to vector<8xf32>
    %405 = vector.shape_cast %404 : vector<8xf32> to vector<8x1xf32>
    %406 = vector.broadcast %405 : vector<8x1xf32> to vector<8x8xf32>
    %407 = arith.subf %403, %406 : vector<8x8xf32>
    %408 = math.exp %407 : vector<8x8xf32>
    %cst_180 = arith.constant dense<0.000000e+00> : vector<8xf32>
    %409 = vector.multi_reduction <add>, %408, %cst_180 [1] : vector<8x8xf32> to vector<8xf32>
    %410 = vector.shape_cast %409 : vector<8xf32> to vector<8x1xf32>
    %411 = tpu.reciprocal %410 {approx = true} : vector<8x1xf32> -> vector<8x1xf32>
    %412 = vector.broadcast %411 : vector<8x1xf32> to vector<8x8xf32>
    %413 = arith.mulf %408, %412 : vector<8x8xf32>
    %cst_181 = arith.constant dense<0.000000e+00> : vector<8x8xf32>
    %414 = tpu.matmul %413, %398, %cst_181 {dimension_numbers = #tpu.dot_dimension_numbers<[1], [0], [0], [1], [0, 0, 1, 1], [], []>} : vector<8x8xf32>, vector<8x8xf32>, vector<8x8xf32> -> vector<8x8xf32>
    %415 = tpu.concatenate %357, %376, %395, %414 in 1 : vector<8x8xf32>, vector<8x8xf32>, vector<8x8xf32>, vector<8x8xf32> -> vector<8x32xf32>
    %c0_182 = arith.constant 0 : index
    %c0_183 = arith.constant 0 : index
    %c0_184 = arith.constant 0 : index
    %416 = vector.load %arg18[%c0_182, %c0_183, %c0_184] : memref<2x32x32xf32, #tpu.memory_space<vmem>>, vector<1x32x32xf32>
    %417 = vector.shape_cast %416 : vector<1x32x32xf32> to vector<32x32xf32>
    %cst_185 = arith.constant dense<0.000000e+00> : vector<8x32xf32>
    %418 = tpu.matmul %415, %417, %cst_185 {dimension_numbers = #tpu.dot_dimension_numbers<[1], [0], [0], [1], [0, 0, 1, 1], [], []>} : vector<8x32xf32>, vector<32x32xf32>, vector<8x32xf32> -> vector<8x32xf32>
    %c0_186 = arith.constant 0 : index
    %c0_187 = arith.constant 0 : index
    %c0_188 = arith.constant 0 : index
    %419 = vector.load %arg19[%c0_186, %c0_187, %c0_188] : memref<2x1x32xf32, #tpu.memory_space<vmem>>, vector<1x1x32xf32>
    %420 = vector.shape_cast %419 : vector<1x1x32xf32> to vector<1x32xf32>
    %421 = vector.broadcast %420 : vector<1x32xf32> to vector<8x32xf32>
    %422 = arith.addf %418, %421 : vector<8x32xf32>
    %423 = arith.addf %329, %422 : vector<8x32xf32>
    %c0_189 = arith.constant 0 : index
    %c0_190 = arith.constant 0 : index
    %c0_191 = arith.constant 0 : index
    %424 = vector.load %arg30[%c0_189, %c0_190, %c0_191] : memref<2x1x32xf32, #tpu.memory_space<vmem>>, vector<1x1x32xf32>
    %425 = vector.shape_cast %424 : vector<1x1x32xf32> to vector<1x32xf32>
    %c0_192 = arith.constant 0 : index
    %c0_193 = arith.constant 0 : index
    %c0_194 = arith.constant 0 : index
    %426 = vector.load %arg31[%c0_192, %c0_193, %c0_194] : memref<2x1x32xf32, #tpu.memory_space<vmem>>, vector<1x1x32xf32>
    %427 = vector.shape_cast %426 : vector<1x1x32xf32> to vector<1x32xf32>
    %cst_195 = arith.constant dense<0.000000e+00> : vector<8xf32>
    %428 = vector.multi_reduction <add>, %423, %cst_195 [1] : vector<8x32xf32> to vector<8xf32>
    %429 = vector.shape_cast %428 : vector<8xf32> to vector<8x1xf32>
    %cst_196 = arith.constant 3.200000e+01 : f32
    %430 = vector.broadcast %cst_196 : f32 to vector<8x1xf32>
    %431 = arith.divf %429, %430 : vector<8x1xf32>
    %432 = vector.broadcast %431 : vector<8x1xf32> to vector<8x32xf32>
    %433 = arith.subf %423, %432 : vector<8x32xf32>
    %434 = arith.mulf %433, %433 : vector<8x32xf32>
    %cst_197 = arith.constant dense<0.000000e+00> : vector<8xf32>
    %435 = vector.multi_reduction <add>, %434, %cst_197 [1] : vector<8x32xf32> to vector<8xf32>
    %436 = vector.shape_cast %435 : vector<8xf32> to vector<8x1xf32>
    %cst_198 = arith.constant 3.200000e+01 : f32
    %437 = vector.broadcast %cst_198 : f32 to vector<8x1xf32>
    %438 = arith.divf %436, %437 : vector<8x1xf32>
    %cst_199 = arith.constant 9.99999974E-6 : f32
    %439 = vector.broadcast %cst_199 : f32 to vector<8x1xf32>
    %440 = arith.addf %438, %439 : vector<8x1xf32>
    %441 = math.rsqrt %440 : vector<8x1xf32>
    %442 = vector.broadcast %441 : vector<8x1xf32> to vector<8x32xf32>
    %443 = arith.mulf %433, %442 : vector<8x32xf32>
    %444 = vector.broadcast %425 : vector<1x32xf32> to vector<8x32xf32>
    %445 = arith.mulf %443, %444 : vector<8x32xf32>
    %446 = vector.broadcast %427 : vector<1x32xf32> to vector<8x32xf32>
    %447 = arith.addf %445, %446 : vector<8x32xf32>
    %c0_200 = arith.constant 0 : index
    %c0_201 = arith.constant 0 : index
    %c0_202 = arith.constant 0 : index
    %448 = vector.load %arg20[%c0_200, %c0_201, %c0_202] : memref<2x32x32xf32, #tpu.memory_space<vmem>>, vector<1x32x32xf32>
    %449 = vector.shape_cast %448 : vector<1x32x32xf32> to vector<32x32xf32>
    %cst_203 = arith.constant dense<0.000000e+00> : vector<8x32xf32>
    %450 = tpu.matmul %447, %449, %cst_203 {dimension_numbers = #tpu.dot_dimension_numbers<[1], [0], [0], [1], [0, 0, 1, 1], [], []>} : vector<8x32xf32>, vector<32x32xf32>, vector<8x32xf32> -> vector<8x32xf32>
    %c0_204 = arith.constant 0 : index
    %c0_205 = arith.constant 0 : index
    %c0_206 = arith.constant 0 : index
    %451 = vector.load %arg21[%c0_204, %c0_205, %c0_206] : memref<2x1x32xf32, #tpu.memory_space<vmem>>, vector<1x1x32xf32>
    %452 = vector.shape_cast %451 : vector<1x1x32xf32> to vector<1x32xf32>
    %453 = vector.broadcast %452 : vector<1x32xf32> to vector<8x32xf32>
    %454 = arith.addf %450, %453 : vector<8x32xf32>
    %c0_207 = arith.constant 0 : index
    %c0_208 = arith.constant 0 : index
    %c0_209 = arith.constant 0 : index
    %455 = vector.load %arg22[%c0_207, %c0_208, %c0_209] : memref<2x32x64xf32, #tpu.memory_space<vmem>>, vector<1x32x64xf32>
    %456 = vector.shape_cast %455 : vector<1x32x64xf32> to vector<32x64xf32>
    %cst_210 = arith.constant dense<0.000000e+00> : vector<8x64xf32>
    %457 = tpu.matmul %327, %456, %cst_210 {dimension_numbers = #tpu.dot_dimension_numbers<[1], [0], [0], [1], [0, 0, 1, 1], [], []>} : vector<8x32xf32>, vector<32x64xf32>, vector<8x64xf32> -> vector<8x64xf32>
    %c0_211 = arith.constant 0 : index
    %c0_212 = arith.constant 0 : index
    %c0_213 = arith.constant 0 : index
    %458 = vector.load %arg23[%c0_211, %c0_212, %c0_213] : memref<2x1x64xf32, #tpu.memory_space<vmem>>, vector<1x1x64xf32>
    %459 = vector.shape_cast %458 : vector<1x1x64xf32> to vector<1x64xf32>
    %460 = vector.broadcast %459 : vector<1x64xf32> to vector<8x64xf32>
    %461 = arith.addf %457, %460 : vector<8x64xf32>
    %462 = vector.extract_strided_slice %461 {offsets = [0, 0], sizes = [8, 32], strides = [1, 1]} : vector<8x64xf32> to vector<8x32xf32>
    %463 = vector.extract_strided_slice %461 {offsets = [0, 32], sizes = [8, 32], strides = [1, 1]} : vector<8x64xf32> to vector<8x32xf32>
    %464 = vector.extract_strided_slice %454 {offsets = [0, 0], sizes = [8, 8], strides = [1, 1]} : vector<8x32xf32> to vector<8x8xf32>
    %465 = vector.extract_strided_slice %462 {offsets = [0, 0], sizes = [8, 8], strides = [1, 1]} : vector<8x32xf32> to vector<8x8xf32>
    %466 = vector.extract_strided_slice %463 {offsets = [0, 0], sizes = [8, 8], strides = [1, 1]} : vector<8x32xf32> to vector<8x8xf32>
    %cst_214 = arith.constant dense<0.000000e+00> : vector<8x8xf32>
    %467 = tpu.matmul %464, %465, %cst_214 {dimension_numbers = #tpu.dot_dimension_numbers<[1], [1], [0], [0], [0, 0, 1, 0], [], []>} : vector<8x8xf32>, vector<8x8xf32>, vector<8x8xf32> -> vector<8x8xf32>
    %cst_215 = arith.constant 0.353553385 : f32
    %468 = vector.broadcast %cst_215 : f32 to vector<8x8xf32>
    %469 = arith.mulf %467, %468 : vector<8x8xf32>
    %cst_216 = arith.constant dense<0xFF800000> : vector<8xf32>
    %470 = vector.multi_reduction <maximumf>, %469, %cst_216 [1] : vector<8x8xf32> to vector<8xf32>
    %471 = vector.shape_cast %470 : vector<8xf32> to vector<8x1xf32>
    %472 = vector.broadcast %471 : vector<8x1xf32> to vector<8x8xf32>
    %473 = arith.subf %469, %472 : vector<8x8xf32>
    %474 = math.exp %473 : vector<8x8xf32>
    %cst_217 = arith.constant dense<0.000000e+00> : vector<8xf32>
    %475 = vector.multi_reduction <add>, %474, %cst_217 [1] : vector<8x8xf32> to vector<8xf32>
    %476 = vector.shape_cast %475 : vector<8xf32> to vector<8x1xf32>
    %477 = tpu.reciprocal %476 {approx = true} : vector<8x1xf32> -> vector<8x1xf32>
    %478 = vector.broadcast %477 : vector<8x1xf32> to vector<8x8xf32>
    %479 = arith.mulf %474, %478 : vector<8x8xf32>
    %cst_218 = arith.constant dense<0.000000e+00> : vector<8x8xf32>
    %480 = tpu.matmul %479, %466, %cst_218 {dimension_numbers = #tpu.dot_dimension_numbers<[1], [0], [0], [1], [0, 0, 1, 1], [], []>} : vector<8x8xf32>, vector<8x8xf32>, vector<8x8xf32> -> vector<8x8xf32>
    %481 = vector.extract_strided_slice %454 {offsets = [0, 8], sizes = [8, 8], strides = [1, 1]} : vector<8x32xf32> to vector<8x8xf32>
    %482 = vector.extract_strided_slice %462 {offsets = [0, 8], sizes = [8, 8], strides = [1, 1]} : vector<8x32xf32> to vector<8x8xf32>
    %483 = vector.extract_strided_slice %463 {offsets = [0, 8], sizes = [8, 8], strides = [1, 1]} : vector<8x32xf32> to vector<8x8xf32>
    %cst_219 = arith.constant dense<0.000000e+00> : vector<8x8xf32>
    %484 = tpu.matmul %481, %482, %cst_219 {dimension_numbers = #tpu.dot_dimension_numbers<[1], [1], [0], [0], [0, 0, 1, 0], [], []>} : vector<8x8xf32>, vector<8x8xf32>, vector<8x8xf32> -> vector<8x8xf32>
    %cst_220 = arith.constant 0.353553385 : f32
    %485 = vector.broadcast %cst_220 : f32 to vector<8x8xf32>
    %486 = arith.mulf %484, %485 : vector<8x8xf32>
    %cst_221 = arith.constant dense<0xFF800000> : vector<8xf32>
    %487 = vector.multi_reduction <maximumf>, %486, %cst_221 [1] : vector<8x8xf32> to vector<8xf32>
    %488 = vector.shape_cast %487 : vector<8xf32> to vector<8x1xf32>
    %489 = vector.broadcast %488 : vector<8x1xf32> to vector<8x8xf32>
    %490 = arith.subf %486, %489 : vector<8x8xf32>
    %491 = math.exp %490 : vector<8x8xf32>
    %cst_222 = arith.constant dense<0.000000e+00> : vector<8xf32>
    %492 = vector.multi_reduction <add>, %491, %cst_222 [1] : vector<8x8xf32> to vector<8xf32>
    %493 = vector.shape_cast %492 : vector<8xf32> to vector<8x1xf32>
    %494 = tpu.reciprocal %493 {approx = true} : vector<8x1xf32> -> vector<8x1xf32>
    %495 = vector.broadcast %494 : vector<8x1xf32> to vector<8x8xf32>
    %496 = arith.mulf %491, %495 : vector<8x8xf32>
    %cst_223 = arith.constant dense<0.000000e+00> : vector<8x8xf32>
    %497 = tpu.matmul %496, %483, %cst_223 {dimension_numbers = #tpu.dot_dimension_numbers<[1], [0], [0], [1], [0, 0, 1, 1], [], []>} : vector<8x8xf32>, vector<8x8xf32>, vector<8x8xf32> -> vector<8x8xf32>
    %498 = vector.extract_strided_slice %454 {offsets = [0, 16], sizes = [8, 8], strides = [1, 1]} : vector<8x32xf32> to vector<8x8xf32>
    %499 = vector.extract_strided_slice %462 {offsets = [0, 16], sizes = [8, 8], strides = [1, 1]} : vector<8x32xf32> to vector<8x8xf32>
    %500 = vector.extract_strided_slice %463 {offsets = [0, 16], sizes = [8, 8], strides = [1, 1]} : vector<8x32xf32> to vector<8x8xf32>
    %cst_224 = arith.constant dense<0.000000e+00> : vector<8x8xf32>
    %501 = tpu.matmul %498, %499, %cst_224 {dimension_numbers = #tpu.dot_dimension_numbers<[1], [1], [0], [0], [0, 0, 1, 0], [], []>} : vector<8x8xf32>, vector<8x8xf32>, vector<8x8xf32> -> vector<8x8xf32>
    %cst_225 = arith.constant 0.353553385 : f32
    %502 = vector.broadcast %cst_225 : f32 to vector<8x8xf32>
    %503 = arith.mulf %501, %502 : vector<8x8xf32>
    %cst_226 = arith.constant dense<0xFF800000> : vector<8xf32>
    %504 = vector.multi_reduction <maximumf>, %503, %cst_226 [1] : vector<8x8xf32> to vector<8xf32>
    %505 = vector.shape_cast %504 : vector<8xf32> to vector<8x1xf32>
    %506 = vector.broadcast %505 : vector<8x1xf32> to vector<8x8xf32>
    %507 = arith.subf %503, %506 : vector<8x8xf32>
    %508 = math.exp %507 : vector<8x8xf32>
    %cst_227 = arith.constant dense<0.000000e+00> : vector<8xf32>
    %509 = vector.multi_reduction <add>, %508, %cst_227 [1] : vector<8x8xf32> to vector<8xf32>
    %510 = vector.shape_cast %509 : vector<8xf32> to vector<8x1xf32>
    %511 = tpu.reciprocal %510 {approx = true} : vector<8x1xf32> -> vector<8x1xf32>
    %512 = vector.broadcast %511 : vector<8x1xf32> to vector<8x8xf32>
    %513 = arith.mulf %508, %512 : vector<8x8xf32>
    %cst_228 = arith.constant dense<0.000000e+00> : vector<8x8xf32>
    %514 = tpu.matmul %513, %500, %cst_228 {dimension_numbers = #tpu.dot_dimension_numbers<[1], [0], [0], [1], [0, 0, 1, 1], [], []>} : vector<8x8xf32>, vector<8x8xf32>, vector<8x8xf32> -> vector<8x8xf32>
    %515 = vector.extract_strided_slice %454 {offsets = [0, 24], sizes = [8, 8], strides = [1, 1]} : vector<8x32xf32> to vector<8x8xf32>
    %516 = vector.extract_strided_slice %462 {offsets = [0, 24], sizes = [8, 8], strides = [1, 1]} : vector<8x32xf32> to vector<8x8xf32>
    %517 = vector.extract_strided_slice %463 {offsets = [0, 24], sizes = [8, 8], strides = [1, 1]} : vector<8x32xf32> to vector<8x8xf32>
    %cst_229 = arith.constant dense<0.000000e+00> : vector<8x8xf32>
    %518 = tpu.matmul %515, %516, %cst_229 {dimension_numbers = #tpu.dot_dimension_numbers<[1], [1], [0], [0], [0, 0, 1, 0], [], []>} : vector<8x8xf32>, vector<8x8xf32>, vector<8x8xf32> -> vector<8x8xf32>
    %cst_230 = arith.constant 0.353553385 : f32
    %519 = vector.broadcast %cst_230 : f32 to vector<8x8xf32>
    %520 = arith.mulf %518, %519 : vector<8x8xf32>
    %cst_231 = arith.constant dense<0xFF800000> : vector<8xf32>
    %521 = vector.multi_reduction <maximumf>, %520, %cst_231 [1] : vector<8x8xf32> to vector<8xf32>
    %522 = vector.shape_cast %521 : vector<8xf32> to vector<8x1xf32>
    %523 = vector.broadcast %522 : vector<8x1xf32> to vector<8x8xf32>
    %524 = arith.subf %520, %523 : vector<8x8xf32>
    %525 = math.exp %524 : vector<8x8xf32>
    %cst_232 = arith.constant dense<0.000000e+00> : vector<8xf32>
    %526 = vector.multi_reduction <add>, %525, %cst_232 [1] : vector<8x8xf32> to vector<8xf32>
    %527 = vector.shape_cast %526 : vector<8xf32> to vector<8x1xf32>
    %528 = tpu.reciprocal %527 {approx = true} : vector<8x1xf32> -> vector<8x1xf32>
    %529 = vector.broadcast %528 : vector<8x1xf32> to vector<8x8xf32>
    %530 = arith.mulf %525, %529 : vector<8x8xf32>
    %cst_233 = arith.constant dense<0.000000e+00> : vector<8x8xf32>
    %531 = tpu.matmul %530, %517, %cst_233 {dimension_numbers = #tpu.dot_dimension_numbers<[1], [0], [0], [1], [0, 0, 1, 1], [], []>} : vector<8x8xf32>, vector<8x8xf32>, vector<8x8xf32> -> vector<8x8xf32>
    %532 = tpu.concatenate %480, %497, %514, %531 in 1 : vector<8x8xf32>, vector<8x8xf32>, vector<8x8xf32>, vector<8x8xf32> -> vector<8x32xf32>
    %c0_234 = arith.constant 0 : index
    %c0_235 = arith.constant 0 : index
    %c0_236 = arith.constant 0 : index
    %533 = vector.load %arg24[%c0_234, %c0_235, %c0_236] : memref<2x32x32xf32, #tpu.memory_space<vmem>>, vector<1x32x32xf32>
    %534 = vector.shape_cast %533 : vector<1x32x32xf32> to vector<32x32xf32>
    %cst_237 = arith.constant dense<0.000000e+00> : vector<8x32xf32>
    %535 = tpu.matmul %532, %534, %cst_237 {dimension_numbers = #tpu.dot_dimension_numbers<[1], [0], [0], [1], [0, 0, 1, 1], [], []>} : vector<8x32xf32>, vector<32x32xf32>, vector<8x32xf32> -> vector<8x32xf32>
    %c0_238 = arith.constant 0 : index
    %c0_239 = arith.constant 0 : index
    %c0_240 = arith.constant 0 : index
    %536 = vector.load %arg25[%c0_238, %c0_239, %c0_240] : memref<2x1x32xf32, #tpu.memory_space<vmem>>, vector<1x1x32xf32>
    %537 = vector.shape_cast %536 : vector<1x1x32xf32> to vector<1x32xf32>
    %538 = vector.broadcast %537 : vector<1x32xf32> to vector<8x32xf32>
    %539 = arith.addf %535, %538 : vector<8x32xf32>
    %540 = arith.addf %447, %539 : vector<8x32xf32>
    %c0_241 = arith.constant 0 : index
    %c0_242 = arith.constant 0 : index
    %c0_243 = arith.constant 0 : index
    %541 = vector.load %arg32[%c0_241, %c0_242, %c0_243] : memref<2x1x32xf32, #tpu.memory_space<vmem>>, vector<1x1x32xf32>
    %542 = vector.shape_cast %541 : vector<1x1x32xf32> to vector<1x32xf32>
    %c0_244 = arith.constant 0 : index
    %c0_245 = arith.constant 0 : index
    %c0_246 = arith.constant 0 : index
    %543 = vector.load %arg33[%c0_244, %c0_245, %c0_246] : memref<2x1x32xf32, #tpu.memory_space<vmem>>, vector<1x1x32xf32>
    %544 = vector.shape_cast %543 : vector<1x1x32xf32> to vector<1x32xf32>
    %cst_247 = arith.constant dense<0.000000e+00> : vector<8xf32>
    %545 = vector.multi_reduction <add>, %540, %cst_247 [1] : vector<8x32xf32> to vector<8xf32>
    %546 = vector.shape_cast %545 : vector<8xf32> to vector<8x1xf32>
    %cst_248 = arith.constant 3.200000e+01 : f32
    %547 = vector.broadcast %cst_248 : f32 to vector<8x1xf32>
    %548 = arith.divf %546, %547 : vector<8x1xf32>
    %549 = vector.broadcast %548 : vector<8x1xf32> to vector<8x32xf32>
    %550 = arith.subf %540, %549 : vector<8x32xf32>
    %551 = arith.mulf %550, %550 : vector<8x32xf32>
    %cst_249 = arith.constant dense<0.000000e+00> : vector<8xf32>
    %552 = vector.multi_reduction <add>, %551, %cst_249 [1] : vector<8x32xf32> to vector<8xf32>
    %553 = vector.shape_cast %552 : vector<8xf32> to vector<8x1xf32>
    %cst_250 = arith.constant 3.200000e+01 : f32
    %554 = vector.broadcast %cst_250 : f32 to vector<8x1xf32>
    %555 = arith.divf %553, %554 : vector<8x1xf32>
    %cst_251 = arith.constant 9.99999974E-6 : f32
    %556 = vector.broadcast %cst_251 : f32 to vector<8x1xf32>
    %557 = arith.addf %555, %556 : vector<8x1xf32>
    %558 = math.rsqrt %557 : vector<8x1xf32>
    %559 = vector.broadcast %558 : vector<8x1xf32> to vector<8x32xf32>
    %560 = arith.mulf %550, %559 : vector<8x32xf32>
    %561 = vector.broadcast %542 : vector<1x32xf32> to vector<8x32xf32>
    %562 = arith.mulf %560, %561 : vector<8x32xf32>
    %563 = vector.broadcast %544 : vector<1x32xf32> to vector<8x32xf32>
    %564 = arith.addf %562, %563 : vector<8x32xf32>
    %c0_252 = arith.constant 0 : index
    %c0_253 = arith.constant 0 : index
    %c0_254 = arith.constant 0 : index
    %565 = vector.load %arg26[%c0_252, %c0_253, %c0_254] : memref<2x32x128xf32, #tpu.memory_space<vmem>>, vector<1x32x128xf32>
    %566 = vector.shape_cast %565 : vector<1x32x128xf32> to vector<32x128xf32>
    %cst_255 = arith.constant dense<0.000000e+00> : vector<8x128xf32>
    %567 = tpu.matmul %564, %566, %cst_255 {dimension_numbers = #tpu.dot_dimension_numbers<[1], [0], [0], [1], [0, 0, 1, 1], [], []>} : vector<8x32xf32>, vector<32x128xf32>, vector<8x128xf32> -> vector<8x128xf32>
    %c0_256 = arith.constant 0 : index
    %c0_257 = arith.constant 0 : index
    %c0_258 = arith.constant 0 : index
    %568 = vector.load %arg27[%c0_256, %c0_257, %c0_258] : memref<2x1x128xf32, #tpu.memory_space<vmem>>, vector<1x1x128xf32>
    %569 = vector.shape_cast %568 : vector<1x1x128xf32> to vector<1x128xf32>
    %570 = vector.broadcast %569 : vector<1x128xf32> to vector<8x128xf32>
    %571 = arith.addf %567, %570 : vector<8x128xf32>
    %cst_259 = arith.constant 0.000000e+00 : f32
    %572 = vector.broadcast %cst_259 : f32 to vector<8x128xf32>
    %573 = arith.maximumf %571, %572 : vector<8x128xf32>
    %c0_260 = arith.constant 0 : index
    %c0_261 = arith.constant 0 : index
    %c0_262 = arith.constant 0 : index
    %574 = vector.load %arg28[%c0_260, %c0_261, %c0_262] : memref<2x128x32xf32, #tpu.memory_space<vmem>>, vector<1x128x32xf32>
    %575 = vector.shape_cast %574 : vector<1x128x32xf32> to vector<128x32xf32>
    %cst_263 = arith.constant dense<0.000000e+00> : vector<8x32xf32>
    %576 = tpu.matmul %573, %575, %cst_263 {dimension_numbers = #tpu.dot_dimension_numbers<[1], [0], [0], [1], [0, 0, 1, 1], [], []>} : vector<8x128xf32>, vector<128x32xf32>, vector<8x32xf32> -> vector<8x32xf32>
    %c0_264 = arith.constant 0 : index
    %c0_265 = arith.constant 0 : index
    %c0_266 = arith.constant 0 : index
    %577 = vector.load %arg29[%c0_264, %c0_265, %c0_266] : memref<2x1x32xf32, #tpu.memory_space<vmem>>, vector<1x1x32xf32>
    %578 = vector.shape_cast %577 : vector<1x1x32xf32> to vector<1x32xf32>
    %579 = vector.broadcast %578 : vector<1x32xf32> to vector<8x32xf32>
    %580 = arith.addf %576, %579 : vector<8x32xf32>
    %581 = arith.addf %564, %580 : vector<8x32xf32>
    %c0_267 = arith.constant 0 : index
    %c0_268 = arith.constant 0 : index
    %c0_269 = arith.constant 0 : index
    %582 = vector.load %arg34[%c0_267, %c0_268, %c0_269] : memref<2x1x32xf32, #tpu.memory_space<vmem>>, vector<1x1x32xf32>
    %583 = vector.shape_cast %582 : vector<1x1x32xf32> to vector<1x32xf32>
    %c0_270 = arith.constant 0 : index
    %c0_271 = arith.constant 0 : index
    %c0_272 = arith.constant 0 : index
    %584 = vector.load %arg35[%c0_270, %c0_271, %c0_272] : memref<2x1x32xf32, #tpu.memory_space<vmem>>, vector<1x1x32xf32>
    %585 = vector.shape_cast %584 : vector<1x1x32xf32> to vector<1x32xf32>
    %cst_273 = arith.constant dense<0.000000e+00> : vector<8xf32>
    %586 = vector.multi_reduction <add>, %581, %cst_273 [1] : vector<8x32xf32> to vector<8xf32>
    %587 = vector.shape_cast %586 : vector<8xf32> to vector<8x1xf32>
    %cst_274 = arith.constant 3.200000e+01 : f32
    %588 = vector.broadcast %cst_274 : f32 to vector<8x1xf32>
    %589 = arith.divf %587, %588 : vector<8x1xf32>
    %590 = vector.broadcast %589 : vector<8x1xf32> to vector<8x32xf32>
    %591 = arith.subf %581, %590 : vector<8x32xf32>
    %592 = arith.mulf %591, %591 : vector<8x32xf32>
    %cst_275 = arith.constant dense<0.000000e+00> : vector<8xf32>
    %593 = vector.multi_reduction <add>, %592, %cst_275 [1] : vector<8x32xf32> to vector<8xf32>
    %594 = vector.shape_cast %593 : vector<8xf32> to vector<8x1xf32>
    %cst_276 = arith.constant 3.200000e+01 : f32
    %595 = vector.broadcast %cst_276 : f32 to vector<8x1xf32>
    %596 = arith.divf %594, %595 : vector<8x1xf32>
    %cst_277 = arith.constant 9.99999974E-6 : f32
    %597 = vector.broadcast %cst_277 : f32 to vector<8x1xf32>
    %598 = arith.addf %596, %597 : vector<8x1xf32>
    %599 = math.rsqrt %598 : vector<8x1xf32>
    %600 = vector.broadcast %599 : vector<8x1xf32> to vector<8x32xf32>
    %601 = arith.mulf %591, %600 : vector<8x32xf32>
    %602 = vector.broadcast %583 : vector<1x32xf32> to vector<8x32xf32>
    %603 = arith.mulf %601, %602 : vector<8x32xf32>
    %604 = vector.broadcast %585 : vector<1x32xf32> to vector<8x32xf32>
    %605 = arith.addf %603, %604 : vector<8x32xf32>
    %c1_278 = arith.constant 1 : index
    %c0_279 = arith.constant 0 : index
    %c0_280 = arith.constant 0 : index
    %606 = vector.load %arg17[%c1_278, %c0_279, %c0_280] : memref<2x32x96xf32, #tpu.memory_space<vmem>>, vector<1x32x96xf32>
    %607 = vector.shape_cast %606 : vector<1x32x96xf32> to vector<32x96xf32>
    %cst_281 = arith.constant dense<0.000000e+00> : vector<8x96xf32>
    %608 = tpu.matmul %605, %607, %cst_281 {dimension_numbers = #tpu.dot_dimension_numbers<[1], [0], [0], [1], [0, 0, 1, 1], [], []>} : vector<8x32xf32>, vector<32x96xf32>, vector<8x96xf32> -> vector<8x96xf32>
    %609 = vector.extract_strided_slice %608 {offsets = [0, 0], sizes = [8, 32], strides = [1, 1]} : vector<8x96xf32> to vector<8x32xf32>
    %610 = vector.extract_strided_slice %608 {offsets = [0, 32], sizes = [8, 32], strides = [1, 1]} : vector<8x96xf32> to vector<8x32xf32>
    %611 = vector.extract_strided_slice %608 {offsets = [0, 64], sizes = [8, 32], strides = [1, 1]} : vector<8x96xf32> to vector<8x32xf32>
    %612 = tpu.iota {dimensions = array<i32: 0>} : vector<8x8xi32>
    %613 = tpu.iota {dimensions = array<i32: 1>} : vector<8x8xi32>
    %614 = arith.cmpi sle, %613, %612 : vector<8x8xi32>
    %615 = vector.extract_strided_slice %609 {offsets = [0, 0], sizes = [8, 8], strides = [1, 1]} : vector<8x32xf32> to vector<8x8xf32>
    %616 = vector.extract_strided_slice %610 {offsets = [0, 0], sizes = [8, 8], strides = [1, 1]} : vector<8x32xf32> to vector<8x8xf32>
    %617 = vector.extract_strided_slice %611 {offsets = [0, 0], sizes = [8, 8], strides = [1, 1]} : vector<8x32xf32> to vector<8x8xf32>
    %cst_282 = arith.constant dense<0.000000e+00> : vector<8x8xf32>
    %618 = tpu.matmul %615, %616, %cst_282 {dimension_numbers = #tpu.dot_dimension_numbers<[1], [1], [0], [0], [0, 0, 1, 0], [], []>} : vector<8x8xf32>, vector<8x8xf32>, vector<8x8xf32> -> vector<8x8xf32>
    %cst_283 = arith.constant 0.353553385 : f32
    %619 = vector.broadcast %cst_283 : f32 to vector<8x8xf32>
    %620 = arith.mulf %618, %619 : vector<8x8xf32>
    %cst_284 = arith.constant 0xFF800000 : f32
    %621 = vector.broadcast %cst_284 : f32 to vector<8x8xf32>
    %622 = arith.select %614, %620, %621 : vector<8x8xi1>, vector<8x8xf32>
    %cst_285 = arith.constant dense<0xFF800000> : vector<8xf32>
    %623 = vector.multi_reduction <maximumf>, %622, %cst_285 [1] : vector<8x8xf32> to vector<8xf32>
    %624 = vector.shape_cast %623 : vector<8xf32> to vector<8x1xf32>
    %625 = vector.broadcast %624 : vector<8x1xf32> to vector<8x8xf32>
    %626 = arith.subf %622, %625 : vector<8x8xf32>
    %627 = math.exp %626 : vector<8x8xf32>
    %cst_286 = arith.constant dense<0.000000e+00> : vector<8xf32>
    %628 = vector.multi_reduction <add>, %627, %cst_286 [1] : vector<8x8xf32> to vector<8xf32>
    %629 = vector.shape_cast %628 : vector<8xf32> to vector<8x1xf32>
    %630 = tpu.reciprocal %629 {approx = true} : vector<8x1xf32> -> vector<8x1xf32>
    %631 = vector.broadcast %630 : vector<8x1xf32> to vector<8x8xf32>
    %632 = arith.mulf %627, %631 : vector<8x8xf32>
    %cst_287 = arith.constant dense<0.000000e+00> : vector<8x8xf32>
    %633 = tpu.matmul %632, %617, %cst_287 {dimension_numbers = #tpu.dot_dimension_numbers<[1], [0], [0], [1], [0, 0, 1, 1], [], []>} : vector<8x8xf32>, vector<8x8xf32>, vector<8x8xf32> -> vector<8x8xf32>
    %634 = vector.extract_strided_slice %609 {offsets = [0, 8], sizes = [8, 8], strides = [1, 1]} : vector<8x32xf32> to vector<8x8xf32>
    %635 = vector.extract_strided_slice %610 {offsets = [0, 8], sizes = [8, 8], strides = [1, 1]} : vector<8x32xf32> to vector<8x8xf32>
    %636 = vector.extract_strided_slice %611 {offsets = [0, 8], sizes = [8, 8], strides = [1, 1]} : vector<8x32xf32> to vector<8x8xf32>
    %cst_288 = arith.constant dense<0.000000e+00> : vector<8x8xf32>
    %637 = tpu.matmul %634, %635, %cst_288 {dimension_numbers = #tpu.dot_dimension_numbers<[1], [1], [0], [0], [0, 0, 1, 0], [], []>} : vector<8x8xf32>, vector<8x8xf32>, vector<8x8xf32> -> vector<8x8xf32>
    %cst_289 = arith.constant 0.353553385 : f32
    %638 = vector.broadcast %cst_289 : f32 to vector<8x8xf32>
    %639 = arith.mulf %637, %638 : vector<8x8xf32>
    %cst_290 = arith.constant 0xFF800000 : f32
    %640 = vector.broadcast %cst_290 : f32 to vector<8x8xf32>
    %641 = arith.select %614, %639, %640 : vector<8x8xi1>, vector<8x8xf32>
    %cst_291 = arith.constant dense<0xFF800000> : vector<8xf32>
    %642 = vector.multi_reduction <maximumf>, %641, %cst_291 [1] : vector<8x8xf32> to vector<8xf32>
    %643 = vector.shape_cast %642 : vector<8xf32> to vector<8x1xf32>
    %644 = vector.broadcast %643 : vector<8x1xf32> to vector<8x8xf32>
    %645 = arith.subf %641, %644 : vector<8x8xf32>
    %646 = math.exp %645 : vector<8x8xf32>
    %cst_292 = arith.constant dense<0.000000e+00> : vector<8xf32>
    %647 = vector.multi_reduction <add>, %646, %cst_292 [1] : vector<8x8xf32> to vector<8xf32>
    %648 = vector.shape_cast %647 : vector<8xf32> to vector<8x1xf32>
    %649 = tpu.reciprocal %648 {approx = true} : vector<8x1xf32> -> vector<8x1xf32>
    %650 = vector.broadcast %649 : vector<8x1xf32> to vector<8x8xf32>
    %651 = arith.mulf %646, %650 : vector<8x8xf32>
    %cst_293 = arith.constant dense<0.000000e+00> : vector<8x8xf32>
    %652 = tpu.matmul %651, %636, %cst_293 {dimension_numbers = #tpu.dot_dimension_numbers<[1], [0], [0], [1], [0, 0, 1, 1], [], []>} : vector<8x8xf32>, vector<8x8xf32>, vector<8x8xf32> -> vector<8x8xf32>
    %653 = vector.extract_strided_slice %609 {offsets = [0, 16], sizes = [8, 8], strides = [1, 1]} : vector<8x32xf32> to vector<8x8xf32>
    %654 = vector.extract_strided_slice %610 {offsets = [0, 16], sizes = [8, 8], strides = [1, 1]} : vector<8x32xf32> to vector<8x8xf32>
    %655 = vector.extract_strided_slice %611 {offsets = [0, 16], sizes = [8, 8], strides = [1, 1]} : vector<8x32xf32> to vector<8x8xf32>
    %cst_294 = arith.constant dense<0.000000e+00> : vector<8x8xf32>
    %656 = tpu.matmul %653, %654, %cst_294 {dimension_numbers = #tpu.dot_dimension_numbers<[1], [1], [0], [0], [0, 0, 1, 0], [], []>} : vector<8x8xf32>, vector<8x8xf32>, vector<8x8xf32> -> vector<8x8xf32>
    %cst_295 = arith.constant 0.353553385 : f32
    %657 = vector.broadcast %cst_295 : f32 to vector<8x8xf32>
    %658 = arith.mulf %656, %657 : vector<8x8xf32>
    %cst_296 = arith.constant 0xFF800000 : f32
    %659 = vector.broadcast %cst_296 : f32 to vector<8x8xf32>
    %660 = arith.select %614, %658, %659 : vector<8x8xi1>, vector<8x8xf32>
    %cst_297 = arith.constant dense<0xFF800000> : vector<8xf32>
    %661 = vector.multi_reduction <maximumf>, %660, %cst_297 [1] : vector<8x8xf32> to vector<8xf32>
    %662 = vector.shape_cast %661 : vector<8xf32> to vector<8x1xf32>
    %663 = vector.broadcast %662 : vector<8x1xf32> to vector<8x8xf32>
    %664 = arith.subf %660, %663 : vector<8x8xf32>
    %665 = math.exp %664 : vector<8x8xf32>
    %cst_298 = arith.constant dense<0.000000e+00> : vector<8xf32>
    %666 = vector.multi_reduction <add>, %665, %cst_298 [1] : vector<8x8xf32> to vector<8xf32>
    %667 = vector.shape_cast %666 : vector<8xf32> to vector<8x1xf32>
    %668 = tpu.reciprocal %667 {approx = true} : vector<8x1xf32> -> vector<8x1xf32>
    %669 = vector.broadcast %668 : vector<8x1xf32> to vector<8x8xf32>
    %670 = arith.mulf %665, %669 : vector<8x8xf32>
    %cst_299 = arith.constant dense<0.000000e+00> : vector<8x8xf32>
    %671 = tpu.matmul %670, %655, %cst_299 {dimension_numbers = #tpu.dot_dimension_numbers<[1], [0], [0], [1], [0, 0, 1, 1], [], []>} : vector<8x8xf32>, vector<8x8xf32>, vector<8x8xf32> -> vector<8x8xf32>
    %672 = vector.extract_strided_slice %609 {offsets = [0, 24], sizes = [8, 8], strides = [1, 1]} : vector<8x32xf32> to vector<8x8xf32>
    %673 = vector.extract_strided_slice %610 {offsets = [0, 24], sizes = [8, 8], strides = [1, 1]} : vector<8x32xf32> to vector<8x8xf32>
    %674 = vector.extract_strided_slice %611 {offsets = [0, 24], sizes = [8, 8], strides = [1, 1]} : vector<8x32xf32> to vector<8x8xf32>
    %cst_300 = arith.constant dense<0.000000e+00> : vector<8x8xf32>
    %675 = tpu.matmul %672, %673, %cst_300 {dimension_numbers = #tpu.dot_dimension_numbers<[1], [1], [0], [0], [0, 0, 1, 0], [], []>} : vector<8x8xf32>, vector<8x8xf32>, vector<8x8xf32> -> vector<8x8xf32>
    %cst_301 = arith.constant 0.353553385 : f32
    %676 = vector.broadcast %cst_301 : f32 to vector<8x8xf32>
    %677 = arith.mulf %675, %676 : vector<8x8xf32>
    %cst_302 = arith.constant 0xFF800000 : f32
    %678 = vector.broadcast %cst_302 : f32 to vector<8x8xf32>
    %679 = arith.select %614, %677, %678 : vector<8x8xi1>, vector<8x8xf32>
    %cst_303 = arith.constant dense<0xFF800000> : vector<8xf32>
    %680 = vector.multi_reduction <maximumf>, %679, %cst_303 [1] : vector<8x8xf32> to vector<8xf32>
    %681 = vector.shape_cast %680 : vector<8xf32> to vector<8x1xf32>
    %682 = vector.broadcast %681 : vector<8x1xf32> to vector<8x8xf32>
    %683 = arith.subf %679, %682 : vector<8x8xf32>
    %684 = math.exp %683 : vector<8x8xf32>
    %cst_304 = arith.constant dense<0.000000e+00> : vector<8xf32>
    %685 = vector.multi_reduction <add>, %684, %cst_304 [1] : vector<8x8xf32> to vector<8xf32>
    %686 = vector.shape_cast %685 : vector<8xf32> to vector<8x1xf32>
    %687 = tpu.reciprocal %686 {approx = true} : vector<8x1xf32> -> vector<8x1xf32>
    %688 = vector.broadcast %687 : vector<8x1xf32> to vector<8x8xf32>
    %689 = arith.mulf %684, %688 : vector<8x8xf32>
    %cst_305 = arith.constant dense<0.000000e+00> : vector<8x8xf32>
    %690 = tpu.matmul %689, %674, %cst_305 {dimension_numbers = #tpu.dot_dimension_numbers<[1], [0], [0], [1], [0, 0, 1, 1], [], []>} : vector<8x8xf32>, vector<8x8xf32>, vector<8x8xf32> -> vector<8x8xf32>
    %691 = tpu.concatenate %633, %652, %671, %690 in 1 : vector<8x8xf32>, vector<8x8xf32>, vector<8x8xf32>, vector<8x8xf32> -> vector<8x32xf32>
    %c1_306 = arith.constant 1 : index
    %c0_307 = arith.constant 0 : index
    %c0_308 = arith.constant 0 : index
    %692 = vector.load %arg18[%c1_306, %c0_307, %c0_308] : memref<2x32x32xf32, #tpu.memory_space<vmem>>, vector<1x32x32xf32>
    %693 = vector.shape_cast %692 : vector<1x32x32xf32> to vector<32x32xf32>
    %cst_309 = arith.constant dense<0.000000e+00> : vector<8x32xf32>
    %694 = tpu.matmul %691, %693, %cst_309 {dimension_numbers = #tpu.dot_dimension_numbers<[1], [0], [0], [1], [0, 0, 1, 1], [], []>} : vector<8x32xf32>, vector<32x32xf32>, vector<8x32xf32> -> vector<8x32xf32>
    %c1_310 = arith.constant 1 : index
    %c0_311 = arith.constant 0 : index
    %c0_312 = arith.constant 0 : index
    %695 = vector.load %arg19[%c1_310, %c0_311, %c0_312] : memref<2x1x32xf32, #tpu.memory_space<vmem>>, vector<1x1x32xf32>
    %696 = vector.shape_cast %695 : vector<1x1x32xf32> to vector<1x32xf32>
    %697 = vector.broadcast %696 : vector<1x32xf32> to vector<8x32xf32>
    %698 = arith.addf %694, %697 : vector<8x32xf32>
    %699 = arith.addf %605, %698 : vector<8x32xf32>
    %c1_313 = arith.constant 1 : index
    %c0_314 = arith.constant 0 : index
    %c0_315 = arith.constant 0 : index
    %700 = vector.load %arg30[%c1_313, %c0_314, %c0_315] : memref<2x1x32xf32, #tpu.memory_space<vmem>>, vector<1x1x32xf32>
    %701 = vector.shape_cast %700 : vector<1x1x32xf32> to vector<1x32xf32>
    %c1_316 = arith.constant 1 : index
    %c0_317 = arith.constant 0 : index
    %c0_318 = arith.constant 0 : index
    %702 = vector.load %arg31[%c1_316, %c0_317, %c0_318] : memref<2x1x32xf32, #tpu.memory_space<vmem>>, vector<1x1x32xf32>
    %703 = vector.shape_cast %702 : vector<1x1x32xf32> to vector<1x32xf32>
    %cst_319 = arith.constant dense<0.000000e+00> : vector<8xf32>
    %704 = vector.multi_reduction <add>, %699, %cst_319 [1] : vector<8x32xf32> to vector<8xf32>
    %705 = vector.shape_cast %704 : vector<8xf32> to vector<8x1xf32>
    %cst_320 = arith.constant 3.200000e+01 : f32
    %706 = vector.broadcast %cst_320 : f32 to vector<8x1xf32>
    %707 = arith.divf %705, %706 : vector<8x1xf32>
    %708 = vector.broadcast %707 : vector<8x1xf32> to vector<8x32xf32>
    %709 = arith.subf %699, %708 : vector<8x32xf32>
    %710 = arith.mulf %709, %709 : vector<8x32xf32>
    %cst_321 = arith.constant dense<0.000000e+00> : vector<8xf32>
    %711 = vector.multi_reduction <add>, %710, %cst_321 [1] : vector<8x32xf32> to vector<8xf32>
    %712 = vector.shape_cast %711 : vector<8xf32> to vector<8x1xf32>
    %cst_322 = arith.constant 3.200000e+01 : f32
    %713 = vector.broadcast %cst_322 : f32 to vector<8x1xf32>
    %714 = arith.divf %712, %713 : vector<8x1xf32>
    %cst_323 = arith.constant 9.99999974E-6 : f32
    %715 = vector.broadcast %cst_323 : f32 to vector<8x1xf32>
    %716 = arith.addf %714, %715 : vector<8x1xf32>
    %717 = math.rsqrt %716 : vector<8x1xf32>
    %718 = vector.broadcast %717 : vector<8x1xf32> to vector<8x32xf32>
    %719 = arith.mulf %709, %718 : vector<8x32xf32>
    %720 = vector.broadcast %701 : vector<1x32xf32> to vector<8x32xf32>
    %721 = arith.mulf %719, %720 : vector<8x32xf32>
    %722 = vector.broadcast %703 : vector<1x32xf32> to vector<8x32xf32>
    %723 = arith.addf %721, %722 : vector<8x32xf32>
    %c1_324 = arith.constant 1 : index
    %c0_325 = arith.constant 0 : index
    %c0_326 = arith.constant 0 : index
    %724 = vector.load %arg20[%c1_324, %c0_325, %c0_326] : memref<2x32x32xf32, #tpu.memory_space<vmem>>, vector<1x32x32xf32>
    %725 = vector.shape_cast %724 : vector<1x32x32xf32> to vector<32x32xf32>
    %cst_327 = arith.constant dense<0.000000e+00> : vector<8x32xf32>
    %726 = tpu.matmul %723, %725, %cst_327 {dimension_numbers = #tpu.dot_dimension_numbers<[1], [0], [0], [1], [0, 0, 1, 1], [], []>} : vector<8x32xf32>, vector<32x32xf32>, vector<8x32xf32> -> vector<8x32xf32>
    %c1_328 = arith.constant 1 : index
    %c0_329 = arith.constant 0 : index
    %c0_330 = arith.constant 0 : index
    %727 = vector.load %arg21[%c1_328, %c0_329, %c0_330] : memref<2x1x32xf32, #tpu.memory_space<vmem>>, vector<1x1x32xf32>
    %728 = vector.shape_cast %727 : vector<1x1x32xf32> to vector<1x32xf32>
    %729 = vector.broadcast %728 : vector<1x32xf32> to vector<8x32xf32>
    %730 = arith.addf %726, %729 : vector<8x32xf32>
    %c1_331 = arith.constant 1 : index
    %c0_332 = arith.constant 0 : index
    %c0_333 = arith.constant 0 : index
    %731 = vector.load %arg22[%c1_331, %c0_332, %c0_333] : memref<2x32x64xf32, #tpu.memory_space<vmem>>, vector<1x32x64xf32>
    %732 = vector.shape_cast %731 : vector<1x32x64xf32> to vector<32x64xf32>
    %cst_334 = arith.constant dense<0.000000e+00> : vector<8x64xf32>
    %733 = tpu.matmul %327, %732, %cst_334 {dimension_numbers = #tpu.dot_dimension_numbers<[1], [0], [0], [1], [0, 0, 1, 1], [], []>} : vector<8x32xf32>, vector<32x64xf32>, vector<8x64xf32> -> vector<8x64xf32>
    %c1_335 = arith.constant 1 : index
    %c0_336 = arith.constant 0 : index
    %c0_337 = arith.constant 0 : index
    %734 = vector.load %arg23[%c1_335, %c0_336, %c0_337] : memref<2x1x64xf32, #tpu.memory_space<vmem>>, vector<1x1x64xf32>
    %735 = vector.shape_cast %734 : vector<1x1x64xf32> to vector<1x64xf32>
    %736 = vector.broadcast %735 : vector<1x64xf32> to vector<8x64xf32>
    %737 = arith.addf %733, %736 : vector<8x64xf32>
    %738 = vector.extract_strided_slice %737 {offsets = [0, 0], sizes = [8, 32], strides = [1, 1]} : vector<8x64xf32> to vector<8x32xf32>
    %739 = vector.extract_strided_slice %737 {offsets = [0, 32], sizes = [8, 32], strides = [1, 1]} : vector<8x64xf32> to vector<8x32xf32>
    %740 = vector.extract_strided_slice %730 {offsets = [0, 0], sizes = [8, 8], strides = [1, 1]} : vector<8x32xf32> to vector<8x8xf32>
    %741 = vector.extract_strided_slice %738 {offsets = [0, 0], sizes = [8, 8], strides = [1, 1]} : vector<8x32xf32> to vector<8x8xf32>
    %742 = vector.extract_strided_slice %739 {offsets = [0, 0], sizes = [8, 8], strides = [1, 1]} : vector<8x32xf32> to vector<8x8xf32>
    %cst_338 = arith.constant dense<0.000000e+00> : vector<8x8xf32>
    %743 = tpu.matmul %740, %741, %cst_338 {dimension_numbers = #tpu.dot_dimension_numbers<[1], [1], [0], [0], [0, 0, 1, 0], [], []>} : vector<8x8xf32>, vector<8x8xf32>, vector<8x8xf32> -> vector<8x8xf32>
    %cst_339 = arith.constant 0.353553385 : f32
    %744 = vector.broadcast %cst_339 : f32 to vector<8x8xf32>
    %745 = arith.mulf %743, %744 : vector<8x8xf32>
    %cst_340 = arith.constant dense<0xFF800000> : vector<8xf32>
    %746 = vector.multi_reduction <maximumf>, %745, %cst_340 [1] : vector<8x8xf32> to vector<8xf32>
    %747 = vector.shape_cast %746 : vector<8xf32> to vector<8x1xf32>
    %748 = vector.broadcast %747 : vector<8x1xf32> to vector<8x8xf32>
    %749 = arith.subf %745, %748 : vector<8x8xf32>
    %750 = math.exp %749 : vector<8x8xf32>
    %cst_341 = arith.constant dense<0.000000e+00> : vector<8xf32>
    %751 = vector.multi_reduction <add>, %750, %cst_341 [1] : vector<8x8xf32> to vector<8xf32>
    %752 = vector.shape_cast %751 : vector<8xf32> to vector<8x1xf32>
    %753 = tpu.reciprocal %752 {approx = true} : vector<8x1xf32> -> vector<8x1xf32>
    %754 = vector.broadcast %753 : vector<8x1xf32> to vector<8x8xf32>
    %755 = arith.mulf %750, %754 : vector<8x8xf32>
    %cst_342 = arith.constant dense<0.000000e+00> : vector<8x8xf32>
    %756 = tpu.matmul %755, %742, %cst_342 {dimension_numbers = #tpu.dot_dimension_numbers<[1], [0], [0], [1], [0, 0, 1, 1], [], []>} : vector<8x8xf32>, vector<8x8xf32>, vector<8x8xf32> -> vector<8x8xf32>
    %757 = vector.extract_strided_slice %730 {offsets = [0, 8], sizes = [8, 8], strides = [1, 1]} : vector<8x32xf32> to vector<8x8xf32>
    %758 = vector.extract_strided_slice %738 {offsets = [0, 8], sizes = [8, 8], strides = [1, 1]} : vector<8x32xf32> to vector<8x8xf32>
    %759 = vector.extract_strided_slice %739 {offsets = [0, 8], sizes = [8, 8], strides = [1, 1]} : vector<8x32xf32> to vector<8x8xf32>
    %cst_343 = arith.constant dense<0.000000e+00> : vector<8x8xf32>
    %760 = tpu.matmul %757, %758, %cst_343 {dimension_numbers = #tpu.dot_dimension_numbers<[1], [1], [0], [0], [0, 0, 1, 0], [], []>} : vector<8x8xf32>, vector<8x8xf32>, vector<8x8xf32> -> vector<8x8xf32>
    %cst_344 = arith.constant 0.353553385 : f32
    %761 = vector.broadcast %cst_344 : f32 to vector<8x8xf32>
    %762 = arith.mulf %760, %761 : vector<8x8xf32>
    %cst_345 = arith.constant dense<0xFF800000> : vector<8xf32>
    %763 = vector.multi_reduction <maximumf>, %762, %cst_345 [1] : vector<8x8xf32> to vector<8xf32>
    %764 = vector.shape_cast %763 : vector<8xf32> to vector<8x1xf32>
    %765 = vector.broadcast %764 : vector<8x1xf32> to vector<8x8xf32>
    %766 = arith.subf %762, %765 : vector<8x8xf32>
    %767 = math.exp %766 : vector<8x8xf32>
    %cst_346 = arith.constant dense<0.000000e+00> : vector<8xf32>
    %768 = vector.multi_reduction <add>, %767, %cst_346 [1] : vector<8x8xf32> to vector<8xf32>
    %769 = vector.shape_cast %768 : vector<8xf32> to vector<8x1xf32>
    %770 = tpu.reciprocal %769 {approx = true} : vector<8x1xf32> -> vector<8x1xf32>
    %771 = vector.broadcast %770 : vector<8x1xf32> to vector<8x8xf32>
    %772 = arith.mulf %767, %771 : vector<8x8xf32>
    %cst_347 = arith.constant dense<0.000000e+00> : vector<8x8xf32>
    %773 = tpu.matmul %772, %759, %cst_347 {dimension_numbers = #tpu.dot_dimension_numbers<[1], [0], [0], [1], [0, 0, 1, 1], [], []>} : vector<8x8xf32>, vector<8x8xf32>, vector<8x8xf32> -> vector<8x8xf32>
    %774 = vector.extract_strided_slice %730 {offsets = [0, 16], sizes = [8, 8], strides = [1, 1]} : vector<8x32xf32> to vector<8x8xf32>
    %775 = vector.extract_strided_slice %738 {offsets = [0, 16], sizes = [8, 8], strides = [1, 1]} : vector<8x32xf32> to vector<8x8xf32>
    %776 = vector.extract_strided_slice %739 {offsets = [0, 16], sizes = [8, 8], strides = [1, 1]} : vector<8x32xf32> to vector<8x8xf32>
    %cst_348 = arith.constant dense<0.000000e+00> : vector<8x8xf32>
    %777 = tpu.matmul %774, %775, %cst_348 {dimension_numbers = #tpu.dot_dimension_numbers<[1], [1], [0], [0], [0, 0, 1, 0], [], []>} : vector<8x8xf32>, vector<8x8xf32>, vector<8x8xf32> -> vector<8x8xf32>
    %cst_349 = arith.constant 0.353553385 : f32
    %778 = vector.broadcast %cst_349 : f32 to vector<8x8xf32>
    %779 = arith.mulf %777, %778 : vector<8x8xf32>
    %cst_350 = arith.constant dense<0xFF800000> : vector<8xf32>
    %780 = vector.multi_reduction <maximumf>, %779, %cst_350 [1] : vector<8x8xf32> to vector<8xf32>
    %781 = vector.shape_cast %780 : vector<8xf32> to vector<8x1xf32>
    %782 = vector.broadcast %781 : vector<8x1xf32> to vector<8x8xf32>
    %783 = arith.subf %779, %782 : vector<8x8xf32>
    %784 = math.exp %783 : vector<8x8xf32>
    %cst_351 = arith.constant dense<0.000000e+00> : vector<8xf32>
    %785 = vector.multi_reduction <add>, %784, %cst_351 [1] : vector<8x8xf32> to vector<8xf32>
    %786 = vector.shape_cast %785 : vector<8xf32> to vector<8x1xf32>
    %787 = tpu.reciprocal %786 {approx = true} : vector<8x1xf32> -> vector<8x1xf32>
    %788 = vector.broadcast %787 : vector<8x1xf32> to vector<8x8xf32>
    %789 = arith.mulf %784, %788 : vector<8x8xf32>
    %cst_352 = arith.constant dense<0.000000e+00> : vector<8x8xf32>
    %790 = tpu.matmul %789, %776, %cst_352 {dimension_numbers = #tpu.dot_dimension_numbers<[1], [0], [0], [1], [0, 0, 1, 1], [], []>} : vector<8x8xf32>, vector<8x8xf32>, vector<8x8xf32> -> vector<8x8xf32>
    %791 = vector.extract_strided_slice %730 {offsets = [0, 24], sizes = [8, 8], strides = [1, 1]} : vector<8x32xf32> to vector<8x8xf32>
    %792 = vector.extract_strided_slice %738 {offsets = [0, 24], sizes = [8, 8], strides = [1, 1]} : vector<8x32xf32> to vector<8x8xf32>
    %793 = vector.extract_strided_slice %739 {offsets = [0, 24], sizes = [8, 8], strides = [1, 1]} : vector<8x32xf32> to vector<8x8xf32>
    %cst_353 = arith.constant dense<0.000000e+00> : vector<8x8xf32>
    %794 = tpu.matmul %791, %792, %cst_353 {dimension_numbers = #tpu.dot_dimension_numbers<[1], [1], [0], [0], [0, 0, 1, 0], [], []>} : vector<8x8xf32>, vector<8x8xf32>, vector<8x8xf32> -> vector<8x8xf32>
    %cst_354 = arith.constant 0.353553385 : f32
    %795 = vector.broadcast %cst_354 : f32 to vector<8x8xf32>
    %796 = arith.mulf %794, %795 : vector<8x8xf32>
    %cst_355 = arith.constant dense<0xFF800000> : vector<8xf32>
    %797 = vector.multi_reduction <maximumf>, %796, %cst_355 [1] : vector<8x8xf32> to vector<8xf32>
    %798 = vector.shape_cast %797 : vector<8xf32> to vector<8x1xf32>
    %799 = vector.broadcast %798 : vector<8x1xf32> to vector<8x8xf32>
    %800 = arith.subf %796, %799 : vector<8x8xf32>
    %801 = math.exp %800 : vector<8x8xf32>
    %cst_356 = arith.constant dense<0.000000e+00> : vector<8xf32>
    %802 = vector.multi_reduction <add>, %801, %cst_356 [1] : vector<8x8xf32> to vector<8xf32>
    %803 = vector.shape_cast %802 : vector<8xf32> to vector<8x1xf32>
    %804 = tpu.reciprocal %803 {approx = true} : vector<8x1xf32> -> vector<8x1xf32>
    %805 = vector.broadcast %804 : vector<8x1xf32> to vector<8x8xf32>
    %806 = arith.mulf %801, %805 : vector<8x8xf32>
    %cst_357 = arith.constant dense<0.000000e+00> : vector<8x8xf32>
    %807 = tpu.matmul %806, %793, %cst_357 {dimension_numbers = #tpu.dot_dimension_numbers<[1], [0], [0], [1], [0, 0, 1, 1], [], []>} : vector<8x8xf32>, vector<8x8xf32>, vector<8x8xf32> -> vector<8x8xf32>
    %808 = tpu.concatenate %756, %773, %790, %807 in 1 : vector<8x8xf32>, vector<8x8xf32>, vector<8x8xf32>, vector<8x8xf32> -> vector<8x32xf32>
    %c1_358 = arith.constant 1 : index
    %c0_359 = arith.constant 0 : index
    %c0_360 = arith.constant 0 : index
    %809 = vector.load %arg24[%c1_358, %c0_359, %c0_360] : memref<2x32x32xf32, #tpu.memory_space<vmem>>, vector<1x32x32xf32>
    %810 = vector.shape_cast %809 : vector<1x32x32xf32> to vector<32x32xf32>
    %cst_361 = arith.constant dense<0.000000e+00> : vector<8x32xf32>
    %811 = tpu.matmul %808, %810, %cst_361 {dimension_numbers = #tpu.dot_dimension_numbers<[1], [0], [0], [1], [0, 0, 1, 1], [], []>} : vector<8x32xf32>, vector<32x32xf32>, vector<8x32xf32> -> vector<8x32xf32>
    %c1_362 = arith.constant 1 : index
    %c0_363 = arith.constant 0 : index
    %c0_364 = arith.constant 0 : index
    %812 = vector.load %arg25[%c1_362, %c0_363, %c0_364] : memref<2x1x32xf32, #tpu.memory_space<vmem>>, vector<1x1x32xf32>
    %813 = vector.shape_cast %812 : vector<1x1x32xf32> to vector<1x32xf32>
    %814 = vector.broadcast %813 : vector<1x32xf32> to vector<8x32xf32>
    %815 = arith.addf %811, %814 : vector<8x32xf32>
    %816 = arith.addf %723, %815 : vector<8x32xf32>
    %c1_365 = arith.constant 1 : index
    %c0_366 = arith.constant 0 : index
    %c0_367 = arith.constant 0 : index
    %817 = vector.load %arg32[%c1_365, %c0_366, %c0_367] : memref<2x1x32xf32, #tpu.memory_space<vmem>>, vector<1x1x32xf32>
    %818 = vector.shape_cast %817 : vector<1x1x32xf32> to vector<1x32xf32>
    %c1_368 = arith.constant 1 : index
    %c0_369 = arith.constant 0 : index
    %c0_370 = arith.constant 0 : index
    %819 = vector.load %arg33[%c1_368, %c0_369, %c0_370] : memref<2x1x32xf32, #tpu.memory_space<vmem>>, vector<1x1x32xf32>
    %820 = vector.shape_cast %819 : vector<1x1x32xf32> to vector<1x32xf32>
    %cst_371 = arith.constant dense<0.000000e+00> : vector<8xf32>
    %821 = vector.multi_reduction <add>, %816, %cst_371 [1] : vector<8x32xf32> to vector<8xf32>
    %822 = vector.shape_cast %821 : vector<8xf32> to vector<8x1xf32>
    %cst_372 = arith.constant 3.200000e+01 : f32
    %823 = vector.broadcast %cst_372 : f32 to vector<8x1xf32>
    %824 = arith.divf %822, %823 : vector<8x1xf32>
    %825 = vector.broadcast %824 : vector<8x1xf32> to vector<8x32xf32>
    %826 = arith.subf %816, %825 : vector<8x32xf32>
    %827 = arith.mulf %826, %826 : vector<8x32xf32>
    %cst_373 = arith.constant dense<0.000000e+00> : vector<8xf32>
    %828 = vector.multi_reduction <add>, %827, %cst_373 [1] : vector<8x32xf32> to vector<8xf32>
    %829 = vector.shape_cast %828 : vector<8xf32> to vector<8x1xf32>
    %cst_374 = arith.constant 3.200000e+01 : f32
    %830 = vector.broadcast %cst_374 : f32 to vector<8x1xf32>
    %831 = arith.divf %829, %830 : vector<8x1xf32>
    %cst_375 = arith.constant 9.99999974E-6 : f32
    %832 = vector.broadcast %cst_375 : f32 to vector<8x1xf32>
    %833 = arith.addf %831, %832 : vector<8x1xf32>
    %834 = math.rsqrt %833 : vector<8x1xf32>
    %835 = vector.broadcast %834 : vector<8x1xf32> to vector<8x32xf32>
    %836 = arith.mulf %826, %835 : vector<8x32xf32>
    %837 = vector.broadcast %818 : vector<1x32xf32> to vector<8x32xf32>
    %838 = arith.mulf %836, %837 : vector<8x32xf32>
    %839 = vector.broadcast %820 : vector<1x32xf32> to vector<8x32xf32>
    %840 = arith.addf %838, %839 : vector<8x32xf32>
    %c1_376 = arith.constant 1 : index
    %c0_377 = arith.constant 0 : index
    %c0_378 = arith.constant 0 : index
    %841 = vector.load %arg26[%c1_376, %c0_377, %c0_378] : memref<2x32x128xf32, #tpu.memory_space<vmem>>, vector<1x32x128xf32>
    %842 = vector.shape_cast %841 : vector<1x32x128xf32> to vector<32x128xf32>
    %cst_379 = arith.constant dense<0.000000e+00> : vector<8x128xf32>
    %843 = tpu.matmul %840, %842, %cst_379 {dimension_numbers = #tpu.dot_dimension_numbers<[1], [0], [0], [1], [0, 0, 1, 1], [], []>} : vector<8x32xf32>, vector<32x128xf32>, vector<8x128xf32> -> vector<8x128xf32>
    %c1_380 = arith.constant 1 : index
    %c0_381 = arith.constant 0 : index
    %c0_382 = arith.constant 0 : index
    %844 = vector.load %arg27[%c1_380, %c0_381, %c0_382] : memref<2x1x128xf32, #tpu.memory_space<vmem>>, vector<1x1x128xf32>
    %845 = vector.shape_cast %844 : vector<1x1x128xf32> to vector<1x128xf32>
    %846 = vector.broadcast %845 : vector<1x128xf32> to vector<8x128xf32>
    %847 = arith.addf %843, %846 : vector<8x128xf32>
    %cst_383 = arith.constant 0.000000e+00 : f32
    %848 = vector.broadcast %cst_383 : f32 to vector<8x128xf32>
    %849 = arith.maximumf %847, %848 : vector<8x128xf32>
    %c1_384 = arith.constant 1 : index
    %c0_385 = arith.constant 0 : index
    %c0_386 = arith.constant 0 : index
    %850 = vector.load %arg28[%c1_384, %c0_385, %c0_386] : memref<2x128x32xf32, #tpu.memory_space<vmem>>, vector<1x128x32xf32>
    %851 = vector.shape_cast %850 : vector<1x128x32xf32> to vector<128x32xf32>
    %cst_387 = arith.constant dense<0.000000e+00> : vector<8x32xf32>
    %852 = tpu.matmul %849, %851, %cst_387 {dimension_numbers = #tpu.dot_dimension_numbers<[1], [0], [0], [1], [0, 0, 1, 1], [], []>} : vector<8x128xf32>, vector<128x32xf32>, vector<8x32xf32> -> vector<8x32xf32>
    %c1_388 = arith.constant 1 : index
    %c0_389 = arith.constant 0 : index
    %c0_390 = arith.constant 0 : index
    %853 = vector.load %arg29[%c1_388, %c0_389, %c0_390] : memref<2x1x32xf32, #tpu.memory_space<vmem>>, vector<1x1x32xf32>
    %854 = vector.shape_cast %853 : vector<1x1x32xf32> to vector<1x32xf32>
    %855 = vector.broadcast %854 : vector<1x32xf32> to vector<8x32xf32>
    %856 = arith.addf %852, %855 : vector<8x32xf32>
    %857 = arith.addf %840, %856 : vector<8x32xf32>
    %c1_391 = arith.constant 1 : index
    %c0_392 = arith.constant 0 : index
    %c0_393 = arith.constant 0 : index
    %858 = vector.load %arg34[%c1_391, %c0_392, %c0_393] : memref<2x1x32xf32, #tpu.memory_space<vmem>>, vector<1x1x32xf32>
    %859 = vector.shape_cast %858 : vector<1x1x32xf32> to vector<1x32xf32>
    %c1_394 = arith.constant 1 : index
    %c0_395 = arith.constant 0 : index
    %c0_396 = arith.constant 0 : index
    %860 = vector.load %arg35[%c1_394, %c0_395, %c0_396] : memref<2x1x32xf32, #tpu.memory_space<vmem>>, vector<1x1x32xf32>
    %861 = vector.shape_cast %860 : vector<1x1x32xf32> to vector<1x32xf32>
    %cst_397 = arith.constant dense<0.000000e+00> : vector<8xf32>
    %862 = vector.multi_reduction <add>, %857, %cst_397 [1] : vector<8x32xf32> to vector<8xf32>
    %863 = vector.shape_cast %862 : vector<8xf32> to vector<8x1xf32>
    %cst_398 = arith.constant 3.200000e+01 : f32
    %864 = vector.broadcast %cst_398 : f32 to vector<8x1xf32>
    %865 = arith.divf %863, %864 : vector<8x1xf32>
    %866 = vector.broadcast %865 : vector<8x1xf32> to vector<8x32xf32>
    %867 = arith.subf %857, %866 : vector<8x32xf32>
    %868 = arith.mulf %867, %867 : vector<8x32xf32>
    %cst_399 = arith.constant dense<0.000000e+00> : vector<8xf32>
    %869 = vector.multi_reduction <add>, %868, %cst_399 [1] : vector<8x32xf32> to vector<8xf32>
    %870 = vector.shape_cast %869 : vector<8xf32> to vector<8x1xf32>
    %cst_400 = arith.constant 3.200000e+01 : f32
    %871 = vector.broadcast %cst_400 : f32 to vector<8x1xf32>
    %872 = arith.divf %870, %871 : vector<8x1xf32>
    %cst_401 = arith.constant 9.99999974E-6 : f32
    %873 = vector.broadcast %cst_401 : f32 to vector<8x1xf32>
    %874 = arith.addf %872, %873 : vector<8x1xf32>
    %875 = math.rsqrt %874 : vector<8x1xf32>
    %876 = vector.broadcast %875 : vector<8x1xf32> to vector<8x32xf32>
    %877 = arith.mulf %867, %876 : vector<8x32xf32>
    %878 = vector.broadcast %859 : vector<1x32xf32> to vector<8x32xf32>
    %879 = arith.mulf %877, %878 : vector<8x32xf32>
    %880 = vector.broadcast %861 : vector<1x32xf32> to vector<8x32xf32>
    %881 = arith.addf %879, %880 : vector<8x32xf32>
    %c0_402 = arith.constant 0 : index
    %c0_403 = arith.constant 0 : index
    %882 = vector.load %arg36[%c0_402, %c0_403] : memref<1x32xf32, #tpu.memory_space<vmem>>, vector<1x32xf32>
    %c0_404 = arith.constant 0 : index
    %c0_405 = arith.constant 0 : index
    %883 = vector.load %arg37[%c0_404, %c0_405] : memref<1x32xf32, #tpu.memory_space<vmem>>, vector<1x32xf32>
    %cst_406 = arith.constant dense<0.000000e+00> : vector<8xf32>
    %884 = vector.multi_reduction <add>, %881, %cst_406 [1] : vector<8x32xf32> to vector<8xf32>
    %885 = vector.shape_cast %884 : vector<8xf32> to vector<8x1xf32>
    %cst_407 = arith.constant 3.200000e+01 : f32
    %886 = vector.broadcast %cst_407 : f32 to vector<8x1xf32>
    %887 = arith.divf %885, %886 : vector<8x1xf32>
    %888 = vector.broadcast %887 : vector<8x1xf32> to vector<8x32xf32>
    %889 = arith.subf %881, %888 : vector<8x32xf32>
    %890 = arith.mulf %889, %889 : vector<8x32xf32>
    %cst_408 = arith.constant dense<0.000000e+00> : vector<8xf32>
    %891 = vector.multi_reduction <add>, %890, %cst_408 [1] : vector<8x32xf32> to vector<8xf32>
    %892 = vector.shape_cast %891 : vector<8xf32> to vector<8x1xf32>
    %cst_409 = arith.constant 3.200000e+01 : f32
    %893 = vector.broadcast %cst_409 : f32 to vector<8x1xf32>
    %894 = arith.divf %892, %893 : vector<8x1xf32>
    %cst_410 = arith.constant 9.99999974E-6 : f32
    %895 = vector.broadcast %cst_410 : f32 to vector<8x1xf32>
    %896 = arith.addf %894, %895 : vector<8x1xf32>
    %897 = math.rsqrt %896 : vector<8x1xf32>
    %898 = vector.broadcast %897 : vector<8x1xf32> to vector<8x32xf32>
    %899 = arith.mulf %889, %898 : vector<8x32xf32>
    %900 = vector.broadcast %882 : vector<1x32xf32> to vector<8x32xf32>
    %901 = arith.mulf %899, %900 : vector<8x32xf32>
    %902 = vector.broadcast %883 : vector<1x32xf32> to vector<8x32xf32>
    %903 = arith.addf %901, %902 : vector<8x32xf32>
    %c0_411 = arith.constant 0 : index
    %c0_412 = arith.constant 0 : index
    %904 = vector.load %arg38[%c0_411, %c0_412] : memref<32x128xf32, #tpu.memory_space<vmem>>, vector<32x128xf32>
    %cst_413 = arith.constant dense<0.000000e+00> : vector<8x128xf32>
    %905 = tpu.matmul %903, %904, %cst_413 {dimension_numbers = #tpu.dot_dimension_numbers<[1], [0], [0], [1], [0, 0, 1, 1], [], []>} : vector<8x32xf32>, vector<32x128xf32>, vector<8x128xf32> -> vector<8x128xf32>
    %c0_414 = arith.constant 0 : index
    %c0_415 = arith.constant 0 : index
    %906 = vector.load %arg39[%c0_414, %c0_415] : memref<1x128xf32, #tpu.memory_space<vmem>>, vector<1x128xf32>
    %907 = vector.broadcast %906 : vector<1x128xf32> to vector<8x128xf32>
    %908 = arith.addf %905, %907 : vector<8x128xf32>
    %c0_416 = arith.constant 0 : index
    %c0_417 = arith.constant 0 : index
    %c0_418 = arith.constant 0 : index
    %909 = vector.load %arg40[%c0_416, %c0_417, %c0_418] : memref<1x8x128xf32, #tpu.memory_space<vmem>>, vector<1x8x128xf32>
    %910 = vector.shape_cast %909 : vector<1x8x128xf32> to vector<8x128xf32>
    %911 = vector.shape_cast %908 : vector<8x128xf32> to vector<1x8x128xf32>
    tpu.vector_store %arg40[%c0_416, %c0_417, %c0_418], %911 {strides = array<i32>} : memref<1x8x128xf32, #tpu.memory_space<vmem>>, vector<1x8x128xf32>,
    return
  }
  func.func @transform_0(%arg0: i32) -> (i32, i32, i32) {
    %c0_i32 = arith.constant 0 : i32
    %c0_i32_0 = arith.constant 0 : i32
    %c0_i32_1 = arith.constant 0 : i32
    return %arg0, %c0_i32, %c0_i32_0 : i32, i32, i32
  }
  func.func @transform_1(%arg0: i32) -> (i32, i32, i32) {
    %c0_i32 = arith.constant 0 : i32
    %c0_i32_0 = arith.constant 0 : i32
    %c0_i32_1 = arith.constant 0 : i32
    return %arg0, %c0_i32, %c0_i32_0 : i32, i32, i32
  }
  func.func @transform_2(%arg0: i32) -> (i32, i32, i32) {
    %c0_i32 = arith.constant 0 : i32
    %c0_i32_0 = arith.constant 0 : i32
    %c0_i32_1 = arith.constant 0 : i32
    %c0_i32_2 = arith.constant 0 : i32
    return %c0_i32, %c0_i32_0, %c0_i32_1 : i32, i32, i32
  }
  func.func @transform_3(%arg0: i32) -> (i32, i32, i32) {
    %c0_i32 = arith.constant 0 : i32
    %c0_i32_0 = arith.constant 0 : i32
    %c0_i32_1 = arith.constant 0 : i32
    %c0_i32_2 = arith.constant 0 : i32
    return %c0_i32, %c0_i32_0, %c0_i32_1 : i32, i32, i32
  }
  func.func @transform_4(%arg0: i32) -> (i32, i32, i32) {
    %c0_i32 = arith.constant 0 : i32
    %c0_i32_0 = arith.constant 0 : i32
    %c0_i32_1 = arith.constant 0 : i32
    %c0_i32_2 = arith.constant 0 : i32
    return %c0_i32, %c0_i32_0, %c0_i32_1 : i32, i32, i32
  }
  func.func @transform_5(%arg0: i32) -> (i32, i32, i32) {
    %c0_i32 = arith.constant 0 : i32
    %c0_i32_0 = arith.constant 0 : i32
    %c0_i32_1 = arith.constant 0 : i32
    %c0_i32_2 = arith.constant 0 : i32
    return %c0_i32, %c0_i32_0, %c0_i32_1 : i32, i32, i32
  }
  func.func @transform_6(%arg0: i32) -> (i32, i32, i32) {
    %c0_i32 = arith.constant 0 : i32
    %c0_i32_0 = arith.constant 0 : i32
    %c0_i32_1 = arith.constant 0 : i32
    %c0_i32_2 = arith.constant 0 : i32
    return %c0_i32, %c0_i32_0, %c0_i32_1 : i32, i32, i32
  }
  func.func @transform_7(%arg0: i32) -> (i32, i32, i32) {
    %c0_i32 = arith.constant 0 : i32
    %c0_i32_0 = arith.constant 0 : i32
    %c0_i32_1 = arith.constant 0 : i32
    %c0_i32_2 = arith.constant 0 : i32
    return %c0_i32, %c0_i32_0, %c0_i32_1 : i32, i32, i32
  }
  func.func @transform_8(%arg0: i32) -> (i32, i32, i32) {
    %c0_i32 = arith.constant 0 : i32
    %c0_i32_0 = arith.constant 0 : i32
    %c0_i32_1 = arith.constant 0 : i32
    %c0_i32_2 = arith.constant 0 : i32
    return %c0_i32, %c0_i32_0, %c0_i32_1 : i32, i32, i32
  }
  func.func @transform_9(%arg0: i32) -> (i32, i32, i32) {
    %c0_i32 = arith.constant 0 : i32
    %c0_i32_0 = arith.constant 0 : i32
    %c0_i32_1 = arith.constant 0 : i32
    %c0_i32_2 = arith.constant 0 : i32
    return %c0_i32, %c0_i32_0, %c0_i32_1 : i32, i32, i32
  }
  func.func @transform_10(%arg0: i32) -> (i32, i32, i32) {
    %c0_i32 = arith.constant 0 : i32
    %c0_i32_0 = arith.constant 0 : i32
    %c0_i32_1 = arith.constant 0 : i32
    %c0_i32_2 = arith.constant 0 : i32
    return %c0_i32, %c0_i32_0, %c0_i32_1 : i32, i32, i32
  }
  func.func @transform_11(%arg0: i32) -> (i32, i32, i32) {
    %c0_i32 = arith.constant 0 : i32
    %c0_i32_0 = arith.constant 0 : i32
    %c0_i32_1 = arith.constant 0 : i32
    %c0_i32_2 = arith.constant 0 : i32
    return %c0_i32, %c0_i32_0, %c0_i32_1 : i32, i32, i32
  }
  func.func @transform_12(%arg0: i32) -> (i32, i32, i32) {
    %c0_i32 = arith.constant 0 : i32
    %c0_i32_0 = arith.constant 0 : i32
    %c0_i32_1 = arith.constant 0 : i32
    %c0_i32_2 = arith.constant 0 : i32
    return %c0_i32, %c0_i32_0, %c0_i32_1 : i32, i32, i32
  }
  func.func @transform_13(%arg0: i32) -> (i32, i32, i32) {
    %c0_i32 = arith.constant 0 : i32
    %c0_i32_0 = arith.constant 0 : i32
    %c0_i32_1 = arith.constant 0 : i32
    %c0_i32_2 = arith.constant 0 : i32
    return %c0_i32, %c0_i32_0, %c0_i32_1 : i32, i32, i32
  }
  func.func @transform_14(%arg0: i32) -> (i32, i32) {
    %c0_i32 = arith.constant 0 : i32
    %c0_i32_0 = arith.constant 0 : i32
    %c0_i32_1 = arith.constant 0 : i32
    return %c0_i32, %c0_i32_0 : i32, i32
  }
  func.func @transform_15(%arg0: i32) -> (i32, i32) {
    %c0_i32 = arith.constant 0 : i32
    %c0_i32_0 = arith.constant 0 : i32
    %c0_i32_1 = arith.constant 0 : i32
    return %c0_i32, %c0_i32_0 : i32, i32
  }
  func.func @transform_16(%arg0: i32) -> (i32, i32, i32) {
    %c0_i32 = arith.constant 0 : i32
    %c0_i32_0 = arith.constant 0 : i32
    %c0_i32_1 = arith.constant 0 : i32
    %c0_i32_2 = arith.constant 0 : i32
    return %c0_i32, %c0_i32_0, %c0_i32_1 : i32, i32, i32
  }
  func.func @transform_17(%arg0: i32) -> (i32, i32, i32) {
    %c0_i32 = arith.constant 0 : i32
    %c0_i32_0 = arith.constant 0 : i32
    %c0_i32_1 = arith.constant 0 : i32
    %c0_i32_2 = arith.constant 0 : i32
    return %c0_i32, %c0_i32_0, %c0_i32_1 : i32, i32, i32
  }
  func.func @transform_18(%arg0: i32) -> (i32, i32, i32) {
    %c0_i32 = arith.constant 0 : i32
    %c0_i32_0 = arith.constant 0 : i32
    %c0_i32_1 = arith.constant 0 : i32
    %c0_i32_2 = arith.constant 0 : i32
    return %c0_i32, %c0_i32_0, %c0_i32_1 : i32, i32, i32
  }
  func.func @transform_19(%arg0: i32) -> (i32, i32, i32) {
    %c0_i32 = arith.constant 0 : i32
    %c0_i32_0 = arith.constant 0 : i32
    %c0_i32_1 = arith.constant 0 : i32
    %c0_i32_2 = arith.constant 0 : i32
    return %c0_i32, %c0_i32_0, %c0_i32_1 : i32, i32, i32
  }
  func.func @transform_20(%arg0: i32) -> (i32, i32, i32) {
    %c0_i32 = arith.constant 0 : i32
    %c0_i32_0 = arith.constant 0 : i32
    %c0_i32_1 = arith.constant 0 : i32
    %c0_i32_2 = arith.constant 0 : i32
    return %c0_i32, %c0_i32_0, %c0_i32_1 : i32, i32, i32
  }
  func.func @transform_21(%arg0: i32) -> (i32, i32, i32) {
    %c0_i32 = arith.constant 0 : i32
    %c0_i32_0 = arith.constant 0 : i32
    %c0_i32_1 = arith.constant 0 : i32
    %c0_i32_2 = arith.constant 0 : i32
    return %c0_i32, %c0_i32_0, %c0_i32_1 : i32, i32, i32
  }
  func.func @transform_22(%arg0: i32) -> (i32, i32, i32) {
    %c0_i32 = arith.constant 0 : i32
    %c0_i32_0 = arith.constant 0 : i32
    %c0_i32_1 = arith.constant 0 : i32
    %c0_i32_2 = arith.constant 0 : i32
    return %c0_i32, %c0_i32_0, %c0_i32_1 : i32, i32, i32
  }
  func.func @transform_23(%arg0: i32) -> (i32, i32, i32) {
    %c0_i32 = arith.constant 0 : i32
    %c0_i32_0 = arith.constant 0 : i32
    %c0_i32_1 = arith.constant 0 : i32
    %c0_i32_2 = arith.constant 0 : i32
    return %c0_i32, %c0_i32_0, %c0_i32_1 : i32, i32, i32
  }
  func.func @transform_24(%arg0: i32) -> (i32, i32, i32) {
    %c0_i32 = arith.constant 0 : i32
    %c0_i32_0 = arith.constant 0 : i32
    %c0_i32_1 = arith.constant 0 : i32
    %c0_i32_2 = arith.constant 0 : i32
    return %c0_i32, %c0_i32_0, %c0_i32_1 : i32, i32, i32
  }
  func.func @transform_25(%arg0: i32) -> (i32, i32, i32) {
    %c0_i32 = arith.constant 0 : i32
    %c0_i32_0 = arith.constant 0 : i32
    %c0_i32_1 = arith.constant 0 : i32
    %c0_i32_2 = arith.constant 0 : i32
    return %c0_i32, %c0_i32_0, %c0_i32_1 : i32, i32, i32
  }
  func.func @transform_26(%arg0: i32) -> (i32, i32, i32) {
    %c0_i32 = arith.constant 0 : i32
    %c0_i32_0 = arith.constant 0 : i32
    %c0_i32_1 = arith.constant 0 : i32
    %c0_i32_2 = arith.constant 0 : i32
    return %c0_i32, %c0_i32_0, %c0_i32_1 : i32, i32, i32
  }
  func.func @transform_27(%arg0: i32) -> (i32, i32, i32) {
    %c0_i32 = arith.constant 0 : i32
    %c0_i32_0 = arith.constant 0 : i32
    %c0_i32_1 = arith.constant 0 : i32
    %c0_i32_2 = arith.constant 0 : i32
    return %c0_i32, %c0_i32_0, %c0_i32_1 : i32, i32, i32
  }
  func.func @transform_28(%arg0: i32) -> (i32, i32, i32) {
    %c0_i32 = arith.constant 0 : i32
    %c0_i32_0 = arith.constant 0 : i32
    %c0_i32_1 = arith.constant 0 : i32
    %c0_i32_2 = arith.constant 0 : i32
    return %c0_i32, %c0_i32_0, %c0_i32_1 : i32, i32, i32
  }
  func.func @transform_29(%arg0: i32) -> (i32, i32, i32) {
    %c0_i32 = arith.constant 0 : i32
    %c0_i32_0 = arith.constant 0 : i32
    %c0_i32_1 = arith.constant 0 : i32
    %c0_i32_2 = arith.constant 0 : i32
    return %c0_i32, %c0_i32_0, %c0_i32_1 : i32, i32, i32
  }
  func.func @transform_30(%arg0: i32) -> (i32, i32, i32) {
    %c0_i32 = arith.constant 0 : i32
    %c0_i32_0 = arith.constant 0 : i32
    %c0_i32_1 = arith.constant 0 : i32
    %c0_i32_2 = arith.constant 0 : i32
    return %c0_i32, %c0_i32_0, %c0_i32_1 : i32, i32, i32
  }
  func.func @transform_31(%arg0: i32) -> (i32, i32, i32) {
    %c0_i32 = arith.constant 0 : i32
    %c0_i32_0 = arith.constant 0 : i32
    %c0_i32_1 = arith.constant 0 : i32
    %c0_i32_2 = arith.constant 0 : i32
    return %c0_i32, %c0_i32_0, %c0_i32_1 : i32, i32, i32
  }
  func.func @transform_32(%arg0: i32) -> (i32, i32, i32) {
    %c0_i32 = arith.constant 0 : i32
    %c0_i32_0 = arith.constant 0 : i32
    %c0_i32_1 = arith.constant 0 : i32
    %c0_i32_2 = arith.constant 0 : i32
    return %c0_i32, %c0_i32_0, %c0_i32_1 : i32, i32, i32
  }
  func.func @transform_33(%arg0: i32) -> (i32, i32, i32) {
    %c0_i32 = arith.constant 0 : i32
    %c0_i32_0 = arith.constant 0 : i32
    %c0_i32_1 = arith.constant 0 : i32
    %c0_i32_2 = arith.constant 0 : i32
    return %c0_i32, %c0_i32_0, %c0_i32_1 : i32, i32, i32
  }
  func.func @transform_34(%arg0: i32) -> (i32, i32, i32) {
    %c0_i32 = arith.constant 0 : i32
    %c0_i32_0 = arith.constant 0 : i32
    %c0_i32_1 = arith.constant 0 : i32
    %c0_i32_2 = arith.constant 0 : i32
    return %c0_i32, %c0_i32_0, %c0_i32_1 : i32, i32, i32
  }
  func.func @transform_35(%arg0: i32) -> (i32, i32) {
    %c0_i32 = arith.constant 0 : i32
    %c0_i32_0 = arith.constant 0 : i32
    %c0_i32_1 = arith.constant 0 : i32
    return %c0_i32, %c0_i32_0 : i32, i32
  }
  func.func @transform_36(%arg0: i32) -> (i32, i32) {
    %c0_i32 = arith.constant 0 : i32
    %c0_i32_0 = arith.constant 0 : i32
    %c0_i32_1 = arith.constant 0 : i32
    return %c0_i32, %c0_i32_0 : i32, i32
  }
  func.func @transform_37(%arg0: i32) -> (i32, i32) {
    %c0_i32 = arith.constant 0 : i32
    %c0_i32_0 = arith.constant 0 : i32
    %c0_i32_1 = arith.constant 0 : i32
    return %c0_i32, %c0_i32_0 : i32, i32
  }
  func.func @transform_38(%arg0: i32) -> (i32, i32) {
    %c0_i32 = arith.constant 0 : i32
    %c0_i32_0 = arith.constant 0 : i32
    %c0_i32_1 = arith.constant 0 : i32
    return %c0_i32, %c0_i32_0 : i32, i32
  }
  func.func @transform_39(%arg0: i32) -> (i32, i32, i32) {
    %c0_i32 = arith.constant 0 : i32
    %c0_i32_0 = arith.constant 0 : i32
    %c0_i32_1 = arith.constant 0 : i32
    return %arg0, %c0_i32, %c0_i32_0 : i32, i32, i32
  }
}

</mosaic_0001>

<llo_original>
// kernel: transformer_forward.1
$region0: #{transformer_forward.1}
  #allocation0 [shape = 'u32[]', space=smem, size = 0x4, offset = 0x4, fixed_abs, tag = 'smem constant byte address 0x4 - core index']
  #allocation1 [shape = 'u32[144,128]{1,0:T(1,128)}', space=vmem, size = 0x12000, scoped, tag = 'internal scratch']
  %s0 = inlined_call_operand.smem [shape: u32[40], index: -1, kind: input, shape index: {}]
  %s1 = sld [smem:[%s0]]
  %s2 = scalar_lea.smem %s0, 1
  %s3 = sld [smem:[%s2]]
  %s4 = scalar_lea.smem %s0, 2
  %s5 = sld [smem:[%s4]]
  %s6 = scalar_lea.smem %s0, 3
  %s7 = sld [smem:[%s6]]
  %s8 = scalar_lea.smem %s0, 4
  %s9 = sld [smem:[%s8]]
  %s10 = scalar_lea.smem %s0, 5
  %s11 = sld [smem:[%s10]]
  %s12 = scalar_lea.smem %s0, 6
  %s13 = sld [smem:[%s12]]
  %s14 = scalar_lea.smem %s0, 7
  %s15 = sld [smem:[%s14]]
  %s16 = scalar_lea.smem %s0, 8
  %s17 = sld [smem:[%s16]]
  %s18 = scalar_lea.smem %s0, 9
  %s19 = sld [smem:[%s18]]
  %s20 = scalar_lea.smem %s0, 10
  %s21 = sld [smem:[%s20]]
  %s22 = scalar_lea.smem %s0, 11
  %s23 = sld [smem:[%s22]]
  %s24 = scalar_lea.smem %s0, 12
  %s25 = sld [smem:[%s24]]
  %s26 = scalar_lea.smem %s0, 13
  %s27 = sld [smem:[%s26]]
  %s28 = scalar_lea.smem %s0, 14
  %s29 = sld [smem:[%s28]]
  %s30 = scalar_lea.smem %s0, 15
  %s31 = sld [smem:[%s30]]
  %s32 = scalar_lea.smem %s0, 16
  %s33 = sld [smem:[%s32]]
  %s34 = scalar_lea.smem %s0, 17
  %s35 = sld [smem:[%s34]]
  %s36 = scalar_lea.smem %s0, 18
  %s37 = sld [smem:[%s36]]
  %s38 = scalar_lea.smem %s0, 19
  %s39 = sld [smem:[%s38]]
  %s40 = scalar_lea.smem %s0, 20
  %s41 = sld [smem:[%s40]]
  %s42 = scalar_lea.smem %s0, 21
  %s43 = sld [smem:[%s42]]
  %s44 = scalar_lea.smem %s0, 22
  %s45 = sld [smem:[%s44]]
  %s46 = scalar_lea.smem %s0, 23
  %s47 = sld [smem:[%s46]]
  %s48 = scalar_lea.smem %s0, 24
  %s49 = sld [smem:[%s48]]
  %s50 = scalar_lea.smem %s0, 25
  %s51 = sld [smem:[%s50]]
  %s52 = scalar_lea.smem %s0, 26
  %s53 = sld [smem:[%s52]]
  %s54 = scalar_lea.smem %s0, 27
  %s55 = sld [smem:[%s54]]
  %s56 = scalar_lea.smem %s0, 28
  %s57 = sld [smem:[%s56]]
  %s58 = scalar_lea.smem %s0, 29
  %s59 = sld [smem:[%s58]]
  %s60 = scalar_lea.smem %s0, 30
  %s61 = sld [smem:[%s60]]
  %s62 = scalar_lea.smem %s0, 31
  %s63 = sld [smem:[%s62]]
  %s64 = scalar_lea.smem %s0, 32
  %s65 = sld [smem:[%s64]]
  %s66 = scalar_lea.smem %s0, 33
  %s67 = sld [smem:[%s66]]
  %s68 = scalar_lea.smem %s0, 34
  %s69 = sld [smem:[%s68]]
  %s70 = scalar_lea.smem %s0, 35
  %s71 = sld [smem:[%s70]]
  %s72 = scalar_lea.smem %s0, 36
  %s73 = sld [smem:[%s72]]
  %s74 = scalar_lea.smem %s0, 37
  %s75 = sld [smem:[%s74]]
  %s76 = scalar_lea.smem %s0, 38
  %s77 = sld [smem:[%s76]]
  %s78 = scalar_lea.smem %s0, 39
  %s79 = sld [smem:[%s78]]
  %s80 = sld [smem:[#allocation0]]
  $region189: #{transformer_forward.1} parent=0
    _
  %s82 = ssub.s32 1, %s80
  %s83 = scalar_select 0, %s82, %s80
  $region1: #{transformer_forward.1} parent=0
    #allocation2 [shape = 'u8[8192]{0}', space=vmem, size = 0x2000, scoped, tag = 'output window, operand 0']
    #allocation3 [shape = 's32[2]{0}', space=sflag, size = 0x8, scoped, tag = 'scoped memory for transformer_forward.1']
    %84 = vsyncpa [#allocation3], 0
    %s85 = scalar_lea.sflag [#allocation3], 1
    %86 = vsyncpa %s85, 0
    loop: start=0, step=1, limit=4
    $region2: #{transformer_forward.1} parent=1 // loop_pre_header
      _
    $region3: #{transformer_forward.1} parent=1 // loop_header
      %s88 = sphi 0, %s92
      %p89 = scmp.ge.s32.totalorder %s88, 4
      %s98 = sphi 0, %s100
      %s101 = sphi 0, %s98
      %s102 = sphi 0, %s101
      %s118 = sphi 0, %s102
      %s124 = sphi 0, %s126
      %s127 = sphi 0, %s124
      %s128 = sphi 0, %s127
      %s144 = sphi 0, %s128
      %s148 = sphi 0, %s148
      %s150 = sphi 0, %s148
      %s151 = sphi 0, %s150
      %s165 = sphi 0, %s151
      %s169 = sphi 0, %s169
      %s171 = sphi 0, %s169
      %s172 = sphi 0, %s171
      %s186 = sphi 0, %s172
      %s190 = sphi 0, %s190
      %s192 = sphi 0, %s190
      %s193 = sphi 0, %s192
      %s207 = sphi 0, %s193
      %s211 = sphi 0, %s211
      %s213 = sphi 0, %s211
      %s214 = sphi 0, %s213
      %s228 = sphi 0, %s214
      %s232 = sphi 0, %s232
      %s234 = sphi 0, %s232
      %s235 = sphi 0, %s234
      %s249 = sphi 0, %s235
      %s253 = sphi 0, %s253
      %s255 = sphi 0, %s253
      %s256 = sphi 0, %s255
      %s270 = sphi 0, %s256
      %s274 = sphi 0, %s274
      %s276 = sphi 0, %s274
      %s277 = sphi 0, %s276
      %s291 = sphi 0, %s277
      %s295 = sphi 0, %s295
      %s297 = sphi 0, %s295
      %s298 = sphi 0, %s297
      %s312 = sphi 0, %s298
      %s316 = sphi 0, %s316
      %s318 = sphi 0, %s316
      %s319 = sphi 0, %s318
      %s333 = sphi 0, %s319
      %s337 = sphi 0, %s337
      %s339 = sphi 0, %s337
      %s340 = sphi 0, %s339
      %s354 = sphi 0, %s340
      %s358 = sphi 0, %s358
      %s360 = sphi 0, %s358
      %s361 = sphi 0, %s360
      %s375 = sphi 0, %s361
      %s379 = sphi 0, %s379
      %s381 = sphi 0, %s379
      %s382 = sphi 0, %s381
      %s396 = sphi 0, %s382
      %s400 = sphi 0, %s400
      %s402 = sphi 0, %s400
      %s403 = sphi 0, %s402
      %s417 = sphi 0, %s403
      %s421 = sphi 0, %s421
      %s423 = sphi 0, %s421
      %s424 = sphi 0, %s423
      %s438 = sphi 0, %s424
      %s442 = sphi 0, %s442
      %s444 = sphi 0, %s442
      %s445 = sphi 0, %s444
      %s459 = sphi 0, %s445
      %s463 = sphi 0, %s463
      %s465 = sphi 0, %s463
      %s466 = sphi 0, %s465
      %s480 = sphi 0, %s466
      %s484 = sphi 0, %s484
      %s486 = sphi 0, %s484
      %s487 = sphi 0, %s486
      %s501 = sphi 0, %s487
      %s505 = sphi 0, %s505
      %s507 = sphi 0, %s505
      %s508 = sphi 0, %s507
      %s522 = sphi 0, %s508
      %s526 = sphi 0, %s526
      %s528 = sphi 0, %s526
      %s529 = sphi 0, %s528
      %s543 = sphi 0, %s529
      %s547 = sphi 0, %s547
      %s549 = sphi 0, %s547
      %s550 = sphi 0, %s549
      %s564 = sphi 0, %s550
      %s568 = sphi 0, %s568
      %s570 = sphi 0, %s568
      %s571 = sphi 0, %s570
      %s585 = sphi 0, %s571
      %s589 = sphi 0, %s589
      %s591 = sphi 0, %s589
      %s592 = sphi 0, %s591
      %s606 = sphi 0, %s592
      %s610 = sphi 0, %s610
      %s612 = sphi 0, %s610
      %s613 = sphi 0, %s612
      %s627 = sphi 0, %s613
      %s631 = sphi 0, %s631
      %s633 = sphi 0, %s631
      %s634 = sphi 0, %s633
      %s648 = sphi 0, %s634
      %s652 = sphi 0, %s652
      %s654 = sphi 0, %s652
      %s655 = sphi 0, %s654
      %s669 = sphi 0, %s655
      %s673 = sphi 0, %s673
      %s675 = sphi 0, %s673
      %s676 = sphi 0, %s675
      %s690 = sphi 0, %s676
      %s694 = sphi 0, %s694
      %s696 = sphi 0, %s694
      %s697 = sphi 0, %s696
      %s711 = sphi 0, %s697
      %s715 = sphi 0, %s715
      %s717 = sphi 0, %s715
      %s718 = sphi 0, %s717
      %s732 = sphi 0, %s718
      %s736 = sphi 0, %s736
      %s738 = sphi 0, %s736
      %s739 = sphi 0, %s738
      %s753 = sphi 0, %s739
      %s757 = sphi 0, %s757
      %s759 = sphi 0, %s757
      %s760 = sphi 0, %s759
      %s774 = sphi 0, %s760
      %s778 = sphi 0, %s778
      %s780 = sphi 0, %s778
      %s781 = sphi 0, %s780
      %s795 = sphi 0, %s781
      %s799 = sphi 0, %s799
      %s801 = sphi 0, %s799
      %s802 = sphi 0, %s801
      %s816 = sphi 0, %s802
      %s820 = sphi 0, %s820
      %s822 = sphi 0, %s820
      %s823 = sphi 0, %s822
      %s837 = sphi 0, %s823
      %s841 = sphi 0, %s841
      %s843 = sphi 0, %s841
      %s844 = sphi 0, %s843
      %s858 = sphi 0, %s844
      %s862 = sphi 0, %s862
      %s864 = sphi 0, %s862
      %s865 = sphi 0, %s864
      %s879 = sphi 0, %s865
      %s883 = sphi 0, %s883
      %s885 = sphi 0, %s883
      %s886 = sphi 0, %s885
      %s900 = sphi 0, %s886
      %s904 = sphi 0, %s904
      %s906 = sphi 0, %s904
      %s907 = sphi 0, %s906
      %s921 = sphi 0, %s907
      %s927 = sphi 0, %s929
      %s930 = sphi 0, %s927
      %s931 = sphi 0, %s930
      %s947 = sphi 0, %s931
    $region4: #{transformer_forward.1} parent=1 // loop_header_branch
      %91 = sbr.rel (%p89) target = $region8
    $region5: #{transformer_forward.1} parent=1 // loop_body
      %s93 = ssub.s32 %s88, 1
      %s94 = ssub.s32 %s88, 2
      %s95 = sadd.s32 %s88, 1
      %s96 = ssub.s32 %s88, %s95
      %p97 = scmp.eq.s32.totalorder %s96, 0
      %s99 = sadd.s32 %s98, 1
      %s100 = scalar_select %p97, %s98, %s99
      %p103 = pneg %p97
      %p104 = scmp.eq.s32.totalorder %s88, 1
      %p105 = por %p103, %p104
      %p106 = scmp.ne.s32.totalorder %s98, %s101
      %p107 = scmp.eq.s32.totalorder %s88, 0
      %p108 = por %p106, %p107
      %p109 = scmp.ne.s32.totalorder %s98, %s101
      %p110 = scmp.eq.s32.totalorder %s93, 1
      %p111 = por %p109, %p110
      %p112 = scmp.ne.s32.totalorder %s101, %s102
      %p113 = scmp.eq.s32.totalorder %s93, 0
      %p114 = por %p112, %p113
      %p115 = scmp.ne.s32.totalorder %s101, %s102
      %p116 = scmp.eq.s32.totalorder %s94, 1
      %p117 = por %p115, %p116
      %p119 = scmp.ne.s32.totalorder %s102, %s118
      %p120 = scmp.eq.s32.totalorder %s94, 0
      %p121 = por %p119, %p120
      %s122 = ssub.s32 %s88, %s95
      %p123 = scmp.eq.s32.totalorder %s122, 0
      %s125 = sadd.s32 %s124, 1
      %s126 = scalar_select %p123, %s124, %s125
      %p129 = pneg %p123
      %p130 = scmp.eq.s32.totalorder %s88, 1
      %p131 = por %p129, %p130
      %p132 = scmp.ne.s32.totalorder %s124, %s127
      %p133 = scmp.eq.s32.totalorder %s88, 0
      %p134 = por %p132, %p133
      %p135 = scmp.ne.s32.totalorder %s124, %s127
      %p136 = scmp.eq.s32.totalorder %s93, 1
      %p137 = por %p135, %p136
      %p138 = scmp.ne.s32.totalorder %s127, %s128
      %p139 = scmp.eq.s32.totalorder %s93, 0
      %p140 = por %p138, %p139
      %p141 = scmp.ne.s32.totalorder %s127, %s128
      %p142 = scmp.eq.s32.totalorder %s94, 1
      %p143 = por %p141, %p142
      %p145 = scmp.ne.s32.totalorder %s128, %s144
      %p146 = scmp.eq.s32.totalorder %s94, 0
      %p147 = por %p145, %p146
      %s149 = sadd.s32 %s148, 1
      %p152 = scmp.eq.s32.totalorder %s88, 1
      %p153 = scmp.ne.s32.totalorder %s148, %s150
      %p154 = scmp.eq.s32.totalorder %s88, 0
      %p155 = por %p153, %p154
      %p156 = scmp.ne.s32.totalorder %s148, %s150
      %p157 = scmp.eq.s32.totalorder %s93, 1
      %p158 = por %p156, %p157
      %p159 = scmp.ne.s32.totalorder %s150, %s151
      %p160 = scmp.eq.s32.totalorder %s93, 0
      %p161 = por %p159, %p160
      %p162 = scmp.ne.s32.totalorder %s150, %s151
      %p163 = scmp.eq.s32.totalorder %s94, 1
      %p164 = por %p162, %p163
      %p166 = scmp.ne.s32.totalorder %s151, %s165
      %p167 = scmp.eq.s32.totalorder %s94, 0
      %p168 = por %p166, %p167
      %s170 = sadd.s32 %s169, 1
      %p173 = scmp.eq.s32.totalorder %s88, 1
      %p174 = scmp.ne.s32.totalorder %s169, %s171
      %p175 = scmp.eq.s32.totalorder %s88, 0
      %p176 = por %p174, %p175
      %p177 = scmp.ne.s32.totalorder %s169, %s171
      %p178 = scmp.eq.s32.totalorder %s93, 1
      %p179 = por %p177, %p178
      %p180 = scmp.ne.s32.totalorder %s171, %s172
      %p181 = scmp.eq.s32.totalorder %s93, 0
      %p182 = por %p180, %p181
      %p183 = scmp.ne.s32.totalorder %s171, %s172
      %p184 = scmp.eq.s32.totalorder %s94, 1
      %p185 = por %p183, %p184
      %p187 = scmp.ne.s32.totalorder %s172, %s186
      %p188 = scmp.eq.s32.totalorder %s94, 0
      %p189 = por %p187, %p188
      %s191 = sadd.s32 %s190, 1
      %p194 = scmp.eq.s32.totalorder %s88, 1
      %p195 = scmp.ne.s32.totalorder %s190, %s192
      %p196 = scmp.eq.s32.totalorder %s88, 0
      %p197 = por %p195, %p196
      %p198 = scmp.ne.s32.totalorder %s190, %s192
      %p199 = scmp.eq.s32.totalorder %s93, 1
      %p200 = por %p198, %p199
      %p201 = scmp.ne.s32.totalorder %s192, %s193
      %p202 = scmp.eq.s32.totalorder %s93, 0
      %p203 = por %p201, %p202
      %p204 = scmp.ne.s32.totalorder %s192, %s193
      %p205 = scmp.eq.s32.totalorder %s94, 1
      %p206 = por %p204, %p205
      %p208 = scmp.ne.s32.totalorder %s193, %s207
      %p209 = scmp.eq.s32.totalorder %s94, 0
      %p210 = por %p208, %p209
      %s212 = sadd.s32 %s211, 1
      %p215 = scmp.eq.s32.totalorder %s88, 1
      %p216 = scmp.ne.s32.totalorder %s211, %s213
      %p217 = scmp.eq.s32.totalorder %s88, 0
      %p218 = por %p216, %p217
      %p219 = scmp.ne.s32.totalorder %s211, %s213
      %p220 = scmp.eq.s32.totalorder %s93, 1
      %p221 = por %p219, %p220
      %p222 = scmp.ne.s32.totalorder %s213, %s214
      %p223 = scmp.eq.s32.totalorder %s93, 0
      %p224 = por %p222, %p223
      %p225 = scmp.ne.s32.totalorder %s213, %s214
      %p226 = scmp.eq.s32.totalorder %s94, 1
      %p227 = por %p225, %p226
      %p229 = scmp.ne.s32.totalorder %s214, %s228
      %p230 = scmp.eq.s32.totalorder %s94, 0
      %p231 = por %p229, %p230
      %s233 = sadd.s32 %s232, 1
      %p236 = scmp.eq.s32.totalorder %s88, 1
      %p237 = scmp.ne.s32.totalorder %s232, %s234
      %p238 = scmp.eq.s32.totalorder %s88, 0
      %p239 = por %p237, %p238
      %p240 = scmp.ne.s32.totalorder %s232, %s234
      %p241 = scmp.eq.s32.totalorder %s93, 1
      %p242 = por %p240, %p241
      %p243 = scmp.ne.s32.totalorder %s234, %s235
      %p244 = scmp.eq.s32.totalorder %s93, 0
      %p245 = por %p243, %p244
      %p246 = scmp.ne.s32.totalorder %s234, %s235
      %p247 = scmp.eq.s32.totalorder %s94, 1
      %p248 = por %p246, %p247
      %p250 = scmp.ne.s32.totalorder %s235, %s249
      %p251 = scmp.eq.s32.totalorder %s94, 0
      %p252 = por %p250, %p251
      %s254 = sadd.s32 %s253, 1
      %p257 = scmp.eq.s32.totalorder %s88, 1
      %p258 = scmp.ne.s32.totalorder %s253, %s255
      %p259 = scmp.eq.s32.totalorder %s88, 0
      %p260 = por %p258, %p259
      %p261 = scmp.ne.s32.totalorder %s253, %s255
      %p262 = scmp.eq.s32.totalorder %s93, 1
      %p263 = por %p261, %p262
      %p264 = scmp.ne.s32.totalorder %s255, %s256
      %p265 = scmp.eq.s32.totalorder %s93, 0
      %p266 = por %p264, %p265
      %p267 = scmp.ne.s32.totalorder %s255, %s256
      %p268 = scmp.eq.s32.totalorder %s94, 1
      %p269 = por %p267, %p268
      %p271 = scmp.ne.s32.totalorder %s256, %s270
      %p272 = scmp.eq.s32.totalorder %s94, 0
      %p273 = por %p271, %p272
      %s275 = sadd.s32 %s274, 1
      %p278 = scmp.eq.s32.totalorder %s88, 1
      %p279 = scmp.ne.s32.totalorder %s274, %s276
      %p280 = scmp.eq.s32.totalorder %s88, 0
      %p281 = por %p279, %p280
      %p282 = scmp.ne.s32.totalorder %s274, %s276
      %p283 = scmp.eq.s32.totalorder %s93, 1
      %p284 = por %p282, %p283
      %p285 = scmp.ne.s32.totalorder %s276, %s277
      %p286 = scmp.eq.s32.totalorder %s93, 0
      %p287 = por %p285, %p286
      %p288 = scmp.ne.s32.totalorder %s276, %s277
      %p289 = scmp.eq.s32.totalorder %s94, 1
      %p290 = por %p288, %p289
      %p292 = scmp.ne.s32.totalorder %s277, %s291
      %p293 = scmp.eq.s32.totalorder %s94, 0
      %p294 = por %p292, %p293
      %s296 = sadd.s32 %s295, 1
      %p299 = scmp.eq.s32.totalorder %s88, 1
      %p300 = scmp.ne.s32.totalorder %s295, %s297
      %p301 = scmp.eq.s32.totalorder %s88, 0
      %p302 = por %p300, %p301
      %p303 = scmp.ne.s32.totalorder %s295, %s297
      %p304 = scmp.eq.s32.totalorder %s93, 1
      %p305 = por %p303, %p304
      %p306 = scmp.ne.s32.totalorder %s297, %s298
      %p307 = scmp.eq.s32.totalorder %s93, 0
      %p308 = por %p306, %p307
      %p309 = scmp.ne.s32.totalorder %s297, %s298
      %p310 = scmp.eq.s32.totalorder %s94, 1
      %p311 = por %p309, %p310
      %p313 = scmp.ne.s32.totalorder %s298, %s312
      %p314 = scmp.eq.s32.totalorder %s94, 0
      %p315 = por %p313, %p314
      %s317 = sadd.s32 %s316, 1
      %p320 = scmp.eq.s32.totalorder %s88, 1
      %p321 = scmp.ne.s32.totalorder %s316, %s318
      %p322 = scmp.eq.s32.totalorder %s88, 0
      %p323 = por %p321, %p322
      %p324 = scmp.ne.s32.totalorder %s316, %s318
      %p325 = scmp.eq.s32.totalorder %s93, 1
      %p326 = por %p324, %p325
      %p327 = scmp.ne.s32.totalorder %s318, %s319
      %p328 = scmp.eq.s32.totalorder %s93, 0
      %p329 = por %p327, %p328
      %p330 = scmp.ne.s32.totalorder %s318, %s319
      %p331 = scmp.eq.s32.totalorder %s94, 1
      %p332 = por %p330, %p331
      %p334 = scmp.ne.s32.totalorder %s319, %s333
      %p335 = scmp.eq.s32.totalorder %s94, 0
      %p336 = por %p334, %p335
      %s338 = sadd.s32 %s337, 1
      %p341 = scmp.eq.s32.totalorder %s88, 1
      %p342 = scmp.ne.s32.totalorder %s337, %s339
      %p343 = scmp.eq.s32.totalorder %s88, 0
      %p344 = por %p342, %p343
      %p345 = scmp.ne.s32.totalorder %s337, %s339
      %p346 = scmp.eq.s32.totalorder %s93, 1
      %p347 = por %p345, %p346
      %p348 = scmp.ne.s32.totalorder %s339, %s340
      %p349 = scmp.eq.s32.totalorder %s93, 0
      %p350 = por %p348, %p349
      %p351 = scmp.ne.s32.totalorder %s339, %s340
      %p352 = scmp.eq.s32.totalorder %s94, 1
      %p353 = por %p351, %p352
      %p355 = scmp.ne.s32.totalorder %s340, %s354
      %p356 = scmp.eq.s32.totalorder %s94, 0
      %p357 = por %p355, %p356
      %s359 = sadd.s32 %s358, 1
      %p362 = scmp.eq.s32.totalorder %s88, 1
      %p363 = scmp.ne.s32.totalorder %s358, %s360
      %p364 = scmp.eq.s32.totalorder %s88, 0
      %p365 = por %p363, %p364
      %p366 = scmp.ne.s32.totalorder %s358, %s360
      %p367 = scmp.eq.s32.totalorder %s93, 1
      %p368 = por %p366, %p367
      %p369 = scmp.ne.s32.totalorder %s360, %s361
      %p370 = scmp.eq.s32.totalorder %s93, 0
      %p371 = por %p369, %p370
      %p372 = scmp.ne.s32.totalorder %s360, %s361
      %p373 = scmp.eq.s32.totalorder %s94, 1
      %p374 = por %p372, %p373
      %p376 = scmp.ne.s32.totalorder %s361, %s375
      %p377 = scmp.eq.s32.totalorder %s94, 0
      %p378 = por %p376, %p377
      %s380 = sadd.s32 %s379, 1
      %p383 = scmp.eq.s32.totalorder %s88, 1
      %p384 = scmp.ne.s32.totalorder %s379, %s381
      %p385 = scmp.eq.s32.totalorder %s88, 0
      %p386 = por %p384, %p385
      %p387 = scmp.ne.s32.totalorder %s379, %s381
      %p388 = scmp.eq.s32.totalorder %s93, 1
      %p389 = por %p387, %p388
      %p390 = scmp.ne.s32.totalorder %s381, %s382
      %p391 = scmp.eq.s32.totalorder %s93, 0
      %p392 = por %p390, %p391
      %p393 = scmp.ne.s32.totalorder %s381, %s382
      %p394 = scmp.eq.s32.totalorder %s94, 1
      %p395 = por %p393, %p394
      %p397 = scmp.ne.s32.totalorder %s382, %s396
      %p398 = scmp.eq.s32.totalorder %s94, 0
      %p399 = por %p397, %p398
      %s401 = sadd.s32 %s400, 1
      %p404 = scmp.eq.s32.totalorder %s88, 1
      %p405 = scmp.ne.s32.totalorder %s400, %s402
      %p406 = scmp.eq.s32.totalorder %s88, 0
      %p407 = por %p405, %p406
      %p408 = scmp.ne.s32.totalorder %s400, %s402
      %p409 = scmp.eq.s32.totalorder %s93, 1
      %p410 = por %p408, %p409
      %p411 = scmp.ne.s32.totalorder %s402, %s403
      %p412 = scmp.eq.s32.totalorder %s93, 0
      %p413 = por %p411, %p412
      %p414 = scmp.ne.s32.totalorder %s402, %s403
      %p415 = scmp.eq.s32.totalorder %s94, 1
      %p416 = por %p414, %p415
      %p418 = scmp.ne.s32.totalorder %s403, %s417
      %p419 = scmp.eq.s32.totalorder %s94, 0
      %p420 = por %p418, %p419
      %s422 = sadd.s32 %s421, 1
      %p425 = scmp.eq.s32.totalorder %s88, 1
      %p426 = scmp.ne.s32.totalorder %s421, %s423
      %p427 = scmp.eq.s32.totalorder %s88, 0
      %p428 = por %p426, %p427
      %p429 = scmp.ne.s32.totalorder %s421, %s423
      %p430 = scmp.eq.s32.totalorder %s93, 1
      %p431 = por %p429, %p430
      %p432 = scmp.ne.s32.totalorder %s423, %s424
      %p433 = scmp.eq.s32.totalorder %s93, 0
      %p434 = por %p432, %p433
      %p435 = scmp.ne.s32.totalorder %s423, %s424
      %p436 = scmp.eq.s32.totalorder %s94, 1
      %p437 = por %p435, %p436
      %p439 = scmp.ne.s32.totalorder %s424, %s438
      %p440 = scmp.eq.s32.totalorder %s94, 0
      %p441 = por %p439, %p440
      %s443 = sadd.s32 %s442, 1
      %p446 = scmp.eq.s32.totalorder %s88, 1
      %p447 = scmp.ne.s32.totalorder %s442, %s444
      %p448 = scmp.eq.s32.totalorder %s88, 0
      %p449 = por %p447, %p448
      %p450 = scmp.ne.s32.totalorder %s442, %s444
      %p451 = scmp.eq.s32.totalorder %s93, 1
      %p452 = por %p450, %p451
      %p453 = scmp.ne.s32.totalorder %s444, %s445
      %p454 = scmp.eq.s32.totalorder %s93, 0
      %p455 = por %p453, %p454
      %p456 = scmp.ne.s32.totalorder %s444, %s445
      %p457 = scmp.eq.s32.totalorder %s94, 1
      %p458 = por %p456, %p457
      %p460 = scmp.ne.s32.totalorder %s445, %s459
      %p461 = scmp.eq.s32.totalorder %s94, 0
      %p462 = por %p460, %p461
      %s464 = sadd.s32 %s463, 1
      %p467 = scmp.eq.s32.totalorder %s88, 1
      %p468 = scmp.ne.s32.totalorder %s463, %s465
      %p469 = scmp.eq.s32.totalorder %s88, 0
      %p470 = por %p468, %p469
      %p471 = scmp.ne.s32.totalorder %s463, %s465
      %p472 = scmp.eq.s32.totalorder %s93, 1
      %p473 = por %p471, %p472
      %p474 = scmp.ne.s32.totalorder %s465, %s466
      %p475 = scmp.eq.s32.totalorder %s93, 0
      %p476 = por %p474, %p475
      %p477 = scmp.ne.s32.totalorder %s465, %s466
      %p478 = scmp.eq.s32.totalorder %s94, 1
      %p479 = por %p477, %p478
      %p481 = scmp.ne.s32.totalorder %s466, %s480
      %p482 = scmp.eq.s32.totalorder %s94, 0
      %p483 = por %p481, %p482
      %s485 = sadd.s32 %s484, 1
      %p488 = scmp.eq.s32.totalorder %s88, 1
      %p489 = scmp.ne.s32.totalorder %s484, %s486
      %p490 = scmp.eq.s32.totalorder %s88, 0
      %p491 = por %p489, %p490
      %p492 = scmp.ne.s32.totalorder %s484, %s486
      %p493 = scmp.eq.s32.totalorder %s93, 1
      %p494 = por %p492, %p493
      %p495 = scmp.ne.s32.totalorder %s486, %s487
      %p496 = scmp.eq.s32.totalorder %s93, 0
      %p497 = por %p495, %p496
      %p498 = scmp.ne.s32.totalorder %s486, %s487
      %p499 = scmp.eq.s32.totalorder %s94, 1
      %p500 = por %p498, %p499
      %p502 = scmp.ne.s32.totalorder %s487, %s501
      %p503 = scmp.eq.s32.totalorder %s94, 0
      %p504 = por %p502, %p503
      %s506 = sadd.s32 %s505, 1
      %p509 = scmp.eq.s32.totalorder %s88, 1
      %p510 = scmp.ne.s32.totalorder %s505, %s507
      %p511 = scmp.eq.s32.totalorder %s88, 0
      %p512 = por %p510, %p511
      %p513 = scmp.ne.s32.totalorder %s505, %s507
      %p514 = scmp.eq.s32.totalorder %s93, 1
      %p515 = por %p513, %p514
      %p516 = scmp.ne.s32.totalorder %s507, %s508
      %p517 = scmp.eq.s32.totalorder %s93, 0
      %p518 = por %p516, %p517
      %p519 = scmp.ne.s32.totalorder %s507, %s508
      %p520 = scmp.eq.s32.totalorder %s94, 1
      %p521 = por %p519, %p520
      %p523 = scmp.ne.s32.totalorder %s508, %s522
      %p524 = scmp.eq.s32.totalorder %s94, 0
      %p525 = por %p523, %p524
      %s527 = sadd.s32 %s526, 1
      %p530 = scmp.eq.s32.totalorder %s88, 1
      %p531 = scmp.ne.s32.totalorder %s526, %s528
      %p532 = scmp.eq.s32.totalorder %s88, 0
      %p533 = por %p531, %p532
      %p534 = scmp.ne.s32.totalorder %s526, %s528
      %p535 = scmp.eq.s32.totalorder %s93, 1
      %p536 = por %p534, %p535
      %p537 = scmp.ne.s32.totalorder %s528, %s529
      %p538 = scmp.eq.s32.totalorder %s93, 0
      %p539 = por %p537, %p538
      %p540 = scmp.ne.s32.totalorder %s528, %s529
      %p541 = scmp.eq.s32.totalorder %s94, 1
      %p542 = por %p540, %p541
      %p544 = scmp.ne.s32.totalorder %s529, %s543
      %p545 = scmp.eq.s32.totalorder %s94, 0
      %p546 = por %p544, %p545
      %s548 = sadd.s32 %s547, 1
      %p551 = scmp.eq.s32.totalorder %s88, 1
      %p552 = scmp.ne.s32.totalorder %s547, %s549
      %p553 = scmp.eq.s32.totalorder %s88, 0
      %p554 = por %p552, %p553
      %p555 = scmp.ne.s32.totalorder %s547, %s549
      %p556 = scmp.eq.s32.totalorder %s93, 1
      %p557 = por %p555, %p556
      %p558 = scmp.ne.s32.totalorder %s549, %s550
      %p559 = scmp.eq.s32.totalorder %s93, 0
      %p560 = por %p558, %p559
      %p561 = scmp.ne.s32.totalorder %s549, %s550
      %p562 = scmp.eq.s32.totalorder %s94, 1
      %p563 = por %p561, %p562
      %p565 = scmp.ne.s32.totalorder %s550, %s564
      %p566 = scmp.eq.s32.totalorder %s94, 0
      %p567 = por %p565, %p566
      %s569 = sadd.s32 %s568, 1
      %p572 = scmp.eq.s32.totalorder %s88, 1
      %p573 = scmp.ne.s32.totalorder %s568, %s570
      %p574 = scmp.eq.s32.totalorder %s88, 0
      %p575 = por %p573, %p574
      %p576 = scmp.ne.s32.totalorder %s568, %s570
      %p577 = scmp.eq.s32.totalorder %s93, 1
      %p578 = por %p576, %p577
      %p579 = scmp.ne.s32.totalorder %s570, %s571
      %p580 = scmp.eq.s32.totalorder %s93, 0
      %p581 = por %p579, %p580
      %p582 = scmp.ne.s32.totalorder %s570, %s571
      %p583 = scmp.eq.s32.totalorder %s94, 1
      %p584 = por %p582, %p583
      %p586 = scmp.ne.s32.totalorder %s571, %s585
      %p587 = scmp.eq.s32.totalorder %s94, 0
      %p588 = por %p586, %p587
      %s590 = sadd.s32 %s589, 1
      %p593 = scmp.eq.s32.totalorder %s88, 1
      %p594 = scmp.ne.s32.totalorder %s589, %s591
      %p595 = scmp.eq.s32.totalorder %s88, 0
      %p596 = por %p594, %p595
      %p597 = scmp.ne.s32.totalorder %s589, %s591
      %p598 = scmp.eq.s32.totalorder %s93, 1
      %p599 = por %p597, %p598
      %p600 = scmp.ne.s32.totalorder %s591, %s592
      %p601 = scmp.eq.s32.totalorder %s93, 0
      %p602 = por %p600, %p601
      %p603 = scmp.ne.s32.totalorder %s591, %s592
      %p604 = scmp.eq.s32.totalorder %s94, 1
      %p605 = por %p603, %p604
      %p607 = scmp.ne.s32.totalorder %s592, %s606
      %p608 = scmp.eq.s32.totalorder %s94, 0
      %p609 = por %p607, %p608
      %s611 = sadd.s32 %s610, 1
      %p614 = scmp.eq.s32.totalorder %s88, 1
      %p615 = scmp.ne.s32.totalorder %s610, %s612
      %p616 = scmp.eq.s32.totalorder %s88, 0
      %p617 = por %p615, %p616
      %p618 = scmp.ne.s32.totalorder %s610, %s612
      %p619 = scmp.eq.s32.totalorder %s93, 1
      %p620 = por %p618, %p619
      %p621 = scmp.ne.s32.totalorder %s612, %s613
      %p622 = scmp.eq.s32.totalorder %s93, 0
      %p623 = por %p621, %p622
      %p624 = scmp.ne.s32.totalorder %s612, %s613
      %p625 = scmp.eq.s32.totalorder %s94, 1
      %p626 = por %p624, %p625
      %p628 = scmp.ne.s32.totalorder %s613, %s627
      %p629 = scmp.eq.s32.totalorder %s94, 0
      %p630 = por %p628, %p629
      %s632 = sadd.s32 %s631, 1
      %p635 = scmp.eq.s32.totalorder %s88, 1
      %p636 = scmp.ne.s32.totalorder %s631, %s633
      %p637 = scmp.eq.s32.totalorder %s88, 0
      %p638 = por %p636, %p637
      %p639 = scmp.ne.s32.totalorder %s631, %s633
      %p640 = scmp.eq.s32.totalorder %s93, 1
      %p641 = por %p639, %p640
      %p642 = scmp.ne.s32.totalorder %s633, %s634
      %p643 = scmp.eq.s32.totalorder %s93, 0
      %p644 = por %p642, %p643
      %p645 = scmp.ne.s32.totalorder %s633, %s634
      %p646 = scmp.eq.s32.totalorder %s94, 1
      %p647 = por %p645, %p646
      %p649 = scmp.ne.s32.totalorder %s634, %s648
      %p650 = scmp.eq.s32.totalorder %s94, 0
      %p651 = por %p649, %p650
      %s653 = sadd.s32 %s652, 1
      %p656 = scmp.eq.s32.totalorder %s88, 1
      %p657 = scmp.ne.s32.totalorder %s652, %s654
      %p658 = scmp.eq.s32.totalorder %s88, 0
      %p659 = por %p657, %p658
      %p660 = scmp.ne.s32.totalorder %s652, %s654
      %p661 = scmp.eq.s32.totalorder %s93, 1
      %p662 = por %p660, %p661
      %p663 = scmp.ne.s32.totalorder %s654, %s655
      %p664 = scmp.eq.s32.totalorder %s93, 0
      %p665 = por %p663, %p664
      %p666 = scmp.ne.s32.totalorder %s654, %s655
      %p667 = scmp.eq.s32.totalorder %s94, 1
      %p668 = por %p666, %p667
      %p670 = scmp.ne.s32.totalorder %s655, %s669
      %p671 = scmp.eq.s32.totalorder %s94, 0
      %p672 = por %p670, %p671
      %s674 = sadd.s32 %s673, 1
      %p677 = scmp.eq.s32.totalorder %s88, 1
      %p678 = scmp.ne.s32.totalorder %s673, %s675
      %p679 = scmp.eq.s32.totalorder %s88, 0
      %p680 = por %p678, %p679
      %p681 = scmp.ne.s32.totalorder %s673, %s675
      %p682 = scmp.eq.s32.totalorder %s93, 1
      %p683 = por %p681, %p682
      %p684 = scmp.ne.s32.totalorder %s675, %s676
      %p685 = scmp.eq.s32.totalorder %s93, 0
      %p686 = por %p684, %p685
      %p687 = scmp.ne.s32.totalorder %s675, %s676
      %p688 = scmp.eq.s32.totalorder %s94, 1
      %p689 = por %p687, %p688
      %p691 = scmp.ne.s32.totalorder %s676, %s690
      %p692 = scmp.eq.s32.totalorder %s94, 0
      %p693 = por %p691, %p692
      %s695 = sadd.s32 %s694, 1
      %p698 = scmp.eq.s32.totalorder %s88, 1
      %p699 = scmp.ne.s32.totalorder %s694, %s696
      %p700 = scmp.eq.s32.totalorder %s88, 0
      %p701 = por %p699, %p700
      %p702 = scmp.ne.s32.totalorder %s694, %s696
      %p703 = scmp.eq.s32.totalorder %s93, 1
      %p704 = por %p702, %p703
      %p705 = scmp.ne.s32.totalorder %s696, %s697
      %p706 = scmp.eq.s32.totalorder %s93, 0
      %p707 = por %p705, %p706
      %p708 = scmp.ne.s32.totalorder %s696, %s697
      %p709 = scmp.eq.s32.totalorder %s94, 1
      %p710 = por %p708, %p709
      %p712 = scmp.ne.s32.totalorder %s697, %s711
      %p713 = scmp.eq.s32.totalorder %s94, 0
      %p714 = por %p712, %p713
      %s716 = sadd.s32 %s715, 1
      %p719 = scmp.eq.s32.totalorder %s88, 1
      %p720 = scmp.ne.s32.totalorder %s715, %s717
      %p721 = scmp.eq.s32.totalorder %s88, 0
      %p722 = por %p720, %p721
      %p723 = scmp.ne.s32.totalorder %s715, %s717
      %p724 = scmp.eq.s32.totalorder %s93, 1
      %p725 = por %p723, %p724
      %p726 = scmp.ne.s32.totalorder %s717, %s718
      %p727 = scmp.eq.s32.totalorder %s93, 0
      %p728 = por %p726, %p727
      %p729 = scmp.ne.s32.totalorder %s717, %s718
      %p730 = scmp.eq.s32.totalorder %s94, 1
      %p731 = por %p729, %p730
      %p733 = scmp.ne.s32.totalorder %s718, %s732
      %p734 = scmp.eq.s32.totalorder %s94, 0
      %p735 = por %p733, %p734
      %s737 = sadd.s32 %s736, 1
      %p740 = scmp.eq.s32.totalorder %s88, 1
      %p741 = scmp.ne.s32.totalorder %s736, %s738
      %p742 = scmp.eq.s32.totalorder %s88, 0
      %p743 = por %p741, %p742
      %p744 = scmp.ne.s32.totalorder %s736, %s738
      %p745 = scmp.eq.s32.totalorder %s93, 1
      %p746 = por %p744, %p745
      %p747 = scmp.ne.s32.totalorder %s738, %s739
      %p748 = scmp.eq.s32.totalorder %s93, 0
      %p749 = por %p747, %p748
      %p750 = scmp.ne.s32.totalorder %s738, %s739
      %p751 = scmp.eq.s32.totalorder %s94, 1
      %p752 = por %p750, %p751
      %p754 = scmp.ne.s32.totalorder %s739, %s753
      %p755 = scmp.eq.s32.totalorder %s94, 0
      %p756 = por %p754, %p755
      %s758 = sadd.s32 %s757, 1
      %p761 = scmp.eq.s32.totalorder %s88, 1
      %p762 = scmp.ne.s32.totalorder %s757, %s759
      %p763 = scmp.eq.s32.totalorder %s88, 0
      %p764 = por %p762, %p763
      %p765 = scmp.ne.s32.totalorder %s757, %s759
      %p766 = scmp.eq.s32.totalorder %s93, 1
      %p767 = por %p765, %p766
      %p768 = scmp.ne.s32.totalorder %s759, %s760
      %p769 = scmp.eq.s32.totalorder %s93, 0
      %p770 = por %p768, %p769
      %p771 = scmp.ne.s32.totalorder %s759, %s760
      %p772 = scmp.eq.s32.totalorder %s94, 1
      %p773 = por %p771, %p772
      %p775 = scmp.ne.s32.totalorder %s760, %s774
      %p776 = scmp.eq.s32.totalorder %s94, 0
      %p777 = por %p775, %p776
      %s779 = sadd.s32 %s778, 1
      %p782 = scmp.eq.s32.totalorder %s88, 1
      %p783 = scmp.ne.s32.totalorder %s778, %s780
      %p784 = scmp.eq.s32.totalorder %s88, 0
      %p785 = por %p783, %p784
      %p786 = scmp.ne.s32.totalorder %s778, %s780
      %p787 = scmp.eq.s32.totalorder %s93, 1
      %p788 = por %p786, %p787
      %p789 = scmp.ne.s32.totalorder %s780, %s781
      %p790 = scmp.eq.s32.totalorder %s93, 0
      %p791 = por %p789, %p790
      %p792 = scmp.ne.s32.totalorder %s780, %s781
      %p793 = scmp.eq.s32.totalorder %s94, 1
      %p794 = por %p792, %p793
      %p796 = scmp.ne.s32.totalorder %s781, %s795
      %p797 = scmp.eq.s32.totalorder %s94, 0
      %p798 = por %p796, %p797
      %s800 = sadd.s32 %s799, 1
      %p803 = scmp.eq.s32.totalorder %s88, 1
      %p804 = scmp.ne.s32.totalorder %s799, %s801
      %p805 = scmp.eq.s32.totalorder %s88, 0
      %p806 = por %p804, %p805
      %p807 = scmp.ne.s32.totalorder %s799, %s801
      %p808 = scmp.eq.s32.totalorder %s93, 1
      %p809 = por %p807, %p808
      %p810 = scmp.ne.s32.totalorder %s801, %s802
      %p811 = scmp.eq.s32.totalorder %s93, 0
      %p812 = por %p810, %p811
      %p813 = scmp.ne.s32.totalorder %s801, %s802
      %p814 = scmp.eq.s32.totalorder %s94, 1
      %p815 = por %p813, %p814
      %p817 = scmp.ne.s32.totalorder %s802, %s816
      %p818 = scmp.eq.s32.totalorder %s94, 0
      %p819 = por %p817, %p818
      %s821 = sadd.s32 %s820, 1
      %p824 = scmp.eq.s32.totalorder %s88, 1
      %p825 = scmp.ne.s32.totalorder %s820, %s822
      %p826 = scmp.eq.s32.totalorder %s88, 0
      %p827 = por %p825, %p826
      %p828 = scmp.ne.s32.totalorder %s820, %s822
      %p829 = scmp.eq.s32.totalorder %s93, 1
      %p830 = por %p828, %p829
      %p831 = scmp.ne.s32.totalorder %s822, %s823
      %p832 = scmp.eq.s32.totalorder %s93, 0
      %p833 = por %p831, %p832
      %p834 = scmp.ne.s32.totalorder %s822, %s823
      %p835 = scmp.eq.s32.totalorder %s94, 1
      %p836 = por %p834, %p835
      %p838 = scmp.ne.s32.totalorder %s823, %s837
      %p839 = scmp.eq.s32.totalorder %s94, 0
      %p840 = por %p838, %p839
      %s842 = sadd.s32 %s841, 1
      %p845 = scmp.eq.s32.totalorder %s88, 1
      %p846 = scmp.ne.s32.totalorder %s841, %s843
      %p847 = scmp.eq.s32.totalorder %s88, 0
      %p848 = por %p846, %p847
      %p849 = scmp.ne.s32.totalorder %s841, %s843
      %p850 = scmp.eq.s32.totalorder %s93, 1
      %p851 = por %p849, %p850
      %p852 = scmp.ne.s32.totalorder %s843, %s844
      %p853 = scmp.eq.s32.totalorder %s93, 0
      %p854 = por %p852, %p853
      %p855 = scmp.ne.s32.totalorder %s843, %s844
      %p856 = scmp.eq.s32.totalorder %s94, 1
      %p857 = por %p855, %p856
      %p859 = scmp.ne.s32.totalorder %s844, %s858
      %p860 = scmp.eq.s32.totalorder %s94, 0
      %p861 = por %p859, %p860
      %s863 = sadd.s32 %s862, 1
      %p866 = scmp.eq.s32.totalorder %s88, 1
      %p867 = scmp.ne.s32.totalorder %s862, %s864
      %p868 = scmp.eq.s32.totalorder %s88, 0
      %p869 = por %p867, %p868
      %p870 = scmp.ne.s32.totalorder %s862, %s864
      %p871 = scmp.eq.s32.totalorder %s93, 1
      %p872 = por %p870, %p871
      %p873 = scmp.ne.s32.totalorder %s864, %s865
      %p874 = scmp.eq.s32.totalorder %s93, 0
      %p875 = por %p873, %p874
      %p876 = scmp.ne.s32.totalorder %s864, %s865
      %p877 = scmp.eq.s32.totalorder %s94, 1
      %p878 = por %p876, %p877
      %p880 = scmp.ne.s32.totalorder %s865, %s879
      %p881 = scmp.eq.s32.totalorder %s94, 0
      %p882 = por %p880, %p881
      %s884 = sadd.s32 %s883, 1
      %p887 = scmp.eq.s32.totalorder %s88, 1
      %p888 = scmp.ne.s32.totalorder %s883, %s885
      %p889 = scmp.eq.s32.totalorder %s88, 0
      %p890 = por %p888, %p889
      %p891 = scmp.ne.s32.totalorder %s883, %s885
      %p892 = scmp.eq.s32.totalorder %s93, 1
      %p893 = por %p891, %p892
      %p894 = scmp.ne.s32.totalorder %s885, %s886
      %p895 = scmp.eq.s32.totalorder %s93, 0
      %p896 = por %p894, %p895
      %p897 = scmp.ne.s32.totalorder %s885, %s886
      %p898 = scmp.eq.s32.totalorder %s94, 1
      %p899 = por %p897, %p898
      %p901 = scmp.ne.s32.totalorder %s886, %s900
      %p902 = scmp.eq.s32.totalorder %s94, 0
      %p903 = por %p901, %p902
      %s905 = sadd.s32 %s904, 1
      %p908 = scmp.eq.s32.totalorder %s88, 1
      %p909 = scmp.ne.s32.totalorder %s904, %s906
      %p910 = scmp.eq.s32.totalorder %s88, 0
      %p911 = por %p909, %p910
      %p912 = scmp.ne.s32.totalorder %s904, %s906
      %p913 = scmp.eq.s32.totalorder %s93, 1
      %p914 = por %p912, %p913
      %p915 = scmp.ne.s32.totalorder %s906, %s907
      %p916 = scmp.eq.s32.totalorder %s93, 0
      %p917 = por %p915, %p916
      %p918 = scmp.ne.s32.totalorder %s906, %s907
      %p919 = scmp.eq.s32.totalorder %s94, 1
      %p920 = por %p918, %p919
      %p922 = scmp.ne.s32.totalorder %s907, %s921
      %p923 = scmp.eq.s32.totalorder %s94, 0
      %p924 = por %p922, %p923
      %s925 = ssub.s32 %s88, %s95
      %p926 = scmp.eq.s32.totalorder %s925, 0
      %s928 = sadd.s32 %s927, 1
      %s929 = scalar_select %p926, %s927, %s928
      %p932 = pneg %p926
      %p933 = scmp.eq.s32.totalorder %s88, 1
      %p934 = por %p932, %p933
      %p935 = scmp.ne.s32.totalorder %s927, %s930
      %p936 = scmp.eq.s32.totalorder %s88, 0
      %p937 = por %p935, %p936
      %p938 = scmp.ne.s32.totalorder %s927, %s930
      %p939 = scmp.eq.s32.totalorder %s93, 1
      %p940 = por %p938, %p939
      %p941 = scmp.ne.s32.totalorder %s930, %s931
      %p942 = scmp.eq.s32.totalorder %s93, 0
      %p943 = por %p941, %p942
      %p944 = scmp.ne.s32.totalorder %s930, %s931
      %p945 = scmp.eq.s32.totalorder %s94, 1
      %p946 = por %p944, %p945
      %p948 = scmp.ne.s32.totalorder %s931, %s947
      %p949 = scmp.eq.s32.totalorder %s94, 0
      %p950 = por %p948, %p949
      %p951 = scmp.le.s32.totalorder 1, %s88
      %p952 = scmp.lt.s32.totalorder %s88, 3
      %p953 = pnand %p951, %p952
      %p954 = pneg %p953
      // Predicated region
      $region9: #{transformer_forward.1} parent=5 // pred_check
        _
      $region10: #{transformer_forward.1} parent=5 // pred_check_branch
        %956 = sbr.rel (%p953) target = $region12
      $region11: #{transformer_forward.1} parent=5 // pred_region
        %s957 = ssub.s32 %s88, 1
        // Predicated region
        $region13: #{transformer_forward.1} parent=11 // pred_check
          %p958 = pneg %p161
        $region14: #{transformer_forward.1} parent=11 // pred_check_branch
          %960 = sbr.rel (%p958) target = $region16
        $region15: #{transformer_forward.1} parent=11 // pred_region
          _
        $region16: #{transformer_forward.1} parent=11 // pred_fallthru
          _
        // Predicated region
        $region17: #{transformer_forward.1} parent=11 // pred_check
          %p961 = pneg %p182
        $region18: #{transformer_forward.1} parent=11 // pred_check_branch
          %963 = sbr.rel (%p961) target = $region20
        $region19: #{transformer_forward.1} parent=11 // pred_region
          _
        $region20: #{transformer_forward.1} parent=11 // pred_fallthru
          _
        // Predicated region
        $region21: #{transformer_forward.1} parent=11 // pred_check
          %p964 = pneg %p203
        $region22: #{transformer_forward.1} parent=11 // pred_check_branch
          %966 = sbr.rel (%p964) target = $region24
        $region23: #{transformer_forward.1} parent=11 // pred_region
          _
        $region24: #{transformer_forward.1} parent=11 // pred_fallthru
          _
        // Predicated region
        $region25: #{transformer_forward.1} parent=11 // pred_check
          %p967 = pneg %p224
        $region26: #{transformer_forward.1} parent=11 // pred_check_branch
          %969 = sbr.rel (%p967) target = $region28
        $region27: #{transformer_forward.1} parent=11 // pred_region
          _
        $region28: #{transformer_forward.1} parent=11 // pred_fallthru
          _
        // Predicated region
        $region29: #{transformer_forward.1} parent=11 // pred_check
          %p970 = pneg %p245
        $region30: #{transformer_forward.1} parent=11 // pred_check_branch
          %972 = sbr.rel (%p970) target = $region32
        $region31: #{transformer_forward.1} parent=11 // pred_region
          _
        $region32: #{transformer_forward.1} parent=11 // pred_fallthru
          _
        // Predicated region
        $region33: #{transformer_forward.1} parent=11 // pred_check
          %p973 = pneg %p266
        $region34: #{transformer_forward.1} parent=11 // pred_check_branch
          %975 = sbr.rel (%p973) target = $region36
        $region35: #{transformer_forward.1} parent=11 // pred_region
          _
        $region36: #{transformer_forward.1} parent=11 // pred_fallthru
          _
        // Predicated region
        $region37: #{transformer_forward.1} parent=11 // pred_check
          %p976 = pneg %p287
        $region38: #{transformer_forward.1} parent=11 // pred_check_branch
          %978 = sbr.rel (%p976) target = $region40
        $region39: #{transformer_forward.1} parent=11 // pred_region
          _
        $region40: #{transformer_forward.1} parent=11 // pred_fallthru
          _
        // Predicated region
        $region41: #{transformer_forward.1} parent=11 // pred_check
          %p979 = pneg %p308
        $region42: #{transformer_forward.1} parent=11 // pred_check_branch
          %981 = sbr.rel (%p979) target = $region44
        $region43: #{transformer_forward.1} parent=11 // pred_region
          _
        $region44: #{transformer_forward.1} parent=11 // pred_fallthru
          _
        // Predicated region
        $region45: #{transformer_forward.1} parent=11 // pred_check
          %p982 = pneg %p329
        $region46: #{transformer_forward.1} parent=11 // pred_check_branch
          %984 = sbr.rel (%p982) target = $region48
        $region47: #{transformer_forward.1} parent=11 // pred_region
          _
        $region48: #{transformer_forward.1} parent=11 // pred_fallthru
          _
        // Predicated region
        $region49: #{transformer_forward.1} parent=11 // pred_check
          %p985 = pneg %p350
        $region50: #{transformer_forward.1} parent=11 // pred_check_branch
          %987 = sbr.rel (%p985) target = $region52
        $region51: #{transformer_forward.1} parent=11 // pred_region
          _
        $region52: #{transformer_forward.1} parent=11 // pred_fallthru
          _
        // Predicated region
        $region53: #{transformer_forward.1} parent=11 // pred_check
          %p988 = pneg %p371
        $region54: #{transformer_forward.1} parent=11 // pred_check_branch
          %990 = sbr.rel (%p988) target = $region56
        $region55: #{transformer_forward.1} parent=11 // pred_region
          _
        $region56: #{transformer_forward.1} parent=11 // pred_fallthru
          _
        // Predicated region
        $region57: #{transformer_forward.1} parent=11 // pred_check
          %p991 = pneg %p392
        $region58: #{transformer_forward.1} parent=11 // pred_check_branch
          %993 = sbr.rel (%p991) target = $region60
        $region59: #{transformer_forward.1} parent=11 // pred_region
          _
        $region60: #{transformer_forward.1} parent=11 // pred_fallthru
          _
        // Predicated region
        $region61: #{transformer_forward.1} parent=11 // pred_check
          %p994 = pneg %p413
        $region62: #{transformer_forward.1} parent=11 // pred_check_branch
          %996 = sbr.rel (%p994) target = $region64
        $region63: #{transformer_forward.1} parent=11 // pred_region
          _
        $region64: #{transformer_forward.1} parent=11 // pred_fallthru
          _
        // Predicated region
        $region65: #{transformer_forward.1} parent=11 // pred_check
          %p997 = pneg %p434
        $region66: #{transformer_forward.1} parent=11 // pred_check_branch
          %999 = sbr.rel (%p997) target = $region68
        $region67: #{transformer_forward.1} parent=11 // pred_region
          _
        $region68: #{transformer_forward.1} parent=11 // pred_fallthru
          _
        // Predicated region
        $region69: #{transformer_forward.1} parent=11 // pred_check
          %p1000 = pneg %p455
        $region70: #{transformer_forward.1} parent=11 // pred_check_branch
          %1002 = sbr.rel (%p1000) target = $region72
        $region71: #{transformer_forward.1} parent=11 // pred_region
          _
        $region72: #{transformer_forward.1} parent=11 // pred_fallthru
          _
        // Predicated region
        $region73: #{transformer_forward.1} parent=11 // pred_check
          %p1003 = pneg %p476
        $region74: #{transformer_forward.1} parent=11 // pred_check_branch
          %1005 = sbr.rel (%p1003) target = $region76
        $region75: #{transformer_forward.1} parent=11 // pred_region
          _
        $region76: #{transformer_forward.1} parent=11 // pred_fallthru
          _
        // Predicated region
        $region77: #{transformer_forward.1} parent=11 // pred_check
          %p1006 = pneg %p497
        $region78: #{transformer_forward.1} parent=11 // pred_check_branch
          %1008 = sbr.rel (%p1006) target = $region80
        $region79: #{transformer_forward.1} parent=11 // pred_region
          _
        $region80: #{transformer_forward.1} parent=11 // pred_fallthru
          _
        // Predicated region
        $region81: #{transformer_forward.1} parent=11 // pred_check
          %p1009 = pneg %p518
        $region82: #{transformer_forward.1} parent=11 // pred_check_branch
          %1011 = sbr.rel (%p1009) target = $region84
        $region83: #{transformer_forward.1} parent=11 // pred_region
          _
        $region84: #{transformer_forward.1} parent=11 // pred_fallthru
          _
        // Predicated region
        $region85: #{transformer_forward.1} parent=11 // pred_check
          %p1012 = pneg %p539
        $region86: #{transformer_forward.1} parent=11 // pred_check_branch
          %1014 = sbr.rel (%p1012) target = $region88
        $region87: #{transformer_forward.1} parent=11 // pred_region
          _
        $region88: #{transformer_forward.1} parent=11 // pred_fallthru
          _
        // Predicated region
        $region89: #{transformer_forward.1} parent=11 // pred_check
          %p1015 = pneg %p560
        $region90: #{transformer_forward.1} parent=11 // pred_check_branch
          %1017 = sbr.rel (%p1015) target = $region92
        $region91: #{transformer_forward.1} parent=11 // pred_region
          _
        $region92: #{transformer_forward.1} parent=11 // pred_fallthru
          _
        // Predicated region
        $region93: #{transformer_forward.1} parent=11 // pred_check
          %p1018 = pneg %p581
        $region94: #{transformer_forward.1} parent=11 // pred_check_branch
          %1020 = sbr.rel (%p1018) target = $region96
        $region95: #{transformer_forward.1} parent=11 // pred_region
          _
        $region96: #{transformer_forward.1} parent=11 // pred_fallthru
          _
        // Predicated region
        $region97: #{transformer_forward.1} parent=11 // pred_check
          %p1021 = pneg %p602
        $region98: #{transformer_forward.1} parent=11 // pred_check_branch
          %1023 = sbr.rel (%p1021) target = $region100
        $region99: #{transformer_forward.1} parent=11 // pred_region
          _
        $region100: #{transformer_forward.1} parent=11 // pred_fallthru
          _
        // Predicated region
        $region101: #{transformer_forward.1} parent=11 // pred_check
          %p1024 = pneg %p623
        $region102: #{transformer_forward.1} parent=11 // pred_check_branch
          %1026 = sbr.rel (%p1024) target = $region104
        $region103: #{transformer_forward.1} parent=11 // pred_region
          _
        $region104: #{transformer_forward.1} parent=11 // pred_fallthru
          _
        // Predicated region
        $region105: #{transformer_forward.1} parent=11 // pred_check
          %p1027 = pneg %p644
        $region106: #{transformer_forward.1} parent=11 // pred_check_branch
          %1029 = sbr.rel (%p1027) target = $region108
        $region107: #{transformer_forward.1} parent=11 // pred_region
          _
        $region108: #{transformer_forward.1} parent=11 // pred_fallthru
          _
        // Predicated region
        $region109: #{transformer_forward.1} parent=11 // pred_check
          %p1030 = pneg %p665
        $region110: #{transformer_forward.1} parent=11 // pred_check_branch
          %1032 = sbr.rel (%p1030) target = $region112
        $region111: #{transformer_forward.1} parent=11 // pred_region
          _
        $region112: #{transformer_forward.1} parent=11 // pred_fallthru
          _
        // Predicated region
        $region113: #{transformer_forward.1} parent=11 // pred_check
          %p1033 = pneg %p686
        $region114: #{transformer_forward.1} parent=11 // pred_check_branch
          %1035 = sbr.rel (%p1033) target = $region116
        $region115: #{transformer_forward.1} parent=11 // pred_region
          _
        $region116: #{transformer_forward.1} parent=11 // pred_fallthru
          _
        // Predicated region
        $region117: #{transformer_forward.1} parent=11 // pred_check
          %p1036 = pneg %p707
        $region118: #{transformer_forward.1} parent=11 // pred_check_branch
          %1038 = sbr.rel (%p1036) target = $region120
        $region119: #{transformer_forward.1} parent=11 // pred_region
          _
        $region120: #{transformer_forward.1} parent=11 // pred_fallthru
          _
        // Predicated region
        $region121: #{transformer_forward.1} parent=11 // pred_check
          %p1039 = pneg %p728
        $region122: #{transformer_forward.1} parent=11 // pred_check_branch
          %1041 = sbr.rel (%p1039) target = $region124
        $region123: #{transformer_forward.1} parent=11 // pred_region
          _
        $region124: #{transformer_forward.1} parent=11 // pred_fallthru
          _
        // Predicated region
        $region125: #{transformer_forward.1} parent=11 // pred_check
          %p1042 = pneg %p749
        $region126: #{transformer_forward.1} parent=11 // pred_check_branch
          %1044 = sbr.rel (%p1042) target = $region128
        $region127: #{transformer_forward.1} parent=11 // pred_region
          _
        $region128: #{transformer_forward.1} parent=11 // pred_fallthru
          _
        // Predicated region
        $region129: #{transformer_forward.1} parent=11 // pred_check
          %p1045 = pneg %p770
        $region130: #{transformer_forward.1} parent=11 // pred_check_branch
          %1047 = sbr.rel (%p1045) target = $region132
        $region131: #{transformer_forward.1} parent=11 // pred_region
          _
        $region132: #{transformer_forward.1} parent=11 // pred_fallthru
          _
        // Predicated region
        $region133: #{transformer_forward.1} parent=11 // pred_check
          %p1048 = pneg %p791
        $region134: #{transformer_forward.1} parent=11 // pred_check_branch
          %1050 = sbr.rel (%p1048) target = $region136
        $region135: #{transformer_forward.1} parent=11 // pred_region
          _
        $region136: #{transformer_forward.1} parent=11 // pred_fallthru
          _
        // Predicated region
        $region137: #{transformer_forward.1} parent=11 // pred_check
          %p1051 = pneg %p812
        $region138: #{transformer_forward.1} parent=11 // pred_check_branch
          %1053 = sbr.rel (%p1051) target = $region140
        $region139: #{transformer_forward.1} parent=11 // pred_region
          _
        $region140: #{transformer_forward.1} parent=11 // pred_fallthru
          _
        // Predicated region
        $region141: #{transformer_forward.1} parent=11 // pred_check
          %p1054 = pneg %p833
        $region142: #{transformer_forward.1} parent=11 // pred_check_branch
          %1056 = sbr.rel (%p1054) target = $region144
        $region143: #{transformer_forward.1} parent=11 // pred_region
          _
        $region144: #{transformer_forward.1} parent=11 // pred_fallthru
          _
        // Predicated region
        $region145: #{transformer_forward.1} parent=11 // pred_check
          %p1057 = pneg %p854
        $region146: #{transformer_forward.1} parent=11 // pred_check_branch
          %1059 = sbr.rel (%p1057) target = $region148
        $region147: #{transformer_forward.1} parent=11 // pred_region
          _
        $region148: #{transformer_forward.1} parent=11 // pred_fallthru
          _
        // Predicated region
        $region149: #{transformer_forward.1} parent=11 // pred_check
          %p1060 = pneg %p875
        $region150: #{transformer_forward.1} parent=11 // pred_check_branch
          %1062 = sbr.rel (%p1060) target = $region152
        $region151: #{transformer_forward.1} parent=11 // pred_region
          _
        $region152: #{transformer_forward.1} parent=11 // pred_fallthru
          _
        // Predicated region
        $region153: #{transformer_forward.1} parent=11 // pred_check
          %p1063 = pneg %p896
        $region154: #{transformer_forward.1} parent=11 // pred_check_branch
          %1065 = sbr.rel (%p1063) target = $region156
        $region155: #{transformer_forward.1} parent=11 // pred_region
          _
        $region156: #{transformer_forward.1} parent=11 // pred_fallthru
          _
        // Predicated region
        $region157: #{transformer_forward.1} parent=11 // pred_check
          %p1066 = pneg %p917
        $region158: #{transformer_forward.1} parent=11 // pred_check_branch
          %1068 = sbr.rel (%p1066) target = $region160
        $region159: #{transformer_forward.1} parent=11 // pred_region
          _
        $region160: #{transformer_forward.1} parent=11 // pred_fallthru
          _
      $region12: #{transformer_forward.1} parent=5 // pred_fallthru
        _
      %p1069 = scmp.lt.s32.totalorder %s88, 2
      // Predicated region
      $region161: #{transformer_forward.1} parent=5 // pred_check
        %p1070 = pneg %p1069
      $region162: #{transformer_forward.1} parent=5 // pred_check_branch
        %1072 = sbr.rel (%p1070) target = $region164
      $region163: #{transformer_forward.1} parent=5 // pred_region
        // Predicated region
        $region165: #{transformer_forward.1} parent=163 // pred_check
          %p1073 = pneg %p108
        $region166: #{transformer_forward.1} parent=163 // pred_check_branch
          %1075 = sbr.rel (%p1073) target = $region168
        $region167: #{transformer_forward.1} parent=163 // pred_region
          %p1076 = scmp.lt.s32.totalorder %s88, 1
          %s1077 = scalar_select %p1076, %s88, 1
          %s1078 = smul.addr %s1077, 8
          %s1079 = scalar_lea.vmem %s1, %s1078
        $region168: #{transformer_forward.1} parent=163 // pred_fallthru
          _
        // Predicated region
        $region169: #{transformer_forward.1} parent=163 // pred_check
          %p1080 = pneg %p134
        $region170: #{transformer_forward.1} parent=163 // pred_check_branch
          %1082 = sbr.rel (%p1080) target = $region172
        $region171: #{transformer_forward.1} parent=163 // pred_region
          %p1083 = scmp.lt.s32.totalorder %s88, 1
          %s1084 = scalar_select %p1083, %s88, 1
          %s1085 = smul.addr %s1084, 8
          %s1086 = scalar_lea.vmem %s3, %s1085
        $region172: #{transformer_forward.1} parent=163 // pred_fallthru
          _
      $region164: #{transformer_forward.1} parent=5 // pred_fallthru
        _
      %p1087 = scmp.le.s32.totalorder 1, %s88
      %p1088 = scmp.lt.s32.totalorder %s88, 3
      %p1089 = pnand %p1087, %p1088
      %p1090 = pneg %p1089
      // Predicated region
      $region173: #{transformer_forward.1} parent=5 // pred_check
        _
      $region174: #{transformer_forward.1} parent=5 // pred_check_branch
        %1092 = sbr.rel (%p1089) target = $region176
      $region175: #{transformer_forward.1} parent=5 // pred_region
        %s1093 = ssub.s32 %s88, 1
        %p1094 = scmp.lt.s32.totalorder %s93, 1
        %s1095 = scalar_select %p1094, %s93, 1
        %s1096 = smul.addr %s1095, 8
        %s1097 = scalar_lea.vmem %s1, %s1096
        %p1098 = pneg %p114
        %p1099 = pneg %p111
        %p1100 = scmp.lt.s32.totalorder %s93, 1
        %s1101 = scalar_select %p1100, %s93, 1
        %s1102 = smul.addr %s1101, 8
        %s1103 = scalar_lea.vmem %s3, %s1102
        %p1104 = pneg %p140
        %p1105 = pneg %p137
        %p1106 = pneg %p161
        %p1107 = pneg %p158
        %p1108 = pneg %p182
        %p1109 = pneg %p179
        %p1110 = pneg %p203
        %p1111 = pneg %p200
        %p1112 = pneg %p224
        %p1113 = pneg %p221
        %p1114 = pneg %p245
        %p1115 = pneg %p242
        %p1116 = pneg %p266
        %p1117 = pneg %p263
        %p1118 = pneg %p287
        %p1119 = pneg %p284
        %p1120 = pneg %p308
        %p1121 = pneg %p305
        %p1122 = pneg %p329
        %p1123 = pneg %p326
        %p1124 = pneg %p350
        %p1125 = pneg %p347
        %p1126 = pneg %p371
        %p1127 = pneg %p368
        %p1128 = pneg %p392
        %p1129 = pneg %p389
        %p1130 = pneg %p413
        %p1131 = pneg %p410
        %p1132 = pneg %p434
        %p1133 = pneg %p431
        %p1134 = pneg %p455
        %p1135 = pneg %p452
        %p1136 = pneg %p476
        %p1137 = pneg %p473
        %p1138 = pneg %p497
        %p1139 = pneg %p494
        %p1140 = pneg %p518
        %p1141 = pneg %p515
        %p1142 = pneg %p539
        %p1143 = pneg %p536
        %p1144 = pneg %p560
        %p1145 = pneg %p557
        %p1146 = pneg %p581
        %p1147 = pneg %p578
        %p1148 = pneg %p602
        %p1149 = pneg %p599
        %p1150 = pneg %p623
        %p1151 = pneg %p620
        %p1152 = pneg %p644
        %p1153 = pneg %p641
        %p1154 = pneg %p665
        %p1155 = pneg %p662
        %p1156 = pneg %p686
        %p1157 = pneg %p683
        %p1158 = pneg %p707
        %p1159 = pneg %p704
        %p1160 = pneg %p728
        %p1161 = pneg %p725
        %p1162 = pneg %p749
        %p1163 = pneg %p746
        %p1164 = pneg %p770
        %p1165 = pneg %p767
        %p1166 = pneg %p791
        %p1167 = pneg %p788
        %p1168 = pneg %p812
        %p1169 = pneg %p809
        %p1170 = pneg %p833
        %p1171 = pneg %p830
        %p1172 = pneg %p854
        %p1173 = pneg %p851
        %p1174 = pneg %p875
        %p1175 = pneg %p872
        %p1176 = pneg %p896
        %p1177 = pneg %p893
        %p1178 = pneg %p917
        %p1179 = pneg %p914
        %p1180 = pneg %p943
        %p1181 = pneg %p940
        %s1182 = sand.u32 %s930, 1
        %s1183 = scalar_lea.sflag [#allocation3], %s1182
        %s1184 = sand.u32 %s930, 1
        %s1185 = smul.addr %s1184, 8
        %s1186 = scalar_lea.vmem [#allocation2], %s1185
        %p1187 = scmp.lt.s32.totalorder %s93, 1
        %s1188 = scalar_select %p1187, %s93, 1
        %s1189 = smul.addr %s1188, 8
        %s1190 = scalar_lea.vmem %s1, %s1189
        %p1191 = scmp.lt.s32.totalorder %s93, 1
        %s1192 = scalar_select %p1191, %s93, 1
        %s1193 = smul.addr %s1192, 8
        %s1194 = scalar_lea.vmem %s3, %s1193
        %v1195 = vld [vmem:[%s1190] sm:$0xff]
        %v1196 = vld [vmem:[%s5] sm:$0xff]
        %v1197 = vld [vmem:[%s5 + $0x8] sm:$0xff]
        %v1198 = vld [vmem:[%s5 + $0x10] sm:$0xff]
        %v1199 = vld [vmem:[%s5 + $0x18] sm:$0xff]
        %v1200 = vld [vmem:[%s7] sm:$0x1]
        %v1202 = vlaneseq
        %v1203 = vshrl.u32 %v1202, 7
        %v1204 = vsub.s32 0, %v1203
        %v1205 = vrot.slane %v1200, %v1204
        %vm1207 = vcmask 261120
        %v1209 = vsel %vm1207, %v1195, 0
        %1211 = vmatprep.subr.mxu0 0.0
        %1212 = vmatpush1.msra.mxu0 %v1196
        %1213 = vmatprep.subr.mxu0 0.0
        %1214 = vmatpush1.msra.mxu0 %v1197
        %1215 = vmatprep.subr.mxu0 0.0
        %1216 = vmatpush1.msra.mxu0 %v1198
        %1217 = vmatprep.subr.mxu0 0.0
        %1218 = vmatpush1.msra.mxu0 %v1199
        %1219 = vmatprep.subr.mxu0 0.0
        %1220 = vmatpush1.msra.mxu0 0.0
        %1221 = vmatprep.subr.mxu0 0.0
        %1222 = vmatpush1.msra.mxu0 0.0
        %1223 = vmatprep.subr.mxu0 0.0
        %1224 = vmatpush1.msra.mxu0 0.0
        %1225 = vmatprep.subr.mxu0 0.0
        %1226 = vmatpush1.msra.mxu0 0.0
        %1227 = vmatprep.subr.mxu0 0.0
        %1228 = vmatpush1.msra.mxu0 0.0
        %1229 = vmatprep.subr.mxu0 0.0
        %1230 = vmatpush1.msra.mxu0 0.0
        %1231 = vmatprep.subr.mxu0 0.0
        %1232 = vmatpush1.msra.mxu0 0.0
        %1233 = vmatprep.subr.mxu0 0.0
        %1234 = vmatpush1.msra.mxu0 0.0
        %1235 = vmatprep.subr.mxu0 0.0
        %1236 = vmatpush1.msra.mxu0 0.0
        %1237 = vmatprep.subr.mxu0 0.0
        %1238 = vmatpush1.msra.mxu0 0.0
        %1239 = vmatprep.subr.mxu0 0.0
        %1240 = vmatpush1.msra.mxu0 0.0
        %1241 = vmatprep.subr.mxu0 0.0
        %1242 = vmatpush1.msra.mxu0 0.0
        %1243 = vmatprep.subr.mxu0 0.0
        %1244 = vmatpush1.msra.mxu0 0.0
        %1245 = vmatprep.subr.mxu0 0.0
        %1246 = vmatpush1.msra.mxu0 0.0
        %1247 = vmatprep.subr.mxu0 0.0
        %1248 = vmatpush1.msra.mxu0 0.0
        %1249 = vmatprep.subr.mxu0 0.0
        %1250 = vmatpush1.msra.mxu0 0.0
        %1251 = vmatprep.subr.mxu0 0.0
        %1252 = vmatpush1.msra.mxu0 0.0
        %1253 = vmatprep.subr.mxu0 0.0
        %1254 = vmatpush1.msra.mxu0 0.0
        %1255 = vmatprep.subr.mxu0 0.0
        %1256 = vmatpush1.msra.mxu0 0.0
        %1257 = vmatprep.subr.mxu0 0.0
        %1258 = vmatpush1.msra.mxu0 0.0
        %1259 = vmatprep.subr.mxu0 0.0
        %1260 = vmatpush1.msra.mxu0 0.0
        %1261 = vmatprep.subr.mxu0 0.0
        %1262 = vmatpush1.msra.mxu0 0.0
        %1263 = vmatprep.subr.mxu0 0.0
        %1264 = vmatpush1.msra.mxu0 0.0
        %1265 = vmatprep.subr.mxu0 0.0
        %1266 = vmatpush1.msra.mxu0 0.0
        %1267 = vmatprep.subr.mxu0 0.0
        %1268 = vmatpush1.msra.mxu0 0.0
        %1269 = vmatprep.subr.mxu0 0.0
        %1270 = vmatpush1.msra.mxu0 0.0
        %1271 = vmatprep.subr.mxu0 0.0
        %1272 = vmatpush1.msra.mxu0 0.0
        %1273 = vmatprep.subr.mxu0 0.0
        %1274 = vmatpush1.msra.mxu0 0.0
        %1275 = vmatprep.mubr.f32.mxu0 0.0
        %1276 = vmatmul.mubr.f32.gmra.mrb[0].mxu0 %v1209
        %v1277 = vpop.f32.mrb[0].mxu0
        %v1278 = vadd.f32 %v1205, %v1277
        %v1279 = vpop.f32.mrb[0].mxu0
        %1280 = vdwg.mxu0
        %1282 = vrot.lane.b32.xlu0 %v1278, 96
        %v1283 = vpop.permute.xlu0 %1282
        %vm1284 = vcmask 64512
        %v1285 = vsel %vm1284, %v1278, 0
        %v1287 = vsel %vm1284, %v1283, 0
        %1289 = vmatprep.subr.mxu0 0.0
        %1290 = vmatpush1.xpose.msra.mxu0 %v1287
        %1291 = vmatprep.subr.mxu0 0.0
        %1292 = vmatpush1.xpose.msra.mxu0 0.0
        %1293 = vmatprep.subr.mxu0 0.0
        %1294 = vmatpush1.xpose.msra.mxu0 0.0
        %1295 = vmatprep.subr.mxu0 0.0
        %1296 = vmatpush1.xpose.msra.mxu0 0.0
        %1297 = vmatprep.subr.mxu0 0.0
        %1298 = vmatpush1.xpose.msra.mxu0 0.0
        %1299 = vmatprep.subr.mxu0 0.0
        %1300 = vmatpush1.xpose.msra.mxu0 0.0
        %1301 = vmatprep.subr.mxu0 0.0
        %1302 = vmatpush1.xpose.msra.mxu0 0.0
        %1303 = vmatprep.subr.mxu0 0.0
        %1304 = vmatpush1.xpose.msra.mxu0 0.0
        %1305 = vmatprep.subr.mxu0 0.0
        %1306 = vmatpush1.xpose.msra.mxu0 0.0
        %1307 = vmatprep.subr.mxu0 0.0
        %1308 = vmatpush1.xpose.msra.mxu0 0.0
        %1309 = vmatprep.subr.mxu0 0.0
        %1310 = vmatpush1.xpose.msra.mxu0 0.0
        %1311 = vmatprep.subr.mxu0 0.0
        %1312 = vmatpush1.xpose.msra.mxu0 0.0
        %1313 = vmatprep.subr.mxu0 0.0
        %1314 = vmatpush1.xpose.msra.mxu0 0.0
        %1315 = vmatprep.subr.mxu0 0.0
        %1316 = vmatpush1.xpose.msra.mxu0 0.0
        %1317 = vmatprep.subr.mxu0 0.0
        %1318 = vmatpush1.xpose.msra.mxu0 0.0
        %1319 = vmatprep.subr.mxu0 0.0
        %1320 = vmatpush1.xpose.msra.mxu0 0.0
        %1321 = vmatprep.subr.mxu0 0.0
        %1322 = vmatpush1.xpose.msra.mxu0 0.0
        %1323 = vmatprep.subr.mxu0 0.0
        %1324 = vmatpush1.xpose.msra.mxu0 0.0
        %1325 = vmatprep.subr.mxu0 0.0
        %1326 = vmatpush1.xpose.msra.mxu0 0.0
        %1327 = vmatprep.subr.mxu0 0.0
        %1328 = vmatpush1.xpose.msra.mxu0 0.0
        %1329 = vmatprep.subr.mxu0 0.0
        %1330 = vmatpush1.xpose.msra.mxu0 0.0
        %1331 = vmatprep.subr.mxu0 0.0
        %1332 = vmatpush1.xpose.msra.mxu0 0.0
        %1333 = vmatprep.subr.mxu0 0.0
        %1334 = vmatpush1.xpose.msra.mxu0 0.0
        %1335 = vmatprep.subr.mxu0 0.0
        %1336 = vmatpush1.xpose.msra.mxu0 0.0
        %1337 = vmatprep.subr.mxu0 0.0
        %1338 = vmatpush1.xpose.msra.mxu0 0.0
        %1339 = vmatprep.subr.mxu0 0.0
        %1340 = vmatpush1.xpose.msra.mxu0 0.0
        %1341 = vmatprep.subr.mxu0 0.0
        %1342 = vmatpush1.xpose.msra.mxu0 0.0
        %1343 = vmatprep.subr.mxu0 0.0
        %1344 = vmatpush1.xpose.msra.mxu0 0.0
        %1345 = vmatprep.subr.mxu0 0.0
        %1346 = vmatpush1.xpose.msra.mxu0 0.0
        %1347 = vmatprep.subr.mxu0 0.0
        %1348 = vmatpush1.xpose.msra.mxu0 0.0
        %1349 = vmatprep.subr.mxu0 0.0
        %1350 = vmatpush1.xpose.msra.mxu0 0.0
        %1351 = vmatprep.subr.mxu0 0.0
        %1352 = vmatpush1.xpose.msra.mxu0 0.0
        %1353 = vmatprep.mubr.f32.mxu0 0.0
        %1354 = vmatmul.mubr.f32.gmra.mrb[0].mxu0 %v1285
        %v1355 = vpop.f32.mrb[0].mxu0
        %v1356 = vadd.f32 0.0, %v1355
        %v1357 = vpop.f32.mrb[0].mxu0
        %1358 = vdwg.mxu0
        %v1359 = vmul.f32 %v1356, 0.35355338
        %v1360 = vsel %vm1284, %v1359, -inf
        %1361 = vmax.xlane.f32.xlu0 %v1360
        %v1362 = vpop.xlane.xlu0 %1361
        %v1363 = vsub.f32 %v1359, %v1362
        %v1364 = vmul.f32 %v1363, 1.442695
        %v1365 = vpow.pop %v1364
        %v1366 = vsel %vm1284, %v1365, 0.0
        %1367 = vadd.xlane.f32.xlu0 %v1366
        %v1368 = vpop.xlane.xlu0 %1367
        %v1369 = vrcp.pop %v1368
        %v1370 = vmul.f32 %v1365, %v1369
        %1371 = vrot.lane.b32.xlu0 %v1278, 64
        %v1372 = vpop.permute.xlu0 %1371
        %v1375 = vsel %vm1284, %v1370, 0
        %1377 = vmatprep.subr.mxu0 0.0
        %1378 = vmatpush1.msra.mxu0 %v1372
        %1379 = vmatprep.subr.mxu0 0.0
        %1380 = vmatpush1.msra.mxu0 0.0
        %1381 = vmatprep.subr.mxu0 0.0
        %1382 = vmatpush1.msra.mxu0 0.0
        %1383 = vmatprep.subr.mxu0 0.0
        %1384 = vmatpush1.msra.mxu0 0.0
        %1385 = vmatprep.subr.mxu0 0.0
        %1386 = vmatpush1.msra.mxu0 0.0
        %1387 = vmatprep.subr.mxu0 0.0
        %1388 = vmatpush1.msra.mxu0 0.0
        %1389 = vmatprep.subr.mxu0 0.0
        %1390 = vmatpush1.msra.mxu0 0.0
        %1391 = vmatprep.subr.mxu0 0.0
        %1392 = vmatpush1.msra.mxu0 0.0
        %1393 = vmatprep.subr.mxu0 0.0
        %1394 = vmatpush1.msra.mxu0 0.0
        %1395 = vmatprep.subr.mxu0 0.0
        %1396 = vmatpush1.msra.mxu0 0.0
        %1397 = vmatprep.subr.mxu0 0.0
        %1398 = vmatpush1.msra.mxu0 0.0
        %1399 = vmatprep.subr.mxu0 0.0
        %1400 = vmatpush1.msra.mxu0 0.0
        %1401 = vmatprep.subr.mxu0 0.0
        %1402 = vmatpush1.msra.mxu0 0.0
        %1403 = vmatprep.subr.mxu0 0.0
        %1404 = vmatpush1.msra.mxu0 0.0
        %1405 = vmatprep.subr.mxu0 0.0
        %1406 = vmatpush1.msra.mxu0 0.0
        %1407 = vmatprep.subr.mxu0 0.0
        %1408 = vmatpush1.msra.mxu0 0.0
        %1409 = vmatprep.subr.mxu0 0.0
        %1410 = vmatpush1.msra.mxu0 0.0
        %1411 = vmatprep.subr.mxu0 0.0
        %1412 = vmatpush1.msra.mxu0 0.0
        %1413 = vmatprep.subr.mxu0 0.0
        %1414 = vmatpush1.msra.mxu0 0.0
        %1415 = vmatprep.subr.mxu0 0.0
        %1416 = vmatpush1.msra.mxu0 0.0
        %1417 = vmatprep.subr.mxu0 0.0
        %1418 = vmatpush1.msra.mxu0 0.0
        %1419 = vmatprep.subr.mxu0 0.0
        %1420 = vmatpush1.msra.mxu0 0.0
        %1421 = vmatprep.subr.mxu0 0.0
        %1422 = vmatpush1.msra.mxu0 0.0
        %1423 = vmatprep.subr.mxu0 0.0
        %1424 = vmatpush1.msra.mxu0 0.0
        %1425 = vmatprep.subr.mxu0 0.0
        %1426 = vmatpush1.msra.mxu0 0.0
        %1427 = vmatprep.subr.mxu0 0.0
        %1428 = vmatpush1.msra.mxu0 0.0
        %1429 = vmatprep.subr.mxu0 0.0
        %1430 = vmatpush1.msra.mxu0 0.0
        %1431 = vmatprep.subr.mxu0 0.0
        %1432 = vmatpush1.msra.mxu0 0.0
        %1433 = vmatprep.subr.mxu0 0.0
        %1434 = vmatpush1.msra.mxu0 0.0
        %1435 = vmatprep.subr.mxu0 0.0
        %1436 = vmatpush1.msra.mxu0 0.0
        %1437 = vmatprep.subr.mxu0 0.0
        %1438 = vmatpush1.msra.mxu0 0.0
        %1439 = vmatprep.subr.mxu0 0.0
        %1440 = vmatpush1.msra.mxu0 0.0
        %1441 = vmatprep.mubr.f32.mxu0 0.0
        %1442 = vmatmul.mubr.f32.gmra.mrb[0].mxu0 %v1375
        %v1443 = vpop.f32.mrb[0].mxu0
        %v1444 = vadd.f32 0.0, %v1443
        %v1445 = vpop.f32.mrb[0].mxu0
        %1446 = vdwg.mxu0
        %1447 = vrot.lane.b32.xlu0 %v1278, 120
        %v1448 = vpop.permute.xlu0 %1447
        %1449 = vrot.lane.b32.xlu0 %v1278, 88
        %v1450 = vpop.permute.xlu0 %1449
        %v1451 = vsel %vm1284, %v1448, 0
        %v1453 = vsel %vm1284, %v1450, 0
        %1455 = vmatprep.subr.mxu0 0.0
        %1456 = vmatpush1.xpose.msra.mxu0 %v1453
        %1457 = vmatprep.subr.mxu0 0.0
        %1458 = vmatpush1.xpose.msra.mxu0 0.0
        %1459 = vmatprep.subr.mxu0 0.0
        %1460 = vmatpush1.xpose.msra.mxu0 0.0
        %1461 = vmatprep.subr.mxu0 0.0
        %1462 = vmatpush1.xpose.msra.mxu0 0.0
        %1463 = vmatprep.subr.mxu0 0.0
        %1464 = vmatpush1.xpose.msra.mxu0 0.0
        %1465 = vmatprep.subr.mxu0 0.0
        %1466 = vmatpush1.xpose.msra.mxu0 0.0
        %1467 = vmatprep.subr.mxu0 0.0
        %1468 = vmatpush1.xpose.msra.mxu0 0.0
        %1469 = vmatprep.subr.mxu0 0.0
        %1470 = vmatpush1.xpose.msra.mxu0 0.0
        %1471 = vmatprep.subr.mxu0 0.0
        %1472 = vmatpush1.xpose.msra.mxu0 0.0
        %1473 = vmatprep.subr.mxu0 0.0
        %1474 = vmatpush1.xpose.msra.mxu0 0.0
        %1475 = vmatprep.subr.mxu0 0.0
        %1476 = vmatpush1.xpose.msra.mxu0 0.0
        %1477 = vmatprep.subr.mxu0 0.0
        %1478 = vmatpush1.xpose.msra.mxu0 0.0
        %1479 = vmatprep.subr.mxu0 0.0
        %1480 = vmatpush1.xpose.msra.mxu0 0.0
        %1481 = vmatprep.subr.mxu0 0.0
        %1482 = vmatpush1.xpose.msra.mxu0 0.0
        %1483 = vmatprep.subr.mxu0 0.0
        %1484 = vmatpush1.xpose.msra.mxu0 0.0
        %1485 = vmatprep.subr.mxu0 0.0
        %1486 = vmatpush1.xpose.msra.mxu0 0.0
        %1487 = vmatprep.subr.mxu0 0.0
        %1488 = vmatpush1.xpose.msra.mxu0 0.0
        %1489 = vmatprep.subr.mxu0 0.0
        %1490 = vmatpush1.xpose.msra.mxu0 0.0
        %1491 = vmatprep.subr.mxu0 0.0
        %1492 = vmatpush1.xpose.msra.mxu0 0.0
        %1493 = vmatprep.subr.mxu0 0.0
        %1494 = vmatpush1.xpose.msra.mxu0 0.0
        %1495 = vmatprep.subr.mxu0 0.0
        %1496 = vmatpush1.xpose.msra.mxu0 0.0
        %1497 = vmatprep.subr.mxu0 0.0
        %1498 = vmatpush1.xpose.msra.mxu0 0.0
        %1499 = vmatprep.subr.mxu0 0.0
        %1500 = vmatpush1.xpose.msra.mxu0 0.0
        %1501 = vmatprep.subr.mxu0 0.0
        %1502 = vmatpush1.xpose.msra.mxu0 0.0
        %1503 = vmatprep.subr.mxu0 0.0
        %1504 = vmatpush1.xpose.msra.mxu0 0.0
        %1505 = vmatprep.subr.mxu0 0.0
        %1506 = vmatpush1.xpose.msra.mxu0 0.0
        %1507 = vmatprep.subr.mxu0 0.0
        %1508 = vmatpush1.xpose.msra.mxu0 0.0
        %1509 = vmatprep.subr.mxu0 0.0
        %1510 = vmatpush1.xpose.msra.mxu0 0.0
        %1511 = vmatprep.subr.mxu0 0.0
        %1512 = vmatpush1.xpose.msra.mxu0 0.0
        %1513 = vmatprep.subr.mxu0 0.0
        %1514 = vmatpush1.xpose.msra.mxu0 0.0
        %1515 = vmatprep.subr.mxu0 0.0
        %1516 = vmatpush1.xpose.msra.mxu0 0.0
        %1517 = vmatprep.subr.mxu0 0.0
        %1518 = vmatpush1.xpose.msra.mxu0 0.0
        %1519 = vmatprep.mubr.f32.mxu0 0.0
        %1520 = vmatmul.mubr.f32.gmra.mrb[0].mxu0 %v1451
        %v1521 = vpop.f32.mrb[0].mxu0
        %v1522 = vadd.f32 0.0, %v1521
        %v1523 = vpop.f32.mrb[0].mxu0
        %1524 = vdwg.mxu0
        %v1525 = vmul.f32 %v1522, 0.35355338
        %v1526 = vsel %vm1284, %v1525, -inf
        %1527 = vmax.xlane.f32.xlu0 %v1526
        %v1528 = vpop.xlane.xlu0 %1527
        %v1529 = vsub.f32 %v1525, %v1528
        %v1530 = vmul.f32 %v1529, 1.442695
        %v1531 = vpow.pop %v1530
        %v1532 = vsel %vm1284, %v1531, 0.0
        %1533 = vadd.xlane.f32.xlu0 %v1532
        %v1534 = vpop.xlane.xlu0 %1533
        %v1535 = vrcp.pop %v1534
        %v1536 = vmul.f32 %v1531, %v1535
        %1537 = vrot.lane.b32.xlu0 %v1278, 56
        %v1538 = vpop.permute.xlu0 %1537
        %v1541 = vsel %vm1284, %v1536, 0
        %1543 = vmatprep.subr.mxu0 0.0
        %1544 = vmatpush1.msra.mxu0 %v1538
        %1545 = vmatprep.subr.mxu0 0.0
        %1546 = vmatpush1.msra.mxu0 0.0
        %1547 = vmatprep.subr.mxu0 0.0
        %1548 = vmatpush1.msra.mxu0 0.0
        %1549 = vmatprep.subr.mxu0 0.0
        %1550 = vmatpush1.msra.mxu0 0.0
        %1551 = vmatprep.subr.mxu0 0.0
        %1552 = vmatpush1.msra.mxu0 0.0
        %1553 = vmatprep.subr.mxu0 0.0
        %1554 = vmatpush1.msra.mxu0 0.0
        %1555 = vmatprep.subr.mxu0 0.0
        %1556 = vmatpush1.msra.mxu0 0.0
        %1557 = vmatprep.subr.mxu0 0.0
        %1558 = vmatpush1.msra.mxu0 0.0
        %1559 = vmatprep.subr.mxu0 0.0
        %1560 = vmatpush1.msra.mxu0 0.0
        %1561 = vmatprep.subr.mxu0 0.0
        %1562 = vmatpush1.msra.mxu0 0.0
        %1563 = vmatprep.subr.mxu0 0.0
        %1564 = vmatpush1.msra.mxu0 0.0
        %1565 = vmatprep.subr.mxu0 0.0
        %1566 = vmatpush1.msra.mxu0 0.0
        %1567 = vmatprep.subr.mxu0 0.0
        %1568 = vmatpush1.msra.mxu0 0.0
        %1569 = vmatprep.subr.mxu0 0.0
        %1570 = vmatpush1.msra.mxu0 0.0
        %1571 = vmatprep.subr.mxu0 0.0
        %1572 = vmatpush1.msra.mxu0 0.0
        %1573 = vmatprep.subr.mxu0 0.0
        %1574 = vmatpush1.msra.mxu0 0.0
        %1575 = vmatprep.subr.mxu0 0.0
        %1576 = vmatpush1.msra.mxu0 0.0
        %1577 = vmatprep.subr.mxu0 0.0
        %1578 = vmatpush1.msra.mxu0 0.0
        %1579 = vmatprep.subr.mxu0 0.0
        %1580 = vmatpush1.msra.mxu0 0.0
        %1581 = vmatprep.subr.mxu0 0.0
        %1582 = vmatpush1.msra.mxu0 0.0
        %1583 = vmatprep.subr.mxu0 0.0
        %1584 = vmatpush1.msra.mxu0 0.0
        %1585 = vmatprep.subr.mxu0 0.0
        %1586 = vmatpush1.msra.mxu0 0.0
        %1587 = vmatprep.subr.mxu0 0.0
        %1588 = vmatpush1.msra.mxu0 0.0
        %1589 = vmatprep.subr.mxu0 0.0
        %1590 = vmatpush1.msra.mxu0 0.0
        %1591 = vmatprep.subr.mxu0 0.0
        %1592 = vmatpush1.msra.mxu0 0.0
        %1593 = vmatprep.subr.mxu0 0.0
        %1594 = vmatpush1.msra.mxu0 0.0
        %1595 = vmatprep.subr.mxu0 0.0
        %1596 = vmatpush1.msra.mxu0 0.0
        %1597 = vmatprep.subr.mxu0 0.0
        %1598 = vmatpush1.msra.mxu0 0.0
        %1599 = vmatprep.subr.mxu0 0.0
        %1600 = vmatpush1.msra.mxu0 0.0
        %1601 = vmatprep.subr.mxu0 0.0
        %1602 = vmatpush1.msra.mxu0 0.0
        %1603 = vmatprep.subr.mxu0 0.0
        %1604 = vmatpush1.msra.mxu0 0.0
        %1605 = vmatprep.subr.mxu0 0.0
        %1606 = vmatpush1.msra.mxu0 0.0
        %1607 = vmatprep.mubr.f32.mxu0 0.0
        %1608 = vmatmul.mubr.f32.gmra.mrb[0].mxu0 %v1541
        %v1609 = vpop.f32.mrb[0].mxu0
        %v1610 = vadd.f32 0.0, %v1609
        %v1611 = vpop.f32.mrb[0].mxu0
        %1612 = vdwg.mxu0
        %1613 = vrot.lane.b32.xlu0 %v1278, 112
        %v1614 = vpop.permute.xlu0 %1613
        %1615 = vrot.lane.b32.xlu0 %v1278, 80
        %v1616 = vpop.permute.xlu0 %1615
        %v1617 = vsel %vm1284, %v1614, 0
        %v1619 = vsel %vm1284, %v1616, 0
        %1621 = vmatprep.subr.mxu0 0.0
        %1622 = vmatpush1.xpose.msra.mxu0 %v1619
        %1623 = vmatprep.subr.mxu0 0.0
        %1624 = vmatpush1.xpose.msra.mxu0 0.0
        %1625 = vmatprep.subr.mxu0 0.0
        %1626 = vmatpush1.xpose.msra.mxu0 0.0
        %1627 = vmatprep.subr.mxu0 0.0
        %1628 = vmatpush1.xpose.msra.mxu0 0.0
        %1629 = vmatprep.subr.mxu0 0.0
        %1630 = vmatpush1.xpose.msra.mxu0 0.0
        %1631 = vmatprep.subr.mxu0 0.0
        %1632 = vmatpush1.xpose.msra.mxu0 0.0
        %1633 = vmatprep.subr.mxu0 0.0
        %1634 = vmatpush1.xpose.msra.mxu0 0.0
        %1635 = vmatprep.subr.mxu0 0.0
        %1636 = vmatpush1.xpose.msra.mxu0 0.0
        %1637 = vmatprep.subr.mxu0 0.0
        %1638 = vmatpush1.xpose.msra.mxu0 0.0
        %1639 = vmatprep.subr.mxu0 0.0
        %1640 = vmatpush1.xpose.msra.mxu0 0.0
        %1641 = vmatprep.subr.mxu0 0.0
        %1642 = vmatpush1.xpose.msra.mxu0 0.0
        %1643 = vmatprep.subr.mxu0 0.0
        %1644 = vmatpush1.xpose.msra.mxu0 0.0
        %1645 = vmatprep.subr.mxu0 0.0
        %1646 = vmatpush1.xpose.msra.mxu0 0.0
        %1647 = vmatprep.subr.mxu0 0.0
        %1648 = vmatpush1.xpose.msra.mxu0 0.0
        %1649 = vmatprep.subr.mxu0 0.0
        %1650 = vmatpush1.xpose.msra.mxu0 0.0
        %1651 = vmatprep.subr.mxu0 0.0
        %1652 = vmatpush1.xpose.msra.mxu0 0.0
        %1653 = vmatprep.subr.mxu0 0.0
        %1654 = vmatpush1.xpose.msra.mxu0 0.0
        %1655 = vmatprep.subr.mxu0 0.0
        %1656 = vmatpush1.xpose.msra.mxu0 0.0
        %1657 = vmatprep.subr.mxu0 0.0
        %1658 = vmatpush1.xpose.msra.mxu0 0.0
        %1659 = vmatprep.subr.mxu0 0.0
        %1660 = vmatpush1.xpose.msra.mxu0 0.0
        %1661 = vmatprep.subr.mxu0 0.0
        %1662 = vmatpush1.xpose.msra.mxu0 0.0
        %1663 = vmatprep.subr.mxu0 0.0
        %1664 = vmatpush1.xpose.msra.mxu0 0.0
        %1665 = vmatprep.subr.mxu0 0.0
        %1666 = vmatpush1.xpose.msra.mxu0 0.0
        %1667 = vmatprep.subr.mxu0 0.0
        %1668 = vmatpush1.xpose.msra.mxu0 0.0
        %1669 = vmatprep.subr.mxu0 0.0
        %1670 = vmatpush1.xpose.msra.mxu0 0.0
        %1671 = vmatprep.subr.mxu0 0.0
        %1672 = vmatpush1.xpose.msra.mxu0 0.0
        %1673 = vmatprep.subr.mxu0 0.0
        %1674 = vmatpush1.xpose.msra.mxu0 0.0
        %1675 = vmatprep.subr.mxu0 0.0
        %1676 = vmatpush1.xpose.msra.mxu0 0.0
        %1677 = vmatprep.subr.mxu0 0.0
        %1678 = vmatpush1.xpose.msra.mxu0 0.0
        %1679 = vmatprep.subr.mxu0 0.0
        %1680 = vmatpush1.xpose.msra.mxu0 0.0
        %1681 = vmatprep.subr.mxu0 0.0
        %1682 = vmatpush1.xpose.msra.mxu0 0.0
        %1683 = vmatprep.subr.mxu0 0.0
        %1684 = vmatpush1.xpose.msra.mxu0 0.0
        %1685 = vmatprep.mubr.f32.mxu0 0.0
        %1686 = vmatmul.mubr.f32.gmra.mrb[0].mxu0 %v1617
        %v1687 = vpop.f32.mrb[0].mxu0
        %v1688 = vadd.f32 0.0, %v1687
        %v1689 = vpop.f32.mrb[0].mxu0
        %1690 = vdwg.mxu0
        %v1691 = vmul.f32 %v1688, 0.35355338
        %v1692 = vsel %vm1284, %v1691, -inf
        %1693 = vmax.xlane.f32.xlu0 %v1692
        %v1694 = vpop.xlane.xlu0 %1693
        %v1695 = vsub.f32 %v1691, %v1694
        %v1696 = vmul.f32 %v1695, 1.442695
        %v1697 = vpow.pop %v1696
        %v1698 = vsel %vm1284, %v1697, 0.0
        %1699 = vadd.xlane.f32.xlu0 %v1698
        %v1700 = vpop.xlane.xlu0 %1699
        %v1701 = vrcp.pop %v1700
        %v1702 = vmul.f32 %v1697, %v1701
        %1703 = vrot.lane.b32.xlu0 %v1278, 48
        %v1704 = vpop.permute.xlu0 %1703
        %v1707 = vsel %vm1284, %v1702, 0
        %1709 = vmatprep.subr.mxu0 0.0
        %1710 = vmatpush1.msra.mxu0 %v1704
        %1711 = vmatprep.subr.mxu0 0.0
        %1712 = vmatpush1.msra.mxu0 0.0
        %1713 = vmatprep.subr.mxu0 0.0
        %1714 = vmatpush1.msra.mxu0 0.0
        %1715 = vmatprep.subr.mxu0 0.0
        %1716 = vmatpush1.msra.mxu0 0.0
        %1717 = vmatprep.subr.mxu0 0.0
        %1718 = vmatpush1.msra.mxu0 0.0
        %1719 = vmatprep.subr.mxu0 0.0
        %1720 = vmatpush1.msra.mxu0 0.0
        %1721 = vmatprep.subr.mxu0 0.0
        %1722 = vmatpush1.msra.mxu0 0.0
        %1723 = vmatprep.subr.mxu0 0.0
        %1724 = vmatpush1.msra.mxu0 0.0
        %1725 = vmatprep.subr.mxu0 0.0
        %1726 = vmatpush1.msra.mxu0 0.0
        %1727 = vmatprep.subr.mxu0 0.0
        %1728 = vmatpush1.msra.mxu0 0.0
        %1729 = vmatprep.subr.mxu0 0.0
        %1730 = vmatpush1.msra.mxu0 0.0
        %1731 = vmatprep.subr.mxu0 0.0
        %1732 = vmatpush1.msra.mxu0 0.0
        %1733 = vmatprep.subr.mxu0 0.0
        %1734 = vmatpush1.msra.mxu0 0.0
        %1735 = vmatprep.subr.mxu0 0.0
        %1736 = vmatpush1.msra.mxu0 0.0
        %1737 = vmatprep.subr.mxu0 0.0
        %1738 = vmatpush1.msra.mxu0 0.0
        %1739 = vmatprep.subr.mxu0 0.0
        %1740 = vmatpush1.msra.mxu0 0.0
        %1741 = vmatprep.subr.mxu0 0.0
        %1742 = vmatpush1.msra.mxu0 0.0
        %1743 = vmatprep.subr.mxu0 0.0
        %1744 = vmatpush1.msra.mxu0 0.0
        %1745 = vmatprep.subr.mxu0 0.0
        %1746 = vmatpush1.msra.mxu0 0.0
        %1747 = vmatprep.subr.mxu0 0.0
        %1748 = vmatpush1.msra.mxu0 0.0
        %1749 = vmatprep.subr.mxu0 0.0
        %1750 = vmatpush1.msra.mxu0 0.0
        %1751 = vmatprep.subr.mxu0 0.0
        %1752 = vmatpush1.msra.mxu0 0.0
        %1753 = vmatprep.subr.mxu0 0.0
        %1754 = vmatpush1.msra.mxu0 0.0
        %1755 = vmatprep.subr.mxu0 0.0
        %1756 = vmatpush1.msra.mxu0 0.0
        %1757 = vmatprep.subr.mxu0 0.0
        %1758 = vmatpush1.msra.mxu0 0.0
        %1759 = vmatprep.subr.mxu0 0.0
        %1760 = vmatpush1.msra.mxu0 0.0
        %1761 = vmatprep.subr.mxu0 0.0
        %1762 = vmatpush1.msra.mxu0 0.0
        %1763 = vmatprep.subr.mxu0 0.0
        %1764 = vmatpush1.msra.mxu0 0.0
        %1765 = vmatprep.subr.mxu0 0.0
        %1766 = vmatpush1.msra.mxu0 0.0
        %1767 = vmatprep.subr.mxu0 0.0
        %1768 = vmatpush1.msra.mxu0 0.0
        %1769 = vmatprep.subr.mxu0 0.0
        %1770 = vmatpush1.msra.mxu0 0.0
        %1771 = vmatprep.subr.mxu0 0.0
        %1772 = vmatpush1.msra.mxu0 0.0
        %1773 = vmatprep.mubr.f32.mxu0 0.0
        %1774 = vmatmul.mubr.f32.gmra.mrb[0].mxu0 %v1707
        %v1775 = vpop.f32.mrb[0].mxu0
        %v1776 = vadd.f32 0.0, %v1775
        %v1777 = vpop.f32.mrb[0].mxu0
        %1778 = vdwg.mxu0
        %1779 = vrot.lane.b32.xlu0 %v1278, 104
        %v1780 = vpop.permute.xlu0 %1779
        %1781 = vrot.lane.b32.xlu0 %v1278, 72
        %v1782 = vpop.permute.xlu0 %1781
        %v1783 = vsel %vm1284, %v1780, 0
        %v1785 = vsel %vm1284, %v1782, 0
        %1787 = vmatprep.subr.mxu0 0.0
        %1788 = vmatpush1.xpose.msra.mxu0 %v1785
        %1789 = vmatprep.subr.mxu0 0.0
        %1790 = vmatpush1.xpose.msra.mxu0 0.0
        %1791 = vmatprep.subr.mxu0 0.0
        %1792 = vmatpush1.xpose.msra.mxu0 0.0
        %1793 = vmatprep.subr.mxu0 0.0
        %1794 = vmatpush1.xpose.msra.mxu0 0.0
        %1795 = vmatprep.subr.mxu0 0.0
        %1796 = vmatpush1.xpose.msra.mxu0 0.0
        %1797 = vmatprep.subr.mxu0 0.0
        %1798 = vmatpush1.xpose.msra.mxu0 0.0
        %1799 = vmatprep.subr.mxu0 0.0
        %1800 = vmatpush1.xpose.msra.mxu0 0.0
        %1801 = vmatprep.subr.mxu0 0.0
        %1802 = vmatpush1.xpose.msra.mxu0 0.0
        %1803 = vmatprep.subr.mxu0 0.0
        %1804 = vmatpush1.xpose.msra.mxu0 0.0
        %1805 = vmatprep.subr.mxu0 0.0
        %1806 = vmatpush1.xpose.msra.mxu0 0.0
        %1807 = vmatprep.subr.mxu0 0.0
        %1808 = vmatpush1.xpose.msra.mxu0 0.0
        %1809 = vmatprep.subr.mxu0 0.0
        %1810 = vmatpush1.xpose.msra.mxu0 0.0
        %1811 = vmatprep.subr.mxu0 0.0
        %1812 = vmatpush1.xpose.msra.mxu0 0.0
        %1813 = vmatprep.subr.mxu0 0.0
        %1814 = vmatpush1.xpose.msra.mxu0 0.0
        %1815 = vmatprep.subr.mxu0 0.0
        %1816 = vmatpush1.xpose.msra.mxu0 0.0
        %1817 = vmatprep.subr.mxu0 0.0
        %1818 = vmatpush1.xpose.msra.mxu0 0.0
        %1819 = vmatprep.subr.mxu0 0.0
        %1820 = vmatpush1.xpose.msra.mxu0 0.0
        %1821 = vmatprep.subr.mxu0 0.0
        %1822 = vmatpush1.xpose.msra.mxu0 0.0
        %1823 = vmatprep.subr.mxu0 0.0
        %1824 = vmatpush1.xpose.msra.mxu0 0.0
        %1825 = vmatprep.subr.mxu0 0.0
        %1826 = vmatpush1.xpose.msra.mxu0 0.0
        %1827 = vmatprep.subr.mxu0 0.0
        %1828 = vmatpush1.xpose.msra.mxu0 0.0
        %1829 = vmatprep.subr.mxu0 0.0
        %1830 = vmatpush1.xpose.msra.mxu0 0.0
        %1831 = vmatprep.subr.mxu0 0.0
        %1832 = vmatpush1.xpose.msra.mxu0 0.0
        %1833 = vmatprep.subr.mxu0 0.0
        %1834 = vmatpush1.xpose.msra.mxu0 0.0
        %1835 = vmatprep.subr.mxu0 0.0
        %1836 = vmatpush1.xpose.msra.mxu0 0.0
        %1837 = vmatprep.subr.mxu0 0.0
        %1838 = vmatpush1.xpose.msra.mxu0 0.0
        %1839 = vmatprep.subr.mxu0 0.0
        %1840 = vmatpush1.xpose.msra.mxu0 0.0
        %1841 = vmatprep.subr.mxu0 0.0
        %1842 = vmatpush1.xpose.msra.mxu0 0.0
        %1843 = vmatprep.subr.mxu0 0.0
        %1844 = vmatpush1.xpose.msra.mxu0 0.0
        %1845 = vmatprep.subr.mxu0 0.0
        %1846 = vmatpush1.xpose.msra.mxu0 0.0
        %1847 = vmatprep.subr.mxu0 0.0
        %1848 = vmatpush1.xpose.msra.mxu0 0.0
        %1849 = vmatprep.subr.mxu0 0.0
        %1850 = vmatpush1.xpose.msra.mxu0 0.0
        %1851 = vmatprep.mubr.f32.mxu0 0.0
        %1852 = vmatmul.mubr.f32.gmra.mrb[0].mxu0 %v1783
        %v1853 = vpop.f32.mrb[0].mxu0
        %v1854 = vadd.f32 0.0, %v1853
        %v1855 = vpop.f32.mrb[0].mxu0
        %1856 = vdwg.mxu0
        %v1857 = vmul.f32 %v1854, 0.35355338
        %v1858 = vsel %vm1284, %v1857, -inf
        %1859 = vmax.xlane.f32.xlu0 %v1858
        %v1860 = vpop.xlane.xlu0 %1859
        %v1861 = vsub.f32 %v1857, %v1860
        %v1862 = vmul.f32 %v1861, 1.442695
        %v1863 = vpow.pop %v1862
        %v1864 = vsel %vm1284, %v1863, 0.0
        %1865 = vadd.xlane.f32.xlu0 %v1864
        %v1866 = vpop.xlane.xlu0 %1865
        %v1867 = vrcp.pop %v1866
        %v1868 = vmul.f32 %v1863, %v1867
        %1869 = vrot.lane.b32.xlu0 %v1278, 40
        %v1870 = vpop.permute.xlu0 %1869
        %v1873 = vsel %vm1284, %v1868, 0
        %1875 = vmatprep.subr.mxu0 0.0
        %1876 = vmatpush1.msra.mxu0 %v1870
        %1877 = vmatprep.subr.mxu0 0.0
        %1878 = vmatpush1.msra.mxu0 0.0
        %1879 = vmatprep.subr.mxu0 0.0
        %1880 = vmatpush1.msra.mxu0 0.0
        %1881 = vmatprep.subr.mxu0 0.0
        %1882 = vmatpush1.msra.mxu0 0.0
        %1883 = vmatprep.subr.mxu0 0.0
        %1884 = vmatpush1.msra.mxu0 0.0
        %1885 = vmatprep.subr.mxu0 0.0
        %1886 = vmatpush1.msra.mxu0 0.0
        %1887 = vmatprep.subr.mxu0 0.0
        %1888 = vmatpush1.msra.mxu0 0.0
        %1889 = vmatprep.subr.mxu0 0.0
        %1890 = vmatpush1.msra.mxu0 0.0
        %1891 = vmatprep.subr.mxu0 0.0
        %1892 = vmatpush1.msra.mxu0 0.0
        %1893 = vmatprep.subr.mxu0 0.0
        %1894 = vmatpush1.msra.mxu0 0.0
        %1895 = vmatprep.subr.mxu0 0.0
        %1896 = vmatpush1.msra.mxu0 0.0
        %1897 = vmatprep.subr.mxu0 0.0
        %1898 = vmatpush1.msra.mxu0 0.0
        %1899 = vmatprep.subr.mxu0 0.0
        %1900 = vmatpush1.msra.mxu0 0.0
        %1901 = vmatprep.subr.mxu0 0.0
        %1902 = vmatpush1.msra.mxu0 0.0
        %1903 = vmatprep.subr.mxu0 0.0
        %1904 = vmatpush1.msra.mxu0 0.0
        %1905 = vmatprep.subr.mxu0 0.0
        %1906 = vmatpush1.msra.mxu0 0.0
        %1907 = vmatprep.subr.mxu0 0.0
        %1908 = vmatpush1.msra.mxu0 0.0
        %1909 = vmatprep.subr.mxu0 0.0
        %1910 = vmatpush1.msra.mxu0 0.0
        %1911 = vmatprep.subr.mxu0 0.0
        %1912 = vmatpush1.msra.mxu0 0.0
        %1913 = vmatprep.subr.mxu0 0.0
        %1914 = vmatpush1.msra.mxu0 0.0
        %1915 = vmatprep.subr.mxu0 0.0
        %1916 = vmatpush1.msra.mxu0 0.0
        %1917 = vmatprep.subr.mxu0 0.0
        %1918 = vmatpush1.msra.mxu0 0.0
        %1919 = vmatprep.subr.mxu0 0.0
        %1920 = vmatpush1.msra.mxu0 0.0
        %1921 = vmatprep.subr.mxu0 0.0
        %1922 = vmatpush1.msra.mxu0 0.0
        %1923 = vmatprep.subr.mxu0 0.0
        %1924 = vmatpush1.msra.mxu0 0.0
        %1925 = vmatprep.subr.mxu0 0.0
        %1926 = vmatpush1.msra.mxu0 0.0
        %1927 = vmatprep.subr.mxu0 0.0
        %1928 = vmatpush1.msra.mxu0 0.0
        %1929 = vmatprep.subr.mxu0 0.0
        %1930 = vmatpush1.msra.mxu0 0.0
        %1931 = vmatprep.subr.mxu0 0.0
        %1932 = vmatpush1.msra.mxu0 0.0
        %1933 = vmatprep.subr.mxu0 0.0
        %1934 = vmatpush1.msra.mxu0 0.0
        %1935 = vmatprep.subr.mxu0 0.0
        %1936 = vmatpush1.msra.mxu0 0.0
        %1937 = vmatprep.subr.mxu0 0.0
        %1938 = vmatpush1.msra.mxu0 0.0
        %1939 = vmatprep.mubr.f32.mxu0 0.0
        %1940 = vmatmul.mubr.f32.gmra.mrb[0].mxu0 %v1873
        %v1941 = vpop.f32.mrb[0].mxu0
        %v1942 = vadd.f32 0.0, %v1941
        %v1943 = vpop.f32.mrb[0].mxu0
        %1944 = vdwg.mxu0
        %1946 = vrot.lane.b32.xlu0 %v1610, 8
        %v1947 = vpop.permute.xlu0 %1946
        %1950 = vrot.lane.b32.xlu0 %v1776, 16
        %v1951 = vpop.permute.xlu0 %1950
        %1954 = vrot.lane.b32.xlu0 %v1942, 24
        %v1955 = vpop.permute.xlu0 %1954
        %v1957 = vsel %vm1284, %v1444, %v1947
        %vm1958 = vcmask 130048
        %v1959 = vsel %vm1958, %v1957, %v1951
        %vm1960 = vcmask 195584
        %v1961 = vsel %vm1960, %v1959, %v1955
        %v1962 = vld [vmem:[%s9] sm:$0xff]
        %v1963 = vld [vmem:[%s9 + $0x8] sm:$0xff]
        %v1964 = vld [vmem:[%s9 + $0x10] sm:$0xff]
        %v1965 = vld [vmem:[%s9 + $0x18] sm:$0xff]
        %v1966 = vld [vmem:[%s11] sm:$0x1]
        %v1968 = vlaneseq
        %v1969 = vshrl.u32 %v1968, 7
        %v1970 = vsub.s32 0, %v1969
        %v1971 = vrot.slane %v1966, %v1970
        %v1974 = vsel %vm1207, %v1961, 0
        %1976 = vmatprep.subr.mxu0 0.0
        %1977 = vmatpush1.msra.mxu0 %v1962
        %1978 = vmatprep.subr.mxu0 0.0
        %1979 = vmatpush1.msra.mxu0 %v1963
        %1980 = vmatprep.subr.mxu0 0.0
        %1981 = vmatpush1.msra.mxu0 %v1964
        %1982 = vmatprep.subr.mxu0 0.0
        %1983 = vmatpush1.msra.mxu0 %v1965
        %1984 = vmatprep.subr.mxu0 0.0
        %1985 = vmatpush1.msra.mxu0 0.0
        %1986 = vmatprep.subr.mxu0 0.0
        %1987 = vmatpush1.msra.mxu0 0.0
        %1988 = vmatprep.subr.mxu0 0.0
        %1989 = vmatpush1.msra.mxu0 0.0
        %1990 = vmatprep.subr.mxu0 0.0
        %1991 = vmatpush1.msra.mxu0 0.0
        %1992 = vmatprep.subr.mxu0 0.0
        %1993 = vmatpush1.msra.mxu0 0.0
        %1994 = vmatprep.subr.mxu0 0.0
        %1995 = vmatpush1.msra.mxu0 0.0
        %1996 = vmatprep.subr.mxu0 0.0
        %1997 = vmatpush1.msra.mxu0 0.0
        %1998 = vmatprep.subr.mxu0 0.0
        %1999 = vmatpush1.msra.mxu0 0.0
        %2000 = vmatprep.subr.mxu0 0.0
        %2001 = vmatpush1.msra.mxu0 0.0
        %2002 = vmatprep.subr.mxu0 0.0
        %2003 = vmatpush1.msra.mxu0 0.0
        %2004 = vmatprep.subr.mxu0 0.0
        %2005 = vmatpush1.msra.mxu0 0.0
        %2006 = vmatprep.subr.mxu0 0.0
        %2007 = vmatpush1.msra.mxu0 0.0
        %2008 = vmatprep.subr.mxu0 0.0
        %2009 = vmatpush1.msra.mxu0 0.0
        %2010 = vmatprep.subr.mxu0 0.0
        %2011 = vmatpush1.msra.mxu0 0.0
        %2012 = vmatprep.subr.mxu0 0.0
        %2013 = vmatpush1.msra.mxu0 0.0
        %2014 = vmatprep.subr.mxu0 0.0
        %2015 = vmatpush1.msra.mxu0 0.0
        %2016 = vmatprep.subr.mxu0 0.0
        %2017 = vmatpush1.msra.mxu0 0.0
        %2018 = vmatprep.subr.mxu0 0.0
        %2019 = vmatpush1.msra.mxu0 0.0
        %2020 = vmatprep.subr.mxu0 0.0
        %2021 = vmatpush1.msra.mxu0 0.0
        %2022 = vmatprep.subr.mxu0 0.0
        %2023 = vmatpush1.msra.mxu0 0.0
        %2024 = vmatprep.subr.mxu0 0.0
        %2025 = vmatpush1.msra.mxu0 0.0
        %2026 = vmatprep.subr.mxu0 0.0
        %2027 = vmatpush1.msra.mxu0 0.0
        %2028 = vmatprep.subr.mxu0 0.0
        %2029 = vmatpush1.msra.mxu0 0.0
        %2030 = vmatprep.subr.mxu0 0.0
        %2031 = vmatpush1.msra.mxu0 0.0
        %2032 = vmatprep.subr.mxu0 0.0
        %2033 = vmatpush1.msra.mxu0 0.0
        %2034 = vmatprep.subr.mxu0 0.0
        %2035 = vmatpush1.msra.mxu0 0.0
        %2036 = vmatprep.subr.mxu0 0.0
        %2037 = vmatpush1.msra.mxu0 0.0
        %2038 = vmatprep.subr.mxu0 0.0
        %2039 = vmatpush1.msra.mxu0 0.0
        %2040 = vmatprep.mubr.f32.mxu0 0.0
        %2041 = vmatmul.mubr.f32.gmra.mrb[0].mxu0 %v1974
        %v2042 = vpop.f32.mrb[0].mxu0
        %v2043 = vadd.f32 %v1971, %v2042
        %v2044 = vpop.f32.mrb[0].mxu0
        %2045 = vdwg.mxu0
        %v2046 = vadd.f32 %v1195, %v2043
        %v2047 = vld [vmem:[%s21] sm:$0x1]
        %v2048 = vld [vmem:[%s23] sm:$0x1]
        %v2049 = vsel %vm1207, %v2046, 0.0
        %2050 = vadd.xlane.f32.xlu0 %v2049
        %v2051 = vpop.xlane.xlu0 %2050
        %v2052 = vrcp.pop 32.0
        %v2053 = vmul.f32 %v2051, %v2052
        %v2054 = vsub.f32 %v2046, %v2053
        %v2055 = vmul.f32 %v2054, %v2054
        %v2056 = vsel %vm1207, %v2055, 0.0
        %2057 = vadd.xlane.f32.xlu0 %v2056
        %v2058 = vpop.xlane.xlu0 %2057
        %v2059 = vmul.f32 %v2058, %v2052
        %v2060 = vadd.f32 %v2059, 1e-05
        %v2061 = vrsqrt.pop %v2060
        %v2062 = vmul.f32 %v2054, %v2061
        %v2064 = vlaneseq
        %v2065 = vshrl.u32 %v2064, 7
        %v2066 = vsub.s32 0, %v2065
        %v2067 = vrot.slane %v2047, %v2066
        %v2069 = vmul.f32 %v2062, %v2067
        %v2071 = vlaneseq
        %v2072 = vshrl.u32 %v2071, 7
        %v2073 = vsub.s32 0, %v2072
        %v2074 = vrot.slane %v2048, %v2073
        %v2076 = vadd.f32 %v2069, %v2074
        %v2077 = vld [vmem:[%s13] sm:$0xff]
        %v2078 = vld [vmem:[%s13 + $0x8] sm:$0xff]
        %v2079 = vld [vmem:[%s13 + $0x10] sm:$0xff]
        %v2080 = vld [vmem:[%s13 + $0x18] sm:$0xff]
        %v2081 = vld [vmem:[%s15] sm:$0x1]
        %v2083 = vlaneseq
        %v2084 = vshrl.u32 %v2083, 7
        %v2085 = vsub.s32 0, %v2084
        %v2086 = vrot.slane %v2081, %v2085
        %v2089 = vsel %vm1207, %v2076, 0
        %2091 = vmatprep.subr.mxu0 0.0
        %2092 = vmatpush1.msra.mxu0 %v2077
        %2093 = vmatprep.subr.mxu0 0.0
        %2094 = vmatpush1.msra.mxu0 %v2078
        %2095 = vmatprep.subr.mxu0 0.0
        %2096 = vmatpush1.msra.mxu0 %v2079
        %2097 = vmatprep.subr.mxu0 0.0
        %2098 = vmatpush1.msra.mxu0 %v2080
        %2099 = vmatprep.subr.mxu0 0.0
        %2100 = vmatpush1.msra.mxu0 0.0
        %2101 = vmatprep.subr.mxu0 0.0
        %2102 = vmatpush1.msra.mxu0 0.0
        %2103 = vmatprep.subr.mxu0 0.0
        %2104 = vmatpush1.msra.mxu0 0.0
        %2105 = vmatprep.subr.mxu0 0.0
        %2106 = vmatpush1.msra.mxu0 0.0
        %2107 = vmatprep.subr.mxu0 0.0
        %2108 = vmatpush1.msra.mxu0 0.0
        %2109 = vmatprep.subr.mxu0 0.0
        %2110 = vmatpush1.msra.mxu0 0.0
        %2111 = vmatprep.subr.mxu0 0.0
        %2112 = vmatpush1.msra.mxu0 0.0
        %2113 = vmatprep.subr.mxu0 0.0
        %2114 = vmatpush1.msra.mxu0 0.0
        %2115 = vmatprep.subr.mxu0 0.0
        %2116 = vmatpush1.msra.mxu0 0.0
        %2117 = vmatprep.subr.mxu0 0.0
        %2118 = vmatpush1.msra.mxu0 0.0
        %2119 = vmatprep.subr.mxu0 0.0
        %2120 = vmatpush1.msra.mxu0 0.0
        %2121 = vmatprep.subr.mxu0 0.0
        %2122 = vmatpush1.msra.mxu0 0.0
        %2123 = vmatprep.subr.mxu0 0.0
        %2124 = vmatpush1.msra.mxu0 0.0
        %2125 = vmatprep.subr.mxu0 0.0
        %2126 = vmatpush1.msra.mxu0 0.0
        %2127 = vmatprep.subr.mxu0 0.0
        %2128 = vmatpush1.msra.mxu0 0.0
        %2129 = vmatprep.subr.mxu0 0.0
        %2130 = vmatpush1.msra.mxu0 0.0
        %2131 = vmatprep.subr.mxu0 0.0
        %2132 = vmatpush1.msra.mxu0 0.0
        %2133 = vmatprep.subr.mxu0 0.0
        %2134 = vmatpush1.msra.mxu0 0.0
        %2135 = vmatprep.subr.mxu0 0.0
        %2136 = vmatpush1.msra.mxu0 0.0
        %2137 = vmatprep.subr.mxu0 0.0
        %2138 = vmatpush1.msra.mxu0 0.0
        %2139 = vmatprep.subr.mxu0 0.0
        %2140 = vmatpush1.msra.mxu0 0.0
        %2141 = vmatprep.subr.mxu0 0.0
        %2142 = vmatpush1.msra.mxu0 0.0
        %2143 = vmatprep.subr.mxu0 0.0
        %2144 = vmatpush1.msra.mxu0 0.0
        %2145 = vmatprep.subr.mxu0 0.0
        %2146 = vmatpush1.msra.mxu0 0.0
        %2147 = vmatprep.subr.mxu0 0.0
        %2148 = vmatpush1.msra.mxu0 0.0
        %2149 = vmatprep.subr.mxu0 0.0
        %2150 = vmatpush1.msra.mxu0 0.0
        %2151 = vmatprep.subr.mxu0 0.0
        %2152 = vmatpush1.msra.mxu0 0.0
        %2153 = vmatprep.subr.mxu0 0.0
        %2154 = vmatpush1.msra.mxu0 0.0
        %2155 = vmatprep.mubr.f32.mxu0 0.0
        %2156 = vmatmul.mubr.f32.gmra.mrb[0].mxu0 %v2089
        %v2157 = vpop.f32.mrb[0].mxu0
        %v2158 = vadd.f32 %v2086, %v2157
        %v2159 = vpop.f32.mrb[0].mxu0
        %2160 = vdwg.mxu0
        %v2161 = vmax.f32 %v2158, 0.0
        %v2162 = vld [vmem:[%s17] sm:$0xff]
        %v2163 = vld [vmem:[%s17 + $0x8] sm:$0xff]
        %v2164 = vld [vmem:[%s17 + $0x10] sm:$0xff]
        %v2165 = vld [vmem:[%s17 + $0x18] sm:$0xff]
        %v2166 = vld [vmem:[%s17 + $0x20] sm:$0xff]
        %v2167 = vld [vmem:[%s17 + $0x28] sm:$0xff]
        %v2168 = vld [vmem:[%s17 + $0x30] sm:$0xff]
        %v2169 = vld [vmem:[%s17 + $0x38] sm:$0xff]
        %v2170 = vld [vmem:[%s17 + $0x40] sm:$0xff]
        %v2171 = vld [vmem:[%s17 + $0x48] sm:$0xff]
        %v2172 = vld [vmem:[%s17 + $0x50] sm:$0xff]
        %v2173 = vld [vmem:[%s17 + $0x58] sm:$0xff]
        %v2174 = vld [vmem:[%s17 + $0x60] sm:$0xff]
        %v2175 = vld [vmem:[%s17 + $0x68] sm:$0xff]
        %v2176 = vld [vmem:[%s17 + $0x70] sm:$0xff]
        %v2177 = vld [vmem:[%s17 + $0x78] sm:$0xff]
        %v2178 = vld [vmem:[%s19] sm:$0x1]
        %v2180 = vlaneseq
        %v2181 = vshrl.u32 %v2180, 7
        %v2182 = vsub.s32 0, %v2181
        %v2183 = vrot.slane %v2178, %v2182
        %2185 = vmatprep.subr.mxu0 0.0
        %2186 = vmatpush1.msra.mxu0 %v2162
        %2187 = vmatprep.subr.mxu0 0.0
        %2188 = vmatpush1.msra.mxu0 %v2163
        %2189 = vmatprep.subr.mxu0 0.0
        %2190 = vmatpush1.msra.mxu0 %v2164
        %2191 = vmatprep.subr.mxu0 0.0
        %2192 = vmatpush1.msra.mxu0 %v2165
        %2193 = vmatprep.subr.mxu0 0.0
        %2194 = vmatpush1.msra.mxu0 %v2166
        %2195 = vmatprep.subr.mxu0 0.0
        %2196 = vmatpush1.msra.mxu0 %v2167
        %2197 = vmatprep.subr.mxu0 0.0
        %2198 = vmatpush1.msra.mxu0 %v2168
        %2199 = vmatprep.subr.mxu0 0.0
        %2200 = vmatpush1.msra.mxu0 %v2169
        %2201 = vmatprep.subr.mxu0 0.0
        %2202 = vmatpush1.msra.mxu0 %v2170
        %2203 = vmatprep.subr.mxu0 0.0
        %2204 = vmatpush1.msra.mxu0 %v2171
        %2205 = vmatprep.subr.mxu0 0.0
        %2206 = vmatpush1.msra.mxu0 %v2172
        %2207 = vmatprep.subr.mxu0 0.0
        %2208 = vmatpush1.msra.mxu0 %v2173
        %2209 = vmatprep.subr.mxu0 0.0
        %2210 = vmatpush1.msra.mxu0 %v2174
        %2211 = vmatprep.subr.mxu0 0.0
        %2212 = vmatpush1.msra.mxu0 %v2175
        %2213 = vmatprep.subr.mxu0 0.0
        %2214 = vmatpush1.msra.mxu0 %v2176
        %2215 = vmatprep.subr.mxu0 0.0
        %2216 = vmatpush1.msra.mxu0 %v2177
        %2217 = vmatprep.subr.mxu0 0.0
        %2218 = vmatpush1.msra.mxu0 0.0
        %2219 = vmatprep.subr.mxu0 0.0
        %2220 = vmatpush1.msra.mxu0 0.0
        %2221 = vmatprep.subr.mxu0 0.0
        %2222 = vmatpush1.msra.mxu0 0.0
        %2223 = vmatprep.subr.mxu0 0.0
        %2224 = vmatpush1.msra.mxu0 0.0
        %2225 = vmatprep.subr.mxu0 0.0
        %2226 = vmatpush1.msra.mxu0 0.0
        %2227 = vmatprep.subr.mxu0 0.0
        %2228 = vmatpush1.msra.mxu0 0.0
        %2229 = vmatprep.subr.mxu0 0.0
        %2230 = vmatpush1.msra.mxu0 0.0
        %2231 = vmatprep.subr.mxu0 0.0
        %2232 = vmatpush1.msra.mxu0 0.0
        %2233 = vmatprep.subr.mxu0 0.0
        %2234 = vmatpush1.msra.mxu0 0.0
        %2235 = vmatprep.subr.mxu0 0.0
        %2236 = vmatpush1.msra.mxu0 0.0
        %2237 = vmatprep.subr.mxu0 0.0
        %2238 = vmatpush1.msra.mxu0 0.0
        %2239 = vmatprep.subr.mxu0 0.0
        %2240 = vmatpush1.msra.mxu0 0.0
        %2241 = vmatprep.subr.mxu0 0.0
        %2242 = vmatpush1.msra.mxu0 0.0
        %2243 = vmatprep.subr.mxu0 0.0
        %2244 = vmatpush1.msra.mxu0 0.0
        %2245 = vmatprep.subr.mxu0 0.0
        %2246 = vmatpush1.msra.mxu0 0.0
        %2247 = vmatprep.subr.mxu0 0.0
        %2248 = vmatpush1.msra.mxu0 0.0
        %2249 = vmatprep.mubr.f32.mxu0 0.0
        %2250 = vmatmul.mubr.f32.gmra.mrb[0].mxu0 %v2161
        %v2251 = vpop.f32.mrb[0].mxu0
        %v2252 = vadd.f32 %v2183, %v2251
        %v2253 = vpop.f32.mrb[0].mxu0
        %2254 = vdwg.mxu0
        %v2255 = vadd.f32 %v2076, %v2252
        %v2256 = vld [vmem:[%s25] sm:$0x1]
        %v2257 = vld [vmem:[%s27] sm:$0x1]
        %v2258 = vsel %vm1207, %v2255, 0.0
        %2259 = vadd.xlane.f32.xlu0 %v2258
        %v2260 = vpop.xlane.xlu0 %2259
        %v2261 = vmul.f32 %v2260, %v2052
        %v2262 = vsub.f32 %v2255, %v2261
        %v2263 = vmul.f32 %v2262, %v2262
        %v2264 = vsel %vm1207, %v2263, 0.0
        %2265 = vadd.xlane.f32.xlu0 %v2264
        %v2266 = vpop.xlane.xlu0 %2265
        %v2267 = vmul.f32 %v2266, %v2052
        %v2268 = vadd.f32 %v2267, 1e-05
        %v2269 = vrsqrt.pop %v2268
        %v2270 = vmul.f32 %v2262, %v2269
        %v2272 = vlaneseq
        %v2273 = vshrl.u32 %v2272, 7
        %v2274 = vsub.s32 0, %v2273
        %v2275 = vrot.slane %v2256, %v2274
        %v2277 = vmul.f32 %v2270, %v2275
        %v2279 = vlaneseq
        %v2280 = vshrl.u32 %v2279, 7
        %v2281 = vsub.s32 0, %v2280
        %v2282 = vrot.slane %v2257, %v2281
        %v2284 = vadd.f32 %v2277, %v2282
        %s2285 = scalar_lea.vmem %s5, 32
        %v2286 = vld [vmem:[%s2285] sm:$0xff]
        %v2287 = vld [vmem:[%s2285 + $0x8] sm:$0xff]
        %v2288 = vld [vmem:[%s2285 + $0x10] sm:$0xff]
        %v2289 = vld [vmem:[%s2285 + $0x18] sm:$0xff]
        %s2290 = scalar_lea.vmem %s7, 1
        %v2291 = vld [vmem:[%s2290] sm:$0x1]
        %v2293 = vlaneseq
        %v2294 = vshrl.u32 %v2293, 7
        %v2295 = vsub.s32 0, %v2294
        %v2296 = vrot.slane %v2291, %v2295
        %v2299 = vsel %vm1207, %v2284, 0
        %2301 = vmatprep.subr.mxu0 0.0
        %2302 = vmatpush1.msra.mxu0 %v2286
        %2303 = vmatprep.subr.mxu0 0.0
        %2304 = vmatpush1.msra.mxu0 %v2287
        %2305 = vmatprep.subr.mxu0 0.0
        %2306 = vmatpush1.msra.mxu0 %v2288
        %2307 = vmatprep.subr.mxu0 0.0
        %2308 = vmatpush1.msra.mxu0 %v2289
        %2309 = vmatprep.subr.mxu0 0.0
        %2310 = vmatpush1.msra.mxu0 0.0
        %2311 = vmatprep.subr.mxu0 0.0
        %2312 = vmatpush1.msra.mxu0 0.0
        %2313 = vmatprep.subr.mxu0 0.0
        %2314 = vmatpush1.msra.mxu0 0.0
        %2315 = vmatprep.subr.mxu0 0.0
        %2316 = vmatpush1.msra.mxu0 0.0
        %2317 = vmatprep.subr.mxu0 0.0
        %2318 = vmatpush1.msra.mxu0 0.0
        %2319 = vmatprep.subr.mxu0 0.0
        %2320 = vmatpush1.msra.mxu0 0.0
        %2321 = vmatprep.subr.mxu0 0.0
        %2322 = vmatpush1.msra.mxu0 0.0
        %2323 = vmatprep.subr.mxu0 0.0
        %2324 = vmatpush1.msra.mxu0 0.0
        %2325 = vmatprep.subr.mxu0 0.0
        %2326 = vmatpush1.msra.mxu0 0.0
        %2327 = vmatprep.subr.mxu0 0.0
        %2328 = vmatpush1.msra.mxu0 0.0
        %2329 = vmatprep.subr.mxu0 0.0
        %2330 = vmatpush1.msra.mxu0 0.0
        %2331 = vmatprep.subr.mxu0 0.0
        %2332 = vmatpush1.msra.mxu0 0.0
        %2333 = vmatprep.subr.mxu0 0.0
        %2334 = vmatpush1.msra.mxu0 0.0
        %2335 = vmatprep.subr.mxu0 0.0
        %2336 = vmatpush1.msra.mxu0 0.0
        %2337 = vmatprep.subr.mxu0 0.0
        %2338 = vmatpush1.msra.mxu0 0.0
        %2339 = vmatprep.subr.mxu0 0.0
        %2340 = vmatpush1.msra.mxu0 0.0
        %2341 = vmatprep.subr.mxu0 0.0
        %2342 = vmatpush1.msra.mxu0 0.0
        %2343 = vmatprep.subr.mxu0 0.0
        %2344 = vmatpush1.msra.mxu0 0.0
        %2345 = vmatprep.subr.mxu0 0.0
        %2346 = vmatpush1.msra.mxu0 0.0
        %2347 = vmatprep.subr.mxu0 0.0
        %2348 = vmatpush1.msra.mxu0 0.0
        %2349 = vmatprep.subr.mxu0 0.0
        %2350 = vmatpush1.msra.mxu0 0.0
        %2351 = vmatprep.subr.mxu0 0.0
        %2352 = vmatpush1.msra.mxu0 0.0
        %2353 = vmatprep.subr.mxu0 0.0
        %2354 = vmatpush1.msra.mxu0 0.0
        %2355 = vmatprep.subr.mxu0 0.0
        %2356 = vmatpush1.msra.mxu0 0.0
        %2357 = vmatprep.subr.mxu0 0.0
        %2358 = vmatpush1.msra.mxu0 0.0
        %2359 = vmatprep.subr.mxu0 0.0
        %2360 = vmatpush1.msra.mxu0 0.0
        %2361 = vmatprep.subr.mxu0 0.0
        %2362 = vmatpush1.msra.mxu0 0.0
        %2363 = vmatprep.subr.mxu0 0.0
        %2364 = vmatpush1.msra.mxu0 0.0
        %2365 = vmatprep.mubr.f32.mxu0 0.0
        %2366 = vmatmul.mubr.f32.gmra.mrb[0].mxu0 %v2299
        %v2367 = vpop.f32.mrb[0].mxu0
        %v2368 = vadd.f32 %v2296, %v2367
        %v2369 = vpop.f32.mrb[0].mxu0
        %2370 = vdwg.mxu0
        %2372 = vrot.lane.b32.xlu0 %v2368, 96
        %v2373 = vpop.permute.xlu0 %2372
        %v2374 = vsel %vm1284, %v2368, 0
        %v2376 = vsel %vm1284, %v2373, 0
        %2378 = vmatprep.subr.mxu0 0.0
        %2379 = vmatpush1.xpose.msra.mxu0 %v2376
        %2380 = vmatprep.subr.mxu0 0.0
        %2381 = vmatpush1.xpose.msra.mxu0 0.0
        %2382 = vmatprep.subr.mxu0 0.0
        %2383 = vmatpush1.xpose.msra.mxu0 0.0
        %2384 = vmatprep.subr.mxu0 0.0
        %2385 = vmatpush1.xpose.msra.mxu0 0.0
        %2386 = vmatprep.subr.mxu0 0.0
        %2387 = vmatpush1.xpose.msra.mxu0 0.0
        %2388 = vmatprep.subr.mxu0 0.0
        %2389 = vmatpush1.xpose.msra.mxu0 0.0
        %2390 = vmatprep.subr.mxu0 0.0
        %2391 = vmatpush1.xpose.msra.mxu0 0.0
        %2392 = vmatprep.subr.mxu0 0.0
        %2393 = vmatpush1.xpose.msra.mxu0 0.0
        %2394 = vmatprep.subr.mxu0 0.0
        %2395 = vmatpush1.xpose.msra.mxu0 0.0
        %2396 = vmatprep.subr.mxu0 0.0
        %2397 = vmatpush1.xpose.msra.mxu0 0.0
        %2398 = vmatprep.subr.mxu0 0.0
        %2399 = vmatpush1.xpose.msra.mxu0 0.0
        %2400 = vmatprep.subr.mxu0 0.0
        %2401 = vmatpush1.xpose.msra.mxu0 0.0
        %2402 = vmatprep.subr.mxu0 0.0
        %2403 = vmatpush1.xpose.msra.mxu0 0.0
        %2404 = vmatprep.subr.mxu0 0.0
        %2405 = vmatpush1.xpose.msra.mxu0 0.0
        %2406 = vmatprep.subr.mxu0 0.0
        %2407 = vmatpush1.xpose.msra.mxu0 0.0
        %2408 = vmatprep.subr.mxu0 0.0
        %2409 = vmatpush1.xpose.msra.mxu0 0.0
        %2410 = vmatprep.subr.mxu0 0.0
        %2411 = vmatpush1.xpose.msra.mxu0 0.0
        %2412 = vmatprep.subr.mxu0 0.0
        %2413 = vmatpush1.xpose.msra.mxu0 0.0
        %2414 = vmatprep.subr.mxu0 0.0
        %2415 = vmatpush1.xpose.msra.mxu0 0.0
        %2416 = vmatprep.subr.mxu0 0.0
        %2417 = vmatpush1.xpose.msra.mxu0 0.0
        %2418 = vmatprep.subr.mxu0 0.0
        %2419 = vmatpush1.xpose.msra.mxu0 0.0
        %2420 = vmatprep.subr.mxu0 0.0
        %2421 = vmatpush1.xpose.msra.mxu0 0.0
        %2422 = vmatprep.subr.mxu0 0.0
        %2423 = vmatpush1.xpose.msra.mxu0 0.0
        %2424 = vmatprep.subr.mxu0 0.0
        %2425 = vmatpush1.xpose.msra.mxu0 0.0
        %2426 = vmatprep.subr.mxu0 0.0
        %2427 = vmatpush1.xpose.msra.mxu0 0.0
        %2428 = vmatprep.subr.mxu0 0.0
        %2429 = vmatpush1.xpose.msra.mxu0 0.0
        %2430 = vmatprep.subr.mxu0 0.0
        %2431 = vmatpush1.xpose.msra.mxu0 0.0
        %2432 = vmatprep.subr.mxu0 0.0
        %2433 = vmatpush1.xpose.msra.mxu0 0.0
        %2434 = vmatprep.subr.mxu0 0.0
        %2435 = vmatpush1.xpose.msra.mxu0 0.0
        %2436 = vmatprep.subr.mxu0 0.0
        %2437 = vmatpush1.xpose.msra.mxu0 0.0
        %2438 = vmatprep.subr.mxu0 0.0
        %2439 = vmatpush1.xpose.msra.mxu0 0.0
        %2440 = vmatprep.subr.mxu0 0.0
        %2441 = vmatpush1.xpose.msra.mxu0 0.0
        %2442 = vmatprep.mubr.f32.mxu0 0.0
        %2443 = vmatmul.mubr.f32.gmra.mrb[0].mxu0 %v2374
        %v2444 = vpop.f32.mrb[0].mxu0
        %v2445 = vadd.f32 0.0, %v2444
        %v2446 = vpop.f32.mrb[0].mxu0
        %2447 = vdwg.mxu0
        %v2448 = vmul.f32 %v2445, 0.35355338
        %v2449 = vsel %vm1284, %v2448, -inf
        %2450 = vmax.xlane.f32.xlu0 %v2449
        %v2451 = vpop.xlane.xlu0 %2450
        %v2452 = vsub.f32 %v2448, %v2451
        %v2453 = vmul.f32 %v2452, 1.442695
        %v2454 = vpow.pop %v2453
        %v2455 = vsel %vm1284, %v2454, 0.0
        %2456 = vadd.xlane.f32.xlu0 %v2455
        %v2457 = vpop.xlane.xlu0 %2456
        %v2458 = vrcp.pop %v2457
        %v2459 = vmul.f32 %v2454, %v2458
        %2460 = vrot.lane.b32.xlu0 %v2368, 64
        %v2461 = vpop.permute.xlu0 %2460
        %v2464 = vsel %vm1284, %v2459, 0
        %2466 = vmatprep.subr.mxu0 0.0
        %2467 = vmatpush1.msra.mxu0 %v2461
        %2468 = vmatprep.subr.mxu0 0.0
        %2469 = vmatpush1.msra.mxu0 0.0
        %2470 = vmatprep.subr.mxu0 0.0
        %2471 = vmatpush1.msra.mxu0 0.0
        %2472 = vmatprep.subr.mxu0 0.0
        %2473 = vmatpush1.msra.mxu0 0.0
        %2474 = vmatprep.subr.mxu0 0.0
        %2475 = vmatpush1.msra.mxu0 0.0
        %2476 = vmatprep.subr.mxu0 0.0
        %2477 = vmatpush1.msra.mxu0 0.0
        %2478 = vmatprep.subr.mxu0 0.0
        %2479 = vmatpush1.msra.mxu0 0.0
        %2480 = vmatprep.subr.mxu0 0.0
        %2481 = vmatpush1.msra.mxu0 0.0
        %2482 = vmatprep.subr.mxu0 0.0
        %2483 = vmatpush1.msra.mxu0 0.0
        %2484 = vmatprep.subr.mxu0 0.0
        %2485 = vmatpush1.msra.mxu0 0.0
        %2486 = vmatprep.subr.mxu0 0.0
        %2487 = vmatpush1.msra.mxu0 0.0
        %2488 = vmatprep.subr.mxu0 0.0
        %2489 = vmatpush1.msra.mxu0 0.0
        %2490 = vmatprep.subr.mxu0 0.0
        %2491 = vmatpush1.msra.mxu0 0.0
        %2492 = vmatprep.subr.mxu0 0.0
        %2493 = vmatpush1.msra.mxu0 0.0
        %2494 = vmatprep.subr.mxu0 0.0
        %2495 = vmatpush1.msra.mxu0 0.0
        %2496 = vmatprep.subr.mxu0 0.0
        %2497 = vmatpush1.msra.mxu0 0.0
        %2498 = vmatprep.subr.mxu0 0.0
        %2499 = vmatpush1.msra.mxu0 0.0
        %2500 = vmatprep.subr.mxu0 0.0
        %2501 = vmatpush1.msra.mxu0 0.0
        %2502 = vmatprep.subr.mxu0 0.0
        %2503 = vmatpush1.msra.mxu0 0.0
        %2504 = vmatprep.subr.mxu0 0.0
        %2505 = vmatpush1.msra.mxu0 0.0
        %2506 = vmatprep.subr.mxu0 0.0
        %2507 = vmatpush1.msra.mxu0 0.0
        %2508 = vmatprep.subr.mxu0 0.0
        %2509 = vmatpush1.msra.mxu0 0.0
        %2510 = vmatprep.subr.mxu0 0.0
        %2511 = vmatpush1.msra.mxu0 0.0
        %2512 = vmatprep.subr.mxu0 0.0
        %2513 = vmatpush1.msra.mxu0 0.0
        %2514 = vmatprep.subr.mxu0 0.0
        %2515 = vmatpush1.msra.mxu0 0.0
        %2516 = vmatprep.subr.mxu0 0.0
        %2517 = vmatpush1.msra.mxu0 0.0
        %2518 = vmatprep.subr.mxu0 0.0
        %2519 = vmatpush1.msra.mxu0 0.0
        %2520 = vmatprep.subr.mxu0 0.0
        %2521 = vmatpush1.msra.mxu0 0.0
        %2522 = vmatprep.subr.mxu0 0.0
        %2523 = vmatpush1.msra.mxu0 0.0
        %2524 = vmatprep.subr.mxu0 0.0
        %2525 = vmatpush1.msra.mxu0 0.0
        %2526 = vmatprep.subr.mxu0 0.0
        %2527 = vmatpush1.msra.mxu0 0.0
        %2528 = vmatprep.subr.mxu0 0.0
        %2529 = vmatpush1.msra.mxu0 0.0
        %2530 = vmatprep.mubr.f32.mxu0 0.0
        %2531 = vmatmul.mubr.f32.gmra.mrb[0].mxu0 %v2464
        %v2532 = vpop.f32.mrb[0].mxu0
        %v2533 = vadd.f32 0.0, %v2532
        %v2534 = vpop.f32.mrb[0].mxu0
        %2535 = vdwg.mxu0
        %2536 = vrot.lane.b32.xlu0 %v2368, 120
        %v2537 = vpop.permute.xlu0 %2536
        %2538 = vrot.lane.b32.xlu0 %v2368, 88
        %v2539 = vpop.permute.xlu0 %2538
        %v2540 = vsel %vm1284, %v2537, 0
        %v2542 = vsel %vm1284, %v2539, 0
        %2544 = vmatprep.subr.mxu0 0.0
        %2545 = vmatpush1.xpose.msra.mxu0 %v2542
        %2546 = vmatprep.subr.mxu0 0.0
        %2547 = vmatpush1.xpose.msra.mxu0 0.0
        %2548 = vmatprep.subr.mxu0 0.0
        %2549 = vmatpush1.xpose.msra.mxu0 0.0
        %2550 = vmatprep.subr.mxu0 0.0
        %2551 = vmatpush1.xpose.msra.mxu0 0.0
        %2552 = vmatprep.subr.mxu0 0.0
        %2553 = vmatpush1.xpose.msra.mxu0 0.0
        %2554 = vmatprep.subr.mxu0 0.0
        %2555 = vmatpush1.xpose.msra.mxu0 0.0
        %2556 = vmatprep.subr.mxu0 0.0
        %2557 = vmatpush1.xpose.msra.mxu0 0.0
        %2558 = vmatprep.subr.mxu0 0.0
        %2559 = vmatpush1.xpose.msra.mxu0 0.0
        %2560 = vmatprep.subr.mxu0 0.0
        %2561 = vmatpush1.xpose.msra.mxu0 0.0
        %2562 = vmatprep.subr.mxu0 0.0
        %2563 = vmatpush1.xpose.msra.mxu0 0.0
        %2564 = vmatprep.subr.mxu0 0.0
        %2565 = vmatpush1.xpose.msra.mxu0 0.0
        %2566 = vmatprep.subr.mxu0 0.0
        %2567 = vmatpush1.xpose.msra.mxu0 0.0
        %2568 = vmatprep.subr.mxu0 0.0
        %2569 = vmatpush1.xpose.msra.mxu0 0.0
        %2570 = vmatprep.subr.mxu0 0.0
        %2571 = vmatpush1.xpose.msra.mxu0 0.0
        %2572 = vmatprep.subr.mxu0 0.0
        %2573 = vmatpush1.xpose.msra.mxu0 0.0
        %2574 = vmatprep.subr.mxu0 0.0
        %2575 = vmatpush1.xpose.msra.mxu0 0.0
        %2576 = vmatprep.subr.mxu0 0.0
        %2577 = vmatpush1.xpose.msra.mxu0 0.0
        %2578 = vmatprep.subr.mxu0 0.0
        %2579 = vmatpush1.xpose.msra.mxu0 0.0
        %2580 = vmatprep.subr.mxu0 0.0
        %2581 = vmatpush1.xpose.msra.mxu0 0.0
        %2582 = vmatprep.subr.mxu0 0.0
        %2583 = vmatpush1.xpose.msra.mxu0 0.0
        %2584 = vmatprep.subr.mxu0 0.0
        %2585 = vmatpush1.xpose.msra.mxu0 0.0
        %2586 = vmatprep.subr.mxu0 0.0
        %2587 = vmatpush1.xpose.msra.mxu0 0.0
        %2588 = vmatprep.subr.mxu0 0.0
        %2589 = vmatpush1.xpose.msra.mxu0 0.0
        %2590 = vmatprep.subr.mxu0 0.0
        %2591 = vmatpush1.xpose.msra.mxu0 0.0
        %2592 = vmatprep.subr.mxu0 0.0
        %2593 = vmatpush1.xpose.msra.mxu0 0.0
        %2594 = vmatprep.subr.mxu0 0.0
        %2595 = vmatpush1.xpose.msra.mxu0 0.0
        %2596 = vmatprep.subr.mxu0 0.0
        %2597 = vmatpush1.xpose.msra.mxu0 0.0
        %2598 = vmatprep.subr.mxu0 0.0
        %2599 = vmatpush1.xpose.msra.mxu0 0.0
        %2600 = vmatprep.subr.mxu0 0.0
        %2601 = vmatpush1.xpose.msra.mxu0 0.0
        %2602 = vmatprep.subr.mxu0 0.0
        %2603 = vmatpush1.xpose.msra.mxu0 0.0
        %2604 = vmatprep.subr.mxu0 0.0
        %2605 = vmatpush1.xpose.msra.mxu0 0.0
        %2606 = vmatprep.subr.mxu0 0.0
        %2607 = vmatpush1.xpose.msra.mxu0 0.0
        %2608 = vmatprep.mubr.f32.mxu0 0.0
        %2609 = vmatmul.mubr.f32.gmra.mrb[0].mxu0 %v2540
        %v2610 = vpop.f32.mrb[0].mxu0
        %v2611 = vadd.f32 0.0, %v2610
        %v2612 = vpop.f32.mrb[0].mxu0
        %2613 = vdwg.mxu0
        %v2614 = vmul.f32 %v2611, 0.35355338
        %v2615 = vsel %vm1284, %v2614, -inf
        %2616 = vmax.xlane.f32.xlu0 %v2615
        %v2617 = vpop.xlane.xlu0 %2616
        %v2618 = vsub.f32 %v2614, %v2617
        %v2619 = vmul.f32 %v2618, 1.442695
        %v2620 = vpow.pop %v2619
        %v2621 = vsel %vm1284, %v2620, 0.0
        %2622 = vadd.xlane.f32.xlu0 %v2621
        %v2623 = vpop.xlane.xlu0 %2622
        %v2624 = vrcp.pop %v2623
        %v2625 = vmul.f32 %v2620, %v2624
        %2626 = vrot.lane.b32.xlu0 %v2368, 56
        %v2627 = vpop.permute.xlu0 %2626
        %v2630 = vsel %vm1284, %v2625, 0
        %2632 = vmatprep.subr.mxu0 0.0
        %2633 = vmatpush1.msra.mxu0 %v2627
        %2634 = vmatprep.subr.mxu0 0.0
        %2635 = vmatpush1.msra.mxu0 0.0
        %2636 = vmatprep.subr.mxu0 0.0
        %2637 = vmatpush1.msra.mxu0 0.0
        %2638 = vmatprep.subr.mxu0 0.0
        %2639 = vmatpush1.msra.mxu0 0.0
        %2640 = vmatprep.subr.mxu0 0.0
        %2641 = vmatpush1.msra.mxu0 0.0
        %2642 = vmatprep.subr.mxu0 0.0
        %2643 = vmatpush1.msra.mxu0 0.0
        %2644 = vmatprep.subr.mxu0 0.0
        %2645 = vmatpush1.msra.mxu0 0.0
        %2646 = vmatprep.subr.mxu0 0.0
        %2647 = vmatpush1.msra.mxu0 0.0
        %2648 = vmatprep.subr.mxu0 0.0
        %2649 = vmatpush1.msra.mxu0 0.0
        %2650 = vmatprep.subr.mxu0 0.0
        %2651 = vmatpush1.msra.mxu0 0.0
        %2652 = vmatprep.subr.mxu0 0.0
        %2653 = vmatpush1.msra.mxu0 0.0
        %2654 = vmatprep.subr.mxu0 0.0
        %2655 = vmatpush1.msra.mxu0 0.0
        %2656 = vmatprep.subr.mxu0 0.0
        %2657 = vmatpush1.msra.mxu0 0.0
        %2658 = vmatprep.subr.mxu0 0.0
        %2659 = vmatpush1.msra.mxu0 0.0
        %2660 = vmatprep.subr.mxu0 0.0
        %2661 = vmatpush1.msra.mxu0 0.0
        %2662 = vmatprep.subr.mxu0 0.0
        %2663 = vmatpush1.msra.mxu0 0.0
        %2664 = vmatprep.subr.mxu0 0.0
        %2665 = vmatpush1.msra.mxu0 0.0
        %2666 = vmatprep.subr.mxu0 0.0
        %2667 = vmatpush1.msra.mxu0 0.0
        %2668 = vmatprep.subr.mxu0 0.0
        %2669 = vmatpush1.msra.mxu0 0.0
        %2670 = vmatprep.subr.mxu0 0.0
        %2671 = vmatpush1.msra.mxu0 0.0
        %2672 = vmatprep.subr.mxu0 0.0
        %2673 = vmatpush1.msra.mxu0 0.0
        %2674 = vmatprep.subr.mxu0 0.0
        %2675 = vmatpush1.msra.mxu0 0.0
        %2676 = vmatprep.subr.mxu0 0.0
        %2677 = vmatpush1.msra.mxu0 0.0
        %2678 = vmatprep.subr.mxu0 0.0
        %2679 = vmatpush1.msra.mxu0 0.0
        %2680 = vmatprep.subr.mxu0 0.0
        %2681 = vmatpush1.msra.mxu0 0.0
        %2682 = vmatprep.subr.mxu0 0.0
        %2683 = vmatpush1.msra.mxu0 0.0
        %2684 = vmatprep.subr.mxu0 0.0
        %2685 = vmatpush1.msra.mxu0 0.0
        %2686 = vmatprep.subr.mxu0 0.0
        %2687 = vmatpush1.msra.mxu0 0.0
        %2688 = vmatprep.subr.mxu0 0.0
        %2689 = vmatpush1.msra.mxu0 0.0
        %2690 = vmatprep.subr.mxu0 0.0
        %2691 = vmatpush1.msra.mxu0 0.0
        %2692 = vmatprep.subr.mxu0 0.0
        %2693 = vmatpush1.msra.mxu0 0.0
        %2694 = vmatprep.subr.mxu0 0.0
        %2695 = vmatpush1.msra.mxu0 0.0
        %2696 = vmatprep.mubr.f32.mxu0 0.0
        %2697 = vmatmul.mubr.f32.gmra.mrb[0].mxu0 %v2630
        %v2698 = vpop.f32.mrb[0].mxu0
        %v2699 = vadd.f32 0.0, %v2698
        %v2700 = vpop.f32.mrb[0].mxu0
        %2701 = vdwg.mxu0
        %2702 = vrot.lane.b32.xlu0 %v2368, 112
        %v2703 = vpop.permute.xlu0 %2702
        %2704 = vrot.lane.b32.xlu0 %v2368, 80
        %v2705 = vpop.permute.xlu0 %2704
        %v2706 = vsel %vm1284, %v2703, 0
        %v2708 = vsel %vm1284, %v2705, 0
        %2710 = vmatprep.subr.mxu0 0.0
        %2711 = vmatpush1.xpose.msra.mxu0 %v2708
        %2712 = vmatprep.subr.mxu0 0.0
        %2713 = vmatpush1.xpose.msra.mxu0 0.0
        %2714 = vmatprep.subr.mxu0 0.0
        %2715 = vmatpush1.xpose.msra.mxu0 0.0
        %2716 = vmatprep.subr.mxu0 0.0
        %2717 = vmatpush1.xpose.msra.mxu0 0.0
        %2718 = vmatprep.subr.mxu0 0.0
        %2719 = vmatpush1.xpose.msra.mxu0 0.0
        %2720 = vmatprep.subr.mxu0 0.0
        %2721 = vmatpush1.xpose.msra.mxu0 0.0
        %2722 = vmatprep.subr.mxu0 0.0
        %2723 = vmatpush1.xpose.msra.mxu0 0.0
        %2724 = vmatprep.subr.mxu0 0.0
        %2725 = vmatpush1.xpose.msra.mxu0 0.0
        %2726 = vmatprep.subr.mxu0 0.0
        %2727 = vmatpush1.xpose.msra.mxu0 0.0
        %2728 = vmatprep.subr.mxu0 0.0
        %2729 = vmatpush1.xpose.msra.mxu0 0.0
        %2730 = vmatprep.subr.mxu0 0.0
        %2731 = vmatpush1.xpose.msra.mxu0 0.0
        %2732 = vmatprep.subr.mxu0 0.0
        %2733 = vmatpush1.xpose.msra.mxu0 0.0
        %2734 = vmatprep.subr.mxu0 0.0
        %2735 = vmatpush1.xpose.msra.mxu0 0.0
        %2736 = vmatprep.subr.mxu0 0.0
        %2737 = vmatpush1.xpose.msra.mxu0 0.0
        %2738 = vmatprep.subr.mxu0 0.0
        %2739 = vmatpush1.xpose.msra.mxu0 0.0
        %2740 = vmatprep.subr.mxu0 0.0
        %2741 = vmatpush1.xpose.msra.mxu0 0.0
        %2742 = vmatprep.subr.mxu0 0.0
        %2743 = vmatpush1.xpose.msra.mxu0 0.0
        %2744 = vmatprep.subr.mxu0 0.0
        %2745 = vmatpush1.xpose.msra.mxu0 0.0
        %2746 = vmatprep.subr.mxu0 0.0
        %2747 = vmatpush1.xpose.msra.mxu0 0.0
        %2748 = vmatprep.subr.mxu0 0.0
        %2749 = vmatpush1.xpose.msra.mxu0 0.0
        %2750 = vmatprep.subr.mxu0 0.0
        %2751 = vmatpush1.xpose.msra.mxu0 0.0
        %2752 = vmatprep.subr.mxu0 0.0
        %2753 = vmatpush1.xpose.msra.mxu0 0.0
        %2754 = vmatprep.subr.mxu0 0.0
        %2755 = vmatpush1.xpose.msra.mxu0 0.0
        %2756 = vmatprep.subr.mxu0 0.0
        %2757 = vmatpush1.xpose.msra.mxu0 0.0
        %2758 = vmatprep.subr.mxu0 0.0
        %2759 = vmatpush1.xpose.msra.mxu0 0.0
        %2760 = vmatprep.subr.mxu0 0.0
        %2761 = vmatpush1.xpose.msra.mxu0 0.0
        %2762 = vmatprep.subr.mxu0 0.0
        %2763 = vmatpush1.xpose.msra.mxu0 0.0
        %2764 = vmatprep.subr.mxu0 0.0
        %2765 = vmatpush1.xpose.msra.mxu0 0.0
        %2766 = vmatprep.subr.mxu0 0.0
        %2767 = vmatpush1.xpose.msra.mxu0 0.0
        %2768 = vmatprep.subr.mxu0 0.0
        %2769 = vmatpush1.xpose.msra.mxu0 0.0
        %2770 = vmatprep.subr.mxu0 0.0
        %2771 = vmatpush1.xpose.msra.mxu0 0.0
        %2772 = vmatprep.subr.mxu0 0.0
        %2773 = vmatpush1.xpose.msra.mxu0 0.0
        %2774 = vmatprep.mubr.f32.mxu0 0.0
        %2775 = vmatmul.mubr.f32.gmra.mrb[0].mxu0 %v2706
        %v2776 = vpop.f32.mrb[0].mxu0
        %v2777 = vadd.f32 0.0, %v2776
        %v2778 = vpop.f32.mrb[0].mxu0
        %2779 = vdwg.mxu0
        %v2780 = vmul.f32 %v2777, 0.35355338
        %v2781 = vsel %vm1284, %v2780, -inf
        %2782 = vmax.xlane.f32.xlu0 %v2781
        %v2783 = vpop.xlane.xlu0 %2782
        %v2784 = vsub.f32 %v2780, %v2783
        %v2785 = vmul.f32 %v2784, 1.442695
        %v2786 = vpow.pop %v2785
        %v2787 = vsel %vm1284, %v2786, 0.0
        %2788 = vadd.xlane.f32.xlu0 %v2787
        %v2789 = vpop.xlane.xlu0 %2788
        %v2790 = vrcp.pop %v2789
        %v2791 = vmul.f32 %v2786, %v2790
        %2792 = vrot.lane.b32.xlu0 %v2368, 48
        %v2793 = vpop.permute.xlu0 %2792
        %v2796 = vsel %vm1284, %v2791, 0
        %2798 = vmatprep.subr.mxu0 0.0
        %2799 = vmatpush1.msra.mxu0 %v2793
        %2800 = vmatprep.subr.mxu0 0.0
        %2801 = vmatpush1.msra.mxu0 0.0
        %2802 = vmatprep.subr.mxu0 0.0
        %2803 = vmatpush1.msra.mxu0 0.0
        %2804 = vmatprep.subr.mxu0 0.0
        %2805 = vmatpush1.msra.mxu0 0.0
        %2806 = vmatprep.subr.mxu0 0.0
        %2807 = vmatpush1.msra.mxu0 0.0
        %2808 = vmatprep.subr.mxu0 0.0
        %2809 = vmatpush1.msra.mxu0 0.0
        %2810 = vmatprep.subr.mxu0 0.0
        %2811 = vmatpush1.msra.mxu0 0.0
        %2812 = vmatprep.subr.mxu0 0.0
        %2813 = vmatpush1.msra.mxu0 0.0
        %2814 = vmatprep.subr.mxu0 0.0
        %2815 = vmatpush1.msra.mxu0 0.0
        %2816 = vmatprep.subr.mxu0 0.0
        %2817 = vmatpush1.msra.mxu0 0.0
        %2818 = vmatprep.subr.mxu0 0.0
        %2819 = vmatpush1.msra.mxu0 0.0
        %2820 = vmatprep.subr.mxu0 0.0
        %2821 = vmatpush1.msra.mxu0 0.0
        %2822 = vmatprep.subr.mxu0 0.0
        %2823 = vmatpush1.msra.mxu0 0.0
        %2824 = vmatprep.subr.mxu0 0.0
        %2825 = vmatpush1.msra.mxu0 0.0
        %2826 = vmatprep.subr.mxu0 0.0
        %2827 = vmatpush1.msra.mxu0 0.0
        %2828 = vmatprep.subr.mxu0 0.0
        %2829 = vmatpush1.msra.mxu0 0.0
        %2830 = vmatprep.subr.mxu0 0.0
        %2831 = vmatpush1.msra.mxu0 0.0
        %2832 = vmatprep.subr.mxu0 0.0
        %2833 = vmatpush1.msra.mxu0 0.0
        %2834 = vmatprep.subr.mxu0 0.0
        %2835 = vmatpush1.msra.mxu0 0.0
        %2836 = vmatprep.subr.mxu0 0.0
        %2837 = vmatpush1.msra.mxu0 0.0
        %2838 = vmatprep.subr.mxu0 0.0
        %2839 = vmatpush1.msra.mxu0 0.0
        %2840 = vmatprep.subr.mxu0 0.0
        %2841 = vmatpush1.msra.mxu0 0.0
        %2842 = vmatprep.subr.mxu0 0.0
        %2843 = vmatpush1.msra.mxu0 0.0
        %2844 = vmatprep.subr.mxu0 0.0
        %2845 = vmatpush1.msra.mxu0 0.0
        %2846 = vmatprep.subr.mxu0 0.0
        %2847 = vmatpush1.msra.mxu0 0.0
        %2848 = vmatprep.subr.mxu0 0.0
        %2849 = vmatpush1.msra.mxu0 0.0
        %2850 = vmatprep.subr.mxu0 0.0
        %2851 = vmatpush1.msra.mxu0 0.0
        %2852 = vmatprep.subr.mxu0 0.0
        %2853 = vmatpush1.msra.mxu0 0.0
        %2854 = vmatprep.subr.mxu0 0.0
        %2855 = vmatpush1.msra.mxu0 0.0
        %2856 = vmatprep.subr.mxu0 0.0
        %2857 = vmatpush1.msra.mxu0 0.0
        %2858 = vmatprep.subr.mxu0 0.0
        %2859 = vmatpush1.msra.mxu0 0.0
        %2860 = vmatprep.subr.mxu0 0.0
        %2861 = vmatpush1.msra.mxu0 0.0
        %2862 = vmatprep.mubr.f32.mxu0 0.0
        %2863 = vmatmul.mubr.f32.gmra.mrb[0].mxu0 %v2796
        %v2864 = vpop.f32.mrb[0].mxu0
        %v2865 = vadd.f32 0.0, %v2864
        %v2866 = vpop.f32.mrb[0].mxu0
        %2867 = vdwg.mxu0
        %2868 = vrot.lane.b32.xlu0 %v2368, 104
        %v2869 = vpop.permute.xlu0 %2868
        %2870 = vrot.lane.b32.xlu0 %v2368, 72
        %v2871 = vpop.permute.xlu0 %2870
        %v2872 = vsel %vm1284, %v2869, 0
        %v2874 = vsel %vm1284, %v2871, 0
        %2876 = vmatprep.subr.mxu0 0.0
        %2877 = vmatpush1.xpose.msra.mxu0 %v2874
        %2878 = vmatprep.subr.mxu0 0.0
        %2879 = vmatpush1.xpose.msra.mxu0 0.0
        %2880 = vmatprep.subr.mxu0 0.0
        %2881 = vmatpush1.xpose.msra.mxu0 0.0
        %2882 = vmatprep.subr.mxu0 0.0
        %2883 = vmatpush1.xpose.msra.mxu0 0.0
        %2884 = vmatprep.subr.mxu0 0.0
        %2885 = vmatpush1.xpose.msra.mxu0 0.0
        %2886 = vmatprep.subr.mxu0 0.0
        %2887 = vmatpush1.xpose.msra.mxu0 0.0
        %2888 = vmatprep.subr.mxu0 0.0
        %2889 = vmatpush1.xpose.msra.mxu0 0.0
        %2890 = vmatprep.subr.mxu0 0.0
        %2891 = vmatpush1.xpose.msra.mxu0 0.0
        %2892 = vmatprep.subr.mxu0 0.0
        %2893 = vmatpush1.xpose.msra.mxu0 0.0
        %2894 = vmatprep.subr.mxu0 0.0
        %2895 = vmatpush1.xpose.msra.mxu0 0.0
        %2896 = vmatprep.subr.mxu0 0.0
        %2897 = vmatpush1.xpose.msra.mxu0 0.0
        %2898 = vmatprep.subr.mxu0 0.0
        %2899 = vmatpush1.xpose.msra.mxu0 0.0
        %2900 = vmatprep.subr.mxu0 0.0
        %2901 = vmatpush1.xpose.msra.mxu0 0.0
        %2902 = vmatprep.subr.mxu0 0.0
        %2903 = vmatpush1.xpose.msra.mxu0 0.0
        %2904 = vmatprep.subr.mxu0 0.0
        %2905 = vmatpush1.xpose.msra.mxu0 0.0
        %2906 = vmatprep.subr.mxu0 0.0
        %2907 = vmatpush1.xpose.msra.mxu0 0.0
        %2908 = vmatprep.subr.mxu0 0.0
        %2909 = vmatpush1.xpose.msra.mxu0 0.0
        %2910 = vmatprep.subr.mxu0 0.0
        %2911 = vmatpush1.xpose.msra.mxu0 0.0
        %2912 = vmatprep.subr.mxu0 0.0
        %2913 = vmatpush1.xpose.msra.mxu0 0.0
        %2914 = vmatprep.subr.mxu0 0.0
        %2915 = vmatpush1.xpose.msra.mxu0 0.0
        %2916 = vmatprep.subr.mxu0 0.0
        %2917 = vmatpush1.xpose.msra.mxu0 0.0
        %2918 = vmatprep.subr.mxu0 0.0
        %2919 = vmatpush1.xpose.msra.mxu0 0.0
        %2920 = vmatprep.subr.mxu0 0.0
        %2921 = vmatpush1.xpose.msra.mxu0 0.0
        %2922 = vmatprep.subr.mxu0 0.0
        %2923 = vmatpush1.xpose.msra.mxu0 0.0
        %2924 = vmatprep.subr.mxu0 0.0
        %2925 = vmatpush1.xpose.msra.mxu0 0.0
        %2926 = vmatprep.subr.mxu0 0.0
        %2927 = vmatpush1.xpose.msra.mxu0 0.0
        %2928 = vmatprep.subr.mxu0 0.0
        %2929 = vmatpush1.xpose.msra.mxu0 0.0
        %2930 = vmatprep.subr.mxu0 0.0
        %2931 = vmatpush1.xpose.msra.mxu0 0.0
        %2932 = vmatprep.subr.mxu0 0.0
        %2933 = vmatpush1.xpose.msra.mxu0 0.0
        %2934 = vmatprep.subr.mxu0 0.0
        %2935 = vmatpush1.xpose.msra.mxu0 0.0
        %2936 = vmatprep.subr.mxu0 0.0
        %2937 = vmatpush1.xpose.msra.mxu0 0.0
        %2938 = vmatprep.subr.mxu0 0.0
        %2939 = vmatpush1.xpose.msra.mxu0 0.0
        %2940 = vmatprep.mubr.f32.mxu0 0.0
        %2941 = vmatmul.mubr.f32.gmra.mrb[0].mxu0 %v2872
        %v2942 = vpop.f32.mrb[0].mxu0
        %v2943 = vadd.f32 0.0, %v2942
        %v2944 = vpop.f32.mrb[0].mxu0
        %2945 = vdwg.mxu0
        %v2946 = vmul.f32 %v2943, 0.35355338
        %v2947 = vsel %vm1284, %v2946, -inf
        %2948 = vmax.xlane.f32.xlu0 %v2947
        %v2949 = vpop.xlane.xlu0 %2948
        %v2950 = vsub.f32 %v2946, %v2949
        %v2951 = vmul.f32 %v2950, 1.442695
        %v2952 = vpow.pop %v2951
        %v2953 = vsel %vm1284, %v2952, 0.0
        %2954 = vadd.xlane.f32.xlu0 %v2953
        %v2955 = vpop.xlane.xlu0 %2954
        %v2956 = vrcp.pop %v2955
        %v2957 = vmul.f32 %v2952, %v2956
        %2958 = vrot.lane.b32.xlu0 %v2368, 40
        %v2959 = vpop.permute.xlu0 %2958
        %v2962 = vsel %vm1284, %v2957, 0
        %2964 = vmatprep.subr.mxu0 0.0
        %2965 = vmatpush1.msra.mxu0 %v2959
        %2966 = vmatprep.subr.mxu0 0.0
        %2967 = vmatpush1.msra.mxu0 0.0
        %2968 = vmatprep.subr.mxu0 0.0
        %2969 = vmatpush1.msra.mxu0 0.0
        %2970 = vmatprep.subr.mxu0 0.0
        %2971 = vmatpush1.msra.mxu0 0.0
        %2972 = vmatprep.subr.mxu0 0.0
        %2973 = vmatpush1.msra.mxu0 0.0
        %2974 = vmatprep.subr.mxu0 0.0
        %2975 = vmatpush1.msra.mxu0 0.0
        %2976 = vmatprep.subr.mxu0 0.0
        %2977 = vmatpush1.msra.mxu0 0.0
        %2978 = vmatprep.subr.mxu0 0.0
        %2979 = vmatpush1.msra.mxu0 0.0
        %2980 = vmatprep.subr.mxu0 0.0
        %2981 = vmatpush1.msra.mxu0 0.0
        %2982 = vmatprep.subr.mxu0 0.0
        %2983 = vmatpush1.msra.mxu0 0.0
        %2984 = vmatprep.subr.mxu0 0.0
        %2985 = vmatpush1.msra.mxu0 0.0
        %2986 = vmatprep.subr.mxu0 0.0
        %2987 = vmatpush1.msra.mxu0 0.0
        %2988 = vmatprep.subr.mxu0 0.0
        %2989 = vmatpush1.msra.mxu0 0.0
        %2990 = vmatprep.subr.mxu0 0.0
        %2991 = vmatpush1.msra.mxu0 0.0
        %2992 = vmatprep.subr.mxu0 0.0
        %2993 = vmatpush1.msra.mxu0 0.0
        %2994 = vmatprep.subr.mxu0 0.0
        %2995 = vmatpush1.msra.mxu0 0.0
        %2996 = vmatprep.subr.mxu0 0.0
        %2997 = vmatpush1.msra.mxu0 0.0
        %2998 = vmatprep.subr.mxu0 0.0
        %2999 = vmatpush1.msra.mxu0 0.0
        %3000 = vmatprep.subr.mxu0 0.0
        %3001 = vmatpush1.msra.mxu0 0.0
        %3002 = vmatprep.subr.mxu0 0.0
        %3003 = vmatpush1.msra.mxu0 0.0
        %3004 = vmatprep.subr.mxu0 0.0
        %3005 = vmatpush1.msra.mxu0 0.0
        %3006 = vmatprep.subr.mxu0 0.0
        %3007 = vmatpush1.msra.mxu0 0.0
        %3008 = vmatprep.subr.mxu0 0.0
        %3009 = vmatpush1.msra.mxu0 0.0
        %3010 = vmatprep.subr.mxu0 0.0
        %3011 = vmatpush1.msra.mxu0 0.0
        %3012 = vmatprep.subr.mxu0 0.0
        %3013 = vmatpush1.msra.mxu0 0.0
        %3014 = vmatprep.subr.mxu0 0.0
        %3015 = vmatpush1.msra.mxu0 0.0
        %3016 = vmatprep.subr.mxu0 0.0
        %3017 = vmatpush1.msra.mxu0 0.0
        %3018 = vmatprep.subr.mxu0 0.0
        %3019 = vmatpush1.msra.mxu0 0.0
        %3020 = vmatprep.subr.mxu0 0.0
        %3021 = vmatpush1.msra.mxu0 0.0
        %3022 = vmatprep.subr.mxu0 0.0
        %3023 = vmatpush1.msra.mxu0 0.0
        %3024 = vmatprep.subr.mxu0 0.0
        %3025 = vmatpush1.msra.mxu0 0.0
        %3026 = vmatprep.subr.mxu0 0.0
        %3027 = vmatpush1.msra.mxu0 0.0
        %3028 = vmatprep.mubr.f32.mxu0 0.0
        %3029 = vmatmul.mubr.f32.gmra.mrb[0].mxu0 %v2962
        %v3030 = vpop.f32.mrb[0].mxu0
        %v3031 = vadd.f32 0.0, %v3030
        %v3032 = vpop.f32.mrb[0].mxu0
        %3033 = vdwg.mxu0
        %3035 = vrot.lane.b32.xlu0 %v2699, 8
        %v3036 = vpop.permute.xlu0 %3035
        %3039 = vrot.lane.b32.xlu0 %v2865, 16
        %v3040 = vpop.permute.xlu0 %3039
        %3043 = vrot.lane.b32.xlu0 %v3031, 24
        %v3044 = vpop.permute.xlu0 %3043
        %v3046 = vsel %vm1284, %v2533, %v3036
        %v3047 = vsel %vm1958, %v3046, %v3040
        %v3048 = vsel %vm1960, %v3047, %v3044
        %s3049 = scalar_lea.vmem %s9, 32
        %v3050 = vld [vmem:[%s3049] sm:$0xff]
        %v3051 = vld [vmem:[%s3049 + $0x8] sm:$0xff]
        %v3052 = vld [vmem:[%s3049 + $0x10] sm:$0xff]
        %v3053 = vld [vmem:[%s3049 + $0x18] sm:$0xff]
        %s3054 = scalar_lea.vmem %s11, 1
        %v3055 = vld [vmem:[%s3054] sm:$0x1]
        %v3057 = vlaneseq
        %v3058 = vshrl.u32 %v3057, 7
        %v3059 = vsub.s32 0, %v3058
        %v3060 = vrot.slane %v3055, %v3059
        %v3063 = vsel %vm1207, %v3048, 0
        %3065 = vmatprep.subr.mxu0 0.0
        %3066 = vmatpush1.msra.mxu0 %v3050
        %3067 = vmatprep.subr.mxu0 0.0
        %3068 = vmatpush1.msra.mxu0 %v3051
        %3069 = vmatprep.subr.mxu0 0.0
        %3070 = vmatpush1.msra.mxu0 %v3052
        %3071 = vmatprep.subr.mxu0 0.0
        %3072 = vmatpush1.msra.mxu0 %v3053
        %3073 = vmatprep.subr.mxu0 0.0
        %3074 = vmatpush1.msra.mxu0 0.0
        %3075 = vmatprep.subr.mxu0 0.0
        %3076 = vmatpush1.msra.mxu0 0.0
        %3077 = vmatprep.subr.mxu0 0.0
        %3078 = vmatpush1.msra.mxu0 0.0
        %3079 = vmatprep.subr.mxu0 0.0
        %3080 = vmatpush1.msra.mxu0 0.0
        %3081 = vmatprep.subr.mxu0 0.0
        %3082 = vmatpush1.msra.mxu0 0.0
        %3083 = vmatprep.subr.mxu0 0.0
        %3084 = vmatpush1.msra.mxu0 0.0
        %3085 = vmatprep.subr.mxu0 0.0
        %3086 = vmatpush1.msra.mxu0 0.0
        %3087 = vmatprep.subr.mxu0 0.0
        %3088 = vmatpush1.msra.mxu0 0.0
        %3089 = vmatprep.subr.mxu0 0.0
        %3090 = vmatpush1.msra.mxu0 0.0
        %3091 = vmatprep.subr.mxu0 0.0
        %3092 = vmatpush1.msra.mxu0 0.0
        %3093 = vmatprep.subr.mxu0 0.0
        %3094 = vmatpush1.msra.mxu0 0.0
        %3095 = vmatprep.subr.mxu0 0.0
        %3096 = vmatpush1.msra.mxu0 0.0
        %3097 = vmatprep.subr.mxu0 0.0
        %3098 = vmatpush1.msra.mxu0 0.0
        %3099 = vmatprep.subr.mxu0 0.0
        %3100 = vmatpush1.msra.mxu0 0.0
        %3101 = vmatprep.subr.mxu0 0.0
        %3102 = vmatpush1.msra.mxu0 0.0
        %3103 = vmatprep.subr.mxu0 0.0
        %3104 = vmatpush1.msra.mxu0 0.0
        %3105 = vmatprep.subr.mxu0 0.0
        %3106 = vmatpush1.msra.mxu0 0.0
        %3107 = vmatprep.subr.mxu0 0.0
        %3108 = vmatpush1.msra.mxu0 0.0
        %3109 = vmatprep.subr.mxu0 0.0
        %3110 = vmatpush1.msra.mxu0 0.0
        %3111 = vmatprep.subr.mxu0 0.0
        %3112 = vmatpush1.msra.mxu0 0.0
        %3113 = vmatprep.subr.mxu0 0.0
        %3114 = vmatpush1.msra.mxu0 0.0
        %3115 = vmatprep.subr.mxu0 0.0
        %3116 = vmatpush1.msra.mxu0 0.0
        %3117 = vmatprep.subr.mxu0 0.0
        %3118 = vmatpush1.msra.mxu0 0.0
        %3119 = vmatprep.subr.mxu0 0.0
        %3120 = vmatpush1.msra.mxu0 0.0
        %3121 = vmatprep.subr.mxu0 0.0
        %3122 = vmatpush1.msra.mxu0 0.0
        %3123 = vmatprep.subr.mxu0 0.0
        %3124 = vmatpush1.msra.mxu0 0.0
        %3125 = vmatprep.subr.mxu0 0.0
        %3126 = vmatpush1.msra.mxu0 0.0
        %3127 = vmatprep.subr.mxu0 0.0
        %3128 = vmatpush1.msra.mxu0 0.0
        %3129 = vmatprep.mubr.f32.mxu0 0.0
        %3130 = vmatmul.mubr.f32.gmra.mrb[0].mxu0 %v3063
        %v3131 = vpop.f32.mrb[0].mxu0
        %v3132 = vadd.f32 %v3060, %v3131
        %v3133 = vpop.f32.mrb[0].mxu0
        %3134 = vdwg.mxu0
        %v3135 = vadd.f32 %v2284, %v3132
        %s3136 = scalar_lea.vmem %s21, 1
        %v3137 = vld [vmem:[%s3136] sm:$0x1]
        %s3138 = scalar_lea.vmem %s23, 1
        %v3139 = vld [vmem:[%s3138] sm:$0x1]
        %v3140 = vsel %vm1207, %v3135, 0.0
        %3141 = vadd.xlane.f32.xlu0 %v3140
        %v3142 = vpop.xlane.xlu0 %3141
        %v3143 = vmul.f32 %v3142, %v2052
        %v3144 = vsub.f32 %v3135, %v3143
        %v3145 = vmul.f32 %v3144, %v3144
        %v3146 = vsel %vm1207, %v3145, 0.0
        %3147 = vadd.xlane.f32.xlu0 %v3146
        %v3148 = vpop.xlane.xlu0 %3147
        %v3149 = vmul.f32 %v3148, %v2052
        %v3150 = vadd.f32 %v3149, 1e-05
        %v3151 = vrsqrt.pop %v3150
        %v3152 = vmul.f32 %v3144, %v3151
        %v3154 = vlaneseq
        %v3155 = vshrl.u32 %v3154, 7
        %v3156 = vsub.s32 0, %v3155
        %v3157 = vrot.slane %v3137, %v3156
        %v3159 = vmul.f32 %v3152, %v3157
        %v3161 = vlaneseq
        %v3162 = vshrl.u32 %v3161, 7
        %v3163 = vsub.s32 0, %v3162
        %v3164 = vrot.slane %v3139, %v3163
        %v3166 = vadd.f32 %v3159, %v3164
        %s3167 = scalar_lea.vmem %s13, 32
        %v3168 = vld [vmem:[%s3167] sm:$0xff]
        %v3169 = vld [vmem:[%s3167 + $0x8] sm:$0xff]
        %v3170 = vld [vmem:[%s3167 + $0x10] sm:$0xff]
        %v3171 = vld [vmem:[%s3167 + $0x18] sm:$0xff]
        %s3172 = scalar_lea.vmem %s15, 1
        %v3173 = vld [vmem:[%s3172] sm:$0x1]
        %v3175 = vlaneseq
        %v3176 = vshrl.u32 %v3175, 7
        %v3177 = vsub.s32 0, %v3176
        %v3178 = vrot.slane %v3173, %v3177
        %v3181 = vsel %vm1207, %v3166, 0
        %3183 = vmatprep.subr.mxu0 0.0
        %3184 = vmatpush1.msra.mxu0 %v3168
        %3185 = vmatprep.subr.mxu0 0.0
        %3186 = vmatpush1.msra.mxu0 %v3169
        %3187 = vmatprep.subr.mxu0 0.0
        %3188 = vmatpush1.msra.mxu0 %v3170
        %3189 = vmatprep.subr.mxu0 0.0
        %3190 = vmatpush1.msra.mxu0 %v3171
        %3191 = vmatprep.subr.mxu0 0.0
        %3192 = vmatpush1.msra.mxu0 0.0
        %3193 = vmatprep.subr.mxu0 0.0
        %3194 = vmatpush1.msra.mxu0 0.0
        %3195 = vmatprep.subr.mxu0 0.0
        %3196 = vmatpush1.msra.mxu0 0.0
        %3197 = vmatprep.subr.mxu0 0.0
        %3198 = vmatpush1.msra.mxu0 0.0
        %3199 = vmatprep.subr.mxu0 0.0
        %3200 = vmatpush1.msra.mxu0 0.0
        %3201 = vmatprep.subr.mxu0 0.0
        %3202 = vmatpush1.msra.mxu0 0.0
        %3203 = vmatprep.subr.mxu0 0.0
        %3204 = vmatpush1.msra.mxu0 0.0
        %3205 = vmatprep.subr.mxu0 0.0
        %3206 = vmatpush1.msra.mxu0 0.0
        %3207 = vmatprep.subr.mxu0 0.0
        %3208 = vmatpush1.msra.mxu0 0.0
        %3209 = vmatprep.subr.mxu0 0.0
        %3210 = vmatpush1.msra.mxu0 0.0
        %3211 = vmatprep.subr.mxu0 0.0
        %3212 = vmatpush1.msra.mxu0 0.0
        %3213 = vmatprep.subr.mxu0 0.0
        %3214 = vmatpush1.msra.mxu0 0.0
        %3215 = vmatprep.subr.mxu0 0.0
        %3216 = vmatpush1.msra.mxu0 0.0
        %3217 = vmatprep.subr.mxu0 0.0
        %3218 = vmatpush1.msra.mxu0 0.0
        %3219 = vmatprep.subr.mxu0 0.0
        %3220 = vmatpush1.msra.mxu0 0.0
        %3221 = vmatprep.subr.mxu0 0.0
        %3222 = vmatpush1.msra.mxu0 0.0
        %3223 = vmatprep.subr.mxu0 0.0
        %3224 = vmatpush1.msra.mxu0 0.0
        %3225 = vmatprep.subr.mxu0 0.0
        %3226 = vmatpush1.msra.mxu0 0.0
        %3227 = vmatprep.subr.mxu0 0.0
        %3228 = vmatpush1.msra.mxu0 0.0
        %3229 = vmatprep.subr.mxu0 0.0
        %3230 = vmatpush1.msra.mxu0 0.0
        %3231 = vmatprep.subr.mxu0 0.0
        %3232 = vmatpush1.msra.mxu0 0.0
        %3233 = vmatprep.subr.mxu0 0.0
        %3234 = vmatpush1.msra.mxu0 0.0
        %3235 = vmatprep.subr.mxu0 0.0
        %3236 = vmatpush1.msra.mxu0 0.0
        %3237 = vmatprep.subr.mxu0 0.0
        %3238 = vmatpush1.msra.mxu0 0.0
        %3239 = vmatprep.subr.mxu0 0.0
        %3240 = vmatpush1.msra.mxu0 0.0
        %3241 = vmatprep.subr.mxu0 0.0
        %3242 = vmatpush1.msra.mxu0 0.0
        %3243 = vmatprep.subr.mxu0 0.0
        %3244 = vmatpush1.msra.mxu0 0.0
        %3245 = vmatprep.subr.mxu0 0.0
        %3246 = vmatpush1.msra.mxu0 0.0
        %3247 = vmatprep.mubr.f32.mxu0 0.0
        %3248 = vmatmul.mubr.f32.gmra.mrb[0].mxu0 %v3181
        %v3249 = vpop.f32.mrb[0].mxu0
        %v3250 = vadd.f32 %v3178, %v3249
        %v3251 = vpop.f32.mrb[0].mxu0
        %3252 = vdwg.mxu0
        %v3253 = vmax.f32 %v3250, 0.0
        %s3254 = scalar_lea.vmem %s17, 128
        %v3255 = vld [vmem:[%s3254] sm:$0xff]
        %v3256 = vld [vmem:[%s3254 + $0x8] sm:$0xff]
        %v3257 = vld [vmem:[%s3254 + $0x10] sm:$0xff]
        %v3258 = vld [vmem:[%s3254 + $0x18] sm:$0xff]
        %v3259 = vld [vmem:[%s3254 + $0x20] sm:$0xff]
        %v3260 = vld [vmem:[%s3254 + $0x28] sm:$0xff]
        %v3261 = vld [vmem:[%s3254 + $0x30] sm:$0xff]
        %v3262 = vld [vmem:[%s3254 + $0x38] sm:$0xff]
        %v3263 = vld [vmem:[%s3254 + $0x40] sm:$0xff]
        %v3264 = vld [vmem:[%s3254 + $0x48] sm:$0xff]
        %v3265 = vld [vmem:[%s3254 + $0x50] sm:$0xff]
        %v3266 = vld [vmem:[%s3254 + $0x58] sm:$0xff]
        %v3267 = vld [vmem:[%s3254 + $0x60] sm:$0xff]
        %v3268 = vld [vmem:[%s3254 + $0x68] sm:$0xff]
        %v3269 = vld [vmem:[%s3254 + $0x70] sm:$0xff]
        %v3270 = vld [vmem:[%s3254 + $0x78] sm:$0xff]
        %s3271 = scalar_lea.vmem %s19, 1
        %v3272 = vld [vmem:[%s3271] sm:$0x1]
        %v3274 = vlaneseq
        %v3275 = vshrl.u32 %v3274, 7
        %v3276 = vsub.s32 0, %v3275
        %v3277 = vrot.slane %v3272, %v3276
        %3279 = vmatprep.subr.mxu0 0.0
        %3280 = vmatpush1.msra.mxu0 %v3255
        %3281 = vmatprep.subr.mxu0 0.0
        %3282 = vmatpush1.msra.mxu0 %v3256
        %3283 = vmatprep.subr.mxu0 0.0
        %3284 = vmatpush1.msra.mxu0 %v3257
        %3285 = vmatprep.subr.mxu0 0.0
        %3286 = vmatpush1.msra.mxu0 %v3258
        %3287 = vmatprep.subr.mxu0 0.0
        %3288 = vmatpush1.msra.mxu0 %v3259
        %3289 = vmatprep.subr.mxu0 0.0
        %3290 = vmatpush1.msra.mxu0 %v3260
        %3291 = vmatprep.subr.mxu0 0.0
        %3292 = vmatpush1.msra.mxu0 %v3261
        %3293 = vmatprep.subr.mxu0 0.0
        %3294 = vmatpush1.msra.mxu0 %v3262
        %3295 = vmatprep.subr.mxu0 0.0
        %3296 = vmatpush1.msra.mxu0 %v3263
        %3297 = vmatprep.subr.mxu0 0.0
        %3298 = vmatpush1.msra.mxu0 %v3264
        %3299 = vmatprep.subr.mxu0 0.0
        %3300 = vmatpush1.msra.mxu0 %v3265
        %3301 = vmatprep.subr.mxu0 0.0
        %3302 = vmatpush1.msra.mxu0 %v3266
        %3303 = vmatprep.subr.mxu0 0.0
        %3304 = vmatpush1.msra.mxu0 %v3267
        %3305 = vmatprep.subr.mxu0 0.0
        %3306 = vmatpush1.msra.mxu0 %v3268
        %3307 = vmatprep.subr.mxu0 0.0
        %3308 = vmatpush1.msra.mxu0 %v3269
        %3309 = vmatprep.subr.mxu0 0.0
        %3310 = vmatpush1.msra.mxu0 %v3270
        %3311 = vmatprep.subr.mxu0 0.0
        %3312 = vmatpush1.msra.mxu0 0.0
        %3313 = vmatprep.subr.mxu0 0.0
        %3314 = vmatpush1.msra.mxu0 0.0
        %3315 = vmatprep.subr.mxu0 0.0
        %3316 = vmatpush1.msra.mxu0 0.0
        %3317 = vmatprep.subr.mxu0 0.0
        %3318 = vmatpush1.msra.mxu0 0.0
        %3319 = vmatprep.subr.mxu0 0.0
        %3320 = vmatpush1.msra.mxu0 0.0
        %3321 = vmatprep.subr.mxu0 0.0
        %3322 = vmatpush1.msra.mxu0 0.0
        %3323 = vmatprep.subr.mxu0 0.0
        %3324 = vmatpush1.msra.mxu0 0.0
        %3325 = vmatprep.subr.mxu0 0.0
        %3326 = vmatpush1.msra.mxu0 0.0
        %3327 = vmatprep.subr.mxu0 0.0
        %3328 = vmatpush1.msra.mxu0 0.0
        %3329 = vmatprep.subr.mxu0 0.0
        %3330 = vmatpush1.msra.mxu0 0.0
        %3331 = vmatprep.subr.mxu0 0.0
        %3332 = vmatpush1.msra.mxu0 0.0
        %3333 = vmatprep.subr.mxu0 0.0
        %3334 = vmatpush1.msra.mxu0 0.0
        %3335 = vmatprep.subr.mxu0 0.0
        %3336 = vmatpush1.msra.mxu0 0.0
        %3337 = vmatprep.subr.mxu0 0.0
        %3338 = vmatpush1.msra.mxu0 0.0
        %3339 = vmatprep.subr.mxu0 0.0
        %3340 = vmatpush1.msra.mxu0 0.0
        %3341 = vmatprep.subr.mxu0 0.0
        %3342 = vmatpush1.msra.mxu0 0.0
        %3343 = vmatprep.mubr.f32.mxu0 0.0
        %3344 = vmatmul.mubr.f32.gmra.mrb[0].mxu0 %v3253
        %v3345 = vpop.f32.mrb[0].mxu0
        %v3346 = vadd.f32 %v3277, %v3345
        %v3347 = vpop.f32.mrb[0].mxu0
        %3348 = vdwg.mxu0
        %v3349 = vadd.f32 %v3166, %v3346
        %s3350 = scalar_lea.vmem %s25, 1
        %v3351 = vld [vmem:[%s3350] sm:$0x1]
        %s3352 = scalar_lea.vmem %s27, 1
        %v3353 = vld [vmem:[%s3352] sm:$0x1]
        %v3354 = vsel %vm1207, %v3349, 0.0
        %3355 = vadd.xlane.f32.xlu0 %v3354
        %v3356 = vpop.xlane.xlu0 %3355
        %v3357 = vmul.f32 %v3356, %v2052
        %v3358 = vsub.f32 %v3349, %v3357
        %v3359 = vmul.f32 %v3358, %v3358
        %v3360 = vsel %vm1207, %v3359, 0.0
        %3361 = vadd.xlane.f32.xlu0 %v3360
        %v3362 = vpop.xlane.xlu0 %3361
        %v3363 = vmul.f32 %v3362, %v2052
        %v3364 = vadd.f32 %v3363, 1e-05
        %v3365 = vrsqrt.pop %v3364
        %v3366 = vmul.f32 %v3358, %v3365
        %v3368 = vlaneseq
        %v3369 = vshrl.u32 %v3368, 7
        %v3370 = vsub.s32 0, %v3369
        %v3371 = vrot.slane %v3351, %v3370
        %v3373 = vmul.f32 %v3366, %v3371
        %v3375 = vlaneseq
        %v3376 = vshrl.u32 %v3375, 7
        %v3377 = vsub.s32 0, %v3376
        %v3378 = vrot.slane %v3353, %v3377
        %v3380 = vadd.f32 %v3373, %v3378
        %v3381 = vld [vmem:[%s29] sm:$0x1]
        %v3382 = vld [vmem:[%s31] sm:$0x1]
        %v3383 = vsel %vm1207, %v3380, 0.0
        %3384 = vadd.xlane.f32.xlu0 %v3383
        %v3385 = vpop.xlane.xlu0 %3384
        %v3386 = vmul.f32 %v3385, %v2052
        %v3387 = vsub.f32 %v3380, %v3386
        %v3388 = vmul.f32 %v3387, %v3387
        %v3389 = vsel %vm1207, %v3388, 0.0
        %3390 = vadd.xlane.f32.xlu0 %v3389
        %v3391 = vpop.xlane.xlu0 %3390
        %v3392 = vmul.f32 %v3391, %v2052
        %v3393 = vadd.f32 %v3392, 1e-05
        %v3394 = vrsqrt.pop %v3393
        %v3395 = vmul.f32 %v3387, %v3394
        %v3397 = vlaneseq
        %v3398 = vshrl.u32 %v3397, 7
        %v3399 = vsub.s32 0, %v3398
        %v3400 = vrot.slane %v3381, %v3399
        %v3402 = vmul.f32 %v3395, %v3400
        %v3404 = vlaneseq
        %v3405 = vshrl.u32 %v3404, 7
        %v3406 = vsub.s32 0, %v3405
        %v3407 = vrot.slane %v3382, %v3406
        %v3409 = vadd.f32 %v3402, %v3407
        %v3410 = vld [vmem:[%s1194] sm:$0xff]
        %v3411 = vld [vmem:[%s33] sm:$0xff]
        %v3412 = vld [vmem:[%s33 + $0x8] sm:$0xff]
        %v3413 = vld [vmem:[%s33 + $0x10] sm:$0xff]
        %v3414 = vld [vmem:[%s33 + $0x18] sm:$0xff]
        %v3416 = vsel %vm1207, %v3410, 0
        %3418 = vmatprep.subr.mxu0 0.0
        %3419 = vmatpush1.msra.mxu0 %v3411
        %3420 = vmatprep.subr.mxu0 0.0
        %3421 = vmatpush1.msra.mxu0 %v3412
        %3422 = vmatprep.subr.mxu0 0.0
        %3423 = vmatpush1.msra.mxu0 %v3413
        %3424 = vmatprep.subr.mxu0 0.0
        %3425 = vmatpush1.msra.mxu0 %v3414
        %3426 = vmatprep.subr.mxu0 0.0
        %3427 = vmatpush1.msra.mxu0 0.0
        %3428 = vmatprep.subr.mxu0 0.0
        %3429 = vmatpush1.msra.mxu0 0.0
        %3430 = vmatprep.subr.mxu0 0.0
        %3431 = vmatpush1.msra.mxu0 0.0
        %3432 = vmatprep.subr.mxu0 0.0
        %3433 = vmatpush1.msra.mxu0 0.0
        %3434 = vmatprep.subr.mxu0 0.0
        %3435 = vmatpush1.msra.mxu0 0.0
        %3436 = vmatprep.subr.mxu0 0.0
        %3437 = vmatpush1.msra.mxu0 0.0
        %3438 = vmatprep.subr.mxu0 0.0
        %3439 = vmatpush1.msra.mxu0 0.0
        %3440 = vmatprep.subr.mxu0 0.0
        %3441 = vmatpush1.msra.mxu0 0.0
        %3442 = vmatprep.subr.mxu0 0.0
        %3443 = vmatpush1.msra.mxu0 0.0
        %3444 = vmatprep.subr.mxu0 0.0
        %3445 = vmatpush1.msra.mxu0 0.0
        %3446 = vmatprep.subr.mxu0 0.0
        %3447 = vmatpush1.msra.mxu0 0.0
        %3448 = vmatprep.subr.mxu0 0.0
        %3449 = vmatpush1.msra.mxu0 0.0
        %3450 = vmatprep.subr.mxu0 0.0
        %3451 = vmatpush1.msra.mxu0 0.0
        %3452 = vmatprep.subr.mxu0 0.0
        %3453 = vmatpush1.msra.mxu0 0.0
        %3454 = vmatprep.subr.mxu0 0.0
        %3455 = vmatpush1.msra.mxu0 0.0
        %3456 = vmatprep.subr.mxu0 0.0
        %3457 = vmatpush1.msra.mxu0 0.0
        %3458 = vmatprep.subr.mxu0 0.0
        %3459 = vmatpush1.msra.mxu0 0.0
        %3460 = vmatprep.subr.mxu0 0.0
        %3461 = vmatpush1.msra.mxu0 0.0
        %3462 = vmatprep.subr.mxu0 0.0
        %3463 = vmatpush1.msra.mxu0 0.0
        %3464 = vmatprep.subr.mxu0 0.0
        %3465 = vmatpush1.msra.mxu0 0.0
        %3466 = vmatprep.subr.mxu0 0.0
        %3467 = vmatpush1.msra.mxu0 0.0
        %3468 = vmatprep.subr.mxu0 0.0
        %3469 = vmatpush1.msra.mxu0 0.0
        %3470 = vmatprep.subr.mxu0 0.0
        %3471 = vmatpush1.msra.mxu0 0.0
        %3472 = vmatprep.subr.mxu0 0.0
        %3473 = vmatpush1.msra.mxu0 0.0
        %3474 = vmatprep.subr.mxu0 0.0
        %3475 = vmatpush1.msra.mxu0 0.0
        %3476 = vmatprep.subr.mxu0 0.0
        %3477 = vmatpush1.msra.mxu0 0.0
        %3478 = vmatprep.subr.mxu0 0.0
        %3479 = vmatpush1.msra.mxu0 0.0
        %3480 = vmatprep.subr.mxu0 0.0
        %3481 = vmatpush1.msra.mxu0 0.0
        %3482 = vmatprep.mubr.f32.mxu0 0.0
        %3483 = vmatmul.mubr.f32.gmra.mrb[0].mxu0 %v3416
        %v3484 = vpop.f32.mrb[0].mxu0
        %v3485 = vadd.f32 0.0, %v3484
        %v3486 = vpop.f32.mrb[0].mxu0
        %3487 = vdwg.mxu0
        %v3488 = vlaneseq
        %v3489 = vshrl.u32 %v3488, 7
        %v3490 = vlaneseq
        %v3491 = vand.u32 %v3490, 127
        %vm3492 = vcmp.le.s32.totalorder %v3491, %v3489
        %3494 = vrot.lane.b32.xlu0 %v3485, 96
        %v3495 = vpop.permute.xlu0 %3494
        %v3496 = vsel %vm1284, %v3485, 0
        %v3498 = vsel %vm1284, %v3495, 0
        %3500 = vmatprep.subr.mxu0 0.0
        %3501 = vmatpush1.xpose.msra.mxu0 %v3498
        %3502 = vmatprep.subr.mxu0 0.0
        %3503 = vmatpush1.xpose.msra.mxu0 0.0
        %3504 = vmatprep.subr.mxu0 0.0
        %3505 = vmatpush1.xpose.msra.mxu0 0.0
        %3506 = vmatprep.subr.mxu0 0.0
        %3507 = vmatpush1.xpose.msra.mxu0 0.0
        %3508 = vmatprep.subr.mxu0 0.0
        %3509 = vmatpush1.xpose.msra.mxu0 0.0
        %3510 = vmatprep.subr.mxu0 0.0
        %3511 = vmatpush1.xpose.msra.mxu0 0.0
        %3512 = vmatprep.subr.mxu0 0.0
        %3513 = vmatpush1.xpose.msra.mxu0 0.0
        %3514 = vmatprep.subr.mxu0 0.0
        %3515 = vmatpush1.xpose.msra.mxu0 0.0
        %3516 = vmatprep.subr.mxu0 0.0
        %3517 = vmatpush1.xpose.msra.mxu0 0.0
        %3518 = vmatprep.subr.mxu0 0.0
        %3519 = vmatpush1.xpose.msra.mxu0 0.0
        %3520 = vmatprep.subr.mxu0 0.0
        %3521 = vmatpush1.xpose.msra.mxu0 0.0
        %3522 = vmatprep.subr.mxu0 0.0
        %3523 = vmatpush1.xpose.msra.mxu0 0.0
        %3524 = vmatprep.subr.mxu0 0.0
        %3525 = vmatpush1.xpose.msra.mxu0 0.0
        %3526 = vmatprep.subr.mxu0 0.0
        %3527 = vmatpush1.xpose.msra.mxu0 0.0
        %3528 = vmatprep.subr.mxu0 0.0
        %3529 = vmatpush1.xpose.msra.mxu0 0.0
        %3530 = vmatprep.subr.mxu0 0.0
        %3531 = vmatpush1.xpose.msra.mxu0 0.0
        %3532 = vmatprep.subr.mxu0 0.0
        %3533 = vmatpush1.xpose.msra.mxu0 0.0
        %3534 = vmatprep.subr.mxu0 0.0
        %3535 = vmatpush1.xpose.msra.mxu0 0.0
        %3536 = vmatprep.subr.mxu0 0.0
        %3537 = vmatpush1.xpose.msra.mxu0 0.0
        %3538 = vmatprep.subr.mxu0 0.0
        %3539 = vmatpush1.xpose.msra.mxu0 0.0
        %3540 = vmatprep.subr.mxu0 0.0
        %3541 = vmatpush1.xpose.msra.mxu0 0.0
        %3542 = vmatprep.subr.mxu0 0.0
        %3543 = vmatpush1.xpose.msra.mxu0 0.0
        %3544 = vmatprep.subr.mxu0 0.0
        %3545 = vmatpush1.xpose.msra.mxu0 0.0
        %3546 = vmatprep.subr.mxu0 0.0
        %3547 = vmatpush1.xpose.msra.mxu0 0.0
        %3548 = vmatprep.subr.mxu0 0.0
        %3549 = vmatpush1.xpose.msra.mxu0 0.0
        %3550 = vmatprep.subr.mxu0 0.0
        %3551 = vmatpush1.xpose.msra.mxu0 0.0
        %3552 = vmatprep.subr.mxu0 0.0
        %3553 = vmatpush1.xpose.msra.mxu0 0.0
        %3554 = vmatprep.subr.mxu0 0.0
        %3555 = vmatpush1.xpose.msra.mxu0 0.0
        %3556 = vmatprep.subr.mxu0 0.0
        %3557 = vmatpush1.xpose.msra.mxu0 0.0
        %3558 = vmatprep.subr.mxu0 0.0
        %3559 = vmatpush1.xpose.msra.mxu0 0.0
        %3560 = vmatprep.subr.mxu0 0.0
        %3561 = vmatpush1.xpose.msra.mxu0 0.0
        %3562 = vmatprep.subr.mxu0 0.0
        %3563 = vmatpush1.xpose.msra.mxu0 0.0
        %3564 = vmatprep.mubr.f32.mxu0 0.0
        %3565 = vmatmul.mubr.f32.gmra.mrb[0].mxu0 %v3496
        %v3566 = vpop.f32.mrb[0].mxu0
        %v3567 = vadd.f32 0.0, %v3566
        %v3568 = vpop.f32.mrb[0].mxu0
        %3569 = vdwg.mxu0
        %v3570 = vmul.f32 %v3567, 0.35355338
        %v3571 = vsel %vm3492, %v3570, -inf
        %v3572 = vsel %vm1284, %v3571, -inf
        %3573 = vmax.xlane.f32.xlu0 %v3572
        %v3574 = vpop.xlane.xlu0 %3573
        %v3575 = vsub.f32 %v3571, %v3574
        %v3576 = vmul.f32 %v3575, 1.442695
        %v3577 = vpow.pop %v3576
        %v3578 = vsel %vm1284, %v3577, 0.0
        %3579 = vadd.xlane.f32.xlu0 %v3578
        %v3580 = vpop.xlane.xlu0 %3579
        %v3581 = vrcp.pop %v3580
        %v3582 = vmul.f32 %v3577, %v3581
        %3583 = vrot.lane.b32.xlu0 %v3485, 64
        %v3584 = vpop.permute.xlu0 %3583
        %v3587 = vsel %vm1284, %v3582, 0
        %3589 = vmatprep.subr.mxu0 0.0
        %3590 = vmatpush1.msra.mxu0 %v3584
        %3591 = vmatprep.subr.mxu0 0.0
        %3592 = vmatpush1.msra.mxu0 0.0
        %3593 = vmatprep.subr.mxu0 0.0
        %3594 = vmatpush1.msra.mxu0 0.0
        %3595 = vmatprep.subr.mxu0 0.0
        %3596 = vmatpush1.msra.mxu0 0.0
        %3597 = vmatprep.subr.mxu0 0.0
        %3598 = vmatpush1.msra.mxu0 0.0
        %3599 = vmatprep.subr.mxu0 0.0
        %3600 = vmatpush1.msra.mxu0 0.0
        %3601 = vmatprep.subr.mxu0 0.0
        %3602 = vmatpush1.msra.mxu0 0.0
        %3603 = vmatprep.subr.mxu0 0.0
        %3604 = vmatpush1.msra.mxu0 0.0
        %3605 = vmatprep.subr.mxu0 0.0
        %3606 = vmatpush1.msra.mxu0 0.0
        %3607 = vmatprep.subr.mxu0 0.0
        %3608 = vmatpush1.msra.mxu0 0.0
        %3609 = vmatprep.subr.mxu0 0.0
        %3610 = vmatpush1.msra.mxu0 0.0
        %3611 = vmatprep.subr.mxu0 0.0
        %3612 = vmatpush1.msra.mxu0 0.0
        %3613 = vmatprep.subr.mxu0 0.0
        %3614 = vmatpush1.msra.mxu0 0.0
        %3615 = vmatprep.subr.mxu0 0.0
        %3616 = vmatpush1.msra.mxu0 0.0
        %3617 = vmatprep.subr.mxu0 0.0
        %3618 = vmatpush1.msra.mxu0 0.0
        %3619 = vmatprep.subr.mxu0 0.0
        %3620 = vmatpush1.msra.mxu0 0.0
        %3621 = vmatprep.subr.mxu0 0.0
        %3622 = vmatpush1.msra.mxu0 0.0
        %3623 = vmatprep.subr.mxu0 0.0
        %3624 = vmatpush1.msra.mxu0 0.0
        %3625 = vmatprep.subr.mxu0 0.0
        %3626 = vmatpush1.msra.mxu0 0.0
        %3627 = vmatprep.subr.mxu0 0.0
        %3628 = vmatpush1.msra.mxu0 0.0
        %3629 = vmatprep.subr.mxu0 0.0
        %3630 = vmatpush1.msra.mxu0 0.0
        %3631 = vmatprep.subr.mxu0 0.0
        %3632 = vmatpush1.msra.mxu0 0.0
        %3633 = vmatprep.subr.mxu0 0.0
        %3634 = vmatpush1.msra.mxu0 0.0
        %3635 = vmatprep.subr.mxu0 0.0
        %3636 = vmatpush1.msra.mxu0 0.0
        %3637 = vmatprep.subr.mxu0 0.0
        %3638 = vmatpush1.msra.mxu0 0.0
        %3639 = vmatprep.subr.mxu0 0.0
        %3640 = vmatpush1.msra.mxu0 0.0
        %3641 = vmatprep.subr.mxu0 0.0
        %3642 = vmatpush1.msra.mxu0 0.0
        %3643 = vmatprep.subr.mxu0 0.0
        %3644 = vmatpush1.msra.mxu0 0.0
        %3645 = vmatprep.subr.mxu0 0.0
        %3646 = vmatpush1.msra.mxu0 0.0
        %3647 = vmatprep.subr.mxu0 0.0
        %3648 = vmatpush1.msra.mxu0 0.0
        %3649 = vmatprep.subr.mxu0 0.0
        %3650 = vmatpush1.msra.mxu0 0.0
        %3651 = vmatprep.subr.mxu0 0.0
        %3652 = vmatpush1.msra.mxu0 0.0
        %3653 = vmatprep.mubr.f32.mxu0 0.0
        %3654 = vmatmul.mubr.f32.gmra.mrb[0].mxu0 %v3587
        %v3655 = vpop.f32.mrb[0].mxu0
        %v3656 = vadd.f32 0.0, %v3655
        %v3657 = vpop.f32.mrb[0].mxu0
        %3658 = vdwg.mxu0
        %3659 = vrot.lane.b32.xlu0 %v3485, 120
        %v3660 = vpop.permute.xlu0 %3659
        %3661 = vrot.lane.b32.xlu0 %v3485, 88
        %v3662 = vpop.permute.xlu0 %3661
        %v3663 = vsel %vm1284, %v3660, 0
        %v3665 = vsel %vm1284, %v3662, 0
        %3667 = vmatprep.subr.mxu0 0.0
        %3668 = vmatpush1.xpose.msra.mxu0 %v3665
        %3669 = vmatprep.subr.mxu0 0.0
        %3670 = vmatpush1.xpose.msra.mxu0 0.0
        %3671 = vmatprep.subr.mxu0 0.0
        %3672 = vmatpush1.xpose.msra.mxu0 0.0
        %3673 = vmatprep.subr.mxu0 0.0
        %3674 = vmatpush1.xpose.msra.mxu0 0.0
        %3675 = vmatprep.subr.mxu0 0.0
        %3676 = vmatpush1.xpose.msra.mxu0 0.0
        %3677 = vmatprep.subr.mxu0 0.0
        %3678 = vmatpush1.xpose.msra.mxu0 0.0
        %3679 = vmatprep.subr.mxu0 0.0
        %3680 = vmatpush1.xpose.msra.mxu0 0.0
        %3681 = vmatprep.subr.mxu0 0.0
        %3682 = vmatpush1.xpose.msra.mxu0 0.0
        %3683 = vmatprep.subr.mxu0 0.0
        %3684 = vmatpush1.xpose.msra.mxu0 0.0
        %3685 = vmatprep.subr.mxu0 0.0
        %3686 = vmatpush1.xpose.msra.mxu0 0.0
        %3687 = vmatprep.subr.mxu0 0.0
        %3688 = vmatpush1.xpose.msra.mxu0 0.0
        %3689 = vmatprep.subr.mxu0 0.0
        %3690 = vmatpush1.xpose.msra.mxu0 0.0
        %3691 = vmatprep.subr.mxu0 0.0
        %3692 = vmatpush1.xpose.msra.mxu0 0.0
        %3693 = vmatprep.subr.mxu0 0.0
        %3694 = vmatpush1.xpose.msra.mxu0 0.0
        %3695 = vmatprep.subr.mxu0 0.0
        %3696 = vmatpush1.xpose.msra.mxu0 0.0
        %3697 = vmatprep.subr.mxu0 0.0
        %3698 = vmatpush1.xpose.msra.mxu0 0.0
        %3699 = vmatprep.subr.mxu0 0.0
        %3700 = vmatpush1.xpose.msra.mxu0 0.0
        %3701 = vmatprep.subr.mxu0 0.0
        %3702 = vmatpush1.xpose.msra.mxu0 0.0
        %3703 = vmatprep.subr.mxu0 0.0
        %3704 = vmatpush1.xpose.msra.mxu0 0.0
        %3705 = vmatprep.subr.mxu0 0.0
        %3706 = vmatpush1.xpose.msra.mxu0 0.0
        %3707 = vmatprep.subr.mxu0 0.0
        %3708 = vmatpush1.xpose.msra.mxu0 0.0
        %3709 = vmatprep.subr.mxu0 0.0
        %3710 = vmatpush1.xpose.msra.mxu0 0.0
        %3711 = vmatprep.subr.mxu0 0.0
        %3712 = vmatpush1.xpose.msra.mxu0 0.0
        %3713 = vmatprep.subr.mxu0 0.0
        %3714 = vmatpush1.xpose.msra.mxu0 0.0
        %3715 = vmatprep.subr.mxu0 0.0
        %3716 = vmatpush1.xpose.msra.mxu0 0.0
        %3717 = vmatprep.subr.mxu0 0.0
        %3718 = vmatpush1.xpose.msra.mxu0 0.0
        %3719 = vmatprep.subr.mxu0 0.0
        %3720 = vmatpush1.xpose.msra.mxu0 0.0
        %3721 = vmatprep.subr.mxu0 0.0
        %3722 = vmatpush1.xpose.msra.mxu0 0.0
        %3723 = vmatprep.subr.mxu0 0.0
        %3724 = vmatpush1.xpose.msra.mxu0 0.0
        %3725 = vmatprep.subr.mxu0 0.0
        %3726 = vmatpush1.xpose.msra.mxu0 0.0
        %3727 = vmatprep.subr.mxu0 0.0
        %3728 = vmatpush1.xpose.msra.mxu0 0.0
        %3729 = vmatprep.subr.mxu0 0.0
        %3730 = vmatpush1.xpose.msra.mxu0 0.0
        %3731 = vmatprep.mubr.f32.mxu0 0.0
        %3732 = vmatmul.mubr.f32.gmra.mrb[0].mxu0 %v3663
        %v3733 = vpop.f32.mrb[0].mxu0
        %v3734 = vadd.f32 0.0, %v3733
        %v3735 = vpop.f32.mrb[0].mxu0
        %3736 = vdwg.mxu0
        %v3737 = vmul.f32 %v3734, 0.35355338
        %v3738 = vsel %vm3492, %v3737, -inf
        %v3739 = vsel %vm1284, %v3738, -inf
        %3740 = vmax.xlane.f32.xlu0 %v3739
        %v3741 = vpop.xlane.xlu0 %3740
        %v3742 = vsub.f32 %v3738, %v3741
        %v3743 = vmul.f32 %v3742, 1.442695
        %v3744 = vpow.pop %v3743
        %v3745 = vsel %vm1284, %v3744, 0.0
        %3746 = vadd.xlane.f32.xlu0 %v3745
        %v3747 = vpop.xlane.xlu0 %3746
        %v3748 = vrcp.pop %v3747
        %v3749 = vmul.f32 %v3744, %v3748
        %3750 = vrot.lane.b32.xlu0 %v3485, 56
        %v3751 = vpop.permute.xlu0 %3750
        %v3754 = vsel %vm1284, %v3749, 0
        %3756 = vmatprep.subr.mxu0 0.0
        %3757 = vmatpush1.msra.mxu0 %v3751
        %3758 = vmatprep.subr.mxu0 0.0
        %3759 = vmatpush1.msra.mxu0 0.0
        %3760 = vmatprep.subr.mxu0 0.0
        %3761 = vmatpush1.msra.mxu0 0.0
        %3762 = vmatprep.subr.mxu0 0.0
        %3763 = vmatpush1.msra.mxu0 0.0
        %3764 = vmatprep.subr.mxu0 0.0
        %3765 = vmatpush1.msra.mxu0 0.0
        %3766 = vmatprep.subr.mxu0 0.0
        %3767 = vmatpush1.msra.mxu0 0.0
        %3768 = vmatprep.subr.mxu0 0.0
        %3769 = vmatpush1.msra.mxu0 0.0
        %3770 = vmatprep.subr.mxu0 0.0
        %3771 = vmatpush1.msra.mxu0 0.0
        %3772 = vmatprep.subr.mxu0 0.0
        %3773 = vmatpush1.msra.mxu0 0.0
        %3774 = vmatprep.subr.mxu0 0.0
        %3775 = vmatpush1.msra.mxu0 0.0
        %3776 = vmatprep.subr.mxu0 0.0
        %3777 = vmatpush1.msra.mxu0 0.0
        %3778 = vmatprep.subr.mxu0 0.0
        %3779 = vmatpush1.msra.mxu0 0.0
        %3780 = vmatprep.subr.mxu0 0.0
        %3781 = vmatpush1.msra.mxu0 0.0
        %3782 = vmatprep.subr.mxu0 0.0
        %3783 = vmatpush1.msra.mxu0 0.0
        %3784 = vmatprep.subr.mxu0 0.0
        %3785 = vmatpush1.msra.mxu0 0.0
        %3786 = vmatprep.subr.mxu0 0.0
        %3787 = vmatpush1.msra.mxu0 0.0
        %3788 = vmatprep.subr.mxu0 0.0
        %3789 = vmatpush1.msra.mxu0 0.0
        %3790 = vmatprep.subr.mxu0 0.0
        %3791 = vmatpush1.msra.mxu0 0.0
        %3792 = vmatprep.subr.mxu0 0.0
        %3793 = vmatpush1.msra.mxu0 0.0
        %3794 = vmatprep.subr.mxu0 0.0
        %3795 = vmatpush1.msra.mxu0 0.0
        %3796 = vmatprep.subr.mxu0 0.0
        %3797 = vmatpush1.msra.mxu0 0.0
        %3798 = vmatprep.subr.mxu0 0.0
        %3799 = vmatpush1.msra.mxu0 0.0
        %3800 = vmatprep.subr.mxu0 0.0
        %3801 = vmatpush1.msra.mxu0 0.0
        %3802 = vmatprep.subr.mxu0 0.0
        %3803 = vmatpush1.msra.mxu0 0.0
        %3804 = vmatprep.subr.mxu0 0.0
        %3805 = vmatpush1.msra.mxu0 0.0
        %3806 = vmatprep.subr.mxu0 0.0
        %3807 = vmatpush1.msra.mxu0 0.0
        %3808 = vmatprep.subr.mxu0 0.0
        %3809 = vmatpush1.msra.mxu0 0.0
        %3810 = vmatprep.subr.mxu0 0.0
        %3811 = vmatpush1.msra.mxu0 0.0
        %3812 = vmatprep.subr.mxu0 0.0
        %3813 = vmatpush1.msra.mxu0 0.0
        %3814 = vmatprep.subr.mxu0 0.0
        %3815 = vmatpush1.msra.mxu0 0.0
        %3816 = vmatprep.subr.mxu0 0.0
        %3817 = vmatpush1.msra.mxu0 0.0
        %3818 = vmatprep.subr.mxu0 0.0
        %3819 = vmatpush1.msra.mxu0 0.0
        %3820 = vmatprep.mubr.f32.mxu0 0.0
        %3821 = vmatmul.mubr.f32.gmra.mrb[0].mxu0 %v3754
        %v3822 = vpop.f32.mrb[0].mxu0
        %v3823 = vadd.f32 0.0, %v3822
        %v3824 = vpop.f32.mrb[0].mxu0
        %3825 = vdwg.mxu0
        %3826 = vrot.lane.b32.xlu0 %v3485, 112
        %v3827 = vpop.permute.xlu0 %3826
        %3828 = vrot.lane.b32.xlu0 %v3485, 80
        %v3829 = vpop.permute.xlu0 %3828
        %v3830 = vsel %vm1284, %v3827, 0
        %v3832 = vsel %vm1284, %v3829, 0
        %3834 = vmatprep.subr.mxu0 0.0
        %3835 = vmatpush1.xpose.msra.mxu0 %v3832
        %3836 = vmatprep.subr.mxu0 0.0
        %3837 = vmatpush1.xpose.msra.mxu0 0.0
        %3838 = vmatprep.subr.mxu0 0.0
        %3839 = vmatpush1.xpose.msra.mxu0 0.0
        %3840 = vmatprep.subr.mxu0 0.0
        %3841 = vmatpush1.xpose.msra.mxu0 0.0
        %3842 = vmatprep.subr.mxu0 0.0
        %3843 = vmatpush1.xpose.msra.mxu0 0.0
        %3844 = vmatprep.subr.mxu0 0.0
        %3845 = vmatpush1.xpose.msra.mxu0 0.0
        %3846 = vmatprep.subr.mxu0 0.0
        %3847 = vmatpush1.xpose.msra.mxu0 0.0
        %3848 = vmatprep.subr.mxu0 0.0
        %3849 = vmatpush1.xpose.msra.mxu0 0.0
        %3850 = vmatprep.subr.mxu0 0.0
        %3851 = vmatpush1.xpose.msra.mxu0 0.0
        %3852 = vmatprep.subr.mxu0 0.0
        %3853 = vmatpush1.xpose.msra.mxu0 0.0
        %3854 = vmatprep.subr.mxu0 0.0
        %3855 = vmatpush1.xpose.msra.mxu0 0.0
        %3856 = vmatprep.subr.mxu0 0.0
        %3857 = vmatpush1.xpose.msra.mxu0 0.0
        %3858 = vmatprep.subr.mxu0 0.0
        %3859 = vmatpush1.xpose.msra.mxu0 0.0
        %3860 = vmatprep.subr.mxu0 0.0
        %3861 = vmatpush1.xpose.msra.mxu0 0.0
        %3862 = vmatprep.subr.mxu0 0.0
        %3863 = vmatpush1.xpose.msra.mxu0 0.0
        %3864 = vmatprep.subr.mxu0 0.0
        %3865 = vmatpush1.xpose.msra.mxu0 0.0
        %3866 = vmatprep.subr.mxu0 0.0
        %3867 = vmatpush1.xpose.msra.mxu0 0.0
        %3868 = vmatprep.subr.mxu0 0.0
        %3869 = vmatpush1.xpose.msra.mxu0 0.0
        %3870 = vmatprep.subr.mxu0 0.0
        %3871 = vmatpush1.xpose.msra.mxu0 0.0
        %3872 = vmatprep.subr.mxu0 0.0
        %3873 = vmatpush1.xpose.msra.mxu0 0.0
        %3874 = vmatprep.subr.mxu0 0.0
        %3875 = vmatpush1.xpose.msra.mxu0 0.0
        %3876 = vmatprep.subr.mxu0 0.0
        %3877 = vmatpush1.xpose.msra.mxu0 0.0
        %3878 = vmatprep.subr.mxu0 0.0
        %3879 = vmatpush1.xpose.msra.mxu0 0.0
        %3880 = vmatprep.subr.mxu0 0.0
        %3881 = vmatpush1.xpose.msra.mxu0 0.0
        %3882 = vmatprep.subr.mxu0 0.0
        %3883 = vmatpush1.xpose.msra.mxu0 0.0
        %3884 = vmatprep.subr.mxu0 0.0
        %3885 = vmatpush1.xpose.msra.mxu0 0.0
        %3886 = vmatprep.subr.mxu0 0.0
        %3887 = vmatpush1.xpose.msra.mxu0 0.0
        %3888 = vmatprep.subr.mxu0 0.0
        %3889 = vmatpush1.xpose.msra.mxu0 0.0
        %3890 = vmatprep.subr.mxu0 0.0
        %3891 = vmatpush1.xpose.msra.mxu0 0.0
        %3892 = vmatprep.subr.mxu0 0.0
        %3893 = vmatpush1.xpose.msra.mxu0 0.0
        %3894 = vmatprep.subr.mxu0 0.0
        %3895 = vmatpush1.xpose.msra.mxu0 0.0
        %3896 = vmatprep.subr.mxu0 0.0
        %3897 = vmatpush1.xpose.msra.mxu0 0.0
        %3898 = vmatprep.mubr.f32.mxu0 0.0
        %3899 = vmatmul.mubr.f32.gmra.mrb[0].mxu0 %v3830
        %v3900 = vpop.f32.mrb[0].mxu0
        %v3901 = vadd.f32 0.0, %v3900
        %v3902 = vpop.f32.mrb[0].mxu0
        %3903 = vdwg.mxu0
        %v3904 = vmul.f32 %v3901, 0.35355338
        %v3905 = vsel %vm3492, %v3904, -inf
        %v3906 = vsel %vm1284, %v3905, -inf
        %3907 = vmax.xlane.f32.xlu0 %v3906
        %v3908 = vpop.xlane.xlu0 %3907
        %v3909 = vsub.f32 %v3905, %v3908
        %v3910 = vmul.f32 %v3909, 1.442695
        %v3911 = vpow.pop %v3910
        %v3912 = vsel %vm1284, %v3911, 0.0
        %3913 = vadd.xlane.f32.xlu0 %v3912
        %v3914 = vpop.xlane.xlu0 %3913
        %v3915 = vrcp.pop %v3914
        %v3916 = vmul.f32 %v3911, %v3915
        %3917 = vrot.lane.b32.xlu0 %v3485, 48
        %v3918 = vpop.permute.xlu0 %3917
        %v3921 = vsel %vm1284, %v3916, 0
        %3923 = vmatprep.subr.mxu0 0.0
        %3924 = vmatpush1.msra.mxu0 %v3918
        %3925 = vmatprep.subr.mxu0 0.0
        %3926 = vmatpush1.msra.mxu0 0.0
        %3927 = vmatprep.subr.mxu0 0.0
        %3928 = vmatpush1.msra.mxu0 0.0
        %3929 = vmatprep.subr.mxu0 0.0
        %3930 = vmatpush1.msra.mxu0 0.0
        %3931 = vmatprep.subr.mxu0 0.0
        %3932 = vmatpush1.msra.mxu0 0.0
        %3933 = vmatprep.subr.mxu0 0.0
        %3934 = vmatpush1.msra.mxu0 0.0
        %3935 = vmatprep.subr.mxu0 0.0
        %3936 = vmatpush1.msra.mxu0 0.0
        %3937 = vmatprep.subr.mxu0 0.0
        %3938 = vmatpush1.msra.mxu0 0.0
        %3939 = vmatprep.subr.mxu0 0.0
        %3940 = vmatpush1.msra.mxu0 0.0
        %3941 = vmatprep.subr.mxu0 0.0
        %3942 = vmatpush1.msra.mxu0 0.0
        %3943 = vmatprep.subr.mxu0 0.0
        %3944 = vmatpush1.msra.mxu0 0.0
        %3945 = vmatprep.subr.mxu0 0.0
        %3946 = vmatpush1.msra.mxu0 0.0
        %3947 = vmatprep.subr.mxu0 0.0
        %3948 = vmatpush1.msra.mxu0 0.0
        %3949 = vmatprep.subr.mxu0 0.0
        %3950 = vmatpush1.msra.mxu0 0.0
        %3951 = vmatprep.subr.mxu0 0.0
        %3952 = vmatpush1.msra.mxu0 0.0
        %3953 = vmatprep.subr.mxu0 0.0
        %3954 = vmatpush1.msra.mxu0 0.0
        %3955 = vmatprep.subr.mxu0 0.0
        %3956 = vmatpush1.msra.mxu0 0.0
        %3957 = vmatprep.subr.mxu0 0.0
        %3958 = vmatpush1.msra.mxu0 0.0
        %3959 = vmatprep.subr.mxu0 0.0
        %3960 = vmatpush1.msra.mxu0 0.0
        %3961 = vmatprep.subr.mxu0 0.0
        %3962 = vmatpush1.msra.mxu0 0.0
        %3963 = vmatprep.subr.mxu0 0.0
        %3964 = vmatpush1.msra.mxu0 0.0
        %3965 = vmatprep.subr.mxu0 0.0
        %3966 = vmatpush1.msra.mxu0 0.0
        %3967 = vmatprep.subr.mxu0 0.0
        %3968 = vmatpush1.msra.mxu0 0.0
        %3969 = vmatprep.subr.mxu0 0.0
        %3970 = vmatpush1.msra.mxu0 0.0
        %3971 = vmatprep.subr.mxu0 0.0
        %3972 = vmatpush1.msra.mxu0 0.0
        %3973 = vmatprep.subr.mxu0 0.0
        %3974 = vmatpush1.msra.mxu0 0.0
        %3975 = vmatprep.subr.mxu0 0.0
        %3976 = vmatpush1.msra.mxu0 0.0
        %3977 = vmatprep.subr.mxu0 0.0
        %3978 = vmatpush1.msra.mxu0 0.0
        %3979 = vmatprep.subr.mxu0 0.0
        %3980 = vmatpush1.msra.mxu0 0.0
        %3981 = vmatprep.subr.mxu0 0.0
        %3982 = vmatpush1.msra.mxu0 0.0
        %3983 = vmatprep.subr.mxu0 0.0
        %3984 = vmatpush1.msra.mxu0 0.0
        %3985 = vmatprep.subr.mxu0 0.0
        %3986 = vmatpush1.msra.mxu0 0.0
        %3987 = vmatprep.mubr.f32.mxu0 0.0
        %3988 = vmatmul.mubr.f32.gmra.mrb[0].mxu0 %v3921
        %v3989 = vpop.f32.mrb[0].mxu0
        %v3990 = vadd.f32 0.0, %v3989
        %v3991 = vpop.f32.mrb[0].mxu0
        %3992 = vdwg.mxu0
        %3993 = vrot.lane.b32.xlu0 %v3485, 104
        %v3994 = vpop.permute.xlu0 %3993
        %3995 = vrot.lane.b32.xlu0 %v3485, 72
        %v3996 = vpop.permute.xlu0 %3995
        %v3997 = vsel %vm1284, %v3994, 0
        %v3999 = vsel %vm1284, %v3996, 0
        %4001 = vmatprep.subr.mxu0 0.0
        %4002 = vmatpush1.xpose.msra.mxu0 %v3999
        %4003 = vmatprep.subr.mxu0 0.0
        %4004 = vmatpush1.xpose.msra.mxu0 0.0
        %4005 = vmatprep.subr.mxu0 0.0
        %4006 = vmatpush1.xpose.msra.mxu0 0.0
        %4007 = vmatprep.subr.mxu0 0.0
        %4008 = vmatpush1.xpose.msra.mxu0 0.0
        %4009 = vmatprep.subr.mxu0 0.0
        %4010 = vmatpush1.xpose.msra.mxu0 0.0
        %4011 = vmatprep.subr.mxu0 0.0
        %4012 = vmatpush1.xpose.msra.mxu0 0.0
        %4013 = vmatprep.subr.mxu0 0.0
        %4014 = vmatpush1.xpose.msra.mxu0 0.0
        %4015 = vmatprep.subr.mxu0 0.0
        %4016 = vmatpush1.xpose.msra.mxu0 0.0
        %4017 = vmatprep.subr.mxu0 0.0
        %4018 = vmatpush1.xpose.msra.mxu0 0.0
        %4019 = vmatprep.subr.mxu0 0.0
        %4020 = vmatpush1.xpose.msra.mxu0 0.0
        %4021 = vmatprep.subr.mxu0 0.0
        %4022 = vmatpush1.xpose.msra.mxu0 0.0
        %4023 = vmatprep.subr.mxu0 0.0
        %4024 = vmatpush1.xpose.msra.mxu0 0.0
        %4025 = vmatprep.subr.mxu0 0.0
        %4026 = vmatpush1.xpose.msra.mxu0 0.0
        %4027 = vmatprep.subr.mxu0 0.0
        %4028 = vmatpush1.xpose.msra.mxu0 0.0
        %4029 = vmatprep.subr.mxu0 0.0
        %4030 = vmatpush1.xpose.msra.mxu0 0.0
        %4031 = vmatprep.subr.mxu0 0.0
        %4032 = vmatpush1.xpose.msra.mxu0 0.0
        %4033 = vmatprep.subr.mxu0 0.0
        %4034 = vmatpush1.xpose.msra.mxu0 0.0
        %4035 = vmatprep.subr.mxu0 0.0
        %4036 = vmatpush1.xpose.msra.mxu0 0.0
        %4037 = vmatprep.subr.mxu0 0.0
        %4038 = vmatpush1.xpose.msra.mxu0 0.0
        %4039 = vmatprep.subr.mxu0 0.0
        %4040 = vmatpush1.xpose.msra.mxu0 0.0
        %4041 = vmatprep.subr.mxu0 0.0
        %4042 = vmatpush1.xpose.msra.mxu0 0.0
        %4043 = vmatprep.subr.mxu0 0.0
        %4044 = vmatpush1.xpose.msra.mxu0 0.0
        %4045 = vmatprep.subr.mxu0 0.0
        %4046 = vmatpush1.xpose.msra.mxu0 0.0
        %4047 = vmatprep.subr.mxu0 0.0
        %4048 = vmatpush1.xpose.msra.mxu0 0.0
        %4049 = vmatprep.subr.mxu0 0.0
        %4050 = vmatpush1.xpose.msra.mxu0 0.0
        %4051 = vmatprep.subr.mxu0 0.0
        %4052 = vmatpush1.xpose.msra.mxu0 0.0
        %4053 = vmatprep.subr.mxu0 0.0
        %4054 = vmatpush1.xpose.msra.mxu0 0.0
        %4055 = vmatprep.subr.mxu0 0.0
        %4056 = vmatpush1.xpose.msra.mxu0 0.0
        %4057 = vmatprep.subr.mxu0 0.0
        %4058 = vmatpush1.xpose.msra.mxu0 0.0
        %4059 = vmatprep.subr.mxu0 0.0
        %4060 = vmatpush1.xpose.msra.mxu0 0.0
        %4061 = vmatprep.subr.mxu0 0.0
        %4062 = vmatpush1.xpose.msra.mxu0 0.0
        %4063 = vmatprep.subr.mxu0 0.0
        %4064 = vmatpush1.xpose.msra.mxu0 0.0
        %4065 = vmatprep.mubr.f32.mxu0 0.0
        %4066 = vmatmul.mubr.f32.gmra.mrb[0].mxu0 %v3997
        %v4067 = vpop.f32.mrb[0].mxu0
        %v4068 = vadd.f32 0.0, %v4067
        %v4069 = vpop.f32.mrb[0].mxu0
        %4070 = vdwg.mxu0
        %v4071 = vmul.f32 %v4068, 0.35355338
        %v4072 = vsel %vm3492, %v4071, -inf
        %v4073 = vsel %vm1284, %v4072, -inf
        %4074 = vmax.xlane.f32.xlu0 %v4073
        %v4075 = vpop.xlane.xlu0 %4074
        %v4076 = vsub.f32 %v4072, %v4075
        %v4077 = vmul.f32 %v4076, 1.442695
        %v4078 = vpow.pop %v4077
        %v4079 = vsel %vm1284, %v4078, 0.0
        %4080 = vadd.xlane.f32.xlu0 %v4079
        %v4081 = vpop.xlane.xlu0 %4080
        %v4082 = vrcp.pop %v4081
        %v4083 = vmul.f32 %v4078, %v4082
        %4084 = vrot.lane.b32.xlu0 %v3485, 40
        %v4085 = vpop.permute.xlu0 %4084
        %v4088 = vsel %vm1284, %v4083, 0
        %4090 = vmatprep.subr.mxu0 0.0
        %4091 = vmatpush1.msra.mxu0 %v4085
        %4092 = vmatprep.subr.mxu0 0.0
        %4093 = vmatpush1.msra.mxu0 0.0
        %4094 = vmatprep.subr.mxu0 0.0
        %4095 = vmatpush1.msra.mxu0 0.0
        %4096 = vmatprep.subr.mxu0 0.0
        %4097 = vmatpush1.msra.mxu0 0.0
        %4098 = vmatprep.subr.mxu0 0.0
        %4099 = vmatpush1.msra.mxu0 0.0
        %4100 = vmatprep.subr.mxu0 0.0
        %4101 = vmatpush1.msra.mxu0 0.0
        %4102 = vmatprep.subr.mxu0 0.0
        %4103 = vmatpush1.msra.mxu0 0.0
        %4104 = vmatprep.subr.mxu0 0.0
        %4105 = vmatpush1.msra.mxu0 0.0
        %4106 = vmatprep.subr.mxu0 0.0
        %4107 = vmatpush1.msra.mxu0 0.0
        %4108 = vmatprep.subr.mxu0 0.0
        %4109 = vmatpush1.msra.mxu0 0.0
        %4110 = vmatprep.subr.mxu0 0.0
        %4111 = vmatpush1.msra.mxu0 0.0
        %4112 = vmatprep.subr.mxu0 0.0
        %4113 = vmatpush1.msra.mxu0 0.0
        %4114 = vmatprep.subr.mxu0 0.0
        %4115 = vmatpush1.msra.mxu0 0.0
        %4116 = vmatprep.subr.mxu0 0.0
        %4117 = vmatpush1.msra.mxu0 0.0
        %4118 = vmatprep.subr.mxu0 0.0
        %4119 = vmatpush1.msra.mxu0 0.0
        %4120 = vmatprep.subr.mxu0 0.0
        %4121 = vmatpush1.msra.mxu0 0.0
        %4122 = vmatprep.subr.mxu0 0.0
        %4123 = vmatpush1.msra.mxu0 0.0
        %4124 = vmatprep.subr.mxu0 0.0
        %4125 = vmatpush1.msra.mxu0 0.0
        %4126 = vmatprep.subr.mxu0 0.0
        %4127 = vmatpush1.msra.mxu0 0.0
        %4128 = vmatprep.subr.mxu0 0.0
        %4129 = vmatpush1.msra.mxu0 0.0
        %4130 = vmatprep.subr.mxu0 0.0
        %4131 = vmatpush1.msra.mxu0 0.0
        %4132 = vmatprep.subr.mxu0 0.0
        %4133 = vmatpush1.msra.mxu0 0.0
        %4134 = vmatprep.subr.mxu0 0.0
        %4135 = vmatpush1.msra.mxu0 0.0
        %4136 = vmatprep.subr.mxu0 0.0
        %4137 = vmatpush1.msra.mxu0 0.0
        %4138 = vmatprep.subr.mxu0 0.0
        %4139 = vmatpush1.msra.mxu0 0.0
        %4140 = vmatprep.subr.mxu0 0.0
        %4141 = vmatpush1.msra.mxu0 0.0
        %4142 = vmatprep.subr.mxu0 0.0
        %4143 = vmatpush1.msra.mxu0 0.0
        %4144 = vmatprep.subr.mxu0 0.0
        %4145 = vmatpush1.msra.mxu0 0.0
        %4146 = vmatprep.subr.mxu0 0.0
        %4147 = vmatpush1.msra.mxu0 0.0
        %4148 = vmatprep.subr.mxu0 0.0
        %4149 = vmatpush1.msra.mxu0 0.0
        %4150 = vmatprep.subr.mxu0 0.0
        %4151 = vmatpush1.msra.mxu0 0.0
        %4152 = vmatprep.subr.mxu0 0.0
        %4153 = vmatpush1.msra.mxu0 0.0
        %4154 = vmatprep.mubr.f32.mxu0 0.0
        %4155 = vmatmul.mubr.f32.gmra.mrb[0].mxu0 %v4088
        %v4156 = vpop.f32.mrb[0].mxu0
        %v4157 = vadd.f32 0.0, %v4156
        %v4158 = vpop.f32.mrb[0].mxu0
        %4159 = vdwg.mxu0
        %4161 = vrot.lane.b32.xlu0 %v3823, 8
        %v4162 = vpop.permute.xlu0 %4161
        %4165 = vrot.lane.b32.xlu0 %v3990, 16
        %v4166 = vpop.permute.xlu0 %4165
        %4169 = vrot.lane.b32.xlu0 %v4157, 24
        %v4170 = vpop.permute.xlu0 %4169
        %v4172 = vsel %vm1284, %v3656, %v4162
        %v4173 = vsel %vm1958, %v4172, %v4166
        %v4174 = vsel %vm1960, %v4173, %v4170
        %v4175 = vld [vmem:[%s35] sm:$0xff]
        %v4176 = vld [vmem:[%s35 + $0x8] sm:$0xff]
        %v4177 = vld [vmem:[%s35 + $0x10] sm:$0xff]
        %v4178 = vld [vmem:[%s35 + $0x18] sm:$0xff]
        %v4179 = vld [vmem:[%s37] sm:$0x1]
        %v4181 = vlaneseq
        %v4182 = vshrl.u32 %v4181, 7
        %v4183 = vsub.s32 0, %v4182
        %v4184 = vrot.slane %v4179, %v4183
        %v4187 = vsel %vm1207, %v4174, 0
        %4189 = vmatprep.subr.mxu0 0.0
        %4190 = vmatpush1.msra.mxu0 %v4175
        %4191 = vmatprep.subr.mxu0 0.0
        %4192 = vmatpush1.msra.mxu0 %v4176
        %4193 = vmatprep.subr.mxu0 0.0
        %4194 = vmatpush1.msra.mxu0 %v4177
        %4195 = vmatprep.subr.mxu0 0.0
        %4196 = vmatpush1.msra.mxu0 %v4178
        %4197 = vmatprep.subr.mxu0 0.0
        %4198 = vmatpush1.msra.mxu0 0.0
        %4199 = vmatprep.subr.mxu0 0.0
        %4200 = vmatpush1.msra.mxu0 0.0
        %4201 = vmatprep.subr.mxu0 0.0
        %4202 = vmatpush1.msra.mxu0 0.0
        %4203 = vmatprep.subr.mxu0 0.0
        %4204 = vmatpush1.msra.mxu0 0.0
        %4205 = vmatprep.subr.mxu0 0.0
        %4206 = vmatpush1.msra.mxu0 0.0
        %4207 = vmatprep.subr.mxu0 0.0
        %4208 = vmatpush1.msra.mxu0 0.0
        %4209 = vmatprep.subr.mxu0 0.0
        %4210 = vmatpush1.msra.mxu0 0.0
        %4211 = vmatprep.subr.mxu0 0.0
        %4212 = vmatpush1.msra.mxu0 0.0
        %4213 = vmatprep.subr.mxu0 0.0
        %4214 = vmatpush1.msra.mxu0 0.0
        %4215 = vmatprep.subr.mxu0 0.0
        %4216 = vmatpush1.msra.mxu0 0.0
        %4217 = vmatprep.subr.mxu0 0.0
        %4218 = vmatpush1.msra.mxu0 0.0
        %4219 = vmatprep.subr.mxu0 0.0
        %4220 = vmatpush1.msra.mxu0 0.0
        %4221 = vmatprep.subr.mxu0 0.0
        %4222 = vmatpush1.msra.mxu0 0.0
        %4223 = vmatprep.subr.mxu0 0.0
        %4224 = vmatpush1.msra.mxu0 0.0
        %4225 = vmatprep.subr.mxu0 0.0
        %4226 = vmatpush1.msra.mxu0 0.0
        %4227 = vmatprep.subr.mxu0 0.0
        %4228 = vmatpush1.msra.mxu0 0.0
        %4229 = vmatprep.subr.mxu0 0.0
        %4230 = vmatpush1.msra.mxu0 0.0
        %4231 = vmatprep.subr.mxu0 0.0
        %4232 = vmatpush1.msra.mxu0 0.0
        %4233 = vmatprep.subr.mxu0 0.0
        %4234 = vmatpush1.msra.mxu0 0.0
        %4235 = vmatprep.subr.mxu0 0.0
        %4236 = vmatpush1.msra.mxu0 0.0
        %4237 = vmatprep.subr.mxu0 0.0
        %4238 = vmatpush1.msra.mxu0 0.0
        %4239 = vmatprep.subr.mxu0 0.0
        %4240 = vmatpush1.msra.mxu0 0.0
        %4241 = vmatprep.subr.mxu0 0.0
        %4242 = vmatpush1.msra.mxu0 0.0
        %4243 = vmatprep.subr.mxu0 0.0
        %4244 = vmatpush1.msra.mxu0 0.0
        %4245 = vmatprep.subr.mxu0 0.0
        %4246 = vmatpush1.msra.mxu0 0.0
        %4247 = vmatprep.subr.mxu0 0.0
        %4248 = vmatpush1.msra.mxu0 0.0
        %4249 = vmatprep.subr.mxu0 0.0
        %4250 = vmatpush1.msra.mxu0 0.0
        %4251 = vmatprep.subr.mxu0 0.0
        %4252 = vmatpush1.msra.mxu0 0.0
        %4253 = vmatprep.mubr.f32.mxu0 0.0
        %4254 = vmatmul.mubr.f32.gmra.mrb[0].mxu0 %v4187
        %v4255 = vpop.f32.mrb[0].mxu0
        %v4256 = vadd.f32 %v4184, %v4255
        %v4257 = vpop.f32.mrb[0].mxu0
        %4258 = vdwg.mxu0
        %v4259 = vadd.f32 %v3410, %v4256
        %v4260 = vld [vmem:[%s59] sm:$0x1]
        %v4261 = vld [vmem:[%s61] sm:$0x1]
        %v4262 = vsel %vm1207, %v4259, 0.0
        %4263 = vadd.xlane.f32.xlu0 %v4262
        %v4264 = vpop.xlane.xlu0 %4263
        %v4265 = vmul.f32 %v4264, %v2052
        %v4266 = vsub.f32 %v4259, %v4265
        %v4267 = vmul.f32 %v4266, %v4266
        %v4268 = vsel %vm1207, %v4267, 0.0
        %4269 = vadd.xlane.f32.xlu0 %v4268
        %v4270 = vpop.xlane.xlu0 %4269
        %v4271 = vmul.f32 %v4270, %v2052
        %v4272 = vadd.f32 %v4271, 1e-05
        %v4273 = vrsqrt.pop %v4272
        %v4274 = vmul.f32 %v4266, %v4273
        %v4276 = vlaneseq
        %v4277 = vshrl.u32 %v4276, 7
        %v4278 = vsub.s32 0, %v4277
        %v4279 = vrot.slane %v4260, %v4278
        %v4281 = vmul.f32 %v4274, %v4279
        %v4283 = vlaneseq
        %v4284 = vshrl.u32 %v4283, 7
        %v4285 = vsub.s32 0, %v4284
        %v4286 = vrot.slane %v4261, %v4285
        %v4288 = vadd.f32 %v4281, %v4286
        %v4289 = vld [vmem:[%s39] sm:$0xff]
        %v4290 = vld [vmem:[%s39 + $0x8] sm:$0xff]
        %v4291 = vld [vmem:[%s39 + $0x10] sm:$0xff]
        %v4292 = vld [vmem:[%s39 + $0x18] sm:$0xff]
        %v4293 = vld [vmem:[%s41] sm:$0x1]
        %v4295 = vlaneseq
        %v4296 = vshrl.u32 %v4295, 7
        %v4297 = vsub.s32 0, %v4296
        %v4298 = vrot.slane %v4293, %v4297
        %v4301 = vsel %vm1207, %v4288, 0
        %4303 = vmatprep.subr.mxu0 0.0
        %4304 = vmatpush1.msra.mxu0 %v4289
        %4305 = vmatprep.subr.mxu0 0.0
        %4306 = vmatpush1.msra.mxu0 %v4290
        %4307 = vmatprep.subr.mxu0 0.0
        %4308 = vmatpush1.msra.mxu0 %v4291
        %4309 = vmatprep.subr.mxu0 0.0
        %4310 = vmatpush1.msra.mxu0 %v4292
        %4311 = vmatprep.subr.mxu0 0.0
        %4312 = vmatpush1.msra.mxu0 0.0
        %4313 = vmatprep.subr.mxu0 0.0
        %4314 = vmatpush1.msra.mxu0 0.0
        %4315 = vmatprep.subr.mxu0 0.0
        %4316 = vmatpush1.msra.mxu0 0.0
        %4317 = vmatprep.subr.mxu0 0.0
        %4318 = vmatpush1.msra.mxu0 0.0
        %4319 = vmatprep.subr.mxu0 0.0
        %4320 = vmatpush1.msra.mxu0 0.0
        %4321 = vmatprep.subr.mxu0 0.0
        %4322 = vmatpush1.msra.mxu0 0.0
        %4323 = vmatprep.subr.mxu0 0.0
        %4324 = vmatpush1.msra.mxu0 0.0
        %4325 = vmatprep.subr.mxu0 0.0
        %4326 = vmatpush1.msra.mxu0 0.0
        %4327 = vmatprep.subr.mxu0 0.0
        %4328 = vmatpush1.msra.mxu0 0.0
        %4329 = vmatprep.subr.mxu0 0.0
        %4330 = vmatpush1.msra.mxu0 0.0
        %4331 = vmatprep.subr.mxu0 0.0
        %4332 = vmatpush1.msra.mxu0 0.0
        %4333 = vmatprep.subr.mxu0 0.0
        %4334 = vmatpush1.msra.mxu0 0.0
        %4335 = vmatprep.subr.mxu0 0.0
        %4336 = vmatpush1.msra.mxu0 0.0
        %4337 = vmatprep.subr.mxu0 0.0
        %4338 = vmatpush1.msra.mxu0 0.0
        %4339 = vmatprep.subr.mxu0 0.0
        %4340 = vmatpush1.msra.mxu0 0.0
        %4341 = vmatprep.subr.mxu0 0.0
        %4342 = vmatpush1.msra.mxu0 0.0
        %4343 = vmatprep.subr.mxu0 0.0
        %4344 = vmatpush1.msra.mxu0 0.0
        %4345 = vmatprep.subr.mxu0 0.0
        %4346 = vmatpush1.msra.mxu0 0.0
        %4347 = vmatprep.subr.mxu0 0.0
        %4348 = vmatpush1.msra.mxu0 0.0
        %4349 = vmatprep.subr.mxu0 0.0
        %4350 = vmatpush1.msra.mxu0 0.0
        %4351 = vmatprep.subr.mxu0 0.0
        %4352 = vmatpush1.msra.mxu0 0.0
        %4353 = vmatprep.subr.mxu0 0.0
        %4354 = vmatpush1.msra.mxu0 0.0
        %4355 = vmatprep.subr.mxu0 0.0
        %4356 = vmatpush1.msra.mxu0 0.0
        %4357 = vmatprep.subr.mxu0 0.0
        %4358 = vmatpush1.msra.mxu0 0.0
        %4359 = vmatprep.subr.mxu0 0.0
        %4360 = vmatpush1.msra.mxu0 0.0
        %4361 = vmatprep.subr.mxu0 0.0
        %4362 = vmatpush1.msra.mxu0 0.0
        %4363 = vmatprep.subr.mxu0 0.0
        %4364 = vmatpush1.msra.mxu0 0.0
        %4365 = vmatprep.subr.mxu0 0.0
        %4366 = vmatpush1.msra.mxu0 0.0
        %4367 = vmatprep.mubr.f32.mxu0 0.0
        %4368 = vmatmul.mubr.f32.gmra.mrb[0].mxu0 %v4301
        %v4369 = vpop.f32.mrb[0].mxu0
        %v4370 = vadd.f32 %v4298, %v4369
        %v4371 = vpop.f32.mrb[0].mxu0
        %4372 = vdwg.mxu0
        %v4373 = vld [vmem:[%s43] sm:$0xff]
        %v4374 = vld [vmem:[%s43 + $0x8] sm:$0xff]
        %v4375 = vld [vmem:[%s43 + $0x10] sm:$0xff]
        %v4376 = vld [vmem:[%s43 + $0x18] sm:$0xff]
        %v4377 = vld [vmem:[%s45] sm:$0x1]
        %v4379 = vlaneseq
        %v4380 = vshrl.u32 %v4379, 7
        %v4381 = vsub.s32 0, %v4380
        %v4382 = vrot.slane %v4377, %v4381
        %v4385 = vsel %vm1207, %v3409, 0
        %4387 = vmatprep.subr.mxu0 0.0
        %4388 = vmatpush1.msra.mxu0 %v4373
        %4389 = vmatprep.subr.mxu0 0.0
        %4390 = vmatpush1.msra.mxu0 %v4374
        %4391 = vmatprep.subr.mxu0 0.0
        %4392 = vmatpush1.msra.mxu0 %v4375
        %4393 = vmatprep.subr.mxu0 0.0
        %4394 = vmatpush1.msra.mxu0 %v4376
        %4395 = vmatprep.subr.mxu0 0.0
        %4396 = vmatpush1.msra.mxu0 0.0
        %4397 = vmatprep.subr.mxu0 0.0
        %4398 = vmatpush1.msra.mxu0 0.0
        %4399 = vmatprep.subr.mxu0 0.0
        %4400 = vmatpush1.msra.mxu0 0.0
        %4401 = vmatprep.subr.mxu0 0.0
        %4402 = vmatpush1.msra.mxu0 0.0
        %4403 = vmatprep.subr.mxu0 0.0
        %4404 = vmatpush1.msra.mxu0 0.0
        %4405 = vmatprep.subr.mxu0 0.0
        %4406 = vmatpush1.msra.mxu0 0.0
        %4407 = vmatprep.subr.mxu0 0.0
        %4408 = vmatpush1.msra.mxu0 0.0
        %4409 = vmatprep.subr.mxu0 0.0
        %4410 = vmatpush1.msra.mxu0 0.0
        %4411 = vmatprep.subr.mxu0 0.0
        %4412 = vmatpush1.msra.mxu0 0.0
        %4413 = vmatprep.subr.mxu0 0.0
        %4414 = vmatpush1.msra.mxu0 0.0
        %4415 = vmatprep.subr.mxu0 0.0
        %4416 = vmatpush1.msra.mxu0 0.0
        %4417 = vmatprep.subr.mxu0 0.0
        %4418 = vmatpush1.msra.mxu0 0.0
        %4419 = vmatprep.subr.mxu0 0.0
        %4420 = vmatpush1.msra.mxu0 0.0
        %4421 = vmatprep.subr.mxu0 0.0
        %4422 = vmatpush1.msra.mxu0 0.0
        %4423 = vmatprep.subr.mxu0 0.0
        %4424 = vmatpush1.msra.mxu0 0.0
        %4425 = vmatprep.subr.mxu0 0.0
        %4426 = vmatpush1.msra.mxu0 0.0
        %4427 = vmatprep.subr.mxu0 0.0
        %4428 = vmatpush1.msra.mxu0 0.0
        %4429 = vmatprep.subr.mxu0 0.0
        %4430 = vmatpush1.msra.mxu0 0.0
        %4431 = vmatprep.subr.mxu0 0.0
        %4432 = vmatpush1.msra.mxu0 0.0
        %4433 = vmatprep.subr.mxu0 0.0
        %4434 = vmatpush1.msra.mxu0 0.0
        %4435 = vmatprep.subr.mxu0 0.0
        %4436 = vmatpush1.msra.mxu0 0.0
        %4437 = vmatprep.subr.mxu0 0.0
        %4438 = vmatpush1.msra.mxu0 0.0
        %4439 = vmatprep.subr.mxu0 0.0
        %4440 = vmatpush1.msra.mxu0 0.0
        %4441 = vmatprep.subr.mxu0 0.0
        %4442 = vmatpush1.msra.mxu0 0.0
        %4443 = vmatprep.subr.mxu0 0.0
        %4444 = vmatpush1.msra.mxu0 0.0
        %4445 = vmatprep.subr.mxu0 0.0
        %4446 = vmatpush1.msra.mxu0 0.0
        %4447 = vmatprep.subr.mxu0 0.0
        %4448 = vmatpush1.msra.mxu0 0.0
        %4449 = vmatprep.subr.mxu0 0.0
        %4450 = vmatpush1.msra.mxu0 0.0
        %4451 = vmatprep.mubr.f32.mxu0 0.0
        %4452 = vmatmul.mubr.f32.gmra.mrb[0].mxu0 %v4385
        %v4453 = vpop.f32.mrb[0].mxu0
        %v4454 = vadd.f32 %v4382, %v4453
        %v4455 = vpop.f32.mrb[0].mxu0
        %4456 = vdwg.mxu0
        %v4458 = vsel %vm1284, %v4370, 0
        %v4461 = vsel %vm1284, %v4454, 0
        %4463 = vmatprep.subr.mxu0 0.0
        %4464 = vmatpush1.xpose.msra.mxu0 %v4461
        %4465 = vmatprep.subr.mxu0 0.0
        %4466 = vmatpush1.xpose.msra.mxu0 0.0
        %4467 = vmatprep.subr.mxu0 0.0
        %4468 = vmatpush1.xpose.msra.mxu0 0.0
        %4469 = vmatprep.subr.mxu0 0.0
        %4470 = vmatpush1.xpose.msra.mxu0 0.0
        %4471 = vmatprep.subr.mxu0 0.0
        %4472 = vmatpush1.xpose.msra.mxu0 0.0
        %4473 = vmatprep.subr.mxu0 0.0
        %4474 = vmatpush1.xpose.msra.mxu0 0.0
        %4475 = vmatprep.subr.mxu0 0.0
        %4476 = vmatpush1.xpose.msra.mxu0 0.0
        %4477 = vmatprep.subr.mxu0 0.0
        %4478 = vmatpush1.xpose.msra.mxu0 0.0
        %4479 = vmatprep.subr.mxu0 0.0
        %4480 = vmatpush1.xpose.msra.mxu0 0.0
        %4481 = vmatprep.subr.mxu0 0.0
        %4482 = vmatpush1.xpose.msra.mxu0 0.0
        %4483 = vmatprep.subr.mxu0 0.0
        %4484 = vmatpush1.xpose.msra.mxu0 0.0
        %4485 = vmatprep.subr.mxu0 0.0
        %4486 = vmatpush1.xpose.msra.mxu0 0.0
        %4487 = vmatprep.subr.mxu0 0.0
        %4488 = vmatpush1.xpose.msra.mxu0 0.0
        %4489 = vmatprep.subr.mxu0 0.0
        %4490 = vmatpush1.xpose.msra.mxu0 0.0
        %4491 = vmatprep.subr.mxu0 0.0
        %4492 = vmatpush1.xpose.msra.mxu0 0.0
        %4493 = vmatprep.subr.mxu0 0.0
        %4494 = vmatpush1.xpose.msra.mxu0 0.0
        %4495 = vmatprep.subr.mxu0 0.0
        %4496 = vmatpush1.xpose.msra.mxu0 0.0
        %4497 = vmatprep.subr.mxu0 0.0
        %4498 = vmatpush1.xpose.msra.mxu0 0.0
        %4499 = vmatprep.subr.mxu0 0.0
        %4500 = vmatpush1.xpose.msra.mxu0 0.0
        %4501 = vmatprep.subr.mxu0 0.0
        %4502 = vmatpush1.xpose.msra.mxu0 0.0
        %4503 = vmatprep.subr.mxu0 0.0
        %4504 = vmatpush1.xpose.msra.mxu0 0.0
        %4505 = vmatprep.subr.mxu0 0.0
        %4506 = vmatpush1.xpose.msra.mxu0 0.0
        %4507 = vmatprep.subr.mxu0 0.0
        %4508 = vmatpush1.xpose.msra.mxu0 0.0
        %4509 = vmatprep.subr.mxu0 0.0
        %4510 = vmatpush1.xpose.msra.mxu0 0.0
        %4511 = vmatprep.subr.mxu0 0.0
        %4512 = vmatpush1.xpose.msra.mxu0 0.0
        %4513 = vmatprep.subr.mxu0 0.0
        %4514 = vmatpush1.xpose.msra.mxu0 0.0
        %4515 = vmatprep.subr.mxu0 0.0
        %4516 = vmatpush1.xpose.msra.mxu0 0.0
        %4517 = vmatprep.subr.mxu0 0.0
        %4518 = vmatpush1.xpose.msra.mxu0 0.0
        %4519 = vmatprep.subr.mxu0 0.0
        %4520 = vmatpush1.xpose.msra.mxu0 0.0
        %4521 = vmatprep.subr.mxu0 0.0
        %4522 = vmatpush1.xpose.msra.mxu0 0.0
        %4523 = vmatprep.subr.mxu0 0.0
        %4524 = vmatpush1.xpose.msra.mxu0 0.0
        %4525 = vmatprep.subr.mxu0 0.0
        %4526 = vmatpush1.xpose.msra.mxu0 0.0
        %4527 = vmatprep.mubr.f32.mxu0 0.0
        %4528 = vmatmul.mubr.f32.gmra.mrb[0].mxu0 %v4458
        %v4529 = vpop.f32.mrb[0].mxu0
        %v4530 = vadd.f32 0.0, %v4529
        %v4531 = vpop.f32.mrb[0].mxu0
        %4532 = vdwg.mxu0
        %v4533 = vmul.f32 %v4530, 0.35355338
        %v4534 = vsel %vm1284, %v4533, -inf
        %4535 = vmax.xlane.f32.xlu0 %v4534
        %v4536 = vpop.xlane.xlu0 %4535
        %v4537 = vsub.f32 %v4533, %v4536
        %v4538 = vmul.f32 %v4537, 1.442695
        %v4539 = vpow.pop %v4538
        %v4540 = vsel %vm1284, %v4539, 0.0
        %4541 = vadd.xlane.f32.xlu0 %v4540
        %v4542 = vpop.xlane.xlu0 %4541
        %v4543 = vrcp.pop %v4542
        %v4544 = vmul.f32 %v4539, %v4543
        %4545 = vrot.lane.b32.xlu0 %v4454, 96
        %v4546 = vpop.permute.xlu0 %4545
        %v4549 = vsel %vm1284, %v4544, 0
        %4551 = vmatprep.subr.mxu0 0.0
        %4552 = vmatpush1.msra.mxu0 %v4546
        %4553 = vmatprep.subr.mxu0 0.0
        %4554 = vmatpush1.msra.mxu0 0.0
        %4555 = vmatprep.subr.mxu0 0.0
        %4556 = vmatpush1.msra.mxu0 0.0
        %4557 = vmatprep.subr.mxu0 0.0
        %4558 = vmatpush1.msra.mxu0 0.0
        %4559 = vmatprep.subr.mxu0 0.0
        %4560 = vmatpush1.msra.mxu0 0.0
        %4561 = vmatprep.subr.mxu0 0.0
        %4562 = vmatpush1.msra.mxu0 0.0
        %4563 = vmatprep.subr.mxu0 0.0
        %4564 = vmatpush1.msra.mxu0 0.0
        %4565 = vmatprep.subr.mxu0 0.0
        %4566 = vmatpush1.msra.mxu0 0.0
        %4567 = vmatprep.subr.mxu0 0.0
        %4568 = vmatpush1.msra.mxu0 0.0
        %4569 = vmatprep.subr.mxu0 0.0
        %4570 = vmatpush1.msra.mxu0 0.0
        %4571 = vmatprep.subr.mxu0 0.0
        %4572 = vmatpush1.msra.mxu0 0.0
        %4573 = vmatprep.subr.mxu0 0.0
        %4574 = vmatpush1.msra.mxu0 0.0
        %4575 = vmatprep.subr.mxu0 0.0
        %4576 = vmatpush1.msra.mxu0 0.0
        %4577 = vmatprep.subr.mxu0 0.0
        %4578 = vmatpush1.msra.mxu0 0.0
        %4579 = vmatprep.subr.mxu0 0.0
        %4580 = vmatpush1.msra.mxu0 0.0
        %4581 = vmatprep.subr.mxu0 0.0
        %4582 = vmatpush1.msra.mxu0 0.0
        %4583 = vmatprep.subr.mxu0 0.0
        %4584 = vmatpush1.msra.mxu0 0.0
        %4585 = vmatprep.subr.mxu0 0.0
        %4586 = vmatpush1.msra.mxu0 0.0
        %4587 = vmatprep.subr.mxu0 0.0
        %4588 = vmatpush1.msra.mxu0 0.0
        %4589 = vmatprep.subr.mxu0 0.0
        %4590 = vmatpush1.msra.mxu0 0.0
        %4591 = vmatprep.subr.mxu0 0.0
        %4592 = vmatpush1.msra.mxu0 0.0
        %4593 = vmatprep.subr.mxu0 0.0
        %4594 = vmatpush1.msra.mxu0 0.0
        %4595 = vmatprep.subr.mxu0 0.0
        %4596 = vmatpush1.msra.mxu0 0.0
        %4597 = vmatprep.subr.mxu0 0.0
        %4598 = vmatpush1.msra.mxu0 0.0
        %4599 = vmatprep.subr.mxu0 0.0
        %4600 = vmatpush1.msra.mxu0 0.0
        %4601 = vmatprep.subr.mxu0 0.0
        %4602 = vmatpush1.msra.mxu0 0.0
        %4603 = vmatprep.subr.mxu0 0.0
        %4604 = vmatpush1.msra.mxu0 0.0
        %4605 = vmatprep.subr.mxu0 0.0
        %4606 = vmatpush1.msra.mxu0 0.0
        %4607 = vmatprep.subr.mxu0 0.0
        %4608 = vmatpush1.msra.mxu0 0.0
        %4609 = vmatprep.subr.mxu0 0.0
        %4610 = vmatpush1.msra.mxu0 0.0
        %4611 = vmatprep.subr.mxu0 0.0
        %4612 = vmatpush1.msra.mxu0 0.0
        %4613 = vmatprep.subr.mxu0 0.0
        %4614 = vmatpush1.msra.mxu0 0.0
        %4615 = vmatprep.mubr.f32.mxu0 0.0
        %4616 = vmatmul.mubr.f32.gmra.mrb[0].mxu0 %v4549
        %v4617 = vpop.f32.mrb[0].mxu0
        %v4618 = vadd.f32 0.0, %v4617
        %v4619 = vpop.f32.mrb[0].mxu0
        %4620 = vdwg.mxu0
        %4621 = vrot.lane.b32.xlu0 %v4370, 120
        %v4622 = vpop.permute.xlu0 %4621
        %4623 = vrot.lane.b32.xlu0 %v4454, 120
        %v4624 = vpop.permute.xlu0 %4623
        %v4625 = vsel %vm1284, %v4622, 0
        %v4627 = vsel %vm1284, %v4624, 0
        %4629 = vmatprep.subr.mxu0 0.0
        %4630 = vmatpush1.xpose.msra.mxu0 %v4627
        %4631 = vmatprep.subr.mxu0 0.0
        %4632 = vmatpush1.xpose.msra.mxu0 0.0
        %4633 = vmatprep.subr.mxu0 0.0
        %4634 = vmatpush1.xpose.msra.mxu0 0.0
        %4635 = vmatprep.subr.mxu0 0.0
        %4636 = vmatpush1.xpose.msra.mxu0 0.0
        %4637 = vmatprep.subr.mxu0 0.0
        %4638 = vmatpush1.xpose.msra.mxu0 0.0
        %4639 = vmatprep.subr.mxu0 0.0
        %4640 = vmatpush1.xpose.msra.mxu0 0.0
        %4641 = vmatprep.subr.mxu0 0.0
        %4642 = vmatpush1.xpose.msra.mxu0 0.0
        %4643 = vmatprep.subr.mxu0 0.0
        %4644 = vmatpush1.xpose.msra.mxu0 0.0
        %4645 = vmatprep.subr.mxu0 0.0
        %4646 = vmatpush1.xpose.msra.mxu0 0.0
        %4647 = vmatprep.subr.mxu0 0.0
        %4648 = vmatpush1.xpose.msra.mxu0 0.0
        %4649 = vmatprep.subr.mxu0 0.0
        %4650 = vmatpush1.xpose.msra.mxu0 0.0
        %4651 = vmatprep.subr.mxu0 0.0
        %4652 = vmatpush1.xpose.msra.mxu0 0.0
        %4653 = vmatprep.subr.mxu0 0.0
        %4654 = vmatpush1.xpose.msra.mxu0 0.0
        %4655 = vmatprep.subr.mxu0 0.0
        %4656 = vmatpush1.xpose.msra.mxu0 0.0
        %4657 = vmatprep.subr.mxu0 0.0
        %4658 = vmatpush1.xpose.msra.mxu0 0.0
        %4659 = vmatprep.subr.mxu0 0.0
        %4660 = vmatpush1.xpose.msra.mxu0 0.0
        %4661 = vmatprep.subr.mxu0 0.0
        %4662 = vmatpush1.xpose.msra.mxu0 0.0
        %4663 = vmatprep.subr.mxu0 0.0
        %4664 = vmatpush1.xpose.msra.mxu0 0.0
        %4665 = vmatprep.subr.mxu0 0.0
        %4666 = vmatpush1.xpose.msra.mxu0 0.0
        %4667 = vmatprep.subr.mxu0 0.0
        %4668 = vmatpush1.xpose.msra.mxu0 0.0
        %4669 = vmatprep.subr.mxu0 0.0
        %4670 = vmatpush1.xpose.msra.mxu0 0.0
        %4671 = vmatprep.subr.mxu0 0.0
        %4672 = vmatpush1.xpose.msra.mxu0 0.0
        %4673 = vmatprep.subr.mxu0 0.0
        %4674 = vmatpush1.xpose.msra.mxu0 0.0
        %4675 = vmatprep.subr.mxu0 0.0
        %4676 = vmatpush1.xpose.msra.mxu0 0.0
        %4677 = vmatprep.subr.mxu0 0.0
        %4678 = vmatpush1.xpose.msra.mxu0 0.0
        %4679 = vmatprep.subr.mxu0 0.0
        %4680 = vmatpush1.xpose.msra.mxu0 0.0
        %4681 = vmatprep.subr.mxu0 0.0
        %4682 = vmatpush1.xpose.msra.mxu0 0.0
        %4683 = vmatprep.subr.mxu0 0.0
        %4684 = vmatpush1.xpose.msra.mxu0 0.0
        %4685 = vmatprep.subr.mxu0 0.0
        %4686 = vmatpush1.xpose.msra.mxu0 0.0
        %4687 = vmatprep.subr.mxu0 0.0
        %4688 = vmatpush1.xpose.msra.mxu0 0.0
        %4689 = vmatprep.subr.mxu0 0.0
        %4690 = vmatpush1.xpose.msra.mxu0 0.0
        %4691 = vmatprep.subr.mxu0 0.0
        %4692 = vmatpush1.xpose.msra.mxu0 0.0
        %4693 = vmatprep.mubr.f32.mxu0 0.0
        %4694 = vmatmul.mubr.f32.gmra.mrb[0].mxu0 %v4625
        %v4695 = vpop.f32.mrb[0].mxu0
        %v4696 = vadd.f32 0.0, %v4695
        %v4697 = vpop.f32.mrb[0].mxu0
        %4698 = vdwg.mxu0
        %v4699 = vmul.f32 %v4696, 0.35355338
        %v4700 = vsel %vm1284, %v4699, -inf
        %4701 = vmax.xlane.f32.xlu0 %v4700
        %v4702 = vpop.xlane.xlu0 %4701
        %v4703 = vsub.f32 %v4699, %v4702
        %v4704 = vmul.f32 %v4703, 1.442695
        %v4705 = vpow.pop %v4704
        %v4706 = vsel %vm1284, %v4705, 0.0
        %4707 = vadd.xlane.f32.xlu0 %v4706
        %v4708 = vpop.xlane.xlu0 %4707
        %v4709 = vrcp.pop %v4708
        %v4710 = vmul.f32 %v4705, %v4709
        %4711 = vrot.lane.b32.xlu0 %v4454, 88
        %v4712 = vpop.permute.xlu0 %4711
        %v4715 = vsel %vm1284, %v4710, 0
        %4717 = vmatprep.subr.mxu0 0.0
        %4718 = vmatpush1.msra.mxu0 %v4712
        %4719 = vmatprep.subr.mxu0 0.0
        %4720 = vmatpush1.msra.mxu0 0.0
        %4721 = vmatprep.subr.mxu0 0.0
        %4722 = vmatpush1.msra.mxu0 0.0
        %4723 = vmatprep.subr.mxu0 0.0
        %4724 = vmatpush1.msra.mxu0 0.0
        %4725 = vmatprep.subr.mxu0 0.0
        %4726 = vmatpush1.msra.mxu0 0.0
        %4727 = vmatprep.subr.mxu0 0.0
        %4728 = vmatpush1.msra.mxu0 0.0
        %4729 = vmatprep.subr.mxu0 0.0
        %4730 = vmatpush1.msra.mxu0 0.0
        %4731 = vmatprep.subr.mxu0 0.0
        %4732 = vmatpush1.msra.mxu0 0.0
        %4733 = vmatprep.subr.mxu0 0.0
        %4734 = vmatpush1.msra.mxu0 0.0
        %4735 = vmatprep.subr.mxu0 0.0
        %4736 = vmatpush1.msra.mxu0 0.0
        %4737 = vmatprep.subr.mxu0 0.0
        %4738 = vmatpush1.msra.mxu0 0.0
        %4739 = vmatprep.subr.mxu0 0.0
        %4740 = vmatpush1.msra.mxu0 0.0
        %4741 = vmatprep.subr.mxu0 0.0
        %4742 = vmatpush1.msra.mxu0 0.0
        %4743 = vmatprep.subr.mxu0 0.0
        %4744 = vmatpush1.msra.mxu0 0.0
        %4745 = vmatprep.subr.mxu0 0.0
        %4746 = vmatpush1.msra.mxu0 0.0
        %4747 = vmatprep.subr.mxu0 0.0
        %4748 = vmatpush1.msra.mxu0 0.0
        %4749 = vmatprep.subr.mxu0 0.0
        %4750 = vmatpush1.msra.mxu0 0.0
        %4751 = vmatprep.subr.mxu0 0.0
        %4752 = vmatpush1.msra.mxu0 0.0
        %4753 = vmatprep.subr.mxu0 0.0
        %4754 = vmatpush1.msra.mxu0 0.0
        %4755 = vmatprep.subr.mxu0 0.0
        %4756 = vmatpush1.msra.mxu0 0.0
        %4757 = vmatprep.subr.mxu0 0.0
        %4758 = vmatpush1.msra.mxu0 0.0
        %4759 = vmatprep.subr.mxu0 0.0
        %4760 = vmatpush1.msra.mxu0 0.0
        %4761 = vmatprep.subr.mxu0 0.0
        %4762 = vmatpush1.msra.mxu0 0.0
        %4763 = vmatprep.subr.mxu0 0.0
        %4764 = vmatpush1.msra.mxu0 0.0
        %4765 = vmatprep.subr.mxu0 0.0
        %4766 = vmatpush1.msra.mxu0 0.0
        %4767 = vmatprep.subr.mxu0 0.0
        %4768 = vmatpush1.msra.mxu0 0.0
        %4769 = vmatprep.subr.mxu0 0.0
        %4770 = vmatpush1.msra.mxu0 0.0
        %4771 = vmatprep.subr.mxu0 0.0
        %4772 = vmatpush1.msra.mxu0 0.0
        %4773 = vmatprep.subr.mxu0 0.0
        %4774 = vmatpush1.msra.mxu0 0.0
        %4775 = vmatprep.subr.mxu0 0.0
        %4776 = vmatpush1.msra.mxu0 0.0
        %4777 = vmatprep.subr.mxu0 0.0
        %4778 = vmatpush1.msra.mxu0 0.0
        %4779 = vmatprep.subr.mxu0 0.0
        %4780 = vmatpush1.msra.mxu0 0.0
        %4781 = vmatprep.mubr.f32.mxu0 0.0
        %4782 = vmatmul.mubr.f32.gmra.mrb[0].mxu0 %v4715
        %v4783 = vpop.f32.mrb[0].mxu0
        %v4784 = vadd.f32 0.0, %v4783
        %v4785 = vpop.f32.mrb[0].mxu0
        %4786 = vdwg.mxu0
        %4787 = vrot.lane.b32.xlu0 %v4370, 112
        %v4788 = vpop.permute.xlu0 %4787
        %4789 = vrot.lane.b32.xlu0 %v4454, 112
        %v4790 = vpop.permute.xlu0 %4789
        %v4791 = vsel %vm1284, %v4788, 0
        %v4793 = vsel %vm1284, %v4790, 0
        %4795 = vmatprep.subr.mxu0 0.0
        %4796 = vmatpush1.xpose.msra.mxu0 %v4793
        %4797 = vmatprep.subr.mxu0 0.0
        %4798 = vmatpush1.xpose.msra.mxu0 0.0
        %4799 = vmatprep.subr.mxu0 0.0
        %4800 = vmatpush1.xpose.msra.mxu0 0.0
        %4801 = vmatprep.subr.mxu0 0.0
        %4802 = vmatpush1.xpose.msra.mxu0 0.0
        %4803 = vmatprep.subr.mxu0 0.0
        %4804 = vmatpush1.xpose.msra.mxu0 0.0
        %4805 = vmatprep.subr.mxu0 0.0
        %4806 = vmatpush1.xpose.msra.mxu0 0.0
        %4807 = vmatprep.subr.mxu0 0.0
        %4808 = vmatpush1.xpose.msra.mxu0 0.0
        %4809 = vmatprep.subr.mxu0 0.0
        %4810 = vmatpush1.xpose.msra.mxu0 0.0
        %4811 = vmatprep.subr.mxu0 0.0
        %4812 = vmatpush1.xpose.msra.mxu0 0.0
        %4813 = vmatprep.subr.mxu0 0.0
        %4814 = vmatpush1.xpose.msra.mxu0 0.0
        %4815 = vmatprep.subr.mxu0 0.0
        %4816 = vmatpush1.xpose.msra.mxu0 0.0
        %4817 = vmatprep.subr.mxu0 0.0
        %4818 = vmatpush1.xpose.msra.mxu0 0.0
        %4819 = vmatprep.subr.mxu0 0.0
        %4820 = vmatpush1.xpose.msra.mxu0 0.0
        %4821 = vmatprep.subr.mxu0 0.0
        %4822 = vmatpush1.xpose.msra.mxu0 0.0
        %4823 = vmatprep.subr.mxu0 0.0
        %4824 = vmatpush1.xpose.msra.mxu0 0.0
        %4825 = vmatprep.subr.mxu0 0.0
        %4826 = vmatpush1.xpose.msra.mxu0 0.0
        %4827 = vmatprep.subr.mxu0 0.0
        %4828 = vmatpush1.xpose.msra.mxu0 0.0
        %4829 = vmatprep.subr.mxu0 0.0
        %4830 = vmatpush1.xpose.msra.mxu0 0.0
        %4831 = vmatprep.subr.mxu0 0.0
        %4832 = vmatpush1.xpose.msra.mxu0 0.0
        %4833 = vmatprep.subr.mxu0 0.0
        %4834 = vmatpush1.xpose.msra.mxu0 0.0
        %4835 = vmatprep.subr.mxu0 0.0
        %4836 = vmatpush1.xpose.msra.mxu0 0.0
        %4837 = vmatprep.subr.mxu0 0.0
        %4838 = vmatpush1.xpose.msra.mxu0 0.0
        %4839 = vmatprep.subr.mxu0 0.0
        %4840 = vmatpush1.xpose.msra.mxu0 0.0
        %4841 = vmatprep.subr.mxu0 0.0
        %4842 = vmatpush1.xpose.msra.mxu0 0.0
        %4843 = vmatprep.subr.mxu0 0.0
        %4844 = vmatpush1.xpose.msra.mxu0 0.0
        %4845 = vmatprep.subr.mxu0 0.0
        %4846 = vmatpush1.xpose.msra.mxu0 0.0
        %4847 = vmatprep.subr.mxu0 0.0
        %4848 = vmatpush1.xpose.msra.mxu0 0.0
        %4849 = vmatprep.subr.mxu0 0.0
        %4850 = vmatpush1.xpose.msra.mxu0 0.0
        %4851 = vmatprep.subr.mxu0 0.0
        %4852 = vmatpush1.xpose.msra.mxu0 0.0
        %4853 = vmatprep.subr.mxu0 0.0
        %4854 = vmatpush1.xpose.msra.mxu0 0.0
        %4855 = vmatprep.subr.mxu0 0.0
        %4856 = vmatpush1.xpose.msra.mxu0 0.0
        %4857 = vmatprep.subr.mxu0 0.0
        %4858 = vmatpush1.xpose.msra.mxu0 0.0
        %4859 = vmatprep.mubr.f32.mxu0 0.0
        %4860 = vmatmul.mubr.f32.gmra.mrb[0].mxu0 %v4791
        %v4861 = vpop.f32.mrb[0].mxu0
        %v4862 = vadd.f32 0.0, %v4861
        %v4863 = vpop.f32.mrb[0].mxu0
        %4864 = vdwg.mxu0
        %v4865 = vmul.f32 %v4862, 0.35355338
        %v4866 = vsel %vm1284, %v4865, -inf
        %4867 = vmax.xlane.f32.xlu0 %v4866
        %v4868 = vpop.xlane.xlu0 %4867
        %v4869 = vsub.f32 %v4865, %v4868
        %v4870 = vmul.f32 %v4869, 1.442695
        %v4871 = vpow.pop %v4870
        %v4872 = vsel %vm1284, %v4871, 0.0
        %4873 = vadd.xlane.f32.xlu0 %v4872
        %v4874 = vpop.xlane.xlu0 %4873
        %v4875 = vrcp.pop %v4874
        %v4876 = vmul.f32 %v4871, %v4875
        %4877 = vrot.lane.b32.xlu0 %v4454, 80
        %v4878 = vpop.permute.xlu0 %4877
        %v4881 = vsel %vm1284, %v4876, 0
        %4883 = vmatprep.subr.mxu0 0.0
        %4884 = vmatpush1.msra.mxu0 %v4878
        %4885 = vmatprep.subr.mxu0 0.0
        %4886 = vmatpush1.msra.mxu0 0.0
        %4887 = vmatprep.subr.mxu0 0.0
        %4888 = vmatpush1.msra.mxu0 0.0
        %4889 = vmatprep.subr.mxu0 0.0
        %4890 = vmatpush1.msra.mxu0 0.0
        %4891 = vmatprep.subr.mxu0 0.0
        %4892 = vmatpush1.msra.mxu0 0.0
        %4893 = vmatprep.subr.mxu0 0.0
        %4894 = vmatpush1.msra.mxu0 0.0
        %4895 = vmatprep.subr.mxu0 0.0
        %4896 = vmatpush1.msra.mxu0 0.0
        %4897 = vmatprep.subr.mxu0 0.0
        %4898 = vmatpush1.msra.mxu0 0.0
        %4899 = vmatprep.subr.mxu0 0.0
        %4900 = vmatpush1.msra.mxu0 0.0
        %4901 = vmatprep.subr.mxu0 0.0
        %4902 = vmatpush1.msra.mxu0 0.0
        %4903 = vmatprep.subr.mxu0 0.0
        %4904 = vmatpush1.msra.mxu0 0.0
        %4905 = vmatprep.subr.mxu0 0.0
        %4906 = vmatpush1.msra.mxu0 0.0
        %4907 = vmatprep.subr.mxu0 0.0
        %4908 = vmatpush1.msra.mxu0 0.0
        %4909 = vmatprep.subr.mxu0 0.0
        %4910 = vmatpush1.msra.mxu0 0.0
        %4911 = vmatprep.subr.mxu0 0.0
        %4912 = vmatpush1.msra.mxu0 0.0
        %4913 = vmatprep.subr.mxu0 0.0
        %4914 = vmatpush1.msra.mxu0 0.0
        %4915 = vmatprep.subr.mxu0 0.0
        %4916 = vmatpush1.msra.mxu0 0.0
        %4917 = vmatprep.subr.mxu0 0.0
        %4918 = vmatpush1.msra.mxu0 0.0
        %4919 = vmatprep.subr.mxu0 0.0
        %4920 = vmatpush1.msra.mxu0 0.0
        %4921 = vmatprep.subr.mxu0 0.0
        %4922 = vmatpush1.msra.mxu0 0.0
        %4923 = vmatprep.subr.mxu0 0.0
        %4924 = vmatpush1.msra.mxu0 0.0
        %4925 = vmatprep.subr.mxu0 0.0
        %4926 = vmatpush1.msra.mxu0 0.0
        %4927 = vmatprep.subr.mxu0 0.0
        %4928 = vmatpush1.msra.mxu0 0.0
        %4929 = vmatprep.subr.mxu0 0.0
        %4930 = vmatpush1.msra.mxu0 0.0
        %4931 = vmatprep.subr.mxu0 0.0
        %4932 = vmatpush1.msra.mxu0 0.0
        %4933 = vmatprep.subr.mxu0 0.0
        %4934 = vmatpush1.msra.mxu0 0.0
        %4935 = vmatprep.subr.mxu0 0.0
        %4936 = vmatpush1.msra.mxu0 0.0
        %4937 = vmatprep.subr.mxu0 0.0
        %4938 = vmatpush1.msra.mxu0 0.0
        %4939 = vmatprep.subr.mxu0 0.0
        %4940 = vmatpush1.msra.mxu0 0.0
        %4941 = vmatprep.subr.mxu0 0.0
        %4942 = vmatpush1.msra.mxu0 0.0
        %4943 = vmatprep.subr.mxu0 0.0
        %4944 = vmatpush1.msra.mxu0 0.0
        %4945 = vmatprep.subr.mxu0 0.0
        %4946 = vmatpush1.msra.mxu0 0.0
        %4947 = vmatprep.mubr.f32.mxu0 0.0
        %4948 = vmatmul.mubr.f32.gmra.mrb[0].mxu0 %v4881
        %v4949 = vpop.f32.mrb[0].mxu0
        %v4950 = vadd.f32 0.0, %v4949
        %v4951 = vpop.f32.mrb[0].mxu0
        %4952 = vdwg.mxu0
        %4953 = vrot.lane.b32.xlu0 %v4370, 104
        %v4954 = vpop.permute.xlu0 %4953
        %4955 = vrot.lane.b32.xlu0 %v4454, 104
        %v4956 = vpop.permute.xlu0 %4955
        %v4957 = vsel %vm1284, %v4954, 0
        %v4959 = vsel %vm1284, %v4956, 0
        %4961 = vmatprep.subr.mxu0 0.0
        %4962 = vmatpush1.xpose.msra.mxu0 %v4959
        %4963 = vmatprep.subr.mxu0 0.0
        %4964 = vmatpush1.xpose.msra.mxu0 0.0
        %4965 = vmatprep.subr.mxu0 0.0
        %4966 = vmatpush1.xpose.msra.mxu0 0.0
        %4967 = vmatprep.subr.mxu0 0.0
        %4968 = vmatpush1.xpose.msra.mxu0 0.0
        %4969 = vmatprep.subr.mxu0 0.0
        %4970 = vmatpush1.xpose.msra.mxu0 0.0
        %4971 = vmatprep.subr.mxu0 0.0
        %4972 = vmatpush1.xpose.msra.mxu0 0.0
        %4973 = vmatprep.subr.mxu0 0.0
        %4974 = vmatpush1.xpose.msra.mxu0 0.0
        %4975 = vmatprep.subr.mxu0 0.0
        %4976 = vmatpush1.xpose.msra.mxu0 0.0
        %4977 = vmatprep.subr.mxu0 0.0
        %4978 = vmatpush1.xpose.msra.mxu0 0.0
        %4979 = vmatprep.subr.mxu0 0.0
        %4980 = vmatpush1.xpose.msra.mxu0 0.0
        %4981 = vmatprep.subr.mxu0 0.0
        %4982 = vmatpush1.xpose.msra.mxu0 0.0
        %4983 = vmatprep.subr.mxu0 0.0
        %4984 = vmatpush1.xpose.msra.mxu0 0.0
        %4985 = vmatprep.subr.mxu0 0.0
        %4986 = vmatpush1.xpose.msra.mxu0 0.0
        %4987 = vmatprep.subr.mxu0 0.0
        %4988 = vmatpush1.xpose.msra.mxu0 0.0
        %4989 = vmatprep.subr.mxu0 0.0
        %4990 = vmatpush1.xpose.msra.mxu0 0.0
        %4991 = vmatprep.subr.mxu0 0.0
        %4992 = vmatpush1.xpose.msra.mxu0 0.0
        %4993 = vmatprep.subr.mxu0 0.0
        %4994 = vmatpush1.xpose.msra.mxu0 0.0
        %4995 = vmatprep.subr.mxu0 0.0
        %4996 = vmatpush1.xpose.msra.mxu0 0.0
        %4997 = vmatprep.subr.mxu0 0.0
        %4998 = vmatpush1.xpose.msra.mxu0 0.0
        %4999 = vmatprep.subr.mxu0 0.0
        %5000 = vmatpush1.xpose.msra.mxu0 0.0
        %5001 = vmatprep.subr.mxu0 0.0
        %5002 = vmatpush1.xpose.msra.mxu0 0.0
        %5003 = vmatprep.subr.mxu0 0.0
        %5004 = vmatpush1.xpose.msra.mxu0 0.0
        %5005 = vmatprep.subr.mxu0 0.0
        %5006 = vmatpush1.xpose.msra.mxu0 0.0
        %5007 = vmatprep.subr.mxu0 0.0
        %5008 = vmatpush1.xpose.msra.mxu0 0.0
        %5009 = vmatprep.subr.mxu0 0.0
        %5010 = vmatpush1.xpose.msra.mxu0 0.0
        %5011 = vmatprep.subr.mxu0 0.0
        %5012 = vmatpush1.xpose.msra.mxu0 0.0
        %5013 = vmatprep.subr.mxu0 0.0
        %5014 = vmatpush1.xpose.msra.mxu0 0.0
        %5015 = vmatprep.subr.mxu0 0.0
        %5016 = vmatpush1.xpose.msra.mxu0 0.0
        %5017 = vmatprep.subr.mxu0 0.0
        %5018 = vmatpush1.xpose.msra.mxu0 0.0
        %5019 = vmatprep.subr.mxu0 0.0
        %5020 = vmatpush1.xpose.msra.mxu0 0.0
        %5021 = vmatprep.subr.mxu0 0.0
        %5022 = vmatpush1.xpose.msra.mxu0 0.0
        %5023 = vmatprep.subr.mxu0 0.0
        %5024 = vmatpush1.xpose.msra.mxu0 0.0
        %5025 = vmatprep.mubr.f32.mxu0 0.0
        %5026 = vmatmul.mubr.f32.gmra.mrb[0].mxu0 %v4957
        %v5027 = vpop.f32.mrb[0].mxu0
        %v5028 = vadd.f32 0.0, %v5027
        %v5029 = vpop.f32.mrb[0].mxu0
        %5030 = vdwg.mxu0
        %v5031 = vmul.f32 %v5028, 0.35355338
        %v5032 = vsel %vm1284, %v5031, -inf
        %5033 = vmax.xlane.f32.xlu0 %v5032
        %v5034 = vpop.xlane.xlu0 %5033
        %v5035 = vsub.f32 %v5031, %v5034
        %v5036 = vmul.f32 %v5035, 1.442695
        %v5037 = vpow.pop %v5036
        %v5038 = vsel %vm1284, %v5037, 0.0
        %5039 = vadd.xlane.f32.xlu0 %v5038
        %v5040 = vpop.xlane.xlu0 %5039
        %v5041 = vrcp.pop %v5040
        %v5042 = vmul.f32 %v5037, %v5041
        %5043 = vrot.lane.b32.xlu0 %v4454, 72
        %v5044 = vpop.permute.xlu0 %5043
        %v5047 = vsel %vm1284, %v5042, 0
        %5049 = vmatprep.subr.mxu0 0.0
        %5050 = vmatpush1.msra.mxu0 %v5044
        %5051 = vmatprep.subr.mxu0 0.0
        %5052 = vmatpush1.msra.mxu0 0.0
        %5053 = vmatprep.subr.mxu0 0.0
        %5054 = vmatpush1.msra.mxu0 0.0
        %5055 = vmatprep.subr.mxu0 0.0
        %5056 = vmatpush1.msra.mxu0 0.0
        %5057 = vmatprep.subr.mxu0 0.0
        %5058 = vmatpush1.msra.mxu0 0.0
        %5059 = vmatprep.subr.mxu0 0.0
        %5060 = vmatpush1.msra.mxu0 0.0
        %5061 = vmatprep.subr.mxu0 0.0
        %5062 = vmatpush1.msra.mxu0 0.0
        %5063 = vmatprep.subr.mxu0 0.0
        %5064 = vmatpush1.msra.mxu0 0.0
        %5065 = vmatprep.subr.mxu0 0.0
        %5066 = vmatpush1.msra.mxu0 0.0
        %5067 = vmatprep.subr.mxu0 0.0
        %5068 = vmatpush1.msra.mxu0 0.0
        %5069 = vmatprep.subr.mxu0 0.0
        %5070 = vmatpush1.msra.mxu0 0.0
        %5071 = vmatprep.subr.mxu0 0.0
        %5072 = vmatpush1.msra.mxu0 0.0
        %5073 = vmatprep.subr.mxu0 0.0
        %5074 = vmatpush1.msra.mxu0 0.0
        %5075 = vmatprep.subr.mxu0 0.0
        %5076 = vmatpush1.msra.mxu0 0.0
        %5077 = vmatprep.subr.mxu0 0.0
        %5078 = vmatpush1.msra.mxu0 0.0
        %5079 = vmatprep.subr.mxu0 0.0
        %5080 = vmatpush1.msra.mxu0 0.0
        %5081 = vmatprep.subr.mxu0 0.0
        %5082 = vmatpush1.msra.mxu0 0.0
        %5083 = vmatprep.subr.mxu0 0.0
        %5084 = vmatpush1.msra.mxu0 0.0
        %5085 = vmatprep.subr.mxu0 0.0
        %5086 = vmatpush1.msra.mxu0 0.0
        %5087 = vmatprep.subr.mxu0 0.0
        %5088 = vmatpush1.msra.mxu0 0.0
        %5089 = vmatprep.subr.mxu0 0.0
        %5090 = vmatpush1.msra.mxu0 0.0
        %5091 = vmatprep.subr.mxu0 0.0
        %5092 = vmatpush1.msra.mxu0 0.0
        %5093 = vmatprep.subr.mxu0 0.0
        %5094 = vmatpush1.msra.mxu0 0.0
        %5095 = vmatprep.subr.mxu0 0.0
        %5096 = vmatpush1.msra.mxu0 0.0
        %5097 = vmatprep.subr.mxu0 0.0
        %5098 = vmatpush1.msra.mxu0 0.0
        %5099 = vmatprep.subr.mxu0 0.0
        %5100 = vmatpush1.msra.mxu0 0.0
        %5101 = vmatprep.subr.mxu0 0.0
        %5102 = vmatpush1.msra.mxu0 0.0
        %5103 = vmatprep.subr.mxu0 0.0
        %5104 = vmatpush1.msra.mxu0 0.0
        %5105 = vmatprep.subr.mxu0 0.0
        %5106 = vmatpush1.msra.mxu0 0.0
        %5107 = vmatprep.subr.mxu0 0.0
        %5108 = vmatpush1.msra.mxu0 0.0
        %5109 = vmatprep.subr.mxu0 0.0
        %5110 = vmatpush1.msra.mxu0 0.0
        %5111 = vmatprep.subr.mxu0 0.0
        %5112 = vmatpush1.msra.mxu0 0.0
        %5113 = vmatprep.mubr.f32.mxu0 0.0
        %5114 = vmatmul.mubr.f32.gmra.mrb[0].mxu0 %v5047
        %v5115 = vpop.f32.mrb[0].mxu0
        %v5116 = vadd.f32 0.0, %v5115
        %v5117 = vpop.f32.mrb[0].mxu0
        %5118 = vdwg.mxu0
        %5120 = vrot.lane.b32.xlu0 %v4784, 8
        %v5121 = vpop.permute.xlu0 %5120
        %5124 = vrot.lane.b32.xlu0 %v4950, 16
        %v5125 = vpop.permute.xlu0 %5124
        %5128 = vrot.lane.b32.xlu0 %v5116, 24
        %v5129 = vpop.permute.xlu0 %5128
        %v5131 = vsel %vm1284, %v4618, %v5121
        %v5132 = vsel %vm1958, %v5131, %v5125
        %v5133 = vsel %vm1960, %v5132, %v5129
        %v5134 = vld [vmem:[%s47] sm:$0xff]
        %v5135 = vld [vmem:[%s47 + $0x8] sm:$0xff]
        %v5136 = vld [vmem:[%s47 + $0x10] sm:$0xff]
        %v5137 = vld [vmem:[%s47 + $0x18] sm:$0xff]
        %v5138 = vld [vmem:[%s49] sm:$0x1]
        %v5140 = vlaneseq
        %v5141 = vshrl.u32 %v5140, 7
        %v5142 = vsub.s32 0, %v5141
        %v5143 = vrot.slane %v5138, %v5142
        %v5146 = vsel %vm1207, %v5133, 0
        %5148 = vmatprep.subr.mxu0 0.0
        %5149 = vmatpush1.msra.mxu0 %v5134
        %5150 = vmatprep.subr.mxu0 0.0
        %5151 = vmatpush1.msra.mxu0 %v5135
        %5152 = vmatprep.subr.mxu0 0.0
        %5153 = vmatpush1.msra.mxu0 %v5136
        %5154 = vmatprep.subr.mxu0 0.0
        %5155 = vmatpush1.msra.mxu0 %v5137
        %5156 = vmatprep.subr.mxu0 0.0
        %5157 = vmatpush1.msra.mxu0 0.0
        %5158 = vmatprep.subr.mxu0 0.0
        %5159 = vmatpush1.msra.mxu0 0.0
        %5160 = vmatprep.subr.mxu0 0.0
        %5161 = vmatpush1.msra.mxu0 0.0
        %5162 = vmatprep.subr.mxu0 0.0
        %5163 = vmatpush1.msra.mxu0 0.0
        %5164 = vmatprep.subr.mxu0 0.0
        %5165 = vmatpush1.msra.mxu0 0.0
        %5166 = vmatprep.subr.mxu0 0.0
        %5167 = vmatpush1.msra.mxu0 0.0
        %5168 = vmatprep.subr.mxu0 0.0
        %5169 = vmatpush1.msra.mxu0 0.0
        %5170 = vmatprep.subr.mxu0 0.0
        %5171 = vmatpush1.msra.mxu0 0.0
        %5172 = vmatprep.subr.mxu0 0.0
        %5173 = vmatpush1.msra.mxu0 0.0
        %5174 = vmatprep.subr.mxu0 0.0
        %5175 = vmatpush1.msra.mxu0 0.0
        %5176 = vmatprep.subr.mxu0 0.0
        %5177 = vmatpush1.msra.mxu0 0.0
        %5178 = vmatprep.subr.mxu0 0.0
        %5179 = vmatpush1.msra.mxu0 0.0
        %5180 = vmatprep.subr.mxu0 0.0
        %5181 = vmatpush1.msra.mxu0 0.0
        %5182 = vmatprep.subr.mxu0 0.0
        %5183 = vmatpush1.msra.mxu0 0.0
        %5184 = vmatprep.subr.mxu0 0.0
        %5185 = vmatpush1.msra.mxu0 0.0
        %5186 = vmatprep.subr.mxu0 0.0
        %5187 = vmatpush1.msra.mxu0 0.0
        %5188 = vmatprep.subr.mxu0 0.0
        %5189 = vmatpush1.msra.mxu0 0.0
        %5190 = vmatprep.subr.mxu0 0.0
        %5191 = vmatpush1.msra.mxu0 0.0
        %5192 = vmatprep.subr.mxu0 0.0
        %5193 = vmatpush1.msra.mxu0 0.0
        %5194 = vmatprep.subr.mxu0 0.0
        %5195 = vmatpush1.msra.mxu0 0.0
        %5196 = vmatprep.subr.mxu0 0.0
        %5197 = vmatpush1.msra.mxu0 0.0
        %5198 = vmatprep.subr.mxu0 0.0
        %5199 = vmatpush1.msra.mxu0 0.0
        %5200 = vmatprep.subr.mxu0 0.0
        %5201 = vmatpush1.msra.mxu0 0.0
        %5202 = vmatprep.subr.mxu0 0.0
        %5203 = vmatpush1.msra.mxu0 0.0
        %5204 = vmatprep.subr.mxu0 0.0
        %5205 = vmatpush1.msra.mxu0 0.0
        %5206 = vmatprep.subr.mxu0 0.0
        %5207 = vmatpush1.msra.mxu0 0.0
        %5208 = vmatprep.subr.mxu0 0.0
        %5209 = vmatpush1.msra.mxu0 0.0
        %5210 = vmatprep.subr.mxu0 0.0
        %5211 = vmatpush1.msra.mxu0 0.0
        %5212 = vmatprep.mubr.f32.mxu0 0.0
        %5213 = vmatmul.mubr.f32.gmra.mrb[0].mxu0 %v5146
        %v5214 = vpop.f32.mrb[0].mxu0
        %v5215 = vadd.f32 %v5143, %v5214
        %v5216 = vpop.f32.mrb[0].mxu0
        %5217 = vdwg.mxu0
        %v5218 = vadd.f32 %v4288, %v5215
        %v5219 = vld [vmem:[%s63] sm:$0x1]
        %v5220 = vld [vmem:[%s65] sm:$0x1]
        %v5221 = vsel %vm1207, %v5218, 0.0
        %5222 = vadd.xlane.f32.xlu0 %v5221
        %v5223 = vpop.xlane.xlu0 %5222
        %v5224 = vmul.f32 %v5223, %v2052
        %v5225 = vsub.f32 %v5218, %v5224
        %v5226 = vmul.f32 %v5225, %v5225
        %v5227 = vsel %vm1207, %v5226, 0.0
        %5228 = vadd.xlane.f32.xlu0 %v5227
        %v5229 = vpop.xlane.xlu0 %5228
        %v5230 = vmul.f32 %v5229, %v2052
        %v5231 = vadd.f32 %v5230, 1e-05
        %v5232 = vrsqrt.pop %v5231
        %v5233 = vmul.f32 %v5225, %v5232
        %v5235 = vlaneseq
        %v5236 = vshrl.u32 %v5235, 7
        %v5237 = vsub.s32 0, %v5236
        %v5238 = vrot.slane %v5219, %v5237
        %v5240 = vmul.f32 %v5233, %v5238
        %v5242 = vlaneseq
        %v5243 = vshrl.u32 %v5242, 7
        %v5244 = vsub.s32 0, %v5243
        %v5245 = vrot.slane %v5220, %v5244
        %v5247 = vadd.f32 %v5240, %v5245
        %v5248 = vld [vmem:[%s51] sm:$0xff]
        %v5249 = vld [vmem:[%s51 + $0x8] sm:$0xff]
        %v5250 = vld [vmem:[%s51 + $0x10] sm:$0xff]
        %v5251 = vld [vmem:[%s51 + $0x18] sm:$0xff]
        %v5252 = vld [vmem:[%s53] sm:$0x1]
        %v5254 = vlaneseq
        %v5255 = vshrl.u32 %v5254, 7
        %v5256 = vsub.s32 0, %v5255
        %v5257 = vrot.slane %v5252, %v5256
        %v5260 = vsel %vm1207, %v5247, 0
        %5262 = vmatprep.subr.mxu0 0.0
        %5263 = vmatpush1.msra.mxu0 %v5248
        %5264 = vmatprep.subr.mxu0 0.0
        %5265 = vmatpush1.msra.mxu0 %v5249
        %5266 = vmatprep.subr.mxu0 0.0
        %5267 = vmatpush1.msra.mxu0 %v5250
        %5268 = vmatprep.subr.mxu0 0.0
        %5269 = vmatpush1.msra.mxu0 %v5251
        %5270 = vmatprep.subr.mxu0 0.0
        %5271 = vmatpush1.msra.mxu0 0.0
        %5272 = vmatprep.subr.mxu0 0.0
        %5273 = vmatpush1.msra.mxu0 0.0
        %5274 = vmatprep.subr.mxu0 0.0
        %5275 = vmatpush1.msra.mxu0 0.0
        %5276 = vmatprep.subr.mxu0 0.0
        %5277 = vmatpush1.msra.mxu0 0.0
        %5278 = vmatprep.subr.mxu0 0.0
        %5279 = vmatpush1.msra.mxu0 0.0
        %5280 = vmatprep.subr.mxu0 0.0
        %5281 = vmatpush1.msra.mxu0 0.0
        %5282 = vmatprep.subr.mxu0 0.0
        %5283 = vmatpush1.msra.mxu0 0.0
        %5284 = vmatprep.subr.mxu0 0.0
        %5285 = vmatpush1.msra.mxu0 0.0
        %5286 = vmatprep.subr.mxu0 0.0
        %5287 = vmatpush1.msra.mxu0 0.0
        %5288 = vmatprep.subr.mxu0 0.0
        %5289 = vmatpush1.msra.mxu0 0.0
        %5290 = vmatprep.subr.mxu0 0.0
        %5291 = vmatpush1.msra.mxu0 0.0
        %5292 = vmatprep.subr.mxu0 0.0
        %5293 = vmatpush1.msra.mxu0 0.0
        %5294 = vmatprep.subr.mxu0 0.0
        %5295 = vmatpush1.msra.mxu0 0.0
        %5296 = vmatprep.subr.mxu0 0.0
        %5297 = vmatpush1.msra.mxu0 0.0
        %5298 = vmatprep.subr.mxu0 0.0
        %5299 = vmatpush1.msra.mxu0 0.0
        %5300 = vmatprep.subr.mxu0 0.0
        %5301 = vmatpush1.msra.mxu0 0.0
        %5302 = vmatprep.subr.mxu0 0.0
        %5303 = vmatpush1.msra.mxu0 0.0
        %5304 = vmatprep.subr.mxu0 0.0
        %5305 = vmatpush1.msra.mxu0 0.0
        %5306 = vmatprep.subr.mxu0 0.0
        %5307 = vmatpush1.msra.mxu0 0.0
        %5308 = vmatprep.subr.mxu0 0.0
        %5309 = vmatpush1.msra.mxu0 0.0
        %5310 = vmatprep.subr.mxu0 0.0
        %5311 = vmatpush1.msra.mxu0 0.0
        %5312 = vmatprep.subr.mxu0 0.0
        %5313 = vmatpush1.msra.mxu0 0.0
        %5314 = vmatprep.subr.mxu0 0.0
        %5315 = vmatpush1.msra.mxu0 0.0
        %5316 = vmatprep.subr.mxu0 0.0
        %5317 = vmatpush1.msra.mxu0 0.0
        %5318 = vmatprep.subr.mxu0 0.0
        %5319 = vmatpush1.msra.mxu0 0.0
        %5320 = vmatprep.subr.mxu0 0.0
        %5321 = vmatpush1.msra.mxu0 0.0
        %5322 = vmatprep.subr.mxu0 0.0
        %5323 = vmatpush1.msra.mxu0 0.0
        %5324 = vmatprep.subr.mxu0 0.0
        %5325 = vmatpush1.msra.mxu0 0.0
        %5326 = vmatprep.mubr.f32.mxu0 0.0
        %5327 = vmatmul.mubr.f32.gmra.mrb[0].mxu0 %v5260
        %v5328 = vpop.f32.mrb[0].mxu0
        %v5329 = vadd.f32 %v5257, %v5328
        %v5330 = vpop.f32.mrb[0].mxu0
        %5331 = vdwg.mxu0
        %v5332 = vmax.f32 %v5329, 0.0
        %v5333 = vld [vmem:[%s55] sm:$0xff]
        %v5334 = vld [vmem:[%s55 + $0x8] sm:$0xff]
        %v5335 = vld [vmem:[%s55 + $0x10] sm:$0xff]
        %v5336 = vld [vmem:[%s55 + $0x18] sm:$0xff]
        %v5337 = vld [vmem:[%s55 + $0x20] sm:$0xff]
        %v5338 = vld [vmem:[%s55 + $0x28] sm:$0xff]
        %v5339 = vld [vmem:[%s55 + $0x30] sm:$0xff]
        %v5340 = vld [vmem:[%s55 + $0x38] sm:$0xff]
        %v5341 = vld [vmem:[%s55 + $0x40] sm:$0xff]
        %v5342 = vld [vmem:[%s55 + $0x48] sm:$0xff]
        %v5343 = vld [vmem:[%s55 + $0x50] sm:$0xff]
        %v5344 = vld [vmem:[%s55 + $0x58] sm:$0xff]
        %v5345 = vld [vmem:[%s55 + $0x60] sm:$0xff]
        %v5346 = vld [vmem:[%s55 + $0x68] sm:$0xff]
        %v5347 = vld [vmem:[%s55 + $0x70] sm:$0xff]
        %v5348 = vld [vmem:[%s55 + $0x78] sm:$0xff]
        %v5349 = vld [vmem:[%s57] sm:$0x1]
        %v5351 = vlaneseq
        %v5352 = vshrl.u32 %v5351, 7
        %v5353 = vsub.s32 0, %v5352
        %v5354 = vrot.slane %v5349, %v5353
        %5356 = vmatprep.subr.mxu0 0.0
        %5357 = vmatpush1.msra.mxu0 %v5333
        %5358 = vmatprep.subr.mxu0 0.0
        %5359 = vmatpush1.msra.mxu0 %v5334
        %5360 = vmatprep.subr.mxu0 0.0
        %5361 = vmatpush1.msra.mxu0 %v5335
        %5362 = vmatprep.subr.mxu0 0.0
        %5363 = vmatpush1.msra.mxu0 %v5336
        %5364 = vmatprep.subr.mxu0 0.0
        %5365 = vmatpush1.msra.mxu0 %v5337
        %5366 = vmatprep.subr.mxu0 0.0
        %5367 = vmatpush1.msra.mxu0 %v5338
        %5368 = vmatprep.subr.mxu0 0.0
        %5369 = vmatpush1.msra.mxu0 %v5339
        %5370 = vmatprep.subr.mxu0 0.0
        %5371 = vmatpush1.msra.mxu0 %v5340
        %5372 = vmatprep.subr.mxu0 0.0
        %5373 = vmatpush1.msra.mxu0 %v5341
        %5374 = vmatprep.subr.mxu0 0.0
        %5375 = vmatpush1.msra.mxu0 %v5342
        %5376 = vmatprep.subr.mxu0 0.0
        %5377 = vmatpush1.msra.mxu0 %v5343
        %5378 = vmatprep.subr.mxu0 0.0
        %5379 = vmatpush1.msra.mxu0 %v5344
        %5380 = vmatprep.subr.mxu0 0.0
        %5381 = vmatpush1.msra.mxu0 %v5345
        %5382 = vmatprep.subr.mxu0 0.0
        %5383 = vmatpush1.msra.mxu0 %v5346
        %5384 = vmatprep.subr.mxu0 0.0
        %5385 = vmatpush1.msra.mxu0 %v5347
        %5386 = vmatprep.subr.mxu0 0.0
        %5387 = vmatpush1.msra.mxu0 %v5348
        %5388 = vmatprep.subr.mxu0 0.0
        %5389 = vmatpush1.msra.mxu0 0.0
        %5390 = vmatprep.subr.mxu0 0.0
        %5391 = vmatpush1.msra.mxu0 0.0
        %5392 = vmatprep.subr.mxu0 0.0
        %5393 = vmatpush1.msra.mxu0 0.0
        %5394 = vmatprep.subr.mxu0 0.0
        %5395 = vmatpush1.msra.mxu0 0.0
        %5396 = vmatprep.subr.mxu0 0.0
        %5397 = vmatpush1.msra.mxu0 0.0
        %5398 = vmatprep.subr.mxu0 0.0
        %5399 = vmatpush1.msra.mxu0 0.0
        %5400 = vmatprep.subr.mxu0 0.0
        %5401 = vmatpush1.msra.mxu0 0.0
        %5402 = vmatprep.subr.mxu0 0.0
        %5403 = vmatpush1.msra.mxu0 0.0
        %5404 = vmatprep.subr.mxu0 0.0
        %5405 = vmatpush1.msra.mxu0 0.0
        %5406 = vmatprep.subr.mxu0 0.0
        %5407 = vmatpush1.msra.mxu0 0.0
        %5408 = vmatprep.subr.mxu0 0.0
        %5409 = vmatpush1.msra.mxu0 0.0
        %5410 = vmatprep.subr.mxu0 0.0
        %5411 = vmatpush1.msra.mxu0 0.0
        %5412 = vmatprep.subr.mxu0 0.0
        %5413 = vmatpush1.msra.mxu0 0.0
        %5414 = vmatprep.subr.mxu0 0.0
        %5415 = vmatpush1.msra.mxu0 0.0
        %5416 = vmatprep.subr.mxu0 0.0
        %5417 = vmatpush1.msra.mxu0 0.0
        %5418 = vmatprep.subr.mxu0 0.0
        %5419 = vmatpush1.msra.mxu0 0.0
        %5420 = vmatprep.mubr.f32.mxu0 0.0
        %5421 = vmatmul.mubr.f32.gmra.mrb[0].mxu0 %v5332
        %v5422 = vpop.f32.mrb[0].mxu0
        %v5423 = vadd.f32 %v5354, %v5422
        %v5424 = vpop.f32.mrb[0].mxu0
        %5425 = vdwg.mxu0
        %v5426 = vadd.f32 %v5247, %v5423
        %v5427 = vld [vmem:[%s67] sm:$0x1]
        %v5428 = vld [vmem:[%s69] sm:$0x1]
        %v5429 = vsel %vm1207, %v5426, 0.0
        %5430 = vadd.xlane.f32.xlu0 %v5429
        %v5431 = vpop.xlane.xlu0 %5430
        %v5432 = vmul.f32 %v5431, %v2052
        %v5433 = vsub.f32 %v5426, %v5432
        %v5434 = vmul.f32 %v5433, %v5433
        %v5435 = vsel %vm1207, %v5434, 0.0
        %5436 = vadd.xlane.f32.xlu0 %v5435
        %v5437 = vpop.xlane.xlu0 %5436
        %v5438 = vmul.f32 %v5437, %v2052
        %v5439 = vadd.f32 %v5438, 1e-05
        %v5440 = vrsqrt.pop %v5439
        %v5441 = vmul.f32 %v5433, %v5440
        %v5443 = vlaneseq
        %v5444 = vshrl.u32 %v5443, 7
        %v5445 = vsub.s32 0, %v5444
        %v5446 = vrot.slane %v5427, %v5445
        %v5448 = vmul.f32 %v5441, %v5446
        %v5450 = vlaneseq
        %v5451 = vshrl.u32 %v5450, 7
        %v5452 = vsub.s32 0, %v5451
        %v5453 = vrot.slane %v5428, %v5452
        %v5455 = vadd.f32 %v5448, %v5453
        %s5456 = scalar_lea.vmem %s33, 32
        %v5457 = vld [vmem:[%s5456] sm:$0xff]
        %v5458 = vld [vmem:[%s5456 + $0x8] sm:$0xff]
        %v5459 = vld [vmem:[%s5456 + $0x10] sm:$0xff]
        %v5460 = vld [vmem:[%s5456 + $0x18] sm:$0xff]
        %v5462 = vsel %vm1207, %v5455, 0
        %5464 = vmatprep.subr.mxu0 0.0
        %5465 = vmatpush1.msra.mxu0 %v5457
        %5466 = vmatprep.subr.mxu0 0.0
        %5467 = vmatpush1.msra.mxu0 %v5458
        %5468 = vmatprep.subr.mxu0 0.0
        %5469 = vmatpush1.msra.mxu0 %v5459
        %5470 = vmatprep.subr.mxu0 0.0
        %5471 = vmatpush1.msra.mxu0 %v5460
        %5472 = vmatprep.subr.mxu0 0.0
        %5473 = vmatpush1.msra.mxu0 0.0
        %5474 = vmatprep.subr.mxu0 0.0
        %5475 = vmatpush1.msra.mxu0 0.0
        %5476 = vmatprep.subr.mxu0 0.0
        %5477 = vmatpush1.msra.mxu0 0.0
        %5478 = vmatprep.subr.mxu0 0.0
        %5479 = vmatpush1.msra.mxu0 0.0
        %5480 = vmatprep.subr.mxu0 0.0
        %5481 = vmatpush1.msra.mxu0 0.0
        %5482 = vmatprep.subr.mxu0 0.0
        %5483 = vmatpush1.msra.mxu0 0.0
        %5484 = vmatprep.subr.mxu0 0.0
        %5485 = vmatpush1.msra.mxu0 0.0
        %5486 = vmatprep.subr.mxu0 0.0
        %5487 = vmatpush1.msra.mxu0 0.0
        %5488 = vmatprep.subr.mxu0 0.0
        %5489 = vmatpush1.msra.mxu0 0.0
        %5490 = vmatprep.subr.mxu0 0.0
        %5491 = vmatpush1.msra.mxu0 0.0
        %5492 = vmatprep.subr.mxu0 0.0
        %5493 = vmatpush1.msra.mxu0 0.0
        %5494 = vmatprep.subr.mxu0 0.0
        %5495 = vmatpush1.msra.mxu0 0.0
        %5496 = vmatprep.subr.mxu0 0.0
        %5497 = vmatpush1.msra.mxu0 0.0
        %5498 = vmatprep.subr.mxu0 0.0
        %5499 = vmatpush1.msra.mxu0 0.0
        %5500 = vmatprep.subr.mxu0 0.0
        %5501 = vmatpush1.msra.mxu0 0.0
        %5502 = vmatprep.subr.mxu0 0.0
        %5503 = vmatpush1.msra.mxu0 0.0
        %5504 = vmatprep.subr.mxu0 0.0
        %5505 = vmatpush1.msra.mxu0 0.0
        %5506 = vmatprep.subr.mxu0 0.0
        %5507 = vmatpush1.msra.mxu0 0.0
        %5508 = vmatprep.subr.mxu0 0.0
        %5509 = vmatpush1.msra.mxu0 0.0
        %5510 = vmatprep.subr.mxu0 0.0
        %5511 = vmatpush1.msra.mxu0 0.0
        %5512 = vmatprep.subr.mxu0 0.0
        %5513 = vmatpush1.msra.mxu0 0.0
        %5514 = vmatprep.subr.mxu0 0.0
        %5515 = vmatpush1.msra.mxu0 0.0
        %5516 = vmatprep.subr.mxu0 0.0
        %5517 = vmatpush1.msra.mxu0 0.0
        %5518 = vmatprep.subr.mxu0 0.0
        %5519 = vmatpush1.msra.mxu0 0.0
        %5520 = vmatprep.subr.mxu0 0.0
        %5521 = vmatpush1.msra.mxu0 0.0
        %5522 = vmatprep.subr.mxu0 0.0
        %5523 = vmatpush1.msra.mxu0 0.0
        %5524 = vmatprep.subr.mxu0 0.0
        %5525 = vmatpush1.msra.mxu0 0.0
        %5526 = vmatprep.subr.mxu0 0.0
        %5527 = vmatpush1.msra.mxu0 0.0
        %5528 = vmatprep.mubr.f32.mxu0 0.0
        %5529 = vmatmul.mubr.f32.gmra.mrb[0].mxu0 %v5462
        %v5530 = vpop.f32.mrb[0].mxu0
        %v5531 = vadd.f32 0.0, %v5530
        %v5532 = vpop.f32.mrb[0].mxu0
        %5533 = vdwg.mxu0
        %5535 = vrot.lane.b32.xlu0 %v5531, 96
        %v5536 = vpop.permute.xlu0 %5535
        %v5537 = vsel %vm1284, %v5531, 0
        %v5539 = vsel %vm1284, %v5536, 0
        %5541 = vmatprep.subr.mxu0 0.0
        %5542 = vmatpush1.xpose.msra.mxu0 %v5539
        %5543 = vmatprep.subr.mxu0 0.0
        %5544 = vmatpush1.xpose.msra.mxu0 0.0
        %5545 = vmatprep.subr.mxu0 0.0
        %5546 = vmatpush1.xpose.msra.mxu0 0.0
        %5547 = vmatprep.subr.mxu0 0.0
        %5548 = vmatpush1.xpose.msra.mxu0 0.0
        %5549 = vmatprep.subr.mxu0 0.0
        %5550 = vmatpush1.xpose.msra.mxu0 0.0
        %5551 = vmatprep.subr.mxu0 0.0
        %5552 = vmatpush1.xpose.msra.mxu0 0.0
        %5553 = vmatprep.subr.mxu0 0.0
        %5554 = vmatpush1.xpose.msra.mxu0 0.0
        %5555 = vmatprep.subr.mxu0 0.0
        %5556 = vmatpush1.xpose.msra.mxu0 0.0
        %5557 = vmatprep.subr.mxu0 0.0
        %5558 = vmatpush1.xpose.msra.mxu0 0.0
        %5559 = vmatprep.subr.mxu0 0.0
        %5560 = vmatpush1.xpose.msra.mxu0 0.0
        %5561 = vmatprep.subr.mxu0 0.0
        %5562 = vmatpush1.xpose.msra.mxu0 0.0
        %5563 = vmatprep.subr.mxu0 0.0
        %5564 = vmatpush1.xpose.msra.mxu0 0.0
        %5565 = vmatprep.subr.mxu0 0.0
        %5566 = vmatpush1.xpose.msra.mxu0 0.0
        %5567 = vmatprep.subr.mxu0 0.0
        %5568 = vmatpush1.xpose.msra.mxu0 0.0
        %5569 = vmatprep.subr.mxu0 0.0
        %5570 = vmatpush1.xpose.msra.mxu0 0.0
        %5571 = vmatprep.subr.mxu0 0.0
        %5572 = vmatpush1.xpose.msra.mxu0 0.0
        %5573 = vmatprep.subr.mxu0 0.0
        %5574 = vmatpush1.xpose.msra.mxu0 0.0
        %5575 = vmatprep.subr.mxu0 0.0
        %5576 = vmatpush1.xpose.msra.mxu0 0.0
        %5577 = vmatprep.subr.mxu0 0.0
        %5578 = vmatpush1.xpose.msra.mxu0 0.0
        %5579 = vmatprep.subr.mxu0 0.0
        %5580 = vmatpush1.xpose.msra.mxu0 0.0
        %5581 = vmatprep.subr.mxu0 0.0
        %5582 = vmatpush1.xpose.msra.mxu0 0.0
        %5583 = vmatprep.subr.mxu0 0.0
        %5584 = vmatpush1.xpose.msra.mxu0 0.0
        %5585 = vmatprep.subr.mxu0 0.0
        %5586 = vmatpush1.xpose.msra.mxu0 0.0
        %5587 = vmatprep.subr.mxu0 0.0
        %5588 = vmatpush1.xpose.msra.mxu0 0.0
        %5589 = vmatprep.subr.mxu0 0.0
        %5590 = vmatpush1.xpose.msra.mxu0 0.0
        %5591 = vmatprep.subr.mxu0 0.0
        %5592 = vmatpush1.xpose.msra.mxu0 0.0
        %5593 = vmatprep.subr.mxu0 0.0
        %5594 = vmatpush1.xpose.msra.mxu0 0.0
        %5595 = vmatprep.subr.mxu0 0.0
        %5596 = vmatpush1.xpose.msra.mxu0 0.0
        %5597 = vmatprep.subr.mxu0 0.0
        %5598 = vmatpush1.xpose.msra.mxu0 0.0
        %5599 = vmatprep.subr.mxu0 0.0
        %5600 = vmatpush1.xpose.msra.mxu0 0.0
        %5601 = vmatprep.subr.mxu0 0.0
        %5602 = vmatpush1.xpose.msra.mxu0 0.0
        %5603 = vmatprep.subr.mxu0 0.0
        %5604 = vmatpush1.xpose.msra.mxu0 0.0
        %5605 = vmatprep.mubr.f32.mxu0 0.0
        %5606 = vmatmul.mubr.f32.gmra.mrb[0].mxu0 %v5537
        %v5607 = vpop.f32.mrb[0].mxu0
        %v5608 = vadd.f32 0.0, %v5607
        %v5609 = vpop.f32.mrb[0].mxu0
        %5610 = vdwg.mxu0
        %v5611 = vmul.f32 %v5608, 0.35355338
        %v5612 = vsel %vm3492, %v5611, -inf
        %v5613 = vsel %vm1284, %v5612, -inf
        %5614 = vmax.xlane.f32.xlu0 %v5613
        %v5615 = vpop.xlane.xlu0 %5614
        %v5616 = vsub.f32 %v5612, %v5615
        %v5617 = vmul.f32 %v5616, 1.442695
        %v5618 = vpow.pop %v5617
        %v5619 = vsel %vm1284, %v5618, 0.0
        %5620 = vadd.xlane.f32.xlu0 %v5619
        %v5621 = vpop.xlane.xlu0 %5620
        %v5622 = vrcp.pop %v5621
        %v5623 = vmul.f32 %v5618, %v5622
        %5624 = vrot.lane.b32.xlu0 %v5531, 64
        %v5625 = vpop.permute.xlu0 %5624
        %v5628 = vsel %vm1284, %v5623, 0
        %5630 = vmatprep.subr.mxu0 0.0
        %5631 = vmatpush1.msra.mxu0 %v5625
        %5632 = vmatprep.subr.mxu0 0.0
        %5633 = vmatpush1.msra.mxu0 0.0
        %5634 = vmatprep.subr.mxu0 0.0
        %5635 = vmatpush1.msra.mxu0 0.0
        %5636 = vmatprep.subr.mxu0 0.0
        %5637 = vmatpush1.msra.mxu0 0.0
        %5638 = vmatprep.subr.mxu0 0.0
        %5639 = vmatpush1.msra.mxu0 0.0
        %5640 = vmatprep.subr.mxu0 0.0
        %5641 = vmatpush1.msra.mxu0 0.0
        %5642 = vmatprep.subr.mxu0 0.0
        %5643 = vmatpush1.msra.mxu0 0.0
        %5644 = vmatprep.subr.mxu0 0.0
        %5645 = vmatpush1.msra.mxu0 0.0
        %5646 = vmatprep.subr.mxu0 0.0
        %5647 = vmatpush1.msra.mxu0 0.0
        %5648 = vmatprep.subr.mxu0 0.0
        %5649 = vmatpush1.msra.mxu0 0.0
        %5650 = vmatprep.subr.mxu0 0.0
        %5651 = vmatpush1.msra.mxu0 0.0
        %5652 = vmatprep.subr.mxu0 0.0
        %5653 = vmatpush1.msra.mxu0 0.0
        %5654 = vmatprep.subr.mxu0 0.0
        %5655 = vmatpush1.msra.mxu0 0.0
        %5656 = vmatprep.subr.mxu0 0.0
        %5657 = vmatpush1.msra.mxu0 0.0
        %5658 = vmatprep.subr.mxu0 0.0
        %5659 = vmatpush1.msra.mxu0 0.0
        %5660 = vmatprep.subr.mxu0 0.0
        %5661 = vmatpush1.msra.mxu0 0.0
        %5662 = vmatprep.subr.mxu0 0.0
        %5663 = vmatpush1.msra.mxu0 0.0
        %5664 = vmatprep.subr.mxu0 0.0
        %5665 = vmatpush1.msra.mxu0 0.0
        %5666 = vmatprep.subr.mxu0 0.0
        %5667 = vmatpush1.msra.mxu0 0.0
        %5668 = vmatprep.subr.mxu0 0.0
        %5669 = vmatpush1.msra.mxu0 0.0
        %5670 = vmatprep.subr.mxu0 0.0
        %5671 = vmatpush1.msra.mxu0 0.0
        %5672 = vmatprep.subr.mxu0 0.0
        %5673 = vmatpush1.msra.mxu0 0.0
        %5674 = vmatprep.subr.mxu0 0.0
        %5675 = vmatpush1.msra.mxu0 0.0
        %5676 = vmatprep.subr.mxu0 0.0
        %5677 = vmatpush1.msra.mxu0 0.0
        %5678 = vmatprep.subr.mxu0 0.0
        %5679 = vmatpush1.msra.mxu0 0.0
        %5680 = vmatprep.subr.mxu0 0.0
        %5681 = vmatpush1.msra.mxu0 0.0
        %5682 = vmatprep.subr.mxu0 0.0
        %5683 = vmatpush1.msra.mxu0 0.0
        %5684 = vmatprep.subr.mxu0 0.0
        %5685 = vmatpush1.msra.mxu0 0.0
        %5686 = vmatprep.subr.mxu0 0.0
        %5687 = vmatpush1.msra.mxu0 0.0
        %5688 = vmatprep.subr.mxu0 0.0
        %5689 = vmatpush1.msra.mxu0 0.0
        %5690 = vmatprep.subr.mxu0 0.0
        %5691 = vmatpush1.msra.mxu0 0.0
        %5692 = vmatprep.subr.mxu0 0.0
        %5693 = vmatpush1.msra.mxu0 0.0
        %5694 = vmatprep.mubr.f32.mxu0 0.0
        %5695 = vmatmul.mubr.f32.gmra.mrb[0].mxu0 %v5628
        %v5696 = vpop.f32.mrb[0].mxu0
        %v5697 = vadd.f32 0.0, %v5696
        %v5698 = vpop.f32.mrb[0].mxu0
        %5699 = vdwg.mxu0
        %5700 = vrot.lane.b32.xlu0 %v5531, 120
        %v5701 = vpop.permute.xlu0 %5700
        %5702 = vrot.lane.b32.xlu0 %v5531, 88
        %v5703 = vpop.permute.xlu0 %5702
        %v5704 = vsel %vm1284, %v5701, 0
        %v5706 = vsel %vm1284, %v5703, 0
        %5708 = vmatprep.subr.mxu0 0.0
        %5709 = vmatpush1.xpose.msra.mxu0 %v5706
        %5710 = vmatprep.subr.mxu0 0.0
        %5711 = vmatpush1.xpose.msra.mxu0 0.0
        %5712 = vmatprep.subr.mxu0 0.0
        %5713 = vmatpush1.xpose.msra.mxu0 0.0
        %5714 = vmatprep.subr.mxu0 0.0
        %5715 = vmatpush1.xpose.msra.mxu0 0.0
        %5716 = vmatprep.subr.mxu0 0.0
        %5717 = vmatpush1.xpose.msra.mxu0 0.0
        %5718 = vmatprep.subr.mxu0 0.0
        %5719 = vmatpush1.xpose.msra.mxu0 0.0
        %5720 = vmatprep.subr.mxu0 0.0
        %5721 = vmatpush1.xpose.msra.mxu0 0.0
        %5722 = vmatprep.subr.mxu0 0.0
        %5723 = vmatpush1.xpose.msra.mxu0 0.0
        %5724 = vmatprep.subr.mxu0 0.0
        %5725 = vmatpush1.xpose.msra.mxu0 0.0
        %5726 = vmatprep.subr.mxu0 0.0
        %5727 = vmatpush1.xpose.msra.mxu0 0.0
        %5728 = vmatprep.subr.mxu0 0.0
        %5729 = vmatpush1.xpose.msra.mxu0 0.0
        %5730 = vmatprep.subr.mxu0 0.0
        %5731 = vmatpush1.xpose.msra.mxu0 0.0
        %5732 = vmatprep.subr.mxu0 0.0
        %5733 = vmatpush1.xpose.msra.mxu0 0.0
        %5734 = vmatprep.subr.mxu0 0.0
        %5735 = vmatpush1.xpose.msra.mxu0 0.0
        %5736 = vmatprep.subr.mxu0 0.0
        %5737 = vmatpush1.xpose.msra.mxu0 0.0
        %5738 = vmatprep.subr.mxu0 0.0
        %5739 = vmatpush1.xpose.msra.mxu0 0.0
        %5740 = vmatprep.subr.mxu0 0.0
        %5741 = vmatpush1.xpose.msra.mxu0 0.0
        %5742 = vmatprep.subr.mxu0 0.0
        %5743 = vmatpush1.xpose.msra.mxu0 0.0
        %5744 = vmatprep.subr.mxu0 0.0
        %5745 = vmatpush1.xpose.msra.mxu0 0.0
        %5746 = vmatprep.subr.mxu0 0.0
        %5747 = vmatpush1.xpose.msra.mxu0 0.0
        %5748 = vmatprep.subr.mxu0 0.0
        %5749 = vmatpush1.xpose.msra.mxu0 0.0
        %5750 = vmatprep.subr.mxu0 0.0
        %5751 = vmatpush1.xpose.msra.mxu0 0.0
        %5752 = vmatprep.subr.mxu0 0.0
        %5753 = vmatpush1.xpose.msra.mxu0 0.0
        %5754 = vmatprep.subr.mxu0 0.0
        %5755 = vmatpush1.xpose.msra.mxu0 0.0
        %5756 = vmatprep.subr.mxu0 0.0
        %5757 = vmatpush1.xpose.msra.mxu0 0.0
        %5758 = vmatprep.subr.mxu0 0.0
        %5759 = vmatpush1.xpose.msra.mxu0 0.0
        %5760 = vmatprep.subr.mxu0 0.0
        %5761 = vmatpush1.xpose.msra.mxu0 0.0
        %5762 = vmatprep.subr.mxu0 0.0
        %5763 = vmatpush1.xpose.msra.mxu0 0.0
        %5764 = vmatprep.subr.mxu0 0.0
        %5765 = vmatpush1.xpose.msra.mxu0 0.0
        %5766 = vmatprep.subr.mxu0 0.0
        %5767 = vmatpush1.xpose.msra.mxu0 0.0
        %5768 = vmatprep.subr.mxu0 0.0
        %5769 = vmatpush1.xpose.msra.mxu0 0.0
        %5770 = vmatprep.subr.mxu0 0.0
        %5771 = vmatpush1.xpose.msra.mxu0 0.0
        %5772 = vmatprep.mubr.f32.mxu0 0.0
        %5773 = vmatmul.mubr.f32.gmra.mrb[0].mxu0 %v5704
        %v5774 = vpop.f32.mrb[0].mxu0
        %v5775 = vadd.f32 0.0, %v5774
        %v5776 = vpop.f32.mrb[0].mxu0
        %5777 = vdwg.mxu0
        %v5778 = vmul.f32 %v5775, 0.35355338
        %v5779 = vsel %vm3492, %v5778, -inf
        %v5780 = vsel %vm1284, %v5779, -inf
        %5781 = vmax.xlane.f32.xlu0 %v5780
        %v5782 = vpop.xlane.xlu0 %5781
        %v5783 = vsub.f32 %v5779, %v5782
        %v5784 = vmul.f32 %v5783, 1.442695
        %v5785 = vpow.pop %v5784
        %v5786 = vsel %vm1284, %v5785, 0.0
        %5787 = vadd.xlane.f32.xlu0 %v5786
        %v5788 = vpop.xlane.xlu0 %5787
        %v5789 = vrcp.pop %v5788
        %v5790 = vmul.f32 %v5785, %v5789
        %5791 = vrot.lane.b32.xlu0 %v5531, 56
        %v5792 = vpop.permute.xlu0 %5791
        %v5795 = vsel %vm1284, %v5790, 0
        %5797 = vmatprep.subr.mxu0 0.0
        %5798 = vmatpush1.msra.mxu0 %v5792
        %5799 = vmatprep.subr.mxu0 0.0
        %5800 = vmatpush1.msra.mxu0 0.0
        %5801 = vmatprep.subr.mxu0 0.0
        %5802 = vmatpush1.msra.mxu0 0.0
        %5803 = vmatprep.subr.mxu0 0.0
        %5804 = vmatpush1.msra.mxu0 0.0
        %5805 = vmatprep.subr.mxu0 0.0
        %5806 = vmatpush1.msra.mxu0 0.0
        %5807 = vmatprep.subr.mxu0 0.0
        %5808 = vmatpush1.msra.mxu0 0.0
        %5809 = vmatprep.subr.mxu0 0.0
        %5810 = vmatpush1.msra.mxu0 0.0
        %5811 = vmatprep.subr.mxu0 0.0
        %5812 = vmatpush1.msra.mxu0 0.0
        %5813 = vmatprep.subr.mxu0 0.0
        %5814 = vmatpush1.msra.mxu0 0.0
        %5815 = vmatprep.subr.mxu0 0.0
        %5816 = vmatpush1.msra.mxu0 0.0
        %5817 = vmatprep.subr.mxu0 0.0
        %5818 = vmatpush1.msra.mxu0 0.0
        %5819 = vmatprep.subr.mxu0 0.0
        %5820 = vmatpush1.msra.mxu0 0.0
        %5821 = vmatprep.subr.mxu0 0.0
        %5822 = vmatpush1.msra.mxu0 0.0
        %5823 = vmatprep.subr.mxu0 0.0
        %5824 = vmatpush1.msra.mxu0 0.0
        %5825 = vmatprep.subr.mxu0 0.0
        %5826 = vmatpush1.msra.mxu0 0.0
        %5827 = vmatprep.subr.mxu0 0.0
        %5828 = vmatpush1.msra.mxu0 0.0
        %5829 = vmatprep.subr.mxu0 0.0
        %5830 = vmatpush1.msra.mxu0 0.0
        %5831 = vmatprep.subr.mxu0 0.0
        %5832 = vmatpush1.msra.mxu0 0.0
        %5833 = vmatprep.subr.mxu0 0.0
        %5834 = vmatpush1.msra.mxu0 0.0
        %5835 = vmatprep.subr.mxu0 0.0
        %5836 = vmatpush1.msra.mxu0 0.0
        %5837 = vmatprep.subr.mxu0 0.0
        %5838 = vmatpush1.msra.mxu0 0.0
        %5839 = vmatprep.subr.mxu0 0.0
        %5840 = vmatpush1.msra.mxu0 0.0
        %5841 = vmatprep.subr.mxu0 0.0
        %5842 = vmatpush1.msra.mxu0 0.0
        %5843 = vmatprep.subr.mxu0 0.0
        %5844 = vmatpush1.msra.mxu0 0.0
        %5845 = vmatprep.subr.mxu0 0.0
        %5846 = vmatpush1.msra.mxu0 0.0
        %5847 = vmatprep.subr.mxu0 0.0
        %5848 = vmatpush1.msra.mxu0 0.0
        %5849 = vmatprep.subr.mxu0 0.0
        %5850 = vmatpush1.msra.mxu0 0.0
        %5851 = vmatprep.subr.mxu0 0.0
        %5852 = vmatpush1.msra.mxu0 0.0
        %5853 = vmatprep.subr.mxu0 0.0
        %5854 = vmatpush1.msra.mxu0 0.0
        %5855 = vmatprep.subr.mxu0 0.0
        %5856 = vmatpush1.msra.mxu0 0.0
        %5857 = vmatprep.subr.mxu0 0.0
        %5858 = vmatpush1.msra.mxu0 0.0
        %5859 = vmatprep.subr.mxu0 0.0
        %5860 = vmatpush1.msra.mxu0 0.0
        %5861 = vmatprep.mubr.f32.mxu0 0.0
        %5862 = vmatmul.mubr.f32.gmra.mrb[0].mxu0 %v5795
        %v5863 = vpop.f32.mrb[0].mxu0
        %v5864 = vadd.f32 0.0, %v5863
        %v5865 = vpop.f32.mrb[0].mxu0
        %5866 = vdwg.mxu0
        %5867 = vrot.lane.b32.xlu0 %v5531, 112
        %v5868 = vpop.permute.xlu0 %5867
        %5869 = vrot.lane.b32.xlu0 %v5531, 80
        %v5870 = vpop.permute.xlu0 %5869
        %v5871 = vsel %vm1284, %v5868, 0
        %v5873 = vsel %vm1284, %v5870, 0
        %5875 = vmatprep.subr.mxu0 0.0
        %5876 = vmatpush1.xpose.msra.mxu0 %v5873
        %5877 = vmatprep.subr.mxu0 0.0
        %5878 = vmatpush1.xpose.msra.mxu0 0.0
        %5879 = vmatprep.subr.mxu0 0.0
        %5880 = vmatpush1.xpose.msra.mxu0 0.0
        %5881 = vmatprep.subr.mxu0 0.0
        %5882 = vmatpush1.xpose.msra.mxu0 0.0
        %5883 = vmatprep.subr.mxu0 0.0
        %5884 = vmatpush1.xpose.msra.mxu0 0.0
        %5885 = vmatprep.subr.mxu0 0.0
        %5886 = vmatpush1.xpose.msra.mxu0 0.0
        %5887 = vmatprep.subr.mxu0 0.0
        %5888 = vmatpush1.xpose.msra.mxu0 0.0
        %5889 = vmatprep.subr.mxu0 0.0
        %5890 = vmatpush1.xpose.msra.mxu0 0.0
        %5891 = vmatprep.subr.mxu0 0.0
        %5892 = vmatpush1.xpose.msra.mxu0 0.0
        %5893 = vmatprep.subr.mxu0 0.0
        %5894 = vmatpush1.xpose.msra.mxu0 0.0
        %5895 = vmatprep.subr.mxu0 0.0
        %5896 = vmatpush1.xpose.msra.mxu0 0.0
        %5897 = vmatprep.subr.mxu0 0.0
        %5898 = vmatpush1.xpose.msra.mxu0 0.0
        %5899 = vmatprep.subr.mxu0 0.0
        %5900 = vmatpush1.xpose.msra.mxu0 0.0
        %5901 = vmatprep.subr.mxu0 0.0
        %5902 = vmatpush1.xpose.msra.mxu0 0.0
        %5903 = vmatprep.subr.mxu0 0.0
        %5904 = vmatpush1.xpose.msra.mxu0 0.0
        %5905 = vmatprep.subr.mxu0 0.0
        %5906 = vmatpush1.xpose.msra.mxu0 0.0
        %5907 = vmatprep.subr.mxu0 0.0
        %5908 = vmatpush1.xpose.msra.mxu0 0.0
        %5909 = vmatprep.subr.mxu0 0.0
        %5910 = vmatpush1.xpose.msra.mxu0 0.0
        %5911 = vmatprep.subr.mxu0 0.0
        %5912 = vmatpush1.xpose.msra.mxu0 0.0
        %5913 = vmatprep.subr.mxu0 0.0
        %5914 = vmatpush1.xpose.msra.mxu0 0.0
        %5915 = vmatprep.subr.mxu0 0.0
        %5916 = vmatpush1.xpose.msra.mxu0 0.0
        %5917 = vmatprep.subr.mxu0 0.0
        %5918 = vmatpush1.xpose.msra.mxu0 0.0
        %5919 = vmatprep.subr.mxu0 0.0
        %5920 = vmatpush1.xpose.msra.mxu0 0.0
        %5921 = vmatprep.subr.mxu0 0.0
        %5922 = vmatpush1.xpose.msra.mxu0 0.0
        %5923 = vmatprep.subr.mxu0 0.0
        %5924 = vmatpush1.xpose.msra.mxu0 0.0
        %5925 = vmatprep.subr.mxu0 0.0
        %5926 = vmatpush1.xpose.msra.mxu0 0.0
        %5927 = vmatprep.subr.mxu0 0.0
        %5928 = vmatpush1.xpose.msra.mxu0 0.0
        %5929 = vmatprep.subr.mxu0 0.0
        %5930 = vmatpush1.xpose.msra.mxu0 0.0
        %5931 = vmatprep.subr.mxu0 0.0
        %5932 = vmatpush1.xpose.msra.mxu0 0.0
        %5933 = vmatprep.subr.mxu0 0.0
        %5934 = vmatpush1.xpose.msra.mxu0 0.0
        %5935 = vmatprep.subr.mxu0 0.0
        %5936 = vmatpush1.xpose.msra.mxu0 0.0
        %5937 = vmatprep.subr.mxu0 0.0
        %5938 = vmatpush1.xpose.msra.mxu0 0.0
        %5939 = vmatprep.mubr.f32.mxu0 0.0
        %5940 = vmatmul.mubr.f32.gmra.mrb[0].mxu0 %v5871
        %v5941 = vpop.f32.mrb[0].mxu0
        %v5942 = vadd.f32 0.0, %v5941
        %v5943 = vpop.f32.mrb[0].mxu0
        %5944 = vdwg.mxu0
        %v5945 = vmul.f32 %v5942, 0.35355338
        %v5946 = vsel %vm3492, %v5945, -inf
        %v5947 = vsel %vm1284, %v5946, -inf
        %5948 = vmax.xlane.f32.xlu0 %v5947
        %v5949 = vpop.xlane.xlu0 %5948
        %v5950 = vsub.f32 %v5946, %v5949
        %v5951 = vmul.f32 %v5950, 1.442695
        %v5952 = vpow.pop %v5951
        %v5953 = vsel %vm1284, %v5952, 0.0
        %5954 = vadd.xlane.f32.xlu0 %v5953
        %v5955 = vpop.xlane.xlu0 %5954
        %v5956 = vrcp.pop %v5955
        %v5957 = vmul.f32 %v5952, %v5956
        %5958 = vrot.lane.b32.xlu0 %v5531, 48
        %v5959 = vpop.permute.xlu0 %5958
        %v5962 = vsel %vm1284, %v5957, 0
        %5964 = vmatprep.subr.mxu0 0.0
        %5965 = vmatpush1.msra.mxu0 %v5959
        %5966 = vmatprep.subr.mxu0 0.0
        %5967 = vmatpush1.msra.mxu0 0.0
        %5968 = vmatprep.subr.mxu0 0.0
        %5969 = vmatpush1.msra.mxu0 0.0
        %5970 = vmatprep.subr.mxu0 0.0
        %5971 = vmatpush1.msra.mxu0 0.0
        %5972 = vmatprep.subr.mxu0 0.0
        %5973 = vmatpush1.msra.mxu0 0.0
        %5974 = vmatprep.subr.mxu0 0.0
        %5975 = vmatpush1.msra.mxu0 0.0
        %5976 = vmatprep.subr.mxu0 0.0
        %5977 = vmatpush1.msra.mxu0 0.0
        %5978 = vmatprep.subr.mxu0 0.0
        %5979 = vmatpush1.msra.mxu0 0.0
        %5980 = vmatprep.subr.mxu0 0.0
        %5981 = vmatpush1.msra.mxu0 0.0
        %5982 = vmatprep.subr.mxu0 0.0
        %5983 = vmatpush1.msra.mxu0 0.0
        %5984 = vmatprep.subr.mxu0 0.0
        %5985 = vmatpush1.msra.mxu0 0.0
        %5986 = vmatprep.subr.mxu0 0.0
        %5987 = vmatpush1.msra.mxu0 0.0
        %5988 = vmatprep.subr.mxu0 0.0
        %5989 = vmatpush1.msra.mxu0 0.0
        %5990 = vmatprep.subr.mxu0 0.0
        %5991 = vmatpush1.msra.mxu0 0.0
        %5992 = vmatprep.subr.mxu0 0.0
        %5993 = vmatpush1.msra.mxu0 0.0
        %5994 = vmatprep.subr.mxu0 0.0
        %5995 = vmatpush1.msra.mxu0 0.0
        %5996 = vmatprep.subr.mxu0 0.0
        %5997 = vmatpush1.msra.mxu0 0.0
        %5998 = vmatprep.subr.mxu0 0.0
        %5999 = vmatpush1.msra.mxu0 0.0
        %6000 = vmatprep.subr.mxu0 0.0
        %6001 = vmatpush1.msra.mxu0 0.0
        %6002 = vmatprep.subr.mxu0 0.0
        %6003 = vmatpush1.msra.mxu0 0.0
        %6004 = vmatprep.subr.mxu0 0.0
        %6005 = vmatpush1.msra.mxu0 0.0
        %6006 = vmatprep.subr.mxu0 0.0
        %6007 = vmatpush1.msra.mxu0 0.0
        %6008 = vmatprep.subr.mxu0 0.0
        %6009 = vmatpush1.msra.mxu0 0.0
        %6010 = vmatprep.subr.mxu0 0.0
        %6011 = vmatpush1.msra.mxu0 0.0
        %6012 = vmatprep.subr.mxu0 0.0
        %6013 = vmatpush1.msra.mxu0 0.0
        %6014 = vmatprep.subr.mxu0 0.0
        %6015 = vmatpush1.msra.mxu0 0.0
        %6016 = vmatprep.subr.mxu0 0.0
        %6017 = vmatpush1.msra.mxu0 0.0
        %6018 = vmatprep.subr.mxu0 0.0
        %6019 = vmatpush1.msra.mxu0 0.0
        %6020 = vmatprep.subr.mxu0 0.0
        %6021 = vmatpush1.msra.mxu0 0.0
        %6022 = vmatprep.subr.mxu0 0.0
        %6023 = vmatpush1.msra.mxu0 0.0
        %6024 = vmatprep.subr.mxu0 0.0
        %6025 = vmatpush1.msra.mxu0 0.0
        %6026 = vmatprep.subr.mxu0 0.0
        %6027 = vmatpush1.msra.mxu0 0.0
        %6028 = vmatprep.mubr.f32.mxu0 0.0
        %6029 = vmatmul.mubr.f32.gmra.mrb[0].mxu0 %v5962
        %v6030 = vpop.f32.mrb[0].mxu0
        %v6031 = vadd.f32 0.0, %v6030
        %v6032 = vpop.f32.mrb[0].mxu0
        %6033 = vdwg.mxu0
        %6034 = vrot.lane.b32.xlu0 %v5531, 104
        %v6035 = vpop.permute.xlu0 %6034
        %6036 = vrot.lane.b32.xlu0 %v5531, 72
        %v6037 = vpop.permute.xlu0 %6036
        %v6038 = vsel %vm1284, %v6035, 0
        %v6040 = vsel %vm1284, %v6037, 0
        %6042 = vmatprep.subr.mxu0 0.0
        %6043 = vmatpush1.xpose.msra.mxu0 %v6040
        %6044 = vmatprep.subr.mxu0 0.0
        %6045 = vmatpush1.xpose.msra.mxu0 0.0
        %6046 = vmatprep.subr.mxu0 0.0
        %6047 = vmatpush1.xpose.msra.mxu0 0.0
        %6048 = vmatprep.subr.mxu0 0.0
        %6049 = vmatpush1.xpose.msra.mxu0 0.0
        %6050 = vmatprep.subr.mxu0 0.0
        %6051 = vmatpush1.xpose.msra.mxu0 0.0
        %6052 = vmatprep.subr.mxu0 0.0
        %6053 = vmatpush1.xpose.msra.mxu0 0.0
        %6054 = vmatprep.subr.mxu0 0.0
        %6055 = vmatpush1.xpose.msra.mxu0 0.0
        %6056 = vmatprep.subr.mxu0 0.0
        %6057 = vmatpush1.xpose.msra.mxu0 0.0
        %6058 = vmatprep.subr.mxu0 0.0
        %6059 = vmatpush1.xpose.msra.mxu0 0.0
        %6060 = vmatprep.subr.mxu0 0.0
        %6061 = vmatpush1.xpose.msra.mxu0 0.0
        %6062 = vmatprep.subr.mxu0 0.0
        %6063 = vmatpush1.xpose.msra.mxu0 0.0
        %6064 = vmatprep.subr.mxu0 0.0
        %6065 = vmatpush1.xpose.msra.mxu0 0.0
        %6066 = vmatprep.subr.mxu0 0.0
        %6067 = vmatpush1.xpose.msra.mxu0 0.0
        %6068 = vmatprep.subr.mxu0 0.0
        %6069 = vmatpush1.xpose.msra.mxu0 0.0
        %6070 = vmatprep.subr.mxu0 0.0
        %6071 = vmatpush1.xpose.msra.mxu0 0.0
        %6072 = vmatprep.subr.mxu0 0.0
        %6073 = vmatpush1.xpose.msra.mxu0 0.0
        %6074 = vmatprep.subr.mxu0 0.0
        %6075 = vmatpush1.xpose.msra.mxu0 0.0
        %6076 = vmatprep.subr.mxu0 0.0
        %6077 = vmatpush1.xpose.msra.mxu0 0.0
        %6078 = vmatprep.subr.mxu0 0.0
        %6079 = vmatpush1.xpose.msra.mxu0 0.0
        %6080 = vmatprep.subr.mxu0 0.0
        %6081 = vmatpush1.xpose.msra.mxu0 0.0
        %6082 = vmatprep.subr.mxu0 0.0
        %6083 = vmatpush1.xpose.msra.mxu0 0.0
        %6084 = vmatprep.subr.mxu0 0.0
        %6085 = vmatpush1.xpose.msra.mxu0 0.0
        %6086 = vmatprep.subr.mxu0 0.0
        %6087 = vmatpush1.xpose.msra.mxu0 0.0
        %6088 = vmatprep.subr.mxu0 0.0
        %6089 = vmatpush1.xpose.msra.mxu0 0.0
        %6090 = vmatprep.subr.mxu0 0.0
        %6091 = vmatpush1.xpose.msra.mxu0 0.0
        %6092 = vmatprep.subr.mxu0 0.0
        %6093 = vmatpush1.xpose.msra.mxu0 0.0
        %6094 = vmatprep.subr.mxu0 0.0
        %6095 = vmatpush1.xpose.msra.mxu0 0.0
        %6096 = vmatprep.subr.mxu0 0.0
        %6097 = vmatpush1.xpose.msra.mxu0 0.0
        %6098 = vmatprep.subr.mxu0 0.0
        %6099 = vmatpush1.xpose.msra.mxu0 0.0
        %6100 = vmatprep.subr.mxu0 0.0
        %6101 = vmatpush1.xpose.msra.mxu0 0.0
        %6102 = vmatprep.subr.mxu0 0.0
        %6103 = vmatpush1.xpose.msra.mxu0 0.0
        %6104 = vmatprep.subr.mxu0 0.0
        %6105 = vmatpush1.xpose.msra.mxu0 0.0
        %6106 = vmatprep.mubr.f32.mxu0 0.0
        %6107 = vmatmul.mubr.f32.gmra.mrb[0].mxu0 %v6038
        %v6108 = vpop.f32.mrb[0].mxu0
        %v6109 = vadd.f32 0.0, %v6108
        %v6110 = vpop.f32.mrb[0].mxu0
        %6111 = vdwg.mxu0
        %v6112 = vmul.f32 %v6109, 0.35355338
        %v6113 = vsel %vm3492, %v6112, -inf
        %v6114 = vsel %vm1284, %v6113, -inf
        %6115 = vmax.xlane.f32.xlu0 %v6114
        %v6116 = vpop.xlane.xlu0 %6115
        %v6117 = vsub.f32 %v6113, %v6116
        %v6118 = vmul.f32 %v6117, 1.442695
        %v6119 = vpow.pop %v6118
        %v6120 = vsel %vm1284, %v6119, 0.0
        %6121 = vadd.xlane.f32.xlu0 %v6120
        %v6122 = vpop.xlane.xlu0 %6121
        %v6123 = vrcp.pop %v6122
        %v6124 = vmul.f32 %v6119, %v6123
        %6125 = vrot.lane.b32.xlu0 %v5531, 40
        %v6126 = vpop.permute.xlu0 %6125
        %v6129 = vsel %vm1284, %v6124, 0
        %6131 = vmatprep.subr.mxu0 0.0
        %6132 = vmatpush1.msra.mxu0 %v6126
        %6133 = vmatprep.subr.mxu0 0.0
        %6134 = vmatpush1.msra.mxu0 0.0
        %6135 = vmatprep.subr.mxu0 0.0
        %6136 = vmatpush1.msra.mxu0 0.0
        %6137 = vmatprep.subr.mxu0 0.0
        %6138 = vmatpush1.msra.mxu0 0.0
        %6139 = vmatprep.subr.mxu0 0.0
        %6140 = vmatpush1.msra.mxu0 0.0
        %6141 = vmatprep.subr.mxu0 0.0
        %6142 = vmatpush1.msra.mxu0 0.0
        %6143 = vmatprep.subr.mxu0 0.0
        %6144 = vmatpush1.msra.mxu0 0.0
        %6145 = vmatprep.subr.mxu0 0.0
        %6146 = vmatpush1.msra.mxu0 0.0
        %6147 = vmatprep.subr.mxu0 0.0
        %6148 = vmatpush1.msra.mxu0 0.0
        %6149 = vmatprep.subr.mxu0 0.0
        %6150 = vmatpush1.msra.mxu0 0.0
        %6151 = vmatprep.subr.mxu0 0.0
        %6152 = vmatpush1.msra.mxu0 0.0
        %6153 = vmatprep.subr.mxu0 0.0
        %6154 = vmatpush1.msra.mxu0 0.0
        %6155 = vmatprep.subr.mxu0 0.0
        %6156 = vmatpush1.msra.mxu0 0.0
        %6157 = vmatprep.subr.mxu0 0.0
        %6158 = vmatpush1.msra.mxu0 0.0
        %6159 = vmatprep.subr.mxu0 0.0
        %6160 = vmatpush1.msra.mxu0 0.0
        %6161 = vmatprep.subr.mxu0 0.0
        %6162 = vmatpush1.msra.mxu0 0.0
        %6163 = vmatprep.subr.mxu0 0.0
        %6164 = vmatpush1.msra.mxu0 0.0
        %6165 = vmatprep.subr.mxu0 0.0
        %6166 = vmatpush1.msra.mxu0 0.0
        %6167 = vmatprep.subr.mxu0 0.0
        %6168 = vmatpush1.msra.mxu0 0.0
        %6169 = vmatprep.subr.mxu0 0.0
        %6170 = vmatpush1.msra.mxu0 0.0
        %6171 = vmatprep.subr.mxu0 0.0
        %6172 = vmatpush1.msra.mxu0 0.0
        %6173 = vmatprep.subr.mxu0 0.0
        %6174 = vmatpush1.msra.mxu0 0.0
        %6175 = vmatprep.subr.mxu0 0.0
        %6176 = vmatpush1.msra.mxu0 0.0
        %6177 = vmatprep.subr.mxu0 0.0
        %6178 = vmatpush1.msra.mxu0 0.0
        %6179 = vmatprep.subr.mxu0 0.0
        %6180 = vmatpush1.msra.mxu0 0.0
        %6181 = vmatprep.subr.mxu0 0.0
        %6182 = vmatpush1.msra.mxu0 0.0
        %6183 = vmatprep.subr.mxu0 0.0
        %6184 = vmatpush1.msra.mxu0 0.0
        %6185 = vmatprep.subr.mxu0 0.0
        %6186 = vmatpush1.msra.mxu0 0.0
        %6187 = vmatprep.subr.mxu0 0.0
        %6188 = vmatpush1.msra.mxu0 0.0
        %6189 = vmatprep.subr.mxu0 0.0
        %6190 = vmatpush1.msra.mxu0 0.0
        %6191 = vmatprep.subr.mxu0 0.0
        %6192 = vmatpush1.msra.mxu0 0.0
        %6193 = vmatprep.subr.mxu0 0.0
        %6194 = vmatpush1.msra.mxu0 0.0
        %6195 = vmatprep.mubr.f32.mxu0 0.0
        %6196 = vmatmul.mubr.f32.gmra.mrb[0].mxu0 %v6129
        %v6197 = vpop.f32.mrb[0].mxu0
        %v6198 = vadd.f32 0.0, %v6197
        %v6199 = vpop.f32.mrb[0].mxu0
        %6200 = vdwg.mxu0
        %6202 = vrot.lane.b32.xlu0 %v5864, 8
        %v6203 = vpop.permute.xlu0 %6202
        %6206 = vrot.lane.b32.xlu0 %v6031, 16
        %v6207 = vpop.permute.xlu0 %6206
        %6210 = vrot.lane.b32.xlu0 %v6198, 24
        %v6211 = vpop.permute.xlu0 %6210
        %v6213 = vsel %vm1284, %v5697, %v6203
        %v6214 = vsel %vm1958, %v6213, %v6207
        %v6215 = vsel %vm1960, %v6214, %v6211
        %s6216 = scalar_lea.vmem %s35, 32
        %v6217 = vld [vmem:[%s6216] sm:$0xff]
        %v6218 = vld [vmem:[%s6216 + $0x8] sm:$0xff]
        %v6219 = vld [vmem:[%s6216 + $0x10] sm:$0xff]
        %v6220 = vld [vmem:[%s6216 + $0x18] sm:$0xff]
        %s6221 = scalar_lea.vmem %s37, 1
        %v6222 = vld [vmem:[%s6221] sm:$0x1]
        %v6224 = vlaneseq
        %v6225 = vshrl.u32 %v6224, 7
        %v6226 = vsub.s32 0, %v6225
        %v6227 = vrot.slane %v6222, %v6226
        %v6230 = vsel %vm1207, %v6215, 0
        %6232 = vmatprep.subr.mxu0 0.0
        %6233 = vmatpush1.msra.mxu0 %v6217
        %6234 = vmatprep.subr.mxu0 0.0
        %6235 = vmatpush1.msra.mxu0 %v6218
        %6236 = vmatprep.subr.mxu0 0.0
        %6237 = vmatpush1.msra.mxu0 %v6219
        %6238 = vmatprep.subr.mxu0 0.0
        %6239 = vmatpush1.msra.mxu0 %v6220
        %6240 = vmatprep.subr.mxu0 0.0
        %6241 = vmatpush1.msra.mxu0 0.0
        %6242 = vmatprep.subr.mxu0 0.0
        %6243 = vmatpush1.msra.mxu0 0.0
        %6244 = vmatprep.subr.mxu0 0.0
        %6245 = vmatpush1.msra.mxu0 0.0
        %6246 = vmatprep.subr.mxu0 0.0
        %6247 = vmatpush1.msra.mxu0 0.0
        %6248 = vmatprep.subr.mxu0 0.0
        %6249 = vmatpush1.msra.mxu0 0.0
        %6250 = vmatprep.subr.mxu0 0.0
        %6251 = vmatpush1.msra.mxu0 0.0
        %6252 = vmatprep.subr.mxu0 0.0
        %6253 = vmatpush1.msra.mxu0 0.0
        %6254 = vmatprep.subr.mxu0 0.0
        %6255 = vmatpush1.msra.mxu0 0.0
        %6256 = vmatprep.subr.mxu0 0.0
        %6257 = vmatpush1.msra.mxu0 0.0
        %6258 = vmatprep.subr.mxu0 0.0
        %6259 = vmatpush1.msra.mxu0 0.0
        %6260 = vmatprep.subr.mxu0 0.0
        %6261 = vmatpush1.msra.mxu0 0.0
        %6262 = vmatprep.subr.mxu0 0.0
        %6263 = vmatpush1.msra.mxu0 0.0
        %6264 = vmatprep.subr.mxu0 0.0
        %6265 = vmatpush1.msra.mxu0 0.0
        %6266 = vmatprep.subr.mxu0 0.0
        %6267 = vmatpush1.msra.mxu0 0.0
        %6268 = vmatprep.subr.mxu0 0.0
        %6269 = vmatpush1.msra.mxu0 0.0
        %6270 = vmatprep.subr.mxu0 0.0
        %6271 = vmatpush1.msra.mxu0 0.0
        %6272 = vmatprep.subr.mxu0 0.0
        %6273 = vmatpush1.msra.mxu0 0.0
        %6274 = vmatprep.subr.mxu0 0.0
        %6275 = vmatpush1.msra.mxu0 0.0
        %6276 = vmatprep.subr.mxu0 0.0
        %6277 = vmatpush1.msra.mxu0 0.0
        %6278 = vmatprep.subr.mxu0 0.0
        %6279 = vmatpush1.msra.mxu0 0.0
        %6280 = vmatprep.subr.mxu0 0.0
        %6281 = vmatpush1.msra.mxu0 0.0
        %6282 = vmatprep.subr.mxu0 0.0
        %6283 = vmatpush1.msra.mxu0 0.0
        %6284 = vmatprep.subr.mxu0 0.0
        %6285 = vmatpush1.msra.mxu0 0.0
        %6286 = vmatprep.subr.mxu0 0.0
        %6287 = vmatpush1.msra.mxu0 0.0
        %6288 = vmatprep.subr.mxu0 0.0
        %6289 = vmatpush1.msra.mxu0 0.0
        %6290 = vmatprep.subr.mxu0 0.0
        %6291 = vmatpush1.msra.mxu0 0.0
        %6292 = vmatprep.subr.mxu0 0.0
        %6293 = vmatpush1.msra.mxu0 0.0
        %6294 = vmatprep.subr.mxu0 0.0
        %6295 = vmatpush1.msra.mxu0 0.0
        %6296 = vmatprep.mubr.f32.mxu0 0.0
        %6297 = vmatmul.mubr.f32.gmra.mrb[0].mxu0 %v6230
        %v6298 = vpop.f32.mrb[0].mxu0
        %v6299 = vadd.f32 %v6227, %v6298
        %v6300 = vpop.f32.mrb[0].mxu0
        %6301 = vdwg.mxu0
        %v6302 = vadd.f32 %v5455, %v6299
        %s6303 = scalar_lea.vmem %s59, 1
        %v6304 = vld [vmem:[%s6303] sm:$0x1]
        %s6305 = scalar_lea.vmem %s61, 1
        %v6306 = vld [vmem:[%s6305] sm:$0x1]
        %v6307 = vsel %vm1207, %v6302, 0.0
        %6308 = vadd.xlane.f32.xlu0 %v6307
        %v6309 = vpop.xlane.xlu0 %6308
        %v6310 = vmul.f32 %v6309, %v2052
        %v6311 = vsub.f32 %v6302, %v6310
        %v6312 = vmul.f32 %v6311, %v6311
        %v6313 = vsel %vm1207, %v6312, 0.0
        %6314 = vadd.xlane.f32.xlu0 %v6313
        %v6315 = vpop.xlane.xlu0 %6314
        %v6316 = vmul.f32 %v6315, %v2052
        %v6317 = vadd.f32 %v6316, 1e-05
        %v6318 = vrsqrt.pop %v6317
        %v6319 = vmul.f32 %v6311, %v6318
        %v6321 = vlaneseq
        %v6322 = vshrl.u32 %v6321, 7
        %v6323 = vsub.s32 0, %v6322
        %v6324 = vrot.slane %v6304, %v6323
        %v6326 = vmul.f32 %v6319, %v6324
        %v6328 = vlaneseq
        %v6329 = vshrl.u32 %v6328, 7
        %v6330 = vsub.s32 0, %v6329
        %v6331 = vrot.slane %v6306, %v6330
        %v6333 = vadd.f32 %v6326, %v6331
        %s6334 = scalar_lea.vmem %s39, 32
        %v6335 = vld [vmem:[%s6334] sm:$0xff]
        %v6336 = vld [vmem:[%s6334 + $0x8] sm:$0xff]
        %v6337 = vld [vmem:[%s6334 + $0x10] sm:$0xff]
        %v6338 = vld [vmem:[%s6334 + $0x18] sm:$0xff]
        %s6339 = scalar_lea.vmem %s41, 1
        %v6340 = vld [vmem:[%s6339] sm:$0x1]
        %v6342 = vlaneseq
        %v6343 = vshrl.u32 %v6342, 7
        %v6344 = vsub.s32 0, %v6343
        %v6345 = vrot.slane %v6340, %v6344
        %v6348 = vsel %vm1207, %v6333, 0
        %6350 = vmatprep.subr.mxu0 0.0
        %6351 = vmatpush1.msra.mxu0 %v6335
        %6352 = vmatprep.subr.mxu0 0.0
        %6353 = vmatpush1.msra.mxu0 %v6336
        %6354 = vmatprep.subr.mxu0 0.0
        %6355 = vmatpush1.msra.mxu0 %v6337
        %6356 = vmatprep.subr.mxu0 0.0
        %6357 = vmatpush1.msra.mxu0 %v6338
        %6358 = vmatprep.subr.mxu0 0.0
        %6359 = vmatpush1.msra.mxu0 0.0
        %6360 = vmatprep.subr.mxu0 0.0
        %6361 = vmatpush1.msra.mxu0 0.0
        %6362 = vmatprep.subr.mxu0 0.0
        %6363 = vmatpush1.msra.mxu0 0.0
        %6364 = vmatprep.subr.mxu0 0.0
        %6365 = vmatpush1.msra.mxu0 0.0
        %6366 = vmatprep.subr.mxu0 0.0
        %6367 = vmatpush1.msra.mxu0 0.0
        %6368 = vmatprep.subr.mxu0 0.0
        %6369 = vmatpush1.msra.mxu0 0.0
        %6370 = vmatprep.subr.mxu0 0.0
        %6371 = vmatpush1.msra.mxu0 0.0
        %6372 = vmatprep.subr.mxu0 0.0
        %6373 = vmatpush1.msra.mxu0 0.0
        %6374 = vmatprep.subr.mxu0 0.0
        %6375 = vmatpush1.msra.mxu0 0.0
        %6376 = vmatprep.subr.mxu0 0.0
        %6377 = vmatpush1.msra.mxu0 0.0
        %6378 = vmatprep.subr.mxu0 0.0
        %6379 = vmatpush1.msra.mxu0 0.0
        %6380 = vmatprep.subr.mxu0 0.0
        %6381 = vmatpush1.msra.mxu0 0.0
        %6382 = vmatprep.subr.mxu0 0.0
        %6383 = vmatpush1.msra.mxu0 0.0
        %6384 = vmatprep.subr.mxu0 0.0
        %6385 = vmatpush1.msra.mxu0 0.0
        %6386 = vmatprep.subr.mxu0 0.0
        %6387 = vmatpush1.msra.mxu0 0.0
        %6388 = vmatprep.subr.mxu0 0.0
        %6389 = vmatpush1.msra.mxu0 0.0
        %6390 = vmatprep.subr.mxu0 0.0
        %6391 = vmatpush1.msra.mxu0 0.0
        %6392 = vmatprep.subr.mxu0 0.0
        %6393 = vmatpush1.msra.mxu0 0.0
        %6394 = vmatprep.subr.mxu0 0.0
        %6395 = vmatpush1.msra.mxu0 0.0
        %6396 = vmatprep.subr.mxu0 0.0
        %6397 = vmatpush1.msra.mxu0 0.0
        %6398 = vmatprep.subr.mxu0 0.0
        %6399 = vmatpush1.msra.mxu0 0.0
        %6400 = vmatprep.subr.mxu0 0.0
        %6401 = vmatpush1.msra.mxu0 0.0
        %6402 = vmatprep.subr.mxu0 0.0
        %6403 = vmatpush1.msra.mxu0 0.0
        %6404 = vmatprep.subr.mxu0 0.0
        %6405 = vmatpush1.msra.mxu0 0.0
        %6406 = vmatprep.subr.mxu0 0.0
        %6407 = vmatpush1.msra.mxu0 0.0
        %6408 = vmatprep.subr.mxu0 0.0
        %6409 = vmatpush1.msra.mxu0 0.0
        %6410 = vmatprep.subr.mxu0 0.0
        %6411 = vmatpush1.msra.mxu0 0.0
        %6412 = vmatprep.subr.mxu0 0.0
        %6413 = vmatpush1.msra.mxu0 0.0
        %6414 = vmatprep.mubr.f32.mxu0 0.0
        %6415 = vmatmul.mubr.f32.gmra.mrb[0].mxu0 %v6348
        %v6416 = vpop.f32.mrb[0].mxu0
        %v6417 = vadd.f32 %v6345, %v6416
        %v6418 = vpop.f32.mrb[0].mxu0
        %6419 = vdwg.mxu0
        %s6420 = scalar_lea.vmem %s43, 32
        %v6421 = vld [vmem:[%s6420] sm:$0xff]
        %v6422 = vld [vmem:[%s6420 + $0x8] sm:$0xff]
        %v6423 = vld [vmem:[%s6420 + $0x10] sm:$0xff]
        %v6424 = vld [vmem:[%s6420 + $0x18] sm:$0xff]
        %s6425 = scalar_lea.vmem %s45, 1
        %v6426 = vld [vmem:[%s6425] sm:$0x1]
        %v6428 = vlaneseq
        %v6429 = vshrl.u32 %v6428, 7
        %v6430 = vsub.s32 0, %v6429
        %v6431 = vrot.slane %v6426, %v6430
        %6433 = vmatprep.subr.mxu0 0.0
        %6434 = vmatpush1.msra.mxu0 %v6421
        %6435 = vmatprep.subr.mxu0 0.0
        %6436 = vmatpush1.msra.mxu0 %v6422
        %6437 = vmatprep.subr.mxu0 0.0
        %6438 = vmatpush1.msra.mxu0 %v6423
        %6439 = vmatprep.subr.mxu0 0.0
        %6440 = vmatpush1.msra.mxu0 %v6424
        %6441 = vmatprep.subr.mxu0 0.0
        %6442 = vmatpush1.msra.mxu0 0.0
        %6443 = vmatprep.subr.mxu0 0.0
        %6444 = vmatpush1.msra.mxu0 0.0
        %6445 = vmatprep.subr.mxu0 0.0
        %6446 = vmatpush1.msra.mxu0 0.0
        %6447 = vmatprep.subr.mxu0 0.0
        %6448 = vmatpush1.msra.mxu0 0.0
        %6449 = vmatprep.subr.mxu0 0.0
        %6450 = vmatpush1.msra.mxu0 0.0
        %6451 = vmatprep.subr.mxu0 0.0
        %6452 = vmatpush1.msra.mxu0 0.0
        %6453 = vmatprep.subr.mxu0 0.0
        %6454 = vmatpush1.msra.mxu0 0.0
        %6455 = vmatprep.subr.mxu0 0.0
        %6456 = vmatpush1.msra.mxu0 0.0
        %6457 = vmatprep.subr.mxu0 0.0
        %6458 = vmatpush1.msra.mxu0 0.0
        %6459 = vmatprep.subr.mxu0 0.0
        %6460 = vmatpush1.msra.mxu0 0.0
        %6461 = vmatprep.subr.mxu0 0.0
        %6462 = vmatpush1.msra.mxu0 0.0
        %6463 = vmatprep.subr.mxu0 0.0
        %6464 = vmatpush1.msra.mxu0 0.0
        %6465 = vmatprep.subr.mxu0 0.0
        %6466 = vmatpush1.msra.mxu0 0.0
        %6467 = vmatprep.subr.mxu0 0.0
        %6468 = vmatpush1.msra.mxu0 0.0
        %6469 = vmatprep.subr.mxu0 0.0
        %6470 = vmatpush1.msra.mxu0 0.0
        %6471 = vmatprep.subr.mxu0 0.0
        %6472 = vmatpush1.msra.mxu0 0.0
        %6473 = vmatprep.subr.mxu0 0.0
        %6474 = vmatpush1.msra.mxu0 0.0
        %6475 = vmatprep.subr.mxu0 0.0
        %6476 = vmatpush1.msra.mxu0 0.0
        %6477 = vmatprep.subr.mxu0 0.0
        %6478 = vmatpush1.msra.mxu0 0.0
        %6479 = vmatprep.subr.mxu0 0.0
        %6480 = vmatpush1.msra.mxu0 0.0
        %6481 = vmatprep.subr.mxu0 0.0
        %6482 = vmatpush1.msra.mxu0 0.0
        %6483 = vmatprep.subr.mxu0 0.0
        %6484 = vmatpush1.msra.mxu0 0.0
        %6485 = vmatprep.subr.mxu0 0.0
        %6486 = vmatpush1.msra.mxu0 0.0
        %6487 = vmatprep.subr.mxu0 0.0
        %6488 = vmatpush1.msra.mxu0 0.0
        %6489 = vmatprep.subr.mxu0 0.0
        %6490 = vmatpush1.msra.mxu0 0.0
        %6491 = vmatprep.subr.mxu0 0.0
        %6492 = vmatpush1.msra.mxu0 0.0
        %6493 = vmatprep.subr.mxu0 0.0
        %6494 = vmatpush1.msra.mxu0 0.0
        %6495 = vmatprep.subr.mxu0 0.0
        %6496 = vmatpush1.msra.mxu0 0.0
        %6497 = vmatprep.mubr.f32.mxu0 0.0
        %6498 = vmatmul.mubr.f32.gmra.mrb[0].mxu0 %v4385
        %v6499 = vpop.f32.mrb[0].mxu0
        %v6500 = vadd.f32 %v6431, %v6499
        %v6501 = vpop.f32.mrb[0].mxu0
        %6502 = vdwg.mxu0
        %v6504 = vsel %vm1284, %v6417, 0
        %v6507 = vsel %vm1284, %v6500, 0
        %6509 = vmatprep.subr.mxu0 0.0
        %6510 = vmatpush1.xpose.msra.mxu0 %v6507
        %6511 = vmatprep.subr.mxu0 0.0
        %6512 = vmatpush1.xpose.msra.mxu0 0.0
        %6513 = vmatprep.subr.mxu0 0.0
        %6514 = vmatpush1.xpose.msra.mxu0 0.0
        %6515 = vmatprep.subr.mxu0 0.0
        %6516 = vmatpush1.xpose.msra.mxu0 0.0
        %6517 = vmatprep.subr.mxu0 0.0
        %6518 = vmatpush1.xpose.msra.mxu0 0.0
        %6519 = vmatprep.subr.mxu0 0.0
        %6520 = vmatpush1.xpose.msra.mxu0 0.0
        %6521 = vmatprep.subr.mxu0 0.0
        %6522 = vmatpush1.xpose.msra.mxu0 0.0
        %6523 = vmatprep.subr.mxu0 0.0
        %6524 = vmatpush1.xpose.msra.mxu0 0.0
        %6525 = vmatprep.subr.mxu0 0.0
        %6526 = vmatpush1.xpose.msra.mxu0 0.0
        %6527 = vmatprep.subr.mxu0 0.0
        %6528 = vmatpush1.xpose.msra.mxu0 0.0
        %6529 = vmatprep.subr.mxu0 0.0
        %6530 = vmatpush1.xpose.msra.mxu0 0.0
        %6531 = vmatprep.subr.mxu0 0.0
        %6532 = vmatpush1.xpose.msra.mxu0 0.0
        %6533 = vmatprep.subr.mxu0 0.0
        %6534 = vmatpush1.xpose.msra.mxu0 0.0
        %6535 = vmatprep.subr.mxu0 0.0
        %6536 = vmatpush1.xpose.msra.mxu0 0.0
        %6537 = vmatprep.subr.mxu0 0.0
        %6538 = vmatpush1.xpose.msra.mxu0 0.0
        %6539 = vmatprep.subr.mxu0 0.0
        %6540 = vmatpush1.xpose.msra.mxu0 0.0
        %6541 = vmatprep.subr.mxu0 0.0
        %6542 = vmatpush1.xpose.msra.mxu0 0.0
        %6543 = vmatprep.subr.mxu0 0.0
        %6544 = vmatpush1.xpose.msra.mxu0 0.0
        %6545 = vmatprep.subr.mxu0 0.0
        %6546 = vmatpush1.xpose.msra.mxu0 0.0
        %6547 = vmatprep.subr.mxu0 0.0
        %6548 = vmatpush1.xpose.msra.mxu0 0.0
        %6549 = vmatprep.subr.mxu0 0.0
        %6550 = vmatpush1.xpose.msra.mxu0 0.0
        %6551 = vmatprep.subr.mxu0 0.0
        %6552 = vmatpush1.xpose.msra.mxu0 0.0
        %6553 = vmatprep.subr.mxu0 0.0
        %6554 = vmatpush1.xpose.msra.mxu0 0.0
        %6555 = vmatprep.subr.mxu0 0.0
        %6556 = vmatpush1.xpose.msra.mxu0 0.0
        %6557 = vmatprep.subr.mxu0 0.0
        %6558 = vmatpush1.xpose.msra.mxu0 0.0
        %6559 = vmatprep.subr.mxu0 0.0
        %6560 = vmatpush1.xpose.msra.mxu0 0.0
        %6561 = vmatprep.subr.mxu0 0.0
        %6562 = vmatpush1.xpose.msra.mxu0 0.0
        %6563 = vmatprep.subr.mxu0 0.0
        %6564 = vmatpush1.xpose.msra.mxu0 0.0
        %6565 = vmatprep.subr.mxu0 0.0
        %6566 = vmatpush1.xpose.msra.mxu0 0.0
        %6567 = vmatprep.subr.mxu0 0.0
        %6568 = vmatpush1.xpose.msra.mxu0 0.0
        %6569 = vmatprep.subr.mxu0 0.0
        %6570 = vmatpush1.xpose.msra.mxu0 0.0
        %6571 = vmatprep.subr.mxu0 0.0
        %6572 = vmatpush1.xpose.msra.mxu0 0.0
        %6573 = vmatprep.mubr.f32.mxu0 0.0
        %6574 = vmatmul.mubr.f32.gmra.mrb[0].mxu0 %v6504
        %v6575 = vpop.f32.mrb[0].mxu0
        %v6576 = vadd.f32 0.0, %v6575
        %v6577 = vpop.f32.mrb[0].mxu0
        %6578 = vdwg.mxu0
        %v6579 = vmul.f32 %v6576, 0.35355338
        %v6580 = vsel %vm1284, %v6579, -inf
        %6581 = vmax.xlane.f32.xlu0 %v6580
        %v6582 = vpop.xlane.xlu0 %6581
        %v6583 = vsub.f32 %v6579, %v6582
        %v6584 = vmul.f32 %v6583, 1.442695
        %v6585 = vpow.pop %v6584
        %v6586 = vsel %vm1284, %v6585, 0.0
        %6587 = vadd.xlane.f32.xlu0 %v6586
        %v6588 = vpop.xlane.xlu0 %6587
        %v6589 = vrcp.pop %v6588
        %v6590 = vmul.f32 %v6585, %v6589
        %6591 = vrot.lane.b32.xlu0 %v6500, 96
        %v6592 = vpop.permute.xlu0 %6591
        %v6595 = vsel %vm1284, %v6590, 0
        %6597 = vmatprep.subr.mxu0 0.0
        %6598 = vmatpush1.msra.mxu0 %v6592
        %6599 = vmatprep.subr.mxu0 0.0
        %6600 = vmatpush1.msra.mxu0 0.0
        %6601 = vmatprep.subr.mxu0 0.0
        %6602 = vmatpush1.msra.mxu0 0.0
        %6603 = vmatprep.subr.mxu0 0.0
        %6604 = vmatpush1.msra.mxu0 0.0
        %6605 = vmatprep.subr.mxu0 0.0
        %6606 = vmatpush1.msra.mxu0 0.0
        %6607 = vmatprep.subr.mxu0 0.0
        %6608 = vmatpush1.msra.mxu0 0.0
        %6609 = vmatprep.subr.mxu0 0.0
        %6610 = vmatpush1.msra.mxu0 0.0
        %6611 = vmatprep.subr.mxu0 0.0
        %6612 = vmatpush1.msra.mxu0 0.0
        %6613 = vmatprep.subr.mxu0 0.0
        %6614 = vmatpush1.msra.mxu0 0.0
        %6615 = vmatprep.subr.mxu0 0.0
        %6616 = vmatpush1.msra.mxu0 0.0
        %6617 = vmatprep.subr.mxu0 0.0
        %6618 = vmatpush1.msra.mxu0 0.0
        %6619 = vmatprep.subr.mxu0 0.0
        %6620 = vmatpush1.msra.mxu0 0.0
        %6621 = vmatprep.subr.mxu0 0.0
        %6622 = vmatpush1.msra.mxu0 0.0
        %6623 = vmatprep.subr.mxu0 0.0
        %6624 = vmatpush1.msra.mxu0 0.0
        %6625 = vmatprep.subr.mxu0 0.0
        %6626 = vmatpush1.msra.mxu0 0.0
        %6627 = vmatprep.subr.mxu0 0.0
        %6628 = vmatpush1.msra.mxu0 0.0
        %6629 = vmatprep.subr.mxu0 0.0
        %6630 = vmatpush1.msra.mxu0 0.0
        %6631 = vmatprep.subr.mxu0 0.0
        %6632 = vmatpush1.msra.mxu0 0.0
        %6633 = vmatprep.subr.mxu0 0.0
        %6634 = vmatpush1.msra.mxu0 0.0
        %6635 = vmatprep.subr.mxu0 0.0
        %6636 = vmatpush1.msra.mxu0 0.0
        %6637 = vmatprep.subr.mxu0 0.0
        %6638 = vmatpush1.msra.mxu0 0.0
        %6639 = vmatprep.subr.mxu0 0.0
        %6640 = vmatpush1.msra.mxu0 0.0
        %6641 = vmatprep.subr.mxu0 0.0
        %6642 = vmatpush1.msra.mxu0 0.0
        %6643 = vmatprep.subr.mxu0 0.0
        %6644 = vmatpush1.msra.mxu0 0.0
        %6645 = vmatprep.subr.mxu0 0.0
        %6646 = vmatpush1.msra.mxu0 0.0
        %6647 = vmatprep.subr.mxu0 0.0
        %6648 = vmatpush1.msra.mxu0 0.0
        %6649 = vmatprep.subr.mxu0 0.0
        %6650 = vmatpush1.msra.mxu0 0.0
        %6651 = vmatprep.subr.mxu0 0.0
        %6652 = vmatpush1.msra.mxu0 0.0
        %6653 = vmatprep.subr.mxu0 0.0
        %6654 = vmatpush1.msra.mxu0 0.0
        %6655 = vmatprep.subr.mxu0 0.0
        %6656 = vmatpush1.msra.mxu0 0.0
        %6657 = vmatprep.subr.mxu0 0.0
        %6658 = vmatpush1.msra.mxu0 0.0
        %6659 = vmatprep.subr.mxu0 0.0
        %6660 = vmatpush1.msra.mxu0 0.0
        %6661 = vmatprep.mubr.f32.mxu0 0.0
        %6662 = vmatmul.mubr.f32.gmra.mrb[0].mxu0 %v6595
        %v6663 = vpop.f32.mrb[0].mxu0
        %v6664 = vadd.f32 0.0, %v6663
        %v6665 = vpop.f32.mrb[0].mxu0
        %6666 = vdwg.mxu0
        %6667 = vrot.lane.b32.xlu0 %v6417, 120
        %v6668 = vpop.permute.xlu0 %6667
        %6669 = vrot.lane.b32.xlu0 %v6500, 120
        %v6670 = vpop.permute.xlu0 %6669
        %v6671 = vsel %vm1284, %v6668, 0
        %v6673 = vsel %vm1284, %v6670, 0
        %6675 = vmatprep.subr.mxu0 0.0
        %6676 = vmatpush1.xpose.msra.mxu0 %v6673
        %6677 = vmatprep.subr.mxu0 0.0
        %6678 = vmatpush1.xpose.msra.mxu0 0.0
        %6679 = vmatprep.subr.mxu0 0.0
        %6680 = vmatpush1.xpose.msra.mxu0 0.0
        %6681 = vmatprep.subr.mxu0 0.0
        %6682 = vmatpush1.xpose.msra.mxu0 0.0
        %6683 = vmatprep.subr.mxu0 0.0
        %6684 = vmatpush1.xpose.msra.mxu0 0.0
        %6685 = vmatprep.subr.mxu0 0.0
        %6686 = vmatpush1.xpose.msra.mxu0 0.0
        %6687 = vmatprep.subr.mxu0 0.0
        %6688 = vmatpush1.xpose.msra.mxu0 0.0
        %6689 = vmatprep.subr.mxu0 0.0
        %6690 = vmatpush1.xpose.msra.mxu0 0.0
        %6691 = vmatprep.subr.mxu0 0.0
        %6692 = vmatpush1.xpose.msra.mxu0 0.0
        %6693 = vmatprep.subr.mxu0 0.0
        %6694 = vmatpush1.xpose.msra.mxu0 0.0
        %6695 = vmatprep.subr.mxu0 0.0
        %6696 = vmatpush1.xpose.msra.mxu0 0.0
        %6697 = vmatprep.subr.mxu0 0.0
        %6698 = vmatpush1.xpose.msra.mxu0 0.0
        %6699 = vmatprep.subr.mxu0 0.0
        %6700 = vmatpush1.xpose.msra.mxu0 0.0
        %6701 = vmatprep.subr.mxu0 0.0
        %6702 = vmatpush1.xpose.msra.mxu0 0.0
        %6703 = vmatprep.subr.mxu0 0.0
        %6704 = vmatpush1.xpose.msra.mxu0 0.0
        %6705 = vmatprep.subr.mxu0 0.0
        %6706 = vmatpush1.xpose.msra.mxu0 0.0
        %6707 = vmatprep.subr.mxu0 0.0
        %6708 = vmatpush1.xpose.msra.mxu0 0.0
        %6709 = vmatprep.subr.mxu0 0.0
        %6710 = vmatpush1.xpose.msra.mxu0 0.0
        %6711 = vmatprep.subr.mxu0 0.0
        %6712 = vmatpush1.xpose.msra.mxu0 0.0
        %6713 = vmatprep.subr.mxu0 0.0
        %6714 = vmatpush1.xpose.msra.mxu0 0.0
        %6715 = vmatprep.subr.mxu0 0.0
        %6716 = vmatpush1.xpose.msra.mxu0 0.0
        %6717 = vmatprep.subr.mxu0 0.0
        %6718 = vmatpush1.xpose.msra.mxu0 0.0
        %6719 = vmatprep.subr.mxu0 0.0
        %6720 = vmatpush1.xpose.msra.mxu0 0.0
        %6721 = vmatprep.subr.mxu0 0.0
        %6722 = vmatpush1.xpose.msra.mxu0 0.0
        %6723 = vmatprep.subr.mxu0 0.0
        %6724 = vmatpush1.xpose.msra.mxu0 0.0
        %6725 = vmatprep.subr.mxu0 0.0
        %6726 = vmatpush1.xpose.msra.mxu0 0.0
        %6727 = vmatprep.subr.mxu0 0.0
        %6728 = vmatpush1.xpose.msra.mxu0 0.0
        %6729 = vmatprep.subr.mxu0 0.0
        %6730 = vmatpush1.xpose.msra.mxu0 0.0
        %6731 = vmatprep.subr.mxu0 0.0
        %6732 = vmatpush1.xpose.msra.mxu0 0.0
        %6733 = vmatprep.subr.mxu0 0.0
        %6734 = vmatpush1.xpose.msra.mxu0 0.0
        %6735 = vmatprep.subr.mxu0 0.0
        %6736 = vmatpush1.xpose.msra.mxu0 0.0
        %6737 = vmatprep.subr.mxu0 0.0
        %6738 = vmatpush1.xpose.msra.mxu0 0.0
        %6739 = vmatprep.mubr.f32.mxu0 0.0
        %6740 = vmatmul.mubr.f32.gmra.mrb[0].mxu0 %v6671
        %v6741 = vpop.f32.mrb[0].mxu0
        %v6742 = vadd.f32 0.0, %v6741
        %v6743 = vpop.f32.mrb[0].mxu0
        %6744 = vdwg.mxu0
        %v6745 = vmul.f32 %v6742, 0.35355338
        %v6746 = vsel %vm1284, %v6745, -inf
        %6747 = vmax.xlane.f32.xlu0 %v6746
        %v6748 = vpop.xlane.xlu0 %6747
        %v6749 = vsub.f32 %v6745, %v6748
        %v6750 = vmul.f32 %v6749, 1.442695
        %v6751 = vpow.pop %v6750
        %v6752 = vsel %vm1284, %v6751, 0.0
        %6753 = vadd.xlane.f32.xlu0 %v6752
        %v6754 = vpop.xlane.xlu0 %6753
        %v6755 = vrcp.pop %v6754
        %v6756 = vmul.f32 %v6751, %v6755
        %6757 = vrot.lane.b32.xlu0 %v6500, 88
        %v6758 = vpop.permute.xlu0 %6757
        %v6761 = vsel %vm1284, %v6756, 0
        %6763 = vmatprep.subr.mxu0 0.0
        %6764 = vmatpush1.msra.mxu0 %v6758
        %6765 = vmatprep.subr.mxu0 0.0
        %6766 = vmatpush1.msra.mxu0 0.0
        %6767 = vmatprep.subr.mxu0 0.0
        %6768 = vmatpush1.msra.mxu0 0.0
        %6769 = vmatprep.subr.mxu0 0.0
        %6770 = vmatpush1.msra.mxu0 0.0
        %6771 = vmatprep.subr.mxu0 0.0
        %6772 = vmatpush1.msra.mxu0 0.0
        %6773 = vmatprep.subr.mxu0 0.0
        %6774 = vmatpush1.msra.mxu0 0.0
        %6775 = vmatprep.subr.mxu0 0.0
        %6776 = vmatpush1.msra.mxu0 0.0
        %6777 = vmatprep.subr.mxu0 0.0
        %6778 = vmatpush1.msra.mxu0 0.0
        %6779 = vmatprep.subr.mxu0 0.0
        %6780 = vmatpush1.msra.mxu0 0.0
        %6781 = vmatprep.subr.mxu0 0.0
        %6782 = vmatpush1.msra.mxu0 0.0
        %6783 = vmatprep.subr.mxu0 0.0
        %6784 = vmatpush1.msra.mxu0 0.0
        %6785 = vmatprep.subr.mxu0 0.0
        %6786 = vmatpush1.msra.mxu0 0.0
        %6787 = vmatprep.subr.mxu0 0.0
        %6788 = vmatpush1.msra.mxu0 0.0
        %6789 = vmatprep.subr.mxu0 0.0
        %6790 = vmatpush1.msra.mxu0 0.0
        %6791 = vmatprep.subr.mxu0 0.0
        %6792 = vmatpush1.msra.mxu0 0.0
        %6793 = vmatprep.subr.mxu0 0.0
        %6794 = vmatpush1.msra.mxu0 0.0
        %6795 = vmatprep.subr.mxu0 0.0
        %6796 = vmatpush1.msra.mxu0 0.0
        %6797 = vmatprep.subr.mxu0 0.0
        %6798 = vmatpush1.msra.mxu0 0.0
        %6799 = vmatprep.subr.mxu0 0.0
        %6800 = vmatpush1.msra.mxu0 0.0
        %6801 = vmatprep.subr.mxu0 0.0
        %6802 = vmatpush1.msra.mxu0 0.0
        %6803 = vmatprep.subr.mxu0 0.0
        %6804 = vmatpush1.msra.mxu0 0.0
        %6805 = vmatprep.subr.mxu0 0.0
        %6806 = vmatpush1.msra.mxu0 0.0
        %6807 = vmatprep.subr.mxu0 0.0
        %6808 = vmatpush1.msra.mxu0 0.0
        %6809 = vmatprep.subr.mxu0 0.0
        %6810 = vmatpush1.msra.mxu0 0.0
        %6811 = vmatprep.subr.mxu0 0.0
        %6812 = vmatpush1.msra.mxu0 0.0
        %6813 = vmatprep.subr.mxu0 0.0
        %6814 = vmatpush1.msra.mxu0 0.0
        %6815 = vmatprep.subr.mxu0 0.0
        %6816 = vmatpush1.msra.mxu0 0.0
        %6817 = vmatprep.subr.mxu0 0.0
        %6818 = vmatpush1.msra.mxu0 0.0
        %6819 = vmatprep.subr.mxu0 0.0
        %6820 = vmatpush1.msra.mxu0 0.0
        %6821 = vmatprep.subr.mxu0 0.0
        %6822 = vmatpush1.msra.mxu0 0.0
        %6823 = vmatprep.subr.mxu0 0.0
        %6824 = vmatpush1.msra.mxu0 0.0
        %6825 = vmatprep.subr.mxu0 0.0
        %6826 = vmatpush1.msra.mxu0 0.0
        %6827 = vmatprep.mubr.f32.mxu0 0.0
        %6828 = vmatmul.mubr.f32.gmra.mrb[0].mxu0 %v6761
        %v6829 = vpop.f32.mrb[0].mxu0
        %v6830 = vadd.f32 0.0, %v6829
        %v6831 = vpop.f32.mrb[0].mxu0
        %6832 = vdwg.mxu0
        %6833 = vrot.lane.b32.xlu0 %v6417, 112
        %v6834 = vpop.permute.xlu0 %6833
        %6835 = vrot.lane.b32.xlu0 %v6500, 112
        %v6836 = vpop.permute.xlu0 %6835
        %v6837 = vsel %vm1284, %v6834, 0
        %v6839 = vsel %vm1284, %v6836, 0
        %6841 = vmatprep.subr.mxu0 0.0
        %6842 = vmatpush1.xpose.msra.mxu0 %v6839
        %6843 = vmatprep.subr.mxu0 0.0
        %6844 = vmatpush1.xpose.msra.mxu0 0.0
        %6845 = vmatprep.subr.mxu0 0.0
        %6846 = vmatpush1.xpose.msra.mxu0 0.0
        %6847 = vmatprep.subr.mxu0 0.0
        %6848 = vmatpush1.xpose.msra.mxu0 0.0
        %6849 = vmatprep.subr.mxu0 0.0
        %6850 = vmatpush1.xpose.msra.mxu0 0.0
        %6851 = vmatprep.subr.mxu0 0.0
        %6852 = vmatpush1.xpose.msra.mxu0 0.0
        %6853 = vmatprep.subr.mxu0 0.0
        %6854 = vmatpush1.xpose.msra.mxu0 0.0
        %6855 = vmatprep.subr.mxu0 0.0
        %6856 = vmatpush1.xpose.msra.mxu0 0.0
        %6857 = vmatprep.subr.mxu0 0.0
        %6858 = vmatpush1.xpose.msra.mxu0 0.0
        %6859 = vmatprep.subr.mxu0 0.0
        %6860 = vmatpush1.xpose.msra.mxu0 0.0
        %6861 = vmatprep.subr.mxu0 0.0
        %6862 = vmatpush1.xpose.msra.mxu0 0.0
        %6863 = vmatprep.subr.mxu0 0.0
        %6864 = vmatpush1.xpose.msra.mxu0 0.0
        %6865 = vmatprep.subr.mxu0 0.0
        %6866 = vmatpush1.xpose.msra.mxu0 0.0
        %6867 = vmatprep.subr.mxu0 0.0
        %6868 = vmatpush1.xpose.msra.mxu0 0.0
        %6869 = vmatprep.subr.mxu0 0.0
        %6870 = vmatpush1.xpose.msra.mxu0 0.0
        %6871 = vmatprep.subr.mxu0 0.0
        %6872 = vmatpush1.xpose.msra.mxu0 0.0
        %6873 = vmatprep.subr.mxu0 0.0
        %6874 = vmatpush1.xpose.msra.mxu0 0.0
        %6875 = vmatprep.subr.mxu0 0.0
        %6876 = vmatpush1.xpose.msra.mxu0 0.0
        %6877 = vmatprep.subr.mxu0 0.0
        %6878 = vmatpush1.xpose.msra.mxu0 0.0
        %6879 = vmatprep.subr.mxu0 0.0
        %6880 = vmatpush1.xpose.msra.mxu0 0.0
        %6881 = vmatprep.subr.mxu0 0.0
        %6882 = vmatpush1.xpose.msra.mxu0 0.0
        %6883 = vmatprep.subr.mxu0 0.0
        %6884 = vmatpush1.xpose.msra.mxu0 0.0
        %6885 = vmatprep.subr.mxu0 0.0
        %6886 = vmatpush1.xpose.msra.mxu0 0.0
        %6887 = vmatprep.subr.mxu0 0.0
        %6888 = vmatpush1.xpose.msra.mxu0 0.0
        %6889 = vmatprep.subr.mxu0 0.0
        %6890 = vmatpush1.xpose.msra.mxu0 0.0
        %6891 = vmatprep.subr.mxu0 0.0
        %6892 = vmatpush1.xpose.msra.mxu0 0.0
        %6893 = vmatprep.subr.mxu0 0.0
        %6894 = vmatpush1.xpose.msra.mxu0 0.0
        %6895 = vmatprep.subr.mxu0 0.0
        %6896 = vmatpush1.xpose.msra.mxu0 0.0
        %6897 = vmatprep.subr.mxu0 0.0
        %6898 = vmatpush1.xpose.msra.mxu0 0.0
        %6899 = vmatprep.subr.mxu0 0.0
        %6900 = vmatpush1.xpose.msra.mxu0 0.0
        %6901 = vmatprep.subr.mxu0 0.0
        %6902 = vmatpush1.xpose.msra.mxu0 0.0
        %6903 = vmatprep.subr.mxu0 0.0
        %6904 = vmatpush1.xpose.msra.mxu0 0.0
        %6905 = vmatprep.mubr.f32.mxu0 0.0
        %6906 = vmatmul.mubr.f32.gmra.mrb[0].mxu0 %v6837
        %v6907 = vpop.f32.mrb[0].mxu0
        %v6908 = vadd.f32 0.0, %v6907
        %v6909 = vpop.f32.mrb[0].mxu0
        %6910 = vdwg.mxu0
        %v6911 = vmul.f32 %v6908, 0.35355338
        %v6912 = vsel %vm1284, %v6911, -inf
        %6913 = vmax.xlane.f32.xlu0 %v6912
        %v6914 = vpop.xlane.xlu0 %6913
        %v6915 = vsub.f32 %v6911, %v6914
        %v6916 = vmul.f32 %v6915, 1.442695
        %v6917 = vpow.pop %v6916
        %v6918 = vsel %vm1284, %v6917, 0.0
        %6919 = vadd.xlane.f32.xlu0 %v6918
        %v6920 = vpop.xlane.xlu0 %6919
        %v6921 = vrcp.pop %v6920
        %v6922 = vmul.f32 %v6917, %v6921
        %6923 = vrot.lane.b32.xlu0 %v6500, 80
        %v6924 = vpop.permute.xlu0 %6923
        %v6927 = vsel %vm1284, %v6922, 0
        %6929 = vmatprep.subr.mxu0 0.0
        %6930 = vmatpush1.msra.mxu0 %v6924
        %6931 = vmatprep.subr.mxu0 0.0
        %6932 = vmatpush1.msra.mxu0 0.0
        %6933 = vmatprep.subr.mxu0 0.0
        %6934 = vmatpush1.msra.mxu0 0.0
        %6935 = vmatprep.subr.mxu0 0.0
        %6936 = vmatpush1.msra.mxu0 0.0
        %6937 = vmatprep.subr.mxu0 0.0
        %6938 = vmatpush1.msra.mxu0 0.0
        %6939 = vmatprep.subr.mxu0 0.0
        %6940 = vmatpush1.msra.mxu0 0.0
        %6941 = vmatprep.subr.mxu0 0.0
        %6942 = vmatpush1.msra.mxu0 0.0
        %6943 = vmatprep.subr.mxu0 0.0
        %6944 = vmatpush1.msra.mxu0 0.0
        %6945 = vmatprep.subr.mxu0 0.0
        %6946 = vmatpush1.msra.mxu0 0.0
        %6947 = vmatprep.subr.mxu0 0.0
        %6948 = vmatpush1.msra.mxu0 0.0
        %6949 = vmatprep.subr.mxu0 0.0
        %6950 = vmatpush1.msra.mxu0 0.0
        %6951 = vmatprep.subr.mxu0 0.0
        %6952 = vmatpush1.msra.mxu0 0.0
        %6953 = vmatprep.subr.mxu0 0.0
        %6954 = vmatpush1.msra.mxu0 0.0
        %6955 = vmatprep.subr.mxu0 0.0
        %6956 = vmatpush1.msra.mxu0 0.0
        %6957 = vmatprep.subr.mxu0 0.0
        %6958 = vmatpush1.msra.mxu0 0.0
        %6959 = vmatprep.subr.mxu0 0.0
        %6960 = vmatpush1.msra.mxu0 0.0
        %6961 = vmatprep.subr.mxu0 0.0
        %6962 = vmatpush1.msra.mxu0 0.0
        %6963 = vmatprep.subr.mxu0 0.0
        %6964 = vmatpush1.msra.mxu0 0.0
        %6965 = vmatprep.subr.mxu0 0.0
        %6966 = vmatpush1.msra.mxu0 0.0
        %6967 = vmatprep.subr.mxu0 0.0
        %6968 = vmatpush1.msra.mxu0 0.0
        %6969 = vmatprep.subr.mxu0 0.0
        %6970 = vmatpush1.msra.mxu0 0.0
        %6971 = vmatprep.subr.mxu0 0.0
        %6972 = vmatpush1.msra.mxu0 0.0
        %6973 = vmatprep.subr.mxu0 0.0
        %6974 = vmatpush1.msra.mxu0 0.0
        %6975 = vmatprep.subr.mxu0 0.0
        %6976 = vmatpush1.msra.mxu0 0.0
        %6977 = vmatprep.subr.mxu0 0.0
        %6978 = vmatpush1.msra.mxu0 0.0
        %6979 = vmatprep.subr.mxu0 0.0
        %6980 = vmatpush1.msra.mxu0 0.0
        %6981 = vmatprep.subr.mxu0 0.0
        %6982 = vmatpush1.msra.mxu0 0.0
        %6983 = vmatprep.subr.mxu0 0.0
        %6984 = vmatpush1.msra.mxu0 0.0
        %6985 = vmatprep.subr.mxu0 0.0
        %6986 = vmatpush1.msra.mxu0 0.0
        %6987 = vmatprep.subr.mxu0 0.0
        %6988 = vmatpush1.msra.mxu0 0.0
        %6989 = vmatprep.subr.mxu0 0.0
        %6990 = vmatpush1.msra.mxu0 0.0
        %6991 = vmatprep.subr.mxu0 0.0
        %6992 = vmatpush1.msra.mxu0 0.0
        %6993 = vmatprep.mubr.f32.mxu0 0.0
        %6994 = vmatmul.mubr.f32.gmra.mrb[0].mxu0 %v6927
        %v6995 = vpop.f32.mrb[0].mxu0
        %v6996 = vadd.f32 0.0, %v6995
        %v6997 = vpop.f32.mrb[0].mxu0
        %6998 = vdwg.mxu0
        %6999 = vrot.lane.b32.xlu0 %v6417, 104
        %v7000 = vpop.permute.xlu0 %6999
        %7001 = vrot.lane.b32.xlu0 %v6500, 104
        %v7002 = vpop.permute.xlu0 %7001
        %v7003 = vsel %vm1284, %v7000, 0
        %v7005 = vsel %vm1284, %v7002, 0
        %7007 = vmatprep.subr.mxu0 0.0
        %7008 = vmatpush1.xpose.msra.mxu0 %v7005
        %7009 = vmatprep.subr.mxu0 0.0
        %7010 = vmatpush1.xpose.msra.mxu0 0.0
        %7011 = vmatprep.subr.mxu0 0.0
        %7012 = vmatpush1.xpose.msra.mxu0 0.0
        %7013 = vmatprep.subr.mxu0 0.0
        %7014 = vmatpush1.xpose.msra.mxu0 0.0
        %7015 = vmatprep.subr.mxu0 0.0
        %7016 = vmatpush1.xpose.msra.mxu0 0.0
        %7017 = vmatprep.subr.mxu0 0.0
        %7018 = vmatpush1.xpose.msra.mxu0 0.0
        %7019 = vmatprep.subr.mxu0 0.0
        %7020 = vmatpush1.xpose.msra.mxu0 0.0
        %7021 = vmatprep.subr.mxu0 0.0
        %7022 = vmatpush1.xpose.msra.mxu0 0.0
        %7023 = vmatprep.subr.mxu0 0.0
        %7024 = vmatpush1.xpose.msra.mxu0 0.0
        %7025 = vmatprep.subr.mxu0 0.0
        %7026 = vmatpush1.xpose.msra.mxu0 0.0
        %7027 = vmatprep.subr.mxu0 0.0
        %7028 = vmatpush1.xpose.msra.mxu0 0.0
        %7029 = vmatprep.subr.mxu0 0.0
        %7030 = vmatpush1.xpose.msra.mxu0 0.0
        %7031 = vmatprep.subr.mxu0 0.0
        %7032 = vmatpush1.xpose.msra.mxu0 0.0
        %7033 = vmatprep.subr.mxu0 0.0
        %7034 = vmatpush1.xpose.msra.mxu0 0.0
        %7035 = vmatprep.subr.mxu0 0.0
        %7036 = vmatpush1.xpose.msra.mxu0 0.0
        %7037 = vmatprep.subr.mxu0 0.0
        %7038 = vmatpush1.xpose.msra.mxu0 0.0
        %7039 = vmatprep.subr.mxu0 0.0
        %7040 = vmatpush1.xpose.msra.mxu0 0.0
        %7041 = vmatprep.subr.mxu0 0.0
        %7042 = vmatpush1.xpose.msra.mxu0 0.0
        %7043 = vmatprep.subr.mxu0 0.0
        %7044 = vmatpush1.xpose.msra.mxu0 0.0
        %7045 = vmatprep.subr.mxu0 0.0
        %7046 = vmatpush1.xpose.msra.mxu0 0.0
        %7047 = vmatprep.subr.mxu0 0.0
        %7048 = vmatpush1.xpose.msra.mxu0 0.0
        %7049 = vmatprep.subr.mxu0 0.0
        %7050 = vmatpush1.xpose.msra.mxu0 0.0
        %7051 = vmatprep.subr.mxu0 0.0
        %7052 = vmatpush1.xpose.msra.mxu0 0.0
        %7053 = vmatprep.subr.mxu0 0.0
        %7054 = vmatpush1.xpose.msra.mxu0 0.0
        %7055 = vmatprep.subr.mxu0 0.0
        %7056 = vmatpush1.xpose.msra.mxu0 0.0
        %7057 = vmatprep.subr.mxu0 0.0
        %7058 = vmatpush1.xpose.msra.mxu0 0.0
        %7059 = vmatprep.subr.mxu0 0.0
        %7060 = vmatpush1.xpose.msra.mxu0 0.0
        %7061 = vmatprep.subr.mxu0 0.0
        %7062 = vmatpush1.xpose.msra.mxu0 0.0
        %7063 = vmatprep.subr.mxu0 0.0
        %7064 = vmatpush1.xpose.msra.mxu0 0.0
        %7065 = vmatprep.subr.mxu0 0.0
        %7066 = vmatpush1.xpose.msra.mxu0 0.0
        %7067 = vmatprep.subr.mxu0 0.0
        %7068 = vmatpush1.xpose.msra.mxu0 0.0
        %7069 = vmatprep.subr.mxu0 0.0
        %7070 = vmatpush1.xpose.msra.mxu0 0.0
        %7071 = vmatprep.mubr.f32.mxu0 0.0
        %7072 = vmatmul.mubr.f32.gmra.mrb[0].mxu0 %v7003
        %v7073 = vpop.f32.mrb[0].mxu0
        %v7074 = vadd.f32 0.0, %v7073
        %v7075 = vpop.f32.mrb[0].mxu0
        %7076 = vdwg.mxu0
        %v7077 = vmul.f32 %v7074, 0.35355338
        %v7078 = vsel %vm1284, %v7077, -inf
        %7079 = vmax.xlane.f32.xlu0 %v7078
        %v7080 = vpop.xlane.xlu0 %7079
        %v7081 = vsub.f32 %v7077, %v7080
        %v7082 = vmul.f32 %v7081, 1.442695
        %v7083 = vpow.pop %v7082
        %v7084 = vsel %vm1284, %v7083, 0.0
        %7085 = vadd.xlane.f32.xlu0 %v7084
        %v7086 = vpop.xlane.xlu0 %7085
        %v7087 = vrcp.pop %v7086
        %v7088 = vmul.f32 %v7083, %v7087
        %7089 = vrot.lane.b32.xlu0 %v6500, 72
        %v7090 = vpop.permute.xlu0 %7089
        %v7093 = vsel %vm1284, %v7088, 0
        %7095 = vmatprep.subr.mxu0 0.0
        %7096 = vmatpush1.msra.mxu0 %v7090
        %7097 = vmatprep.subr.mxu0 0.0
        %7098 = vmatpush1.msra.mxu0 0.0
        %7099 = vmatprep.subr.mxu0 0.0
        %7100 = vmatpush1.msra.mxu0 0.0
        %7101 = vmatprep.subr.mxu0 0.0
        %7102 = vmatpush1.msra.mxu0 0.0
        %7103 = vmatprep.subr.mxu0 0.0
        %7104 = vmatpush1.msra.mxu0 0.0
        %7105 = vmatprep.subr.mxu0 0.0
        %7106 = vmatpush1.msra.mxu0 0.0
        %7107 = vmatprep.subr.mxu0 0.0
        %7108 = vmatpush1.msra.mxu0 0.0
        %7109 = vmatprep.subr.mxu0 0.0
        %7110 = vmatpush1.msra.mxu0 0.0
        %7111 = vmatprep.subr.mxu0 0.0
        %7112 = vmatpush1.msra.mxu0 0.0
        %7113 = vmatprep.subr.mxu0 0.0
        %7114 = vmatpush1.msra.mxu0 0.0
        %7115 = vmatprep.subr.mxu0 0.0
        %7116 = vmatpush1.msra.mxu0 0.0
        %7117 = vmatprep.subr.mxu0 0.0
        %7118 = vmatpush1.msra.mxu0 0.0
        %7119 = vmatprep.subr.mxu0 0.0
        %7120 = vmatpush1.msra.mxu0 0.0
        %7121 = vmatprep.subr.mxu0 0.0
        %7122 = vmatpush1.msra.mxu0 0.0
        %7123 = vmatprep.subr.mxu0 0.0
        %7124 = vmatpush1.msra.mxu0 0.0
        %7125 = vmatprep.subr.mxu0 0.0
        %7126 = vmatpush1.msra.mxu0 0.0
        %7127 = vmatprep.subr.mxu0 0.0
        %7128 = vmatpush1.msra.mxu0 0.0
        %7129 = vmatprep.subr.mxu0 0.0
        %7130 = vmatpush1.msra.mxu0 0.0
        %7131 = vmatprep.subr.mxu0 0.0
        %7132 = vmatpush1.msra.mxu0 0.0
        %7133 = vmatprep.subr.mxu0 0.0
        %7134 = vmatpush1.msra.mxu0 0.0
        %7135 = vmatprep.subr.mxu0 0.0
        %7136 = vmatpush1.msra.mxu0 0.0
        %7137 = vmatprep.subr.mxu0 0.0
        %7138 = vmatpush1.msra.mxu0 0.0
        %7139 = vmatprep.subr.mxu0 0.0
        %7140 = vmatpush1.msra.mxu0 0.0
        %7141 = vmatprep.subr.mxu0 0.0
        %7142 = vmatpush1.msra.mxu0 0.0
        %7143 = vmatprep.subr.mxu0 0.0
        %7144 = vmatpush1.msra.mxu0 0.0
        %7145 = vmatprep.subr.mxu0 0.0
        %7146 = vmatpush1.msra.mxu0 0.0
        %7147 = vmatprep.subr.mxu0 0.0
        %7148 = vmatpush1.msra.mxu0 0.0
        %7149 = vmatprep.subr.mxu0 0.0
        %7150 = vmatpush1.msra.mxu0 0.0
        %7151 = vmatprep.subr.mxu0 0.0
        %7152 = vmatpush1.msra.mxu0 0.0
        %7153 = vmatprep.subr.mxu0 0.0
        %7154 = vmatpush1.msra.mxu0 0.0
        %7155 = vmatprep.subr.mxu0 0.0
        %7156 = vmatpush1.msra.mxu0 0.0
        %7157 = vmatprep.subr.mxu0 0.0
        %7158 = vmatpush1.msra.mxu0 0.0
        %7159 = vmatprep.mubr.f32.mxu0 0.0
        %7160 = vmatmul.mubr.f32.gmra.mrb[0].mxu0 %v7093
        %v7161 = vpop.f32.mrb[0].mxu0
        %v7162 = vadd.f32 0.0, %v7161
        %v7163 = vpop.f32.mrb[0].mxu0
        %7164 = vdwg.mxu0
        %7166 = vrot.lane.b32.xlu0 %v6830, 8
        %v7167 = vpop.permute.xlu0 %7166
        %7170 = vrot.lane.b32.xlu0 %v6996, 16
        %v7171 = vpop.permute.xlu0 %7170
        %7174 = vrot.lane.b32.xlu0 %v7162, 24
        %v7175 = vpop.permute.xlu0 %7174
        %v7177 = vsel %vm1284, %v6664, %v7167
        %v7178 = vsel %vm1958, %v7177, %v7171
        %v7179 = vsel %vm1960, %v7178, %v7175
        %s7180 = scalar_lea.vmem %s47, 32
        %v7181 = vld [vmem:[%s7180] sm:$0xff]
        %v7182 = vld [vmem:[%s7180 + $0x8] sm:$0xff]
        %v7183 = vld [vmem:[%s7180 + $0x10] sm:$0xff]
        %v7184 = vld [vmem:[%s7180 + $0x18] sm:$0xff]
        %s7185 = scalar_lea.vmem %s49, 1
        %v7186 = vld [vmem:[%s7185] sm:$0x1]
        %v7188 = vlaneseq
        %v7189 = vshrl.u32 %v7188, 7
        %v7190 = vsub.s32 0, %v7189
        %v7191 = vrot.slane %v7186, %v7190
        %v7194 = vsel %vm1207, %v7179, 0
        %7196 = vmatprep.subr.mxu0 0.0
        %7197 = vmatpush1.msra.mxu0 %v7181
        %7198 = vmatprep.subr.mxu0 0.0
        %7199 = vmatpush1.msra.mxu0 %v7182
        %7200 = vmatprep.subr.mxu0 0.0
        %7201 = vmatpush1.msra.mxu0 %v7183
        %7202 = vmatprep.subr.mxu0 0.0
        %7203 = vmatpush1.msra.mxu0 %v7184
        %7204 = vmatprep.subr.mxu0 0.0
        %7205 = vmatpush1.msra.mxu0 0.0
        %7206 = vmatprep.subr.mxu0 0.0
        %7207 = vmatpush1.msra.mxu0 0.0
        %7208 = vmatprep.subr.mxu0 0.0
        %7209 = vmatpush1.msra.mxu0 0.0
        %7210 = vmatprep.subr.mxu0 0.0
        %7211 = vmatpush1.msra.mxu0 0.0
        %7212 = vmatprep.subr.mxu0 0.0
        %7213 = vmatpush1.msra.mxu0 0.0
        %7214 = vmatprep.subr.mxu0 0.0
        %7215 = vmatpush1.msra.mxu0 0.0
        %7216 = vmatprep.subr.mxu0 0.0
        %7217 = vmatpush1.msra.mxu0 0.0
        %7218 = vmatprep.subr.mxu0 0.0
        %7219 = vmatpush1.msra.mxu0 0.0
        %7220 = vmatprep.subr.mxu0 0.0
        %7221 = vmatpush1.msra.mxu0 0.0
        %7222 = vmatprep.subr.mxu0 0.0
        %7223 = vmatpush1.msra.mxu0 0.0
        %7224 = vmatprep.subr.mxu0 0.0
        %7225 = vmatpush1.msra.mxu0 0.0
        %7226 = vmatprep.subr.mxu0 0.0
        %7227 = vmatpush1.msra.mxu0 0.0
        %7228 = vmatprep.subr.mxu0 0.0
        %7229 = vmatpush1.msra.mxu0 0.0
        %7230 = vmatprep.subr.mxu0 0.0
        %7231 = vmatpush1.msra.mxu0 0.0
        %7232 = vmatprep.subr.mxu0 0.0
        %7233 = vmatpush1.msra.mxu0 0.0
        %7234 = vmatprep.subr.mxu0 0.0
        %7235 = vmatpush1.msra.mxu0 0.0
        %7236 = vmatprep.subr.mxu0 0.0
        %7237 = vmatpush1.msra.mxu0 0.0
        %7238 = vmatprep.subr.mxu0 0.0
        %7239 = vmatpush1.msra.mxu0 0.0
        %7240 = vmatprep.subr.mxu0 0.0
        %7241 = vmatpush1.msra.mxu0 0.0
        %7242 = vmatprep.subr.mxu0 0.0
        %7243 = vmatpush1.msra.mxu0 0.0
        %7244 = vmatprep.subr.mxu0 0.0
        %7245 = vmatpush1.msra.mxu0 0.0
        %7246 = vmatprep.subr.mxu0 0.0
        %7247 = vmatpush1.msra.mxu0 0.0
        %7248 = vmatprep.subr.mxu0 0.0
        %7249 = vmatpush1.msra.mxu0 0.0
        %7250 = vmatprep.subr.mxu0 0.0
        %7251 = vmatpush1.msra.mxu0 0.0
        %7252 = vmatprep.subr.mxu0 0.0
        %7253 = vmatpush1.msra.mxu0 0.0
        %7254 = vmatprep.subr.mxu0 0.0
        %7255 = vmatpush1.msra.mxu0 0.0
        %7256 = vmatprep.subr.mxu0 0.0
        %7257 = vmatpush1.msra.mxu0 0.0
        %7258 = vmatprep.subr.mxu0 0.0
        %7259 = vmatpush1.msra.mxu0 0.0
        %7260 = vmatprep.mubr.f32.mxu0 0.0
        %7261 = vmatmul.mubr.f32.gmra.mrb[0].mxu0 %v7194
        %v7262 = vpop.f32.mrb[0].mxu0
        %v7263 = vadd.f32 %v7191, %v7262
        %v7264 = vpop.f32.mrb[0].mxu0
        %7265 = vdwg.mxu0
        %v7266 = vadd.f32 %v6333, %v7263
        %s7267 = scalar_lea.vmem %s63, 1
        %v7268 = vld [vmem:[%s7267] sm:$0x1]
        %s7269 = scalar_lea.vmem %s65, 1
        %v7270 = vld [vmem:[%s7269] sm:$0x1]
        %v7271 = vsel %vm1207, %v7266, 0.0
        %7272 = vadd.xlane.f32.xlu0 %v7271
        %v7273 = vpop.xlane.xlu0 %7272
        %v7274 = vmul.f32 %v7273, %v2052
        %v7275 = vsub.f32 %v7266, %v7274
        %v7276 = vmul.f32 %v7275, %v7275
        %v7277 = vsel %vm1207, %v7276, 0.0
        %7278 = vadd.xlane.f32.xlu0 %v7277
        %v7279 = vpop.xlane.xlu0 %7278
        %v7280 = vmul.f32 %v7279, %v2052
        %v7281 = vadd.f32 %v7280, 1e-05
        %v7282 = vrsqrt.pop %v7281
        %v7283 = vmul.f32 %v7275, %v7282
        %v7285 = vlaneseq
        %v7286 = vshrl.u32 %v7285, 7
        %v7287 = vsub.s32 0, %v7286
        %v7288 = vrot.slane %v7268, %v7287
        %v7290 = vmul.f32 %v7283, %v7288
        %v7292 = vlaneseq
        %v7293 = vshrl.u32 %v7292, 7
        %v7294 = vsub.s32 0, %v7293
        %v7295 = vrot.slane %v7270, %v7294
        %v7297 = vadd.f32 %v7290, %v7295
        %s7298 = scalar_lea.vmem %s51, 32
        %v7299 = vld [vmem:[%s7298] sm:$0xff]
        %v7300 = vld [vmem:[%s7298 + $0x8] sm:$0xff]
        %v7301 = vld [vmem:[%s7298 + $0x10] sm:$0xff]
        %v7302 = vld [vmem:[%s7298 + $0x18] sm:$0xff]
        %s7303 = scalar_lea.vmem %s53, 1
        %v7304 = vld [vmem:[%s7303] sm:$0x1]
        %v7306 = vlaneseq
        %v7307 = vshrl.u32 %v7306, 7
        %v7308 = vsub.s32 0, %v7307
        %v7309 = vrot.slane %v7304, %v7308
        %v7312 = vsel %vm1207, %v7297, 0
        %7314 = vmatprep.subr.mxu0 0.0
        %7315 = vmatpush1.msra.mxu0 %v7299
        %7316 = vmatprep.subr.mxu0 0.0
        %7317 = vmatpush1.msra.mxu0 %v7300
        %7318 = vmatprep.subr.mxu0 0.0
        %7319 = vmatpush1.msra.mxu0 %v7301
        %7320 = vmatprep.subr.mxu0 0.0
        %7321 = vmatpush1.msra.mxu0 %v7302
        %7322 = vmatprep.subr.mxu0 0.0
        %7323 = vmatpush1.msra.mxu0 0.0
        %7324 = vmatprep.subr.mxu0 0.0
        %7325 = vmatpush1.msra.mxu0 0.0
        %7326 = vmatprep.subr.mxu0 0.0
        %7327 = vmatpush1.msra.mxu0 0.0
        %7328 = vmatprep.subr.mxu0 0.0
        %7329 = vmatpush1.msra.mxu0 0.0
        %7330 = vmatprep.subr.mxu0 0.0
        %7331 = vmatpush1.msra.mxu0 0.0
        %7332 = vmatprep.subr.mxu0 0.0
        %7333 = vmatpush1.msra.mxu0 0.0
        %7334 = vmatprep.subr.mxu0 0.0
        %7335 = vmatpush1.msra.mxu0 0.0
        %7336 = vmatprep.subr.mxu0 0.0
        %7337 = vmatpush1.msra.mxu0 0.0
        %7338 = vmatprep.subr.mxu0 0.0
        %7339 = vmatpush1.msra.mxu0 0.0
        %7340 = vmatprep.subr.mxu0 0.0
        %7341 = vmatpush1.msra.mxu0 0.0
        %7342 = vmatprep.subr.mxu0 0.0
        %7343 = vmatpush1.msra.mxu0 0.0
        %7344 = vmatprep.subr.mxu0 0.0
        %7345 = vmatpush1.msra.mxu0 0.0
        %7346 = vmatprep.subr.mxu0 0.0
        %7347 = vmatpush1.msra.mxu0 0.0
        %7348 = vmatprep.subr.mxu0 0.0
        %7349 = vmatpush1.msra.mxu0 0.0
        %7350 = vmatprep.subr.mxu0 0.0
        %7351 = vmatpush1.msra.mxu0 0.0
        %7352 = vmatprep.subr.mxu0 0.0
        %7353 = vmatpush1.msra.mxu0 0.0
        %7354 = vmatprep.subr.mxu0 0.0
        %7355 = vmatpush1.msra.mxu0 0.0
        %7356 = vmatprep.subr.mxu0 0.0
        %7357 = vmatpush1.msra.mxu0 0.0
        %7358 = vmatprep.subr.mxu0 0.0
        %7359 = vmatpush1.msra.mxu0 0.0
        %7360 = vmatprep.subr.mxu0 0.0
        %7361 = vmatpush1.msra.mxu0 0.0
        %7362 = vmatprep.subr.mxu0 0.0
        %7363 = vmatpush1.msra.mxu0 0.0
        %7364 = vmatprep.subr.mxu0 0.0
        %7365 = vmatpush1.msra.mxu0 0.0
        %7366 = vmatprep.subr.mxu0 0.0
        %7367 = vmatpush1.msra.mxu0 0.0
        %7368 = vmatprep.subr.mxu0 0.0
        %7369 = vmatpush1.msra.mxu0 0.0
        %7370 = vmatprep.subr.mxu0 0.0
        %7371 = vmatpush1.msra.mxu0 0.0
        %7372 = vmatprep.subr.mxu0 0.0
        %7373 = vmatpush1.msra.mxu0 0.0
        %7374 = vmatprep.subr.mxu0 0.0
        %7375 = vmatpush1.msra.mxu0 0.0
        %7376 = vmatprep.subr.mxu0 0.0
        %7377 = vmatpush1.msra.mxu0 0.0
        %7378 = vmatprep.mubr.f32.mxu0 0.0
        %7379 = vmatmul.mubr.f32.gmra.mrb[0].mxu0 %v7312
        %v7380 = vpop.f32.mrb[0].mxu0
        %v7381 = vadd.f32 %v7309, %v7380
        %v7382 = vpop.f32.mrb[0].mxu0
        %7383 = vdwg.mxu0
        %v7384 = vmax.f32 %v7381, 0.0
        %s7385 = scalar_lea.vmem %s55, 128
        %v7386 = vld [vmem:[%s7385] sm:$0xff]
        %v7387 = vld [vmem:[%s7385 + $0x8] sm:$0xff]
        %v7388 = vld [vmem:[%s7385 + $0x10] sm:$0xff]
        %v7389 = vld [vmem:[%s7385 + $0x18] sm:$0xff]
        %v7390 = vld [vmem:[%s7385 + $0x20] sm:$0xff]
        %v7391 = vld [vmem:[%s7385 + $0x28] sm:$0xff]
        %v7392 = vld [vmem:[%s7385 + $0x30] sm:$0xff]
        %v7393 = vld [vmem:[%s7385 + $0x38] sm:$0xff]
        %v7394 = vld [vmem:[%s7385 + $0x40] sm:$0xff]
        %v7395 = vld [vmem:[%s7385 + $0x48] sm:$0xff]
        %v7396 = vld [vmem:[%s7385 + $0x50] sm:$0xff]
        %v7397 = vld [vmem:[%s7385 + $0x58] sm:$0xff]
        %v7398 = vld [vmem:[%s7385 + $0x60] sm:$0xff]
        %v7399 = vld [vmem:[%s7385 + $0x68] sm:$0xff]
        %v7400 = vld [vmem:[%s7385 + $0x70] sm:$0xff]
        %v7401 = vld [vmem:[%s7385 + $0x78] sm:$0xff]
        %s7402 = scalar_lea.vmem %s57, 1
        %v7403 = vld [vmem:[%s7402] sm:$0x1]
        %v7405 = vlaneseq
        %v7406 = vshrl.u32 %v7405, 7
        %v7407 = vsub.s32 0, %v7406
        %v7408 = vrot.slane %v7403, %v7407
        %7410 = vmatprep.subr.mxu0 0.0
        %7411 = vmatpush1.msra.mxu0 %v7386
        %7412 = vmatprep.subr.mxu0 0.0
        %7413 = vmatpush1.msra.mxu0 %v7387
        %7414 = vmatprep.subr.mxu0 0.0
        %7415 = vmatpush1.msra.mxu0 %v7388
        %7416 = vmatprep.subr.mxu0 0.0
        %7417 = vmatpush1.msra.mxu0 %v7389
        %7418 = vmatprep.subr.mxu0 0.0
        %7419 = vmatpush1.msra.mxu0 %v7390
        %7420 = vmatprep.subr.mxu0 0.0
        %7421 = vmatpush1.msra.mxu0 %v7391
        %7422 = vmatprep.subr.mxu0 0.0
        %7423 = vmatpush1.msra.mxu0 %v7392
        %7424 = vmatprep.subr.mxu0 0.0
        %7425 = vmatpush1.msra.mxu0 %v7393
        %7426 = vmatprep.subr.mxu0 0.0
        %7427 = vmatpush1.msra.mxu0 %v7394
        %7428 = vmatprep.subr.mxu0 0.0
        %7429 = vmatpush1.msra.mxu0 %v7395
        %7430 = vmatprep.subr.mxu0 0.0
        %7431 = vmatpush1.msra.mxu0 %v7396
        %7432 = vmatprep.subr.mxu0 0.0
        %7433 = vmatpush1.msra.mxu0 %v7397
        %7434 = vmatprep.subr.mxu0 0.0
        %7435 = vmatpush1.msra.mxu0 %v7398
        %7436 = vmatprep.subr.mxu0 0.0
        %7437 = vmatpush1.msra.mxu0 %v7399
        %7438 = vmatprep.subr.mxu0 0.0
        %7439 = vmatpush1.msra.mxu0 %v7400
        %7440 = vmatprep.subr.mxu0 0.0
        %7441 = vmatpush1.msra.mxu0 %v7401
        %7442 = vmatprep.subr.mxu0 0.0
        %7443 = vmatpush1.msra.mxu0 0.0
        %7444 = vmatprep.subr.mxu0 0.0
        %7445 = vmatpush1.msra.mxu0 0.0
        %7446 = vmatprep.subr.mxu0 0.0
        %7447 = vmatpush1.msra.mxu0 0.0
        %7448 = vmatprep.subr.mxu0 0.0
        %7449 = vmatpush1.msra.mxu0 0.0
        %7450 = vmatprep.subr.mxu0 0.0
        %7451 = vmatpush1.msra.mxu0 0.0
        %7452 = vmatprep.subr.mxu0 0.0
        %7453 = vmatpush1.msra.mxu0 0.0
        %7454 = vmatprep.subr.mxu0 0.0
        %7455 = vmatpush1.msra.mxu0 0.0
        %7456 = vmatprep.subr.mxu0 0.0
        %7457 = vmatpush1.msra.mxu0 0.0
        %7458 = vmatprep.subr.mxu0 0.0
        %7459 = vmatpush1.msra.mxu0 0.0
        %7460 = vmatprep.subr.mxu0 0.0
        %7461 = vmatpush1.msra.mxu0 0.0
        %7462 = vmatprep.subr.mxu0 0.0
        %7463 = vmatpush1.msra.mxu0 0.0
        %7464 = vmatprep.subr.mxu0 0.0
        %7465 = vmatpush1.msra.mxu0 0.0
        %7466 = vmatprep.subr.mxu0 0.0
        %7467 = vmatpush1.msra.mxu0 0.0
        %7468 = vmatprep.subr.mxu0 0.0
        %7469 = vmatpush1.msra.mxu0 0.0
        %7470 = vmatprep.subr.mxu0 0.0
        %7471 = vmatpush1.msra.mxu0 0.0
        %7472 = vmatprep.subr.mxu0 0.0
        %7473 = vmatpush1.msra.mxu0 0.0
        %7474 = vmatprep.mubr.f32.mxu0 0.0
        %7475 = vmatmul.mubr.f32.gmra.mrb[0].mxu0 %v7384
        %v7476 = vpop.f32.mrb[0].mxu0
        %v7477 = vadd.f32 %v7408, %v7476
        %v7478 = vpop.f32.mrb[0].mxu0
        %7479 = vdwg.mxu0
        %v7480 = vadd.f32 %v7297, %v7477
        %s7481 = scalar_lea.vmem %s67, 1
        %v7482 = vld [vmem:[%s7481] sm:$0x1]
        %s7483 = scalar_lea.vmem %s69, 1
        %v7484 = vld [vmem:[%s7483] sm:$0x1]
        %v7485 = vsel %vm1207, %v7480, 0.0
        %7486 = vadd.xlane.f32.xlu0 %v7485
        %v7487 = vpop.xlane.xlu0 %7486
        %v7488 = vmul.f32 %v7487, %v2052
        %v7489 = vsub.f32 %v7480, %v7488
        %v7490 = vmul.f32 %v7489, %v7489
        %v7491 = vsel %vm1207, %v7490, 0.0
        %7492 = vadd.xlane.f32.xlu0 %v7491
        %v7493 = vpop.xlane.xlu0 %7492
        %v7494 = vmul.f32 %v7493, %v2052
        %v7495 = vadd.f32 %v7494, 1e-05
        %v7496 = vrsqrt.pop %v7495
        %v7497 = vmul.f32 %v7489, %v7496
        %v7499 = vlaneseq
        %v7500 = vshrl.u32 %v7499, 7
        %v7501 = vsub.s32 0, %v7500
        %v7502 = vrot.slane %v7482, %v7501
        %v7504 = vmul.f32 %v7497, %v7502
        %v7506 = vlaneseq
        %v7507 = vshrl.u32 %v7506, 7
        %v7508 = vsub.s32 0, %v7507
        %v7509 = vrot.slane %v7484, %v7508
        %v7511 = vadd.f32 %v7504, %v7509
        %v7512 = vld [vmem:[%s71] sm:$0x1]
        %v7513 = vld [vmem:[%s73] sm:$0x1]
        %v7514 = vsel %vm1207, %v7511, 0.0
        %7515 = vadd.xlane.f32.xlu0 %v7514
        %v7516 = vpop.xlane.xlu0 %7515
        %v7517 = vmul.f32 %v7516, %v2052
        %v7518 = vsub.f32 %v7511, %v7517
        %v7519 = vmul.f32 %v7518, %v7518
        %v7520 = vsel %vm1207, %v7519, 0.0
        %7521 = vadd.xlane.f32.xlu0 %v7520
        %v7522 = vpop.xlane.xlu0 %7521
        %v7523 = vmul.f32 %v7522, %v2052
        %v7524 = vadd.f32 %v7523, 1e-05
        %v7525 = vrsqrt.pop %v7524
        %v7526 = vmul.f32 %v7518, %v7525
        %v7528 = vlaneseq
        %v7529 = vshrl.u32 %v7528, 7
        %v7530 = vsub.s32 0, %v7529
        %v7531 = vrot.slane %v7512, %v7530
        %v7533 = vmul.f32 %v7526, %v7531
        %v7535 = vlaneseq
        %v7536 = vshrl.u32 %v7535, 7
        %v7537 = vsub.s32 0, %v7536
        %v7538 = vrot.slane %v7513, %v7537
        %v7540 = vadd.f32 %v7533, %v7538
        %v7541 = vld [vmem:[%s75] sm:$0xff]
        %v7542 = vld [vmem:[%s75 + $0x8] sm:$0xff]
        %v7543 = vld [vmem:[%s75 + $0x10] sm:$0xff]
        %v7544 = vld [vmem:[%s75 + $0x18] sm:$0xff]
        %v7545 = vld [vmem:[%s77] sm:$0x1]
        %v7547 = vlaneseq
        %v7548 = vshrl.u32 %v7547, 7
        %v7549 = vsub.s32 0, %v7548
        %v7550 = vrot.slane %v7545, %v7549
        %v7553 = vsel %vm1207, %v7540, 0
        %7555 = vmatprep.subr.mxu0 0.0
        %7556 = vmatpush1.msra.mxu0 %v7541
        %7557 = vmatprep.subr.mxu0 0.0
        %7558 = vmatpush1.msra.mxu0 %v7542
        %7559 = vmatprep.subr.mxu0 0.0
        %7560 = vmatpush1.msra.mxu0 %v7543
        %7561 = vmatprep.subr.mxu0 0.0
        %7562 = vmatpush1.msra.mxu0 %v7544
        %7563 = vmatprep.subr.mxu0 0.0
        %7564 = vmatpush1.msra.mxu0 0.0
        %7565 = vmatprep.subr.mxu0 0.0
        %7566 = vmatpush1.msra.mxu0 0.0
        %7567 = vmatprep.subr.mxu0 0.0
        %7568 = vmatpush1.msra.mxu0 0.0
        %7569 = vmatprep.subr.mxu0 0.0
        %7570 = vmatpush1.msra.mxu0 0.0
        %7571 = vmatprep.subr.mxu0 0.0
        %7572 = vmatpush1.msra.mxu0 0.0
        %7573 = vmatprep.subr.mxu0 0.0
        %7574 = vmatpush1.msra.mxu0 0.0
        %7575 = vmatprep.subr.mxu0 0.0
        %7576 = vmatpush1.msra.mxu0 0.0
        %7577 = vmatprep.subr.mxu0 0.0
        %7578 = vmatpush1.msra.mxu0 0.0
        %7579 = vmatprep.subr.mxu0 0.0
        %7580 = vmatpush1.msra.mxu0 0.0
        %7581 = vmatprep.subr.mxu0 0.0
        %7582 = vmatpush1.msra.mxu0 0.0
        %7583 = vmatprep.subr.mxu0 0.0
        %7584 = vmatpush1.msra.mxu0 0.0
        %7585 = vmatprep.subr.mxu0 0.0
        %7586 = vmatpush1.msra.mxu0 0.0
        %7587 = vmatprep.subr.mxu0 0.0
        %7588 = vmatpush1.msra.mxu0 0.0
        %7589 = vmatprep.subr.mxu0 0.0
        %7590 = vmatpush1.msra.mxu0 0.0
        %7591 = vmatprep.subr.mxu0 0.0
        %7592 = vmatpush1.msra.mxu0 0.0
        %7593 = vmatprep.subr.mxu0 0.0
        %7594 = vmatpush1.msra.mxu0 0.0
        %7595 = vmatprep.subr.mxu0 0.0
        %7596 = vmatpush1.msra.mxu0 0.0
        %7597 = vmatprep.subr.mxu0 0.0
        %7598 = vmatpush1.msra.mxu0 0.0
        %7599 = vmatprep.subr.mxu0 0.0
        %7600 = vmatpush1.msra.mxu0 0.0
        %7601 = vmatprep.subr.mxu0 0.0
        %7602 = vmatpush1.msra.mxu0 0.0
        %7603 = vmatprep.subr.mxu0 0.0
        %7604 = vmatpush1.msra.mxu0 0.0
        %7605 = vmatprep.subr.mxu0 0.0
        %7606 = vmatpush1.msra.mxu0 0.0
        %7607 = vmatprep.subr.mxu0 0.0
        %7608 = vmatpush1.msra.mxu0 0.0
        %7609 = vmatprep.subr.mxu0 0.0
        %7610 = vmatpush1.msra.mxu0 0.0
        %7611 = vmatprep.subr.mxu0 0.0
        %7612 = vmatpush1.msra.mxu0 0.0
        %7613 = vmatprep.subr.mxu0 0.0
        %7614 = vmatpush1.msra.mxu0 0.0
        %7615 = vmatprep.subr.mxu0 0.0
        %7616 = vmatpush1.msra.mxu0 0.0
        %7617 = vmatprep.subr.mxu0 0.0
        %7618 = vmatpush1.msra.mxu0 0.0
        %7619 = vmatprep.mubr.f32.mxu0 0.0
        %7620 = vmatmul.mubr.f32.gmra.mrb[0].mxu0 %v7553
        %v7621 = vpop.f32.mrb[0].mxu0
        %v7622 = vadd.f32 %v7550, %v7621
        %v7623 = vpop.f32.mrb[0].mxu0
        %7624 = vdwg.mxu0
        %7625 = vst [vmem:[%s1186] sm:$0xff] %v7622
        %s7626 = sand.u32 %s930, 1
        %s7627 = scalar_lea.sflag [#allocation3], %s7626
        %s7628 = sand.u32 %s930, 1
        %s7629 = smul.addr %s7628, 8
        %s7630 = scalar_lea.vmem [#allocation2], %s7629
        // Predicated region
        $region177: #{transformer_forward.1} parent=175 // pred_check
          %p7631 = pneg %p940
        $region178: #{transformer_forward.1} parent=175 // pred_check_branch
          %7633 = sbr.rel (%p7631) target = $region180
        $region179: #{transformer_forward.1} parent=175 // pred_region
          %s7635 = ssub.s32 128, 128
          %7636 = vsyncadd %s7627, %s7635
          %s7637 = smul.addr %s93, 128
          %s7638 = scalar_lea.hbm %s79, %s7637
          %s7640 = sshll.u32 %s7630, 4
          %s7641 = int_to_ptr.vmem [resolvable:$true] %s7640
          %7643 = dma.vmem_to_hbm [thread:$0]  %s7641, 128, %s7638, %s7627
        $region180: #{transformer_forward.1} parent=175 // pred_fallthru
          _
      $region176: #{transformer_forward.1} parent=5 // pred_fallthru
        _
      %p7644 = scmp.le.s32.totalorder 2, %s88
      // Predicated region
      $region181: #{transformer_forward.1} parent=5 // pred_check
        %p7645 = pneg %p7644
      $region182: #{transformer_forward.1} parent=5 // pred_check_branch
        %7647 = sbr.rel (%p7645) target = $region184
      $region183: #{transformer_forward.1} parent=5 // pred_region
        %s7648 = ssub.s32 %s88, 2
        // Predicated region
        $region185: #{transformer_forward.1} parent=183 // pred_check
          %p7649 = pneg %p946
        $region186: #{transformer_forward.1} parent=183 // pred_check_branch
          %7651 = sbr.rel (%p7649) target = $region188
        $region187: #{transformer_forward.1} parent=183 // pred_region
          %s7652 = sand.u32 %s931, 1
          %s7653 = scalar_lea.sflag [#allocation3], %s7652
          %s7654 = sand.u32 %s931, 1
          %s7655 = smul.addr %s7654, 8
          %s7656 = scalar_lea.vmem [#allocation2], %s7655
          %7657 = dma.done %s7653, 128
        $region188: #{transformer_forward.1} parent=183 // pred_fallthru
          _
      $region184: #{transformer_forward.1} parent=5 // pred_fallthru
        _
    $region6: #{transformer_forward.1} parent=1 // loop_footer
      %s92 = sadd.s32 1, %s88
    $region7: #{transformer_forward.1} parent=1 // loop_footer_branch
      %87 = sbr.rel target = $region3
    $region8: #{transformer_forward.1} parent=1 // loop_exit
      _
    %7658 = vsyncpa [#allocation3], 1
    %s7659 = scalar_lea.sflag [#allocation3], 1
    %7660 = vsyncpa %s7659, 1

</llo_original>
